<compile_context>
chip_gen: v7x
topology: tpu7x:2x2x1
jax: 0.10.0
libtpu: 0.0.40
codegen_flags: <defaults>
</compile_context>

<pallas_src>
import jax
import jax.numpy as jnp
from jax.experimental import pallas as pl
from jax.experimental.pallas import tpu as pltpu

# ----------------------------- synthetic config ------------------------------
N = 2            # batch
H = W = 16       # spatial size
CIN = 4          # image channels
CV = 32          # visual_feature_size
CQ = 32          # question_feature_size
SEQ = 8          # question length
VOCAB = 50       # vocab_words size
EMB = 16         # word-embedding dim
HID = 64         # classifier hidden size
NANS = 10        # number of answers
NANS_PAD = 128   # lane-dense padded logit width (sliced back to NANS in wrapper)
K = 3            # conv kernel size
HW = H * W

# TODO(synk): the original image/text/attention/fusion/classification factories
# are external; concrete small architectures were instantiated (see header).
# The use_attention=True (glimpse attention) branch is not implemented.


# ------------------------------ fused kernel ----------------------------------
def _vqars1_kernel(q_ref,                       # SMEM (N, SEQ) int32 token ids (scalar prefetch)
                   xp_ref,                      # (N, H+2, W+2, CIN) masked, zero-padded image
                   wc_ref, bc_ref,              # (K*K, CIN, CV), (1, CV)  conv weight / bias
                   emb_ref,                     # (VOCAB, EMB)
                   wq_ref, bq_ref,              # (EMB, CQ), (1, CQ)
                   w1_ref, b1_ref,              # (CV+CQ, HID), (1, HID)   classifier layer-1
                   w2_ref, b2_ref,              # (HID, NANS_PAD), (1, NANS_PAD)
                   o_ref):                      # (N, NANS_PAD) padded logits
    # --- visual path: 3x3 SAME conv lowered to 9 accumulated matmuls over
    #     shifted windows of the padded image (in-kernel im2col), then ReLU.
    acc = jnp.zeros((N * HW, CV), jnp.float32)
    for dy in range(K):
        for dx in range(K):
            a = xp_ref[:, dy:dy + H, dx:dx + W, :]        # (N, H, W, CIN) window load
            a = a.reshape(N * HW, CIN)                    # merge leading dims -> sublanes (free re-view)
            acc = acc + jnp.dot(a, wc_ref[dy * K + dx],
                                preferred_element_type=jnp.float32)
    feat = jnp.maximum(acc + bc_ref[...], 0.0)            # (N*HW, CV) f32

    # --- adaptive avg-pool to (N, CV): one cross-sublane mean per batch.
    v_feat = jnp.mean(feat.reshape(N, HW, CV), axis=1)    # (N, CV)

    # --- text path: bag-of-words embedding. Token ids live in SMEM; all N*SEQ
    #     dynamic row gathers are independent, then one balanced mean reduce.
    rows = []
    for b in range(N):
        for s in range(SEQ):
            tok = jnp.clip(q_ref[b, s], 0, VOCAB - 1)     # guard OOB ids (no VMEM bounds check)
            rows.append(emb_ref[pl.ds(tok, 1), :])        # (1, EMB)
    tok_emb = jnp.concatenate(rows, axis=0)               # (N*SEQ, EMB)
    bow = jnp.mean(tok_emb.reshape(N, SEQ, EMB), axis=1)  # (N, EMB)
    q_feat = jnp.tanh(
        jnp.dot(bow, wq_ref[...], preferred_element_type=jnp.float32) + bq_ref[...])  # (N, CQ)

    # --- fusion (concat) + classifier: Linear -> ReLU -> Linear (lane-dense).
    fused = jnp.concatenate([v_feat, q_feat], axis=1)     # (N, CV+CQ)
    h = jnp.maximum(
        jnp.dot(fused, w1_ref[...], preferred_element_type=jnp.float32) + b1_ref[...], 0.0)
    o_ref[...] = (jnp.dot(h, w2_ref[...], preferred_element_type=jnp.float32)
                  + b2_ref[...])                          # (N, NANS_PAD) unmasked store


# ------------------------------ pallas plumbing -------------------------------
def _vmem_spec(shape):
    nd = len(shape)
    # index_map receives (grid_idx, scalar_prefetch_ref); single block at origin.
    return pl.BlockSpec(shape, lambda i, q, _nd=nd: (0,) * _nd)


# ---------------------------------- params ------------------------------------
def init_params(key):
    ks = jax.random.split(key, 6)
    w2 = jax.random.normal(ks[4], (HID, NANS), jnp.float32) * 0.1
    return dict(
        # (dy, dx, cin) ordering matches the in-kernel window loop
        w_conv=(jax.random.normal(ks[0], (K, K, CIN, CV), jnp.float32) * 0.1
                ).reshape(K * K, CIN, CV),
        b_conv=jnp.zeros((1, CV), jnp.float32),
        emb=jax.random.normal(ks[1], (VOCAB, EMB), jnp.float32) * 0.1,
        w_q=jax.random.normal(ks[2], (EMB, CQ), jnp.float32) * 0.1,
        b_q=jnp.zeros((1, CQ), jnp.float32),
        # concat-fusion layer-1 weight: rows [0:CV] act on v_feat, [CV:] on q_feat
        w1=jax.random.normal(ks[3], (CV + CQ, HID), jnp.float32) * 0.1,
        b1=jnp.zeros((1, HID), jnp.float32),
        # lane-dense padded classifier head (cols NANS..127 are zero)
        w2=jnp.pad(w2, ((0, 0), (0, NANS_PAD - NANS))),
        b2=jnp.zeros((1, NANS_PAD), jnp.float32),
    )


# ---------------------------------- forward ------------------------------------
@jax.jit
def vqars1_forward(v, q, m, params):
    # v, m: (N, H, W, CIN) float32 ; q: (N, SEQ) int32
    # torch.mul(v, m) + SAME zero padding: one tiny fused XLA op (~10 KiB).
    # Patch extraction happens inside the kernel (no host-side im2col).
    xp = jnp.pad(v * m, ((0, 0), (1, 1), (1, 1), (0, 0)))   # (N, H+2, W+2, CIN)

    vmem_args = (xp,
                 params["w_conv"], params["b_conv"],
                 params["emb"], params["w_q"], params["b_q"],
                 params["w1"], params["b1"],
                 params["w2"], params["b2"])

    grid_spec = pltpu.PrefetchScalarGridSpec(
        num_scalar_prefetch=1,                 # q tokens -> SMEM
        grid=(1,),
        in_specs=[_vmem_spec(a.shape) for a in vmem_args],
        out_specs=_vmem_spec((N, NANS_PAD)),
    )
    logits_pad = pl.pallas_call(
        _vqars1_kernel,
        out_shape=jax.ShapeDtypeStruct((N, NANS_PAD), jnp.float32),
        grid_spec=grid_spec,
        compiler_params=pltpu.CompilerParams(
            dimension_semantics=("arbitrary",)),
    )(q.astype(jnp.int32), *vmem_args)
    return logits_pad[:, :NANS]


# ---------------------------------- main ---------------------------------------
if __name__ == "__main__":
    key = jax.random.PRNGKey(0)
    kv, km, kq, kp = jax.random.split(key, 4)

    v = jax.random.normal(kv, (N, H, W, CIN), jnp.float32)
    m = (jax.random.uniform(km, (N, H, W, CIN)) > 0.5).astype(jnp.float32)  # binary ROI mask
    q = jax.random.randint(kq, (N, SEQ), 0, VOCAB, dtype=jnp.int32)

    params = init_params(kp)

    logits = vqars1_forward(v, q, m, params)
    jax.block_until_ready(logits)
    assert logits.shape == (N, NANS) and logits.dtype == jnp.float32
    assert bool(jnp.all(jnp.isfinite(logits)))
    print("KERNEL_OK")
</pallas_src>

<mosaic_0001>
module attributes {stable_mosaic.version = 11 : i64} {
  func.func @_vqars1_kernel(%arg0: i32, %arg1: memref<2x8xi32, #tpu.memory_space<smem>>, %arg2: memref<2x18x18x4xf32, #tpu.memory_space<vmem>>, %arg3: memref<9x4x32xf32, #tpu.memory_space<vmem>>, %arg4: memref<1x32xf32, #tpu.memory_space<vmem>>, %arg5: memref<50x16xf32, #tpu.memory_space<vmem>>, %arg6: memref<16x32xf32, #tpu.memory_space<vmem>>, %arg7: memref<1x32xf32, #tpu.memory_space<vmem>>, %arg8: memref<64x64xf32, #tpu.memory_space<vmem>>, %arg9: memref<1x64xf32, #tpu.memory_space<vmem>>, %arg10: memref<64x128xf32, #tpu.memory_space<vmem>>, %arg11: memref<1x128xf32, #tpu.memory_space<vmem>>, %arg12: memref<2x128xf32, #tpu.memory_space<vmem>>) attributes {dimension_semantics = [#tpu.dimension_semantics<arbitrary>], iteration_bounds = array<i64: 1>, scalar_prefetch = 1 : i64, scratch_operands = 0 : i64, tpu.core_type = #tpu.core_type<tc>, window_params = [{pipeline_mode = #tpu.pipeline_mode<synchronous>, transform_indices = @transform_0, window_bounds = array<i64: 2, 18, 18, 4>}, {pipeline_mode = #tpu.pipeline_mode<synchronous>, transform_indices = @transform_1, window_bounds = array<i64: 9, 4, 32>}, {pipeline_mode = #tpu.pipeline_mode<synchronous>, transform_indices = @transform_2, window_bounds = array<i64: 1, 32>}, {pipeline_mode = #tpu.pipeline_mode<synchronous>, transform_indices = @transform_3, window_bounds = array<i64: 50, 16>}, {pipeline_mode = #tpu.pipeline_mode<synchronous>, transform_indices = @transform_4, window_bounds = array<i64: 16, 32>}, {pipeline_mode = #tpu.pipeline_mode<synchronous>, transform_indices = @transform_5, window_bounds = array<i64: 1, 32>}, {pipeline_mode = #tpu.pipeline_mode<synchronous>, transform_indices = @transform_6, window_bounds = array<i64: 64, 64>}, {pipeline_mode = #tpu.pipeline_mode<synchronous>, transform_indices = @transform_7, window_bounds = array<i64: 1, 64>}, {pipeline_mode = #tpu.pipeline_mode<synchronous>, transform_indices = @transform_8, window_bounds = array<i64: 64, 128>}, {pipeline_mode = #tpu.pipeline_mode<synchronous>, transform_indices = @transform_9, window_bounds = array<i64: 1, 128>}, {pipeline_mode = #tpu.pipeline_mode<synchronous>, transform_indices = @transform_10, window_bounds = array<i64: 2, 128>}]} {
    %cst = arith.constant 0.000000e+00 : f32
    %0 = vector.broadcast %cst : f32 to vector<512x32xf32>
    %c0 = arith.constant 0 : index
    %c0_0 = arith.constant 0 : index
    %c0_1 = arith.constant 0 : index
    %c0_2 = arith.constant 0 : index
    %1 = vector.load %arg2[%c0, %c0_0, %c0_1, %c0_2] : memref<2x18x18x4xf32, #tpu.memory_space<vmem>>, vector<2x16x16x4xf32>
    %2 = vector.shape_cast %1 : vector<2x16x16x4xf32> to vector<512x4xf32>
    %c0_3 = arith.constant 0 : index
    %c0_4 = arith.constant 0 : index
    %c0_5 = arith.constant 0 : index
    %3 = vector.load %arg3[%c0_3, %c0_4, %c0_5] : memref<9x4x32xf32, #tpu.memory_space<vmem>>, vector<1x4x32xf32>
    %4 = vector.shape_cast %3 : vector<1x4x32xf32> to vector<4x32xf32>
    %cst_6 = arith.constant dense<0.000000e+00> : vector<512x32xf32>
    %5 = tpu.matmul %2, %4, %cst_6 {dimension_numbers = #tpu.dot_dimension_numbers<[1], [0], [0], [1], [0, 0, 1, 1], [], []>} : vector<512x4xf32>, vector<4x32xf32>, vector<512x32xf32> -> vector<512x32xf32>
    %6 = arith.addf %0, %5 : vector<512x32xf32>
    %c0_7 = arith.constant 0 : index
    %c0_8 = arith.constant 0 : index
    %c1 = arith.constant 1 : index
    %c0_9 = arith.constant 0 : index
    %7 = vector.load %arg2[%c0_7, %c0_8, %c1, %c0_9] : memref<2x18x18x4xf32, #tpu.memory_space<vmem>>, vector<2x16x16x4xf32>
    %8 = vector.shape_cast %7 : vector<2x16x16x4xf32> to vector<512x4xf32>
    %c1_10 = arith.constant 1 : index
    %c0_11 = arith.constant 0 : index
    %c0_12 = arith.constant 0 : index
    %9 = vector.load %arg3[%c1_10, %c0_11, %c0_12] : memref<9x4x32xf32, #tpu.memory_space<vmem>>, vector<1x4x32xf32>
    %10 = vector.shape_cast %9 : vector<1x4x32xf32> to vector<4x32xf32>
    %cst_13 = arith.constant dense<0.000000e+00> : vector<512x32xf32>
    %11 = tpu.matmul %8, %10, %cst_13 {dimension_numbers = #tpu.dot_dimension_numbers<[1], [0], [0], [1], [0, 0, 1, 1], [], []>} : vector<512x4xf32>, vector<4x32xf32>, vector<512x32xf32> -> vector<512x32xf32>
    %12 = arith.addf %6, %11 : vector<512x32xf32>
    %c0_14 = arith.constant 0 : index
    %c0_15 = arith.constant 0 : index
    %c2 = arith.constant 2 : index
    %c0_16 = arith.constant 0 : index
    %13 = vector.load %arg2[%c0_14, %c0_15, %c2, %c0_16] : memref<2x18x18x4xf32, #tpu.memory_space<vmem>>, vector<2x16x16x4xf32>
    %14 = vector.shape_cast %13 : vector<2x16x16x4xf32> to vector<512x4xf32>
    %c2_17 = arith.constant 2 : index
    %c0_18 = arith.constant 0 : index
    %c0_19 = arith.constant 0 : index
    %15 = vector.load %arg3[%c2_17, %c0_18, %c0_19] : memref<9x4x32xf32, #tpu.memory_space<vmem>>, vector<1x4x32xf32>
    %16 = vector.shape_cast %15 : vector<1x4x32xf32> to vector<4x32xf32>
    %cst_20 = arith.constant dense<0.000000e+00> : vector<512x32xf32>
    %17 = tpu.matmul %14, %16, %cst_20 {dimension_numbers = #tpu.dot_dimension_numbers<[1], [0], [0], [1], [0, 0, 1, 1], [], []>} : vector<512x4xf32>, vector<4x32xf32>, vector<512x32xf32> -> vector<512x32xf32>
    %18 = arith.addf %12, %17 : vector<512x32xf32>
    %c0_21 = arith.constant 0 : index
    %c1_22 = arith.constant 1 : index
    %c0_23 = arith.constant 0 : index
    %c0_24 = arith.constant 0 : index
    %19 = vector.load %arg2[%c0_21, %c1_22, %c0_23, %c0_24] : memref<2x18x18x4xf32, #tpu.memory_space<vmem>>, vector<2x16x16x4xf32>
    %20 = vector.shape_cast %19 : vector<2x16x16x4xf32> to vector<512x4xf32>
    %c3 = arith.constant 3 : index
    %c0_25 = arith.constant 0 : index
    %c0_26 = arith.constant 0 : index
    %21 = vector.load %arg3[%c3, %c0_25, %c0_26] : memref<9x4x32xf32, #tpu.memory_space<vmem>>, vector<1x4x32xf32>
    %22 = vector.shape_cast %21 : vector<1x4x32xf32> to vector<4x32xf32>
    %cst_27 = arith.constant dense<0.000000e+00> : vector<512x32xf32>
    %23 = tpu.matmul %20, %22, %cst_27 {dimension_numbers = #tpu.dot_dimension_numbers<[1], [0], [0], [1], [0, 0, 1, 1], [], []>} : vector<512x4xf32>, vector<4x32xf32>, vector<512x32xf32> -> vector<512x32xf32>
    %24 = arith.addf %18, %23 : vector<512x32xf32>
    %c0_28 = arith.constant 0 : index
    %c1_29 = arith.constant 1 : index
    %c1_30 = arith.constant 1 : index
    %c0_31 = arith.constant 0 : index
    %25 = vector.load %arg2[%c0_28, %c1_29, %c1_30, %c0_31] : memref<2x18x18x4xf32, #tpu.memory_space<vmem>>, vector<2x16x16x4xf32>
    %26 = vector.shape_cast %25 : vector<2x16x16x4xf32> to vector<512x4xf32>
    %c4 = arith.constant 4 : index
    %c0_32 = arith.constant 0 : index
    %c0_33 = arith.constant 0 : index
    %27 = vector.load %arg3[%c4, %c0_32, %c0_33] : memref<9x4x32xf32, #tpu.memory_space<vmem>>, vector<1x4x32xf32>
    %28 = vector.shape_cast %27 : vector<1x4x32xf32> to vector<4x32xf32>
    %cst_34 = arith.constant dense<0.000000e+00> : vector<512x32xf32>
    %29 = tpu.matmul %26, %28, %cst_34 {dimension_numbers = #tpu.dot_dimension_numbers<[1], [0], [0], [1], [0, 0, 1, 1], [], []>} : vector<512x4xf32>, vector<4x32xf32>, vector<512x32xf32> -> vector<512x32xf32>
    %30 = arith.addf %24, %29 : vector<512x32xf32>
    %c0_35 = arith.constant 0 : index
    %c1_36 = arith.constant 1 : index
    %c2_37 = arith.constant 2 : index
    %c0_38 = arith.constant 0 : index
    %31 = vector.load %arg2[%c0_35, %c1_36, %c2_37, %c0_38] : memref<2x18x18x4xf32, #tpu.memory_space<vmem>>, vector<2x16x16x4xf32>
    %32 = vector.shape_cast %31 : vector<2x16x16x4xf32> to vector<512x4xf32>
    %c5 = arith.constant 5 : index
    %c0_39 = arith.constant 0 : index
    %c0_40 = arith.constant 0 : index
    %33 = vector.load %arg3[%c5, %c0_39, %c0_40] : memref<9x4x32xf32, #tpu.memory_space<vmem>>, vector<1x4x32xf32>
    %34 = vector.shape_cast %33 : vector<1x4x32xf32> to vector<4x32xf32>
    %cst_41 = arith.constant dense<0.000000e+00> : vector<512x32xf32>
    %35 = tpu.matmul %32, %34, %cst_41 {dimension_numbers = #tpu.dot_dimension_numbers<[1], [0], [0], [1], [0, 0, 1, 1], [], []>} : vector<512x4xf32>, vector<4x32xf32>, vector<512x32xf32> -> vector<512x32xf32>
    %36 = arith.addf %30, %35 : vector<512x32xf32>
    %c0_42 = arith.constant 0 : index
    %c2_43 = arith.constant 2 : index
    %c0_44 = arith.constant 0 : index
    %c0_45 = arith.constant 0 : index
    %37 = vector.load %arg2[%c0_42, %c2_43, %c0_44, %c0_45] : memref<2x18x18x4xf32, #tpu.memory_space<vmem>>, vector<2x16x16x4xf32>
    %38 = vector.shape_cast %37 : vector<2x16x16x4xf32> to vector<512x4xf32>
    %c6 = arith.constant 6 : index
    %c0_46 = arith.constant 0 : index
    %c0_47 = arith.constant 0 : index
    %39 = vector.load %arg3[%c6, %c0_46, %c0_47] : memref<9x4x32xf32, #tpu.memory_space<vmem>>, vector<1x4x32xf32>
    %40 = vector.shape_cast %39 : vector<1x4x32xf32> to vector<4x32xf32>
    %cst_48 = arith.constant dense<0.000000e+00> : vector<512x32xf32>
    %41 = tpu.matmul %38, %40, %cst_48 {dimension_numbers = #tpu.dot_dimension_numbers<[1], [0], [0], [1], [0, 0, 1, 1], [], []>} : vector<512x4xf32>, vector<4x32xf32>, vector<512x32xf32> -> vector<512x32xf32>
    %42 = arith.addf %36, %41 : vector<512x32xf32>
    %c0_49 = arith.constant 0 : index
    %c2_50 = arith.constant 2 : index
    %c1_51 = arith.constant 1 : index
    %c0_52 = arith.constant 0 : index
    %43 = vector.load %arg2[%c0_49, %c2_50, %c1_51, %c0_52] : memref<2x18x18x4xf32, #tpu.memory_space<vmem>>, vector<2x16x16x4xf32>
    %44 = vector.shape_cast %43 : vector<2x16x16x4xf32> to vector<512x4xf32>
    %c7 = arith.constant 7 : index
    %c0_53 = arith.constant 0 : index
    %c0_54 = arith.constant 0 : index
    %45 = vector.load %arg3[%c7, %c0_53, %c0_54] : memref<9x4x32xf32, #tpu.memory_space<vmem>>, vector<1x4x32xf32>
    %46 = vector.shape_cast %45 : vector<1x4x32xf32> to vector<4x32xf32>
    %cst_55 = arith.constant dense<0.000000e+00> : vector<512x32xf32>
    %47 = tpu.matmul %44, %46, %cst_55 {dimension_numbers = #tpu.dot_dimension_numbers<[1], [0], [0], [1], [0, 0, 1, 1], [], []>} : vector<512x4xf32>, vector<4x32xf32>, vector<512x32xf32> -> vector<512x32xf32>
    %48 = arith.addf %42, %47 : vector<512x32xf32>
    %c0_56 = arith.constant 0 : index
    %c2_57 = arith.constant 2 : index
    %c2_58 = arith.constant 2 : index
    %c0_59 = arith.constant 0 : index
    %49 = vector.load %arg2[%c0_56, %c2_57, %c2_58, %c0_59] : memref<2x18x18x4xf32, #tpu.memory_space<vmem>>, vector<2x16x16x4xf32>
    %50 = vector.shape_cast %49 : vector<2x16x16x4xf32> to vector<512x4xf32>
    %c8 = arith.constant 8 : index
    %c0_60 = arith.constant 0 : index
    %c0_61 = arith.constant 0 : index
    %51 = vector.load %arg3[%c8, %c0_60, %c0_61] : memref<9x4x32xf32, #tpu.memory_space<vmem>>, vector<1x4x32xf32>
    %52 = vector.shape_cast %51 : vector<1x4x32xf32> to vector<4x32xf32>
    %cst_62 = arith.constant dense<0.000000e+00> : vector<512x32xf32>
    %53 = tpu.matmul %50, %52, %cst_62 {dimension_numbers = #tpu.dot_dimension_numbers<[1], [0], [0], [1], [0, 0, 1, 1], [], []>} : vector<512x4xf32>, vector<4x32xf32>, vector<512x32xf32> -> vector<512x32xf32>
    %54 = arith.addf %48, %53 : vector<512x32xf32>
    %c0_63 = arith.constant 0 : index
    %c0_64 = arith.constant 0 : index
    %55 = vector.load %arg4[%c0_63, %c0_64] : memref<1x32xf32, #tpu.memory_space<vmem>>, vector<1x32xf32>
    %56 = vector.broadcast %55 : vector<1x32xf32> to vector<512x32xf32>
    %57 = arith.addf %54, %56 : vector<512x32xf32>
    %cst_65 = arith.constant 0.000000e+00 : f32
    %58 = vector.broadcast %cst_65 : f32 to vector<512x32xf32>
    %59 = arith.maximumf %57, %58 : vector<512x32xf32>
    %60 = vector.shape_cast %59 : vector<512x32xf32> to vector<2x256x32xf32>
    %cst_66 = arith.constant dense<0.000000e+00> : vector<2x32xf32>
    %61 = vector.multi_reduction <add>, %60, %cst_66 [1] : vector<2x256x32xf32> to vector<2x32xf32>
    %cst_67 = arith.constant 2.560000e+02 : f32
    %62 = vector.broadcast %cst_67 : f32 to vector<2x32xf32>
    %63 = arith.divf %61, %62 : vector<2x32xf32>
    %c0_68 = arith.constant 0 : index
    %c0_69 = arith.constant 0 : index
    %64 = memref.load %arg1[%c0_68, %c0_69] : memref<2x8xi32, #tpu.memory_space<smem>>
    %c0_i32 = arith.constant 0 : i32
    %c49_i32 = arith.constant 49 : i32
    %65 = arith.maxsi %c0_i32, %64 : i32
    %66 = arith.minsi %c49_i32, %65 : i32
    %67 = arith.index_cast %66 : i32 to index
    %c0_70 = arith.constant 0 : index
    %68 = vector.load %arg5[%67, %c0_70] : memref<50x16xf32, #tpu.memory_space<vmem>>, vector<1x16xf32>
    %c0_71 = arith.constant 0 : index
    %c1_72 = arith.constant 1 : index
    %69 = memref.load %arg1[%c0_71, %c1_72] : memref<2x8xi32, #tpu.memory_space<smem>>
    %c0_i32_73 = arith.constant 0 : i32
    %c49_i32_74 = arith.constant 49 : i32
    %70 = arith.maxsi %c0_i32_73, %69 : i32
    %71 = arith.minsi %c49_i32_74, %70 : i32
    %72 = arith.index_cast %71 : i32 to index
    %c0_75 = arith.constant 0 : index
    %73 = vector.load %arg5[%72, %c0_75] : memref<50x16xf32, #tpu.memory_space<vmem>>, vector<1x16xf32>
    %c0_76 = arith.constant 0 : index
    %c2_77 = arith.constant 2 : index
    %74 = memref.load %arg1[%c0_76, %c2_77] : memref<2x8xi32, #tpu.memory_space<smem>>
    %c0_i32_78 = arith.constant 0 : i32
    %c49_i32_79 = arith.constant 49 : i32
    %75 = arith.maxsi %c0_i32_78, %74 : i32
    %76 = arith.minsi %c49_i32_79, %75 : i32
    %77 = arith.index_cast %76 : i32 to index
    %c0_80 = arith.constant 0 : index
    %78 = vector.load %arg5[%77, %c0_80] : memref<50x16xf32, #tpu.memory_space<vmem>>, vector<1x16xf32>
    %c0_81 = arith.constant 0 : index
    %c3_82 = arith.constant 3 : index
    %79 = memref.load %arg1[%c0_81, %c3_82] : memref<2x8xi32, #tpu.memory_space<smem>>
    %c0_i32_83 = arith.constant 0 : i32
    %c49_i32_84 = arith.constant 49 : i32
    %80 = arith.maxsi %c0_i32_83, %79 : i32
    %81 = arith.minsi %c49_i32_84, %80 : i32
    %82 = arith.index_cast %81 : i32 to index
    %c0_85 = arith.constant 0 : index
    %83 = vector.load %arg5[%82, %c0_85] : memref<50x16xf32, #tpu.memory_space<vmem>>, vector<1x16xf32>
    %c0_86 = arith.constant 0 : index
    %c4_87 = arith.constant 4 : index
    %84 = memref.load %arg1[%c0_86, %c4_87] : memref<2x8xi32, #tpu.memory_space<smem>>
    %c0_i32_88 = arith.constant 0 : i32
    %c49_i32_89 = arith.constant 49 : i32
    %85 = arith.maxsi %c0_i32_88, %84 : i32
    %86 = arith.minsi %c49_i32_89, %85 : i32
    %87 = arith.index_cast %86 : i32 to index
    %c0_90 = arith.constant 0 : index
    %88 = vector.load %arg5[%87, %c0_90] : memref<50x16xf32, #tpu.memory_space<vmem>>, vector<1x16xf32>
    %c0_91 = arith.constant 0 : index
    %c5_92 = arith.constant 5 : index
    %89 = memref.load %arg1[%c0_91, %c5_92] : memref<2x8xi32, #tpu.memory_space<smem>>
    %c0_i32_93 = arith.constant 0 : i32
    %c49_i32_94 = arith.constant 49 : i32
    %90 = arith.maxsi %c0_i32_93, %89 : i32
    %91 = arith.minsi %c49_i32_94, %90 : i32
    %92 = arith.index_cast %91 : i32 to index
    %c0_95 = arith.constant 0 : index
    %93 = vector.load %arg5[%92, %c0_95] : memref<50x16xf32, #tpu.memory_space<vmem>>, vector<1x16xf32>
    %c0_96 = arith.constant 0 : index
    %c6_97 = arith.constant 6 : index
    %94 = memref.load %arg1[%c0_96, %c6_97] : memref<2x8xi32, #tpu.memory_space<smem>>
    %c0_i32_98 = arith.constant 0 : i32
    %c49_i32_99 = arith.constant 49 : i32
    %95 = arith.maxsi %c0_i32_98, %94 : i32
    %96 = arith.minsi %c49_i32_99, %95 : i32
    %97 = arith.index_cast %96 : i32 to index
    %c0_100 = arith.constant 0 : index
    %98 = vector.load %arg5[%97, %c0_100] : memref<50x16xf32, #tpu.memory_space<vmem>>, vector<1x16xf32>
    %c0_101 = arith.constant 0 : index
    %c7_102 = arith.constant 7 : index
    %99 = memref.load %arg1[%c0_101, %c7_102] : memref<2x8xi32, #tpu.memory_space<smem>>
    %c0_i32_103 = arith.constant 0 : i32
    %c49_i32_104 = arith.constant 49 : i32
    %100 = arith.maxsi %c0_i32_103, %99 : i32
    %101 = arith.minsi %c49_i32_104, %100 : i32
    %102 = arith.index_cast %101 : i32 to index
    %c0_105 = arith.constant 0 : index
    %103 = vector.load %arg5[%102, %c0_105] : memref<50x16xf32, #tpu.memory_space<vmem>>, vector<1x16xf32>
    %c1_106 = arith.constant 1 : index
    %c0_107 = arith.constant 0 : index
    %104 = memref.load %arg1[%c1_106, %c0_107] : memref<2x8xi32, #tpu.memory_space<smem>>
    %c0_i32_108 = arith.constant 0 : i32
    %c49_i32_109 = arith.constant 49 : i32
    %105 = arith.maxsi %c0_i32_108, %104 : i32
    %106 = arith.minsi %c49_i32_109, %105 : i32
    %107 = arith.index_cast %106 : i32 to index
    %c0_110 = arith.constant 0 : index
    %108 = vector.load %arg5[%107, %c0_110] : memref<50x16xf32, #tpu.memory_space<vmem>>, vector<1x16xf32>
    %c1_111 = arith.constant 1 : index
    %c1_112 = arith.constant 1 : index
    %109 = memref.load %arg1[%c1_111, %c1_112] : memref<2x8xi32, #tpu.memory_space<smem>>
    %c0_i32_113 = arith.constant 0 : i32
    %c49_i32_114 = arith.constant 49 : i32
    %110 = arith.maxsi %c0_i32_113, %109 : i32
    %111 = arith.minsi %c49_i32_114, %110 : i32
    %112 = arith.index_cast %111 : i32 to index
    %c0_115 = arith.constant 0 : index
    %113 = vector.load %arg5[%112, %c0_115] : memref<50x16xf32, #tpu.memory_space<vmem>>, vector<1x16xf32>
    %c1_116 = arith.constant 1 : index
    %c2_117 = arith.constant 2 : index
    %114 = memref.load %arg1[%c1_116, %c2_117] : memref<2x8xi32, #tpu.memory_space<smem>>
    %c0_i32_118 = arith.constant 0 : i32
    %c49_i32_119 = arith.constant 49 : i32
    %115 = arith.maxsi %c0_i32_118, %114 : i32
    %116 = arith.minsi %c49_i32_119, %115 : i32
    %117 = arith.index_cast %116 : i32 to index
    %c0_120 = arith.constant 0 : index
    %118 = vector.load %arg5[%117, %c0_120] : memref<50x16xf32, #tpu.memory_space<vmem>>, vector<1x16xf32>
    %c1_121 = arith.constant 1 : index
    %c3_122 = arith.constant 3 : index
    %119 = memref.load %arg1[%c1_121, %c3_122] : memref<2x8xi32, #tpu.memory_space<smem>>
    %c0_i32_123 = arith.constant 0 : i32
    %c49_i32_124 = arith.constant 49 : i32
    %120 = arith.maxsi %c0_i32_123, %119 : i32
    %121 = arith.minsi %c49_i32_124, %120 : i32
    %122 = arith.index_cast %121 : i32 to index
    %c0_125 = arith.constant 0 : index
    %123 = vector.load %arg5[%122, %c0_125] : memref<50x16xf32, #tpu.memory_space<vmem>>, vector<1x16xf32>
    %c1_126 = arith.constant 1 : index
    %c4_127 = arith.constant 4 : index
    %124 = memref.load %arg1[%c1_126, %c4_127] : memref<2x8xi32, #tpu.memory_space<smem>>
    %c0_i32_128 = arith.constant 0 : i32
    %c49_i32_129 = arith.constant 49 : i32
    %125 = arith.maxsi %c0_i32_128, %124 : i32
    %126 = arith.minsi %c49_i32_129, %125 : i32
    %127 = arith.index_cast %126 : i32 to index
    %c0_130 = arith.constant 0 : index
    %128 = vector.load %arg5[%127, %c0_130] : memref<50x16xf32, #tpu.memory_space<vmem>>, vector<1x16xf32>
    %c1_131 = arith.constant 1 : index
    %c5_132 = arith.constant 5 : index
    %129 = memref.load %arg1[%c1_131, %c5_132] : memref<2x8xi32, #tpu.memory_space<smem>>
    %c0_i32_133 = arith.constant 0 : i32
    %c49_i32_134 = arith.constant 49 : i32
    %130 = arith.maxsi %c0_i32_133, %129 : i32
    %131 = arith.minsi %c49_i32_134, %130 : i32
    %132 = arith.index_cast %131 : i32 to index
    %c0_135 = arith.constant 0 : index
    %133 = vector.load %arg5[%132, %c0_135] : memref<50x16xf32, #tpu.memory_space<vmem>>, vector<1x16xf32>
    %c1_136 = arith.constant 1 : index
    %c6_137 = arith.constant 6 : index
    %134 = memref.load %arg1[%c1_136, %c6_137] : memref<2x8xi32, #tpu.memory_space<smem>>
    %c0_i32_138 = arith.constant 0 : i32
    %c49_i32_139 = arith.constant 49 : i32
    %135 = arith.maxsi %c0_i32_138, %134 : i32
    %136 = arith.minsi %c49_i32_139, %135 : i32
    %137 = arith.index_cast %136 : i32 to index
    %c0_140 = arith.constant 0 : index
    %138 = vector.load %arg5[%137, %c0_140] : memref<50x16xf32, #tpu.memory_space<vmem>>, vector<1x16xf32>
    %c1_141 = arith.constant 1 : index
    %c7_142 = arith.constant 7 : index
    %139 = memref.load %arg1[%c1_141, %c7_142] : memref<2x8xi32, #tpu.memory_space<smem>>
    %c0_i32_143 = arith.constant 0 : i32
    %c49_i32_144 = arith.constant 49 : i32
    %140 = arith.maxsi %c0_i32_143, %139 : i32
    %141 = arith.minsi %c49_i32_144, %140 : i32
    %142 = arith.index_cast %141 : i32 to index
    %c0_145 = arith.constant 0 : index
    %143 = vector.load %arg5[%142, %c0_145] : memref<50x16xf32, #tpu.memory_space<vmem>>, vector<1x16xf32>
    %144 = tpu.concatenate %68, %73, %78, %83, %88, %93, %98, %103, %108, %113, %118, %123, %128, %133, %138, %143 in 0 : vector<1x16xf32>, vector<1x16xf32>, vector<1x16xf32>, vector<1x16xf32>, vector<1x16xf32>, vector<1x16xf32>, vector<1x16xf32>, vector<1x16xf32>, vector<1x16xf32>, vector<1x16xf32>, vector<1x16xf32>, vector<1x16xf32>, vector<1x16xf32>, vector<1x16xf32>, vector<1x16xf32>, vector<1x16xf32> -> vector<16x16xf32>
    %145 = vector.shape_cast %144 : vector<16x16xf32> to vector<2x8x16xf32>
    %cst_146 = arith.constant dense<0.000000e+00> : vector<2x16xf32>
    %146 = vector.multi_reduction <add>, %145, %cst_146 [1] : vector<2x8x16xf32> to vector<2x16xf32>
    %cst_147 = arith.constant 8.000000e+00 : f32
    %147 = vector.broadcast %cst_147 : f32 to vector<2x16xf32>
    %148 = arith.divf %146, %147 : vector<2x16xf32>
    %c0_148 = arith.constant 0 : index
    %c0_149 = arith.constant 0 : index
    %149 = vector.load %arg6[%c0_148, %c0_149] : memref<16x32xf32, #tpu.memory_space<vmem>>, vector<16x32xf32>
    %cst_150 = arith.constant dense<0.000000e+00> : vector<2x32xf32>
    %150 = tpu.matmul %148, %149, %cst_150 {dimension_numbers = #tpu.dot_dimension_numbers<[1], [0], [0], [1], [0, 0, 1, 1], [], []>} : vector<2x16xf32>, vector<16x32xf32>, vector<2x32xf32> -> vector<2x32xf32>
    %c0_151 = arith.constant 0 : index
    %c0_152 = arith.constant 0 : index
    %151 = vector.load %arg7[%c0_151, %c0_152] : memref<1x32xf32, #tpu.memory_space<vmem>>, vector<1x32xf32>
    %152 = vector.broadcast %151 : vector<1x32xf32> to vector<2x32xf32>
    %153 = arith.addf %150, %152 : vector<2x32xf32>
    %154 = math.tanh %153 : vector<2x32xf32>
    %155 = tpu.concatenate %63, %154 in 1 : vector<2x32xf32>, vector<2x32xf32> -> vector<2x64xf32>
    %c0_153 = arith.constant 0 : index
    %c0_154 = arith.constant 0 : index
    %156 = vector.load %arg8[%c0_153, %c0_154] : memref<64x64xf32, #tpu.memory_space<vmem>>, vector<64x64xf32>
    %cst_155 = arith.constant dense<0.000000e+00> : vector<2x64xf32>
    %157 = tpu.matmul %155, %156, %cst_155 {dimension_numbers = #tpu.dot_dimension_numbers<[1], [0], [0], [1], [0, 0, 1, 1], [], []>} : vector<2x64xf32>, vector<64x64xf32>, vector<2x64xf32> -> vector<2x64xf32>
    %c0_156 = arith.constant 0 : index
    %c0_157 = arith.constant 0 : index
    %158 = vector.load %arg9[%c0_156, %c0_157] : memref<1x64xf32, #tpu.memory_space<vmem>>, vector<1x64xf32>
    %159 = vector.broadcast %158 : vector<1x64xf32> to vector<2x64xf32>
    %160 = arith.addf %157, %159 : vector<2x64xf32>
    %cst_158 = arith.constant 0.000000e+00 : f32
    %161 = vector.broadcast %cst_158 : f32 to vector<2x64xf32>
    %162 = arith.maximumf %160, %161 : vector<2x64xf32>
    %c0_159 = arith.constant 0 : index
    %c0_160 = arith.constant 0 : index
    %163 = vector.load %arg10[%c0_159, %c0_160] : memref<64x128xf32, #tpu.memory_space<vmem>>, vector<64x128xf32>
    %cst_161 = arith.constant dense<0.000000e+00> : vector<2x128xf32>
    %164 = tpu.matmul %162, %163, %cst_161 {dimension_numbers = #tpu.dot_dimension_numbers<[1], [0], [0], [1], [0, 0, 1, 1], [], []>} : vector<2x64xf32>, vector<64x128xf32>, vector<2x128xf32> -> vector<2x128xf32>
    %c0_162 = arith.constant 0 : index
    %c0_163 = arith.constant 0 : index
    %165 = vector.load %arg11[%c0_162, %c0_163] : memref<1x128xf32, #tpu.memory_space<vmem>>, vector<1x128xf32>
    %166 = vector.broadcast %165 : vector<1x128xf32> to vector<2x128xf32>
    %167 = arith.addf %164, %166 : vector<2x128xf32>
    %c0_164 = arith.constant 0 : index
    %c0_165 = arith.constant 0 : index
    %168 = vector.load %arg12[%c0_164, %c0_165] : memref<2x128xf32, #tpu.memory_space<vmem>>, vector<2x128xf32>
    tpu.vector_store %arg12[%c0_164, %c0_165], %167 {strides = array<i32>} : memref<2x128xf32, #tpu.memory_space<vmem>>, vector<2x128xf32>,
    return
  }
  func.func @transform_0(%arg0: i32, %arg1: memref<2x8xi32, #tpu.memory_space<smem>>) -> (i32, i32, i32, i32) {
    %c0_i32 = arith.constant 0 : i32
    %c0_i32_0 = arith.constant 0 : i32
    %c0_i32_1 = arith.constant 0 : i32
    %c0_i32_2 = arith.constant 0 : i32
    %c0_i32_3 = arith.constant 0 : i32
    return %c0_i32, %c0_i32_0, %c0_i32_1, %c0_i32_2 : i32, i32, i32, i32
  }
  func.func @transform_1(%arg0: i32, %arg1: memref<2x8xi32, #tpu.memory_space<smem>>) -> (i32, i32, i32) {
    %c0_i32 = arith.constant 0 : i32
    %c0_i32_0 = arith.constant 0 : i32
    %c0_i32_1 = arith.constant 0 : i32
    %c0_i32_2 = arith.constant 0 : i32
    return %c0_i32, %c0_i32_0, %c0_i32_1 : i32, i32, i32
  }
  func.func @transform_2(%arg0: i32, %arg1: memref<2x8xi32, #tpu.memory_space<smem>>) -> (i32, i32) {
    %c0_i32 = arith.constant 0 : i32
    %c0_i32_0 = arith.constant 0 : i32
    %c0_i32_1 = arith.constant 0 : i32
    return %c0_i32, %c0_i32_0 : i32, i32
  }
  func.func @transform_3(%arg0: i32, %arg1: memref<2x8xi32, #tpu.memory_space<smem>>) -> (i32, i32) {
    %c0_i32 = arith.constant 0 : i32
    %c0_i32_0 = arith.constant 0 : i32
    %c0_i32_1 = arith.constant 0 : i32
    return %c0_i32, %c0_i32_0 : i32, i32
  }
  func.func @transform_4(%arg0: i32, %arg1: memref<2x8xi32, #tpu.memory_space<smem>>) -> (i32, i32) {
    %c0_i32 = arith.constant 0 : i32
    %c0_i32_0 = arith.constant 0 : i32
    %c0_i32_1 = arith.constant 0 : i32
    return %c0_i32, %c0_i32_0 : i32, i32
  }
  func.func @transform_5(%arg0: i32, %arg1: memref<2x8xi32, #tpu.memory_space<smem>>) -> (i32, i32) {
    %c0_i32 = arith.constant 0 : i32
    %c0_i32_0 = arith.constant 0 : i32
    %c0_i32_1 = arith.constant 0 : i32
    return %c0_i32, %c0_i32_0 : i32, i32
  }
  func.func @transform_6(%arg0: i32, %arg1: memref<2x8xi32, #tpu.memory_space<smem>>) -> (i32, i32) {
    %c0_i32 = arith.constant 0 : i32
    %c0_i32_0 = arith.constant 0 : i32
    %c0_i32_1 = arith.constant 0 : i32
    return %c0_i32, %c0_i32_0 : i32, i32
  }
  func.func @transform_7(%arg0: i32, %arg1: memref<2x8xi32, #tpu.memory_space<smem>>) -> (i32, i32) {
    %c0_i32 = arith.constant 0 : i32
    %c0_i32_0 = arith.constant 0 : i32
    %c0_i32_1 = arith.constant 0 : i32
    return %c0_i32, %c0_i32_0 : i32, i32
  }
  func.func @transform_8(%arg0: i32, %arg1: memref<2x8xi32, #tpu.memory_space<smem>>) -> (i32, i32) {
    %c0_i32 = arith.constant 0 : i32
    %c0_i32_0 = arith.constant 0 : i32
    %c0_i32_1 = arith.constant 0 : i32
    return %c0_i32, %c0_i32_0 : i32, i32
  }
  func.func @transform_9(%arg0: i32, %arg1: memref<2x8xi32, #tpu.memory_space<smem>>) -> (i32, i32) {
    %c0_i32 = arith.constant 0 : i32
    %c0_i32_0 = arith.constant 0 : i32
    %c0_i32_1 = arith.constant 0 : i32
    return %c0_i32, %c0_i32_0 : i32, i32
  }
  func.func @transform_10(%arg0: i32, %arg1: memref<2x8xi32, #tpu.memory_space<smem>>) -> (i32, i32) {
    %c0_i32 = arith.constant 0 : i32
    %c0_i32_0 = arith.constant 0 : i32
    %c0_i32_1 = arith.constant 0 : i32
    return %c0_i32, %c0_i32_0 : i32, i32
  }
}

</mosaic_0001>

<llo_original>
// kernel: vqars1_forward.1
$region0: #{vqars1_forward.1}
  #allocation0 [shape = 'u32[]', space=smem, size = 0x4, offset = 0x4, fixed_abs, tag = 'smem constant byte address 0x4 - core index']
  #allocation1 [shape = 'u32[144,128]{1,0:T(1,128)}', space=vmem, size = 0x12000, scoped, tag = 'internal scratch']
  #allocation2 [shape = 's32[1]{0}', space=sflag, size = 0x4, scoped, tag = 'scoped memory for vqars1_forward.1']
  #allocation3 [shape = 'u8[1024]{0}', space=smem, size = 0x400, scoped, tag = 'prefetched SMEM operand 0']
  %s0 = inlined_call_operand.vmem [shape: s32[2,8], index: 0, kind: input, shape index: {}]
  %s1 = inlined_call_operand.vmem [shape: f32[2,18,18,4], index: 1, kind: input, shape index: {}]
  %s2 = inlined_call_operand.vmem [shape: f32[9,4,32], index: 2, kind: input, shape index: {}]
  %s3 = inlined_call_operand.vmem [shape: f32[1,32], index: 3, kind: input, shape index: {}]
  %s4 = inlined_call_operand.vmem [shape: f32[50,16], index: 4, kind: input, shape index: {}]
  %s5 = inlined_call_operand.vmem [shape: f32[16,32], index: 5, kind: input, shape index: {}]
  %s6 = inlined_call_operand.vmem [shape: f32[1,32], index: 6, kind: input, shape index: {}]
  %s7 = inlined_call_operand.vmem [shape: f32[64,64], index: 7, kind: input, shape index: {}]
  %s8 = inlined_call_operand.vmem [shape: f32[1,64], index: 8, kind: input, shape index: {}]
  %s9 = inlined_call_operand.vmem [shape: f32[64,128], index: 9, kind: input, shape index: {}]
  %s10 = inlined_call_operand.vmem [shape: f32[1,128], index: 10, kind: input, shape index: {}]
  %s11 = inlined_call_operand.hbm [shape: f32[2,128], index: 11, kind: output, shape index: {}]
  %s12 = sld [smem:[#allocation0]]
  $region50: #{vqars1_forward.1} parent=0
    _
  %s14 = ssub.s32 1, %s12
  %s15 = scalar_select 0, %s14, %s12
  %s16 = sshll.u32 %s0, 4
  %s17 = int_to_ptr.vmem [resolvable:$true] %s16
  %19 = dma.vmem_to_smem %s17, 32, [#allocation3], [#allocation2]
  %20 = dma.done [#allocation2], 32
  %21 = sfence
  $region1: #{vqars1_forward.1} parent=0
    #allocation4 [shape = 'u8[1024]{0}', space=vmem, size = 0x400, scoped, tag = 'output window, operand 0, single buffered']
    #allocation5 [shape = 's32[1]{0}', space=sflag, size = 0x4, scoped, tag = 'scoped memory for vqars1_forward.1']
    %22 = vsyncpa [#allocation5], 0
    // Predicated region
    $region2: #{vqars1_forward.1} parent=1 // pred_check
      _
    $region3: #{vqars1_forward.1} parent=1 // pred_check_branch
      %24 = sbr.rel (0) target = $region5
    $region4: #{vqars1_forward.1} parent=1 // pred_region
      _
    $region5: #{vqars1_forward.1} parent=1 // pred_fallthru
      _
    // Predicated region
    $region6: #{vqars1_forward.1} parent=1 // pred_check
      _
    $region7: #{vqars1_forward.1} parent=1 // pred_check_branch
      %26 = sbr.rel (0) target = $region9
    $region8: #{vqars1_forward.1} parent=1 // pred_region
      _
    $region9: #{vqars1_forward.1} parent=1 // pred_fallthru
      _
    // Predicated region
    $region10: #{vqars1_forward.1} parent=1 // pred_check
      _
    $region11: #{vqars1_forward.1} parent=1 // pred_check_branch
      %28 = sbr.rel (0) target = $region13
    $region12: #{vqars1_forward.1} parent=1 // pred_region
      _
    $region13: #{vqars1_forward.1} parent=1 // pred_fallthru
      _
    // Predicated region
    $region14: #{vqars1_forward.1} parent=1 // pred_check
      _
    $region15: #{vqars1_forward.1} parent=1 // pred_check_branch
      %30 = sbr.rel (0) target = $region17
    $region16: #{vqars1_forward.1} parent=1 // pred_region
      _
    $region17: #{vqars1_forward.1} parent=1 // pred_fallthru
      _
    // Predicated region
    $region18: #{vqars1_forward.1} parent=1 // pred_check
      _
    $region19: #{vqars1_forward.1} parent=1 // pred_check_branch
      %32 = sbr.rel (0) target = $region21
    $region20: #{vqars1_forward.1} parent=1 // pred_region
      _
    $region21: #{vqars1_forward.1} parent=1 // pred_fallthru
      _
    // Predicated region
    $region22: #{vqars1_forward.1} parent=1 // pred_check
      _
    $region23: #{vqars1_forward.1} parent=1 // pred_check_branch
      %34 = sbr.rel (0) target = $region25
    $region24: #{vqars1_forward.1} parent=1 // pred_region
      _
    $region25: #{vqars1_forward.1} parent=1 // pred_fallthru
      _
    // Predicated region
    $region26: #{vqars1_forward.1} parent=1 // pred_check
      _
    $region27: #{vqars1_forward.1} parent=1 // pred_check_branch
      %36 = sbr.rel (0) target = $region29
    $region28: #{vqars1_forward.1} parent=1 // pred_region
      _
    $region29: #{vqars1_forward.1} parent=1 // pred_fallthru
      _
    // Predicated region
    $region30: #{vqars1_forward.1} parent=1 // pred_check
      _
    $region31: #{vqars1_forward.1} parent=1 // pred_check_branch
      %38 = sbr.rel (0) target = $region33
    $region32: #{vqars1_forward.1} parent=1 // pred_region
      _
    $region33: #{vqars1_forward.1} parent=1 // pred_fallthru
      _
    // Predicated region
    $region34: #{vqars1_forward.1} parent=1 // pred_check
      _
    $region35: #{vqars1_forward.1} parent=1 // pred_check_branch
      %40 = sbr.rel (0) target = $region37
    $region36: #{vqars1_forward.1} parent=1 // pred_region
      _
    $region37: #{vqars1_forward.1} parent=1 // pred_fallthru
      _
    // Predicated region
    $region38: #{vqars1_forward.1} parent=1 // pred_check
      _
    $region39: #{vqars1_forward.1} parent=1 // pred_check_branch
      %42 = sbr.rel (0) target = $region41
    $region40: #{vqars1_forward.1} parent=1 // pred_region
      _
    $region41: #{vqars1_forward.1} parent=1 // pred_fallthru
      _
    %v43 = vld [vmem:[%s1] sm:$0xff]
    %v44 = vld [vmem:[%s1 + $0x8] sm:$0xff]
    %v45 = vld [vmem:[%s1 + $0x18] sm:$0xff]
    %v46 = vld [vmem:[%s1 + $0x20] sm:$0xff]
    %v47 = vld [vmem:[%s1 + $0x30] sm:$0xff]
    %v48 = vld [vmem:[%s1 + $0x38] sm:$0xff]
    %v49 = vld [vmem:[%s1 + $0x48] sm:$0xff]
    %v50 = vld [vmem:[%s1 + $0x50] sm:$0xff]
    %v51 = vld [vmem:[%s1 + $0x60] sm:$0xff]
    %v52 = vld [vmem:[%s1 + $0x68] sm:$0xff]
    %v53 = vld [vmem:[%s1 + $0x78] sm:$0xff]
    %v54 = vld [vmem:[%s1 + $0x80] sm:$0xff]
    %v55 = vld [vmem:[%s1 + $0x90] sm:$0xff]
    %v56 = vld [vmem:[%s1 + $0x98] sm:$0xff]
    %v57 = vld [vmem:[%s1 + $0xa8] sm:$0xff]
    %v58 = vld [vmem:[%s1 + $0xb0] sm:$0xff]
    %v59 = vld [vmem:[%s1 + $0xc0] sm:$0xff]
    %v60 = vld [vmem:[%s1 + $0xc8] sm:$0xff]
    %v61 = vld [vmem:[%s1 + $0xd8] sm:$0xff]
    %v62 = vld [vmem:[%s1 + $0xe0] sm:$0xff]
    %v63 = vld [vmem:[%s1 + $0xf0] sm:$0xff]
    %v64 = vld [vmem:[%s1 + $0xf8] sm:$0xff]
    %v65 = vld [vmem:[%s1 + $0x108] sm:$0xff]
    %v66 = vld [vmem:[%s1 + $0x110] sm:$0xff]
    %v67 = vld [vmem:[%s1 + $0x120] sm:$0xff]
    %v68 = vld [vmem:[%s1 + $0x128] sm:$0xff]
    %v69 = vld [vmem:[%s1 + $0x138] sm:$0xff]
    %v70 = vld [vmem:[%s1 + $0x140] sm:$0xff]
    %v71 = vld [vmem:[%s1 + $0x150] sm:$0xff]
    %v72 = vld [vmem:[%s1 + $0x158] sm:$0xff]
    %v73 = vld [vmem:[%s1 + $0x168] sm:$0xff]
    %v74 = vld [vmem:[%s1 + $0x170] sm:$0xff]
    %v75 = vld [vmem:[%s1 + $0x1b0] sm:$0xff]
    %v76 = vld [vmem:[%s1 + $0x1b8] sm:$0xff]
    %v77 = vld [vmem:[%s1 + $0x1c8] sm:$0xff]
    %v78 = vld [vmem:[%s1 + $0x1d0] sm:$0xff]
    %v79 = vld [vmem:[%s1 + $0x1e0] sm:$0xff]
    %v80 = vld [vmem:[%s1 + $0x1e8] sm:$0xff]
    %v81 = vld [vmem:[%s1 + $0x1f8] sm:$0xff]
    %v82 = vld [vmem:[%s1 + $0x200] sm:$0xff]
    %v83 = vld [vmem:[%s1 + $0x210] sm:$0xff]
    %v84 = vld [vmem:[%s1 + $0x218] sm:$0xff]
    %v85 = vld [vmem:[%s1 + $0x228] sm:$0xff]
    %v86 = vld [vmem:[%s1 + $0x230] sm:$0xff]
    %v87 = vld [vmem:[%s1 + $0x240] sm:$0xff]
    %v88 = vld [vmem:[%s1 + $0x248] sm:$0xff]
    %v89 = vld [vmem:[%s1 + $0x258] sm:$0xff]
    %v90 = vld [vmem:[%s1 + $0x260] sm:$0xff]
    %v91 = vld [vmem:[%s1 + $0x270] sm:$0xff]
    %v92 = vld [vmem:[%s1 + $0x278] sm:$0xff]
    %v93 = vld [vmem:[%s1 + $0x288] sm:$0xff]
    %v94 = vld [vmem:[%s1 + $0x290] sm:$0xff]
    %v95 = vld [vmem:[%s1 + $0x2a0] sm:$0xff]
    %v96 = vld [vmem:[%s1 + $0x2a8] sm:$0xff]
    %v97 = vld [vmem:[%s1 + $0x2b8] sm:$0xff]
    %v98 = vld [vmem:[%s1 + $0x2c0] sm:$0xff]
    %v99 = vld [vmem:[%s1 + $0x2d0] sm:$0xff]
    %v100 = vld [vmem:[%s1 + $0x2d8] sm:$0xff]
    %v101 = vld [vmem:[%s1 + $0x2e8] sm:$0xff]
    %v102 = vld [vmem:[%s1 + $0x2f0] sm:$0xff]
    %v103 = vld [vmem:[%s1 + $0x300] sm:$0xff]
    %v104 = vld [vmem:[%s1 + $0x308] sm:$0xff]
    %v105 = vld [vmem:[%s1 + $0x318] sm:$0xff]
    %v106 = vld [vmem:[%s1 + $0x320] sm:$0xff]
    %v107 = vld [vmem:[%s2] sm:$0xf]
    %v108 = vld [vmem:[%s1 + $0x1] sm:$0xff]
    %v109 = vld [vmem:[%s1 + $0x9] sm:$0xff]
    %v110 = vld [vmem:[%s1 + $0x19] sm:$0xff]
    %v111 = vld [vmem:[%s1 + $0x21] sm:$0xff]
    %v112 = vld [vmem:[%s1 + $0x31] sm:$0xff]
    %v113 = vld [vmem:[%s1 + $0x39] sm:$0xff]
    %v114 = vld [vmem:[%s1 + $0x49] sm:$0xff]
    %v115 = vld [vmem:[%s1 + $0x51] sm:$0xff]
    %v116 = vld [vmem:[%s1 + $0x61] sm:$0xff]
    %v117 = vld [vmem:[%s1 + $0x69] sm:$0xff]
    %v118 = vld [vmem:[%s1 + $0x79] sm:$0xff]
    %v119 = vld [vmem:[%s1 + $0x81] sm:$0xff]
    %v120 = vld [vmem:[%s1 + $0x91] sm:$0xff]
    %v121 = vld [vmem:[%s1 + $0x99] sm:$0xff]
    %v122 = vld [vmem:[%s1 + $0xa9] sm:$0xff]
    %v123 = vld [vmem:[%s1 + $0xb1] sm:$0xff]
    %v124 = vld [vmem:[%s1 + $0xc1] sm:$0xff]
    %v125 = vld [vmem:[%s1 + $0xc9] sm:$0xff]
    %v126 = vld [vmem:[%s1 + $0xd9] sm:$0xff]
    %v127 = vld [vmem:[%s1 + $0xe1] sm:$0xff]
    %v128 = vld [vmem:[%s1 + $0xf1] sm:$0xff]
    %v129 = vld [vmem:[%s1 + $0xf9] sm:$0xff]
    %v130 = vld [vmem:[%s1 + $0x109] sm:$0xff]
    %v131 = vld [vmem:[%s1 + $0x111] sm:$0xff]
    %v132 = vld [vmem:[%s1 + $0x121] sm:$0xff]
    %v133 = vld [vmem:[%s1 + $0x129] sm:$0xff]
    %v134 = vld [vmem:[%s1 + $0x139] sm:$0xff]
    %v135 = vld [vmem:[%s1 + $0x141] sm:$0xff]
    %v136 = vld [vmem:[%s1 + $0x151] sm:$0xff]
    %v137 = vld [vmem:[%s1 + $0x159] sm:$0xff]
    %v138 = vld [vmem:[%s1 + $0x169] sm:$0xff]
    %v139 = vld [vmem:[%s1 + $0x171] sm:$0xff]
    %v140 = vld [vmem:[%s1 + $0x1b1] sm:$0xff]
    %v141 = vld [vmem:[%s1 + $0x1b9] sm:$0xff]
    %v142 = vld [vmem:[%s1 + $0x1c9] sm:$0xff]
    %v143 = vld [vmem:[%s1 + $0x1d1] sm:$0xff]
    %v144 = vld [vmem:[%s1 + $0x1e1] sm:$0xff]
    %v145 = vld [vmem:[%s1 + $0x1e9] sm:$0xff]
    %v146 = vld [vmem:[%s1 + $0x1f9] sm:$0xff]
    %v147 = vld [vmem:[%s1 + $0x201] sm:$0xff]
    %v148 = vld [vmem:[%s1 + $0x211] sm:$0xff]
    %v149 = vld [vmem:[%s1 + $0x219] sm:$0xff]
    %v150 = vld [vmem:[%s1 + $0x229] sm:$0xff]
    %v151 = vld [vmem:[%s1 + $0x231] sm:$0xff]
    %v152 = vld [vmem:[%s1 + $0x241] sm:$0xff]
    %v153 = vld [vmem:[%s1 + $0x249] sm:$0xff]
    %v154 = vld [vmem:[%s1 + $0x259] sm:$0xff]
    %v155 = vld [vmem:[%s1 + $0x261] sm:$0xff]
    %v156 = vld [vmem:[%s1 + $0x271] sm:$0xff]
    %v157 = vld [vmem:[%s1 + $0x279] sm:$0xff]
    %v158 = vld [vmem:[%s1 + $0x289] sm:$0xff]
    %v159 = vld [vmem:[%s1 + $0x291] sm:$0xff]
    %v160 = vld [vmem:[%s1 + $0x2a1] sm:$0xff]
    %v161 = vld [vmem:[%s1 + $0x2a9] sm:$0xff]
    %v162 = vld [vmem:[%s1 + $0x2b9] sm:$0xff]
    %v163 = vld [vmem:[%s1 + $0x2c1] sm:$0xff]
    %v164 = vld [vmem:[%s1 + $0x2d1] sm:$0xff]
    %v165 = vld [vmem:[%s1 + $0x2d9] sm:$0xff]
    %v166 = vld [vmem:[%s1 + $0x2e9] sm:$0xff]
    %v167 = vld [vmem:[%s1 + $0x2f1] sm:$0xff]
    %v168 = vld [vmem:[%s1 + $0x301] sm:$0xff]
    %v169 = vld [vmem:[%s1 + $0x309] sm:$0xff]
    %v170 = vld [vmem:[%s1 + $0x319] sm:$0xff]
    %v171 = vld [vmem:[%s1 + $0x321] sm:$0xff]
    %s172 = scalar_lea.vmem %s2, 4
    %v173 = vld [vmem:[%s172] sm:$0xf]
    %vm174 = vcmask 31744
    %v176 = vsel %vm174, %v108, 0
    %v179 = vsel %vm174, %v109, 0
    %v182 = vsel %vm174, %v110, 0
    %v185 = vsel %vm174, %v111, 0
    %v188 = vsel %vm174, %v112, 0
    %v191 = vsel %vm174, %v113, 0
    %v194 = vsel %vm174, %v114, 0
    %v197 = vsel %vm174, %v115, 0
    %v200 = vsel %vm174, %v116, 0
    %v203 = vsel %vm174, %v117, 0
    %v206 = vsel %vm174, %v118, 0
    %v209 = vsel %vm174, %v119, 0
    %v212 = vsel %vm174, %v120, 0
    %v215 = vsel %vm174, %v121, 0
    %v218 = vsel %vm174, %v122, 0
    %v221 = vsel %vm174, %v123, 0
    %v224 = vsel %vm174, %v124, 0
    %v227 = vsel %vm174, %v125, 0
    %v230 = vsel %vm174, %v126, 0
    %v233 = vsel %vm174, %v127, 0
    %v236 = vsel %vm174, %v128, 0
    %v239 = vsel %vm174, %v129, 0
    %v242 = vsel %vm174, %v130, 0
    %v245 = vsel %vm174, %v131, 0
    %v248 = vsel %vm174, %v132, 0
    %v251 = vsel %vm174, %v133, 0
    %v254 = vsel %vm174, %v134, 0
    %v257 = vsel %vm174, %v135, 0
    %v260 = vsel %vm174, %v136, 0
    %v263 = vsel %vm174, %v137, 0
    %v266 = vsel %vm174, %v138, 0
    %v269 = vsel %vm174, %v139, 0
    %v272 = vsel %vm174, %v140, 0
    %v275 = vsel %vm174, %v141, 0
    %v278 = vsel %vm174, %v142, 0
    %v281 = vsel %vm174, %v143, 0
    %v284 = vsel %vm174, %v144, 0
    %v287 = vsel %vm174, %v145, 0
    %v290 = vsel %vm174, %v146, 0
    %v293 = vsel %vm174, %v147, 0
    %v296 = vsel %vm174, %v148, 0
    %v299 = vsel %vm174, %v149, 0
    %v302 = vsel %vm174, %v150, 0
    %v305 = vsel %vm174, %v151, 0
    %v308 = vsel %vm174, %v152, 0
    %v311 = vsel %vm174, %v153, 0
    %v314 = vsel %vm174, %v154, 0
    %v317 = vsel %vm174, %v155, 0
    %v320 = vsel %vm174, %v156, 0
    %v323 = vsel %vm174, %v157, 0
    %v326 = vsel %vm174, %v158, 0
    %v329 = vsel %vm174, %v159, 0
    %v332 = vsel %vm174, %v160, 0
    %v335 = vsel %vm174, %v161, 0
    %v338 = vsel %vm174, %v162, 0
    %v341 = vsel %vm174, %v163, 0
    %v344 = vsel %vm174, %v164, 0
    %v347 = vsel %vm174, %v165, 0
    %v350 = vsel %vm174, %v166, 0
    %v353 = vsel %vm174, %v167, 0
    %v356 = vsel %vm174, %v168, 0
    %v359 = vsel %vm174, %v169, 0
    %v362 = vsel %vm174, %v170, 0
    %v365 = vsel %vm174, %v171, 0
    %vm367 = vcmask 1043456
    %v369 = vsel %vm367, %v173, 0
    %371 = vmatprep.subr.mxu0 0.0
    %372 = vmatpush1.msra.mxu0 %v369
    %373 = vmatprep.subr.mxu0 0.0
    %374 = vmatpush1.msra.mxu0 0.0
    %375 = vmatprep.subr.mxu0 0.0
    %376 = vmatpush1.msra.mxu0 0.0
    %377 = vmatprep.subr.mxu0 0.0
    %378 = vmatpush1.msra.mxu0 0.0
    %379 = vmatprep.subr.mxu0 0.0
    %380 = vmatpush1.msra.mxu0 0.0
    %381 = vmatprep.subr.mxu0 0.0
    %382 = vmatpush1.msra.mxu0 0.0
    %383 = vmatprep.subr.mxu0 0.0
    %384 = vmatpush1.msra.mxu0 0.0
    %385 = vmatprep.subr.mxu0 0.0
    %386 = vmatpush1.msra.mxu0 0.0
    %387 = vmatprep.subr.mxu0 0.0
    %388 = vmatpush1.msra.mxu0 0.0
    %389 = vmatprep.subr.mxu0 0.0
    %390 = vmatpush1.msra.mxu0 0.0
    %391 = vmatprep.subr.mxu0 0.0
    %392 = vmatpush1.msra.mxu0 0.0
    %393 = vmatprep.subr.mxu0 0.0
    %394 = vmatpush1.msra.mxu0 0.0
    %395 = vmatprep.subr.mxu0 0.0
    %396 = vmatpush1.msra.mxu0 0.0
    %397 = vmatprep.subr.mxu0 0.0
    %398 = vmatpush1.msra.mxu0 0.0
    %399 = vmatprep.subr.mxu0 0.0
    %400 = vmatpush1.msra.mxu0 0.0
    %401 = vmatprep.subr.mxu0 0.0
    %402 = vmatpush1.msra.mxu0 0.0
    %403 = vmatprep.subr.mxu0 0.0
    %404 = vmatpush1.msra.mxu0 0.0
    %405 = vmatprep.subr.mxu0 0.0
    %406 = vmatpush1.msra.mxu0 0.0
    %407 = vmatprep.subr.mxu0 0.0
    %408 = vmatpush1.msra.mxu0 0.0
    %409 = vmatprep.subr.mxu0 0.0
    %410 = vmatpush1.msra.mxu0 0.0
    %411 = vmatprep.subr.mxu0 0.0
    %412 = vmatpush1.msra.mxu0 0.0
    %413 = vmatprep.subr.mxu0 0.0
    %414 = vmatpush1.msra.mxu0 0.0
    %415 = vmatprep.subr.mxu0 0.0
    %416 = vmatpush1.msra.mxu0 0.0
    %417 = vmatprep.subr.mxu0 0.0
    %418 = vmatpush1.msra.mxu0 0.0
    %419 = vmatprep.subr.mxu0 0.0
    %420 = vmatpush1.msra.mxu0 0.0
    %421 = vmatprep.subr.mxu0 0.0
    %422 = vmatpush1.msra.mxu0 0.0
    %423 = vmatprep.subr.mxu0 0.0
    %424 = vmatpush1.msra.mxu0 0.0
    %425 = vmatprep.subr.mxu0 0.0
    %426 = vmatpush1.msra.mxu0 0.0
    %427 = vmatprep.subr.mxu0 0.0
    %428 = vmatpush1.msra.mxu0 0.0
    %429 = vmatprep.subr.mxu0 0.0
    %430 = vmatpush1.msra.mxu0 0.0
    %431 = vmatprep.subr.mxu0 0.0
    %432 = vmatpush1.msra.mxu0 0.0
    %433 = vmatprep.subr.mxu0 0.0
    %434 = vmatpush1.msra.mxu0 0.0
    %435 = vmatprep.mubr.f32.mxu0 0.0
    %436 = vmatmul.mubr.f32.gmra.mrb[0].mxu0 %v176
    %v437 = vpop.f32.mrb[0].mxu0
    %v438 = vadd.f32 0.0, %v437
    %v439 = vpop.f32.mrb[0].mxu0
    %440 = vmatprep.mubr.f32.mxu0 0.0
    %441 = vmatmul.mubr.f32.gmra.mrb[0].mxu0 %v179
    %v442 = vpop.f32.mrb[0].mxu0
    %v443 = vadd.f32 0.0, %v442
    %v444 = vpop.f32.mrb[0].mxu0
    %445 = vmatprep.mubr.f32.mxu0 0.0
    %446 = vmatmul.mubr.f32.gmra.mrb[0].mxu0 %v182
    %v447 = vpop.f32.mrb[0].mxu0
    %v448 = vadd.f32 0.0, %v447
    %v449 = vpop.f32.mrb[0].mxu0
    %450 = vmatprep.mubr.f32.mxu0 0.0
    %451 = vmatmul.mubr.f32.gmra.mrb[0].mxu0 %v185
    %v452 = vpop.f32.mrb[0].mxu0
    %v453 = vadd.f32 0.0, %v452
    %v454 = vpop.f32.mrb[0].mxu0
    %455 = vmatprep.mubr.f32.mxu0 0.0
    %456 = vmatmul.mubr.f32.gmra.mrb[0].mxu0 %v188
    %v457 = vpop.f32.mrb[0].mxu0
    %v458 = vadd.f32 0.0, %v457
    %v459 = vpop.f32.mrb[0].mxu0
    %460 = vmatprep.mubr.f32.mxu0 0.0
    %461 = vmatmul.mubr.f32.gmra.mrb[0].mxu0 %v191
    %v462 = vpop.f32.mrb[0].mxu0
    %v463 = vadd.f32 0.0, %v462
    %v464 = vpop.f32.mrb[0].mxu0
    %465 = vmatprep.mubr.f32.mxu0 0.0
    %466 = vmatmul.mubr.f32.gmra.mrb[0].mxu0 %v194
    %v467 = vpop.f32.mrb[0].mxu0
    %v468 = vadd.f32 0.0, %v467
    %v469 = vpop.f32.mrb[0].mxu0
    %470 = vmatprep.mubr.f32.mxu0 0.0
    %471 = vmatmul.mubr.f32.gmra.mrb[0].mxu0 %v197
    %v472 = vpop.f32.mrb[0].mxu0
    %v473 = vadd.f32 0.0, %v472
    %v474 = vpop.f32.mrb[0].mxu0
    %475 = vmatprep.mubr.f32.mxu0 0.0
    %476 = vmatmul.mubr.f32.gmra.mrb[0].mxu0 %v200
    %v477 = vpop.f32.mrb[0].mxu0
    %v478 = vadd.f32 0.0, %v477
    %v479 = vpop.f32.mrb[0].mxu0
    %480 = vmatprep.mubr.f32.mxu0 0.0
    %481 = vmatmul.mubr.f32.gmra.mrb[0].mxu0 %v203
    %v482 = vpop.f32.mrb[0].mxu0
    %v483 = vadd.f32 0.0, %v482
    %v484 = vpop.f32.mrb[0].mxu0
    %485 = vmatprep.mubr.f32.mxu0 0.0
    %486 = vmatmul.mubr.f32.gmra.mrb[0].mxu0 %v206
    %v487 = vpop.f32.mrb[0].mxu0
    %v488 = vadd.f32 0.0, %v487
    %v489 = vpop.f32.mrb[0].mxu0
    %490 = vmatprep.mubr.f32.mxu0 0.0
    %491 = vmatmul.mubr.f32.gmra.mrb[0].mxu0 %v209
    %v492 = vpop.f32.mrb[0].mxu0
    %v493 = vadd.f32 0.0, %v492
    %v494 = vpop.f32.mrb[0].mxu0
    %495 = vmatprep.mubr.f32.mxu0 0.0
    %496 = vmatmul.mubr.f32.gmra.mrb[0].mxu0 %v212
    %v497 = vpop.f32.mrb[0].mxu0
    %v498 = vadd.f32 0.0, %v497
    %v499 = vpop.f32.mrb[0].mxu0
    %500 = vmatprep.mubr.f32.mxu0 0.0
    %501 = vmatmul.mubr.f32.gmra.mrb[0].mxu0 %v215
    %v502 = vpop.f32.mrb[0].mxu0
    %v503 = vadd.f32 0.0, %v502
    %v504 = vpop.f32.mrb[0].mxu0
    %505 = vmatprep.mubr.f32.mxu0 0.0
    %506 = vmatmul.mubr.f32.gmra.mrb[0].mxu0 %v218
    %v507 = vpop.f32.mrb[0].mxu0
    %v508 = vadd.f32 0.0, %v507
    %v509 = vpop.f32.mrb[0].mxu0
    %510 = vmatprep.mubr.f32.mxu0 0.0
    %511 = vmatmul.mubr.f32.gmra.mrb[0].mxu0 %v221
    %v512 = vpop.f32.mrb[0].mxu0
    %v513 = vadd.f32 0.0, %v512
    %v514 = vpop.f32.mrb[0].mxu0
    %515 = vmatprep.mubr.f32.mxu0 0.0
    %516 = vmatmul.mubr.f32.gmra.mrb[0].mxu0 %v224
    %v517 = vpop.f32.mrb[0].mxu0
    %v518 = vadd.f32 0.0, %v517
    %v519 = vpop.f32.mrb[0].mxu0
    %520 = vmatprep.mubr.f32.mxu0 0.0
    %521 = vmatmul.mubr.f32.gmra.mrb[0].mxu0 %v227
    %v522 = vpop.f32.mrb[0].mxu0
    %v523 = vadd.f32 0.0, %v522
    %v524 = vpop.f32.mrb[0].mxu0
    %525 = vmatprep.mubr.f32.mxu0 0.0
    %526 = vmatmul.mubr.f32.gmra.mrb[0].mxu0 %v230
    %v527 = vpop.f32.mrb[0].mxu0
    %v528 = vadd.f32 0.0, %v527
    %v529 = vpop.f32.mrb[0].mxu0
    %530 = vmatprep.mubr.f32.mxu0 0.0
    %531 = vmatmul.mubr.f32.gmra.mrb[0].mxu0 %v233
    %v532 = vpop.f32.mrb[0].mxu0
    %v533 = vadd.f32 0.0, %v532
    %v534 = vpop.f32.mrb[0].mxu0
    %535 = vmatprep.mubr.f32.mxu0 0.0
    %536 = vmatmul.mubr.f32.gmra.mrb[0].mxu0 %v236
    %v537 = vpop.f32.mrb[0].mxu0
    %v538 = vadd.f32 0.0, %v537
    %v539 = vpop.f32.mrb[0].mxu0
    %540 = vmatprep.mubr.f32.mxu0 0.0
    %541 = vmatmul.mubr.f32.gmra.mrb[0].mxu0 %v239
    %v542 = vpop.f32.mrb[0].mxu0
    %v543 = vadd.f32 0.0, %v542
    %v544 = vpop.f32.mrb[0].mxu0
    %545 = vmatprep.mubr.f32.mxu0 0.0
    %546 = vmatmul.mubr.f32.gmra.mrb[0].mxu0 %v242
    %v547 = vpop.f32.mrb[0].mxu0
    %v548 = vadd.f32 0.0, %v547
    %v549 = vpop.f32.mrb[0].mxu0
    %550 = vmatprep.mubr.f32.mxu0 0.0
    %551 = vmatmul.mubr.f32.gmra.mrb[0].mxu0 %v245
    %v552 = vpop.f32.mrb[0].mxu0
    %v553 = vadd.f32 0.0, %v552
    %v554 = vpop.f32.mrb[0].mxu0
    %555 = vmatprep.mubr.f32.mxu0 0.0
    %556 = vmatmul.mubr.f32.gmra.mrb[0].mxu0 %v248
    %v557 = vpop.f32.mrb[0].mxu0
    %v558 = vadd.f32 0.0, %v557
    %v559 = vpop.f32.mrb[0].mxu0
    %560 = vmatprep.mubr.f32.mxu0 0.0
    %561 = vmatmul.mubr.f32.gmra.mrb[0].mxu0 %v251
    %v562 = vpop.f32.mrb[0].mxu0
    %v563 = vadd.f32 0.0, %v562
    %v564 = vpop.f32.mrb[0].mxu0
    %565 = vmatprep.mubr.f32.mxu0 0.0
    %566 = vmatmul.mubr.f32.gmra.mrb[0].mxu0 %v254
    %v567 = vpop.f32.mrb[0].mxu0
    %v568 = vadd.f32 0.0, %v567
    %v569 = vpop.f32.mrb[0].mxu0
    %570 = vmatprep.mubr.f32.mxu0 0.0
    %571 = vmatmul.mubr.f32.gmra.mrb[0].mxu0 %v257
    %v572 = vpop.f32.mrb[0].mxu0
    %v573 = vadd.f32 0.0, %v572
    %v574 = vpop.f32.mrb[0].mxu0
    %575 = vmatprep.mubr.f32.mxu0 0.0
    %576 = vmatmul.mubr.f32.gmra.mrb[0].mxu0 %v260
    %v577 = vpop.f32.mrb[0].mxu0
    %v578 = vadd.f32 0.0, %v577
    %v579 = vpop.f32.mrb[0].mxu0
    %580 = vmatprep.mubr.f32.mxu0 0.0
    %581 = vmatmul.mubr.f32.gmra.mrb[0].mxu0 %v263
    %v582 = vpop.f32.mrb[0].mxu0
    %v583 = vadd.f32 0.0, %v582
    %v584 = vpop.f32.mrb[0].mxu0
    %585 = vmatprep.mubr.f32.mxu0 0.0
    %586 = vmatmul.mubr.f32.gmra.mrb[0].mxu0 %v266
    %v587 = vpop.f32.mrb[0].mxu0
    %v588 = vadd.f32 0.0, %v587
    %v589 = vpop.f32.mrb[0].mxu0
    %590 = vmatprep.mubr.f32.mxu0 0.0
    %591 = vmatmul.mubr.f32.gmra.mrb[0].mxu0 %v269
    %v592 = vpop.f32.mrb[0].mxu0
    %v593 = vadd.f32 0.0, %v592
    %v594 = vpop.f32.mrb[0].mxu0
    %595 = vmatprep.mubr.f32.mxu0 0.0
    %596 = vmatmul.mubr.f32.gmra.mrb[0].mxu0 %v272
    %v597 = vpop.f32.mrb[0].mxu0
    %v598 = vadd.f32 0.0, %v597
    %v599 = vpop.f32.mrb[0].mxu0
    %600 = vmatprep.mubr.f32.mxu0 0.0
    %601 = vmatmul.mubr.f32.gmra.mrb[0].mxu0 %v275
    %v602 = vpop.f32.mrb[0].mxu0
    %v603 = vadd.f32 0.0, %v602
    %v604 = vpop.f32.mrb[0].mxu0
    %605 = vmatprep.mubr.f32.mxu0 0.0
    %606 = vmatmul.mubr.f32.gmra.mrb[0].mxu0 %v278
    %v607 = vpop.f32.mrb[0].mxu0
    %v608 = vadd.f32 0.0, %v607
    %v609 = vpop.f32.mrb[0].mxu0
    %610 = vmatprep.mubr.f32.mxu0 0.0
    %611 = vmatmul.mubr.f32.gmra.mrb[0].mxu0 %v281
    %v612 = vpop.f32.mrb[0].mxu0
    %v613 = vadd.f32 0.0, %v612
    %v614 = vpop.f32.mrb[0].mxu0
    %615 = vmatprep.mubr.f32.mxu0 0.0
    %616 = vmatmul.mubr.f32.gmra.mrb[0].mxu0 %v284
    %v617 = vpop.f32.mrb[0].mxu0
    %v618 = vadd.f32 0.0, %v617
    %v619 = vpop.f32.mrb[0].mxu0
    %620 = vmatprep.mubr.f32.mxu0 0.0
    %621 = vmatmul.mubr.f32.gmra.mrb[0].mxu0 %v287
    %v622 = vpop.f32.mrb[0].mxu0
    %v623 = vadd.f32 0.0, %v622
    %v624 = vpop.f32.mrb[0].mxu0
    %625 = vmatprep.mubr.f32.mxu0 0.0
    %626 = vmatmul.mubr.f32.gmra.mrb[0].mxu0 %v290
    %v627 = vpop.f32.mrb[0].mxu0
    %v628 = vadd.f32 0.0, %v627
    %v629 = vpop.f32.mrb[0].mxu0
    %630 = vmatprep.mubr.f32.mxu0 0.0
    %631 = vmatmul.mubr.f32.gmra.mrb[0].mxu0 %v293
    %v632 = vpop.f32.mrb[0].mxu0
    %v633 = vadd.f32 0.0, %v632
    %v634 = vpop.f32.mrb[0].mxu0
    %635 = vmatprep.mubr.f32.mxu0 0.0
    %636 = vmatmul.mubr.f32.gmra.mrb[0].mxu0 %v296
    %v637 = vpop.f32.mrb[0].mxu0
    %v638 = vadd.f32 0.0, %v637
    %v639 = vpop.f32.mrb[0].mxu0
    %640 = vmatprep.mubr.f32.mxu0 0.0
    %641 = vmatmul.mubr.f32.gmra.mrb[0].mxu0 %v299
    %v642 = vpop.f32.mrb[0].mxu0
    %v643 = vadd.f32 0.0, %v642
    %v644 = vpop.f32.mrb[0].mxu0
    %645 = vmatprep.mubr.f32.mxu0 0.0
    %646 = vmatmul.mubr.f32.gmra.mrb[0].mxu0 %v302
    %v647 = vpop.f32.mrb[0].mxu0
    %v648 = vadd.f32 0.0, %v647
    %v649 = vpop.f32.mrb[0].mxu0
    %650 = vmatprep.mubr.f32.mxu0 0.0
    %651 = vmatmul.mubr.f32.gmra.mrb[0].mxu0 %v305
    %v652 = vpop.f32.mrb[0].mxu0
    %v653 = vadd.f32 0.0, %v652
    %v654 = vpop.f32.mrb[0].mxu0
    %655 = vmatprep.mubr.f32.mxu0 0.0
    %656 = vmatmul.mubr.f32.gmra.mrb[0].mxu0 %v308
    %v657 = vpop.f32.mrb[0].mxu0
    %v658 = vadd.f32 0.0, %v657
    %v659 = vpop.f32.mrb[0].mxu0
    %660 = vmatprep.mubr.f32.mxu0 0.0
    %661 = vmatmul.mubr.f32.gmra.mrb[0].mxu0 %v311
    %v662 = vpop.f32.mrb[0].mxu0
    %v663 = vadd.f32 0.0, %v662
    %v664 = vpop.f32.mrb[0].mxu0
    %665 = vmatprep.mubr.f32.mxu0 0.0
    %666 = vmatmul.mubr.f32.gmra.mrb[0].mxu0 %v314
    %v667 = vpop.f32.mrb[0].mxu0
    %v668 = vadd.f32 0.0, %v667
    %v669 = vpop.f32.mrb[0].mxu0
    %670 = vmatprep.mubr.f32.mxu0 0.0
    %671 = vmatmul.mubr.f32.gmra.mrb[0].mxu0 %v317
    %v672 = vpop.f32.mrb[0].mxu0
    %v673 = vadd.f32 0.0, %v672
    %v674 = vpop.f32.mrb[0].mxu0
    %675 = vmatprep.mubr.f32.mxu0 0.0
    %676 = vmatmul.mubr.f32.gmra.mrb[0].mxu0 %v320
    %v677 = vpop.f32.mrb[0].mxu0
    %v678 = vadd.f32 0.0, %v677
    %v679 = vpop.f32.mrb[0].mxu0
    %680 = vmatprep.mubr.f32.mxu0 0.0
    %681 = vmatmul.mubr.f32.gmra.mrb[0].mxu0 %v323
    %v682 = vpop.f32.mrb[0].mxu0
    %v683 = vadd.f32 0.0, %v682
    %v684 = vpop.f32.mrb[0].mxu0
    %685 = vmatprep.mubr.f32.mxu0 0.0
    %686 = vmatmul.mubr.f32.gmra.mrb[0].mxu0 %v326
    %v687 = vpop.f32.mrb[0].mxu0
    %v688 = vadd.f32 0.0, %v687
    %v689 = vpop.f32.mrb[0].mxu0
    %690 = vmatprep.mubr.f32.mxu0 0.0
    %691 = vmatmul.mubr.f32.gmra.mrb[0].mxu0 %v329
    %v692 = vpop.f32.mrb[0].mxu0
    %v693 = vadd.f32 0.0, %v692
    %v694 = vpop.f32.mrb[0].mxu0
    %695 = vmatprep.mubr.f32.mxu0 0.0
    %696 = vmatmul.mubr.f32.gmra.mrb[0].mxu0 %v332
    %v697 = vpop.f32.mrb[0].mxu0
    %v698 = vadd.f32 0.0, %v697
    %v699 = vpop.f32.mrb[0].mxu0
    %700 = vmatprep.mubr.f32.mxu0 0.0
    %701 = vmatmul.mubr.f32.gmra.mrb[0].mxu0 %v335
    %v702 = vpop.f32.mrb[0].mxu0
    %v703 = vadd.f32 0.0, %v702
    %v704 = vpop.f32.mrb[0].mxu0
    %705 = vmatprep.mubr.f32.mxu0 0.0
    %706 = vmatmul.mubr.f32.gmra.mrb[0].mxu0 %v338
    %v707 = vpop.f32.mrb[0].mxu0
    %v708 = vadd.f32 0.0, %v707
    %v709 = vpop.f32.mrb[0].mxu0
    %710 = vmatprep.mubr.f32.mxu0 0.0
    %711 = vmatmul.mubr.f32.gmra.mrb[0].mxu0 %v341
    %v712 = vpop.f32.mrb[0].mxu0
    %v713 = vadd.f32 0.0, %v712
    %v714 = vpop.f32.mrb[0].mxu0
    %715 = vmatprep.mubr.f32.mxu0 0.0
    %716 = vmatmul.mubr.f32.gmra.mrb[0].mxu0 %v344
    %v717 = vpop.f32.mrb[0].mxu0
    %v718 = vadd.f32 0.0, %v717
    %v719 = vpop.f32.mrb[0].mxu0
    %720 = vmatprep.mubr.f32.mxu0 0.0
    %721 = vmatmul.mubr.f32.gmra.mrb[0].mxu0 %v347
    %v722 = vpop.f32.mrb[0].mxu0
    %v723 = vadd.f32 0.0, %v722
    %v724 = vpop.f32.mrb[0].mxu0
    %725 = vmatprep.mubr.f32.mxu0 0.0
    %726 = vmatmul.mubr.f32.gmra.mrb[0].mxu0 %v350
    %v727 = vpop.f32.mrb[0].mxu0
    %v728 = vadd.f32 0.0, %v727
    %v729 = vpop.f32.mrb[0].mxu0
    %730 = vmatprep.mubr.f32.mxu0 0.0
    %731 = vmatmul.mubr.f32.gmra.mrb[0].mxu0 %v353
    %v732 = vpop.f32.mrb[0].mxu0
    %v733 = vadd.f32 0.0, %v732
    %v734 = vpop.f32.mrb[0].mxu0
    %735 = vmatprep.mubr.f32.mxu0 0.0
    %736 = vmatmul.mubr.f32.gmra.mrb[0].mxu0 %v356
    %v737 = vpop.f32.mrb[0].mxu0
    %v738 = vadd.f32 0.0, %v737
    %v739 = vpop.f32.mrb[0].mxu0
    %740 = vmatprep.mubr.f32.mxu0 0.0
    %741 = vmatmul.mubr.f32.gmra.mrb[0].mxu0 %v359
    %v742 = vpop.f32.mrb[0].mxu0
    %v743 = vadd.f32 0.0, %v742
    %v744 = vpop.f32.mrb[0].mxu0
    %745 = vmatprep.mubr.f32.mxu0 0.0
    %746 = vmatmul.mubr.f32.gmra.mrb[0].mxu0 %v362
    %v747 = vpop.f32.mrb[0].mxu0
    %v748 = vadd.f32 0.0, %v747
    %v749 = vpop.f32.mrb[0].mxu0
    %750 = vmatprep.mubr.f32.mxu0 0.0
    %751 = vmatmul.mubr.f32.gmra.mrb[0].mxu0 %v365
    %v752 = vpop.f32.mrb[0].mxu0
    %v753 = vadd.f32 0.0, %v752
    %v754 = vpop.f32.mrb[0].mxu0
    %755 = vdwg.mxu0
    %v757 = vsel %vm174, %v43, 0
    %v760 = vsel %vm174, %v44, 0
    %v763 = vsel %vm174, %v45, 0
    %v766 = vsel %vm174, %v46, 0
    %v769 = vsel %vm174, %v47, 0
    %v772 = vsel %vm174, %v48, 0
    %v775 = vsel %vm174, %v49, 0
    %v778 = vsel %vm174, %v50, 0
    %v781 = vsel %vm174, %v51, 0
    %v784 = vsel %vm174, %v52, 0
    %v787 = vsel %vm174, %v53, 0
    %v790 = vsel %vm174, %v54, 0
    %v793 = vsel %vm174, %v55, 0
    %v796 = vsel %vm174, %v56, 0
    %v799 = vsel %vm174, %v57, 0
    %v802 = vsel %vm174, %v58, 0
    %v805 = vsel %vm174, %v59, 0
    %v808 = vsel %vm174, %v60, 0
    %v811 = vsel %vm174, %v61, 0
    %v814 = vsel %vm174, %v62, 0
    %v817 = vsel %vm174, %v63, 0
    %v820 = vsel %vm174, %v64, 0
    %v823 = vsel %vm174, %v65, 0
    %v826 = vsel %vm174, %v66, 0
    %v829 = vsel %vm174, %v67, 0
    %v832 = vsel %vm174, %v68, 0
    %v835 = vsel %vm174, %v69, 0
    %v838 = vsel %vm174, %v70, 0
    %v841 = vsel %vm174, %v71, 0
    %v844 = vsel %vm174, %v72, 0
    %v847 = vsel %vm174, %v73, 0
    %v850 = vsel %vm174, %v74, 0
    %v853 = vsel %vm174, %v75, 0
    %v856 = vsel %vm174, %v76, 0
    %v859 = vsel %vm174, %v77, 0
    %v862 = vsel %vm174, %v78, 0
    %v865 = vsel %vm174, %v79, 0
    %v868 = vsel %vm174, %v80, 0
    %v871 = vsel %vm174, %v81, 0
    %v874 = vsel %vm174, %v82, 0
    %v877 = vsel %vm174, %v83, 0
    %v880 = vsel %vm174, %v84, 0
    %v883 = vsel %vm174, %v85, 0
    %v886 = vsel %vm174, %v86, 0
    %v889 = vsel %vm174, %v87, 0
    %v892 = vsel %vm174, %v88, 0
    %v895 = vsel %vm174, %v89, 0
    %v898 = vsel %vm174, %v90, 0
    %v901 = vsel %vm174, %v91, 0
    %v904 = vsel %vm174, %v92, 0
    %v907 = vsel %vm174, %v93, 0
    %v910 = vsel %vm174, %v94, 0
    %v913 = vsel %vm174, %v95, 0
    %v916 = vsel %vm174, %v96, 0
    %v919 = vsel %vm174, %v97, 0
    %v922 = vsel %vm174, %v98, 0
    %v925 = vsel %vm174, %v99, 0
    %v928 = vsel %vm174, %v100, 0
    %v931 = vsel %vm174, %v101, 0
    %v934 = vsel %vm174, %v102, 0
    %v937 = vsel %vm174, %v103, 0
    %v940 = vsel %vm174, %v104, 0
    %v943 = vsel %vm174, %v105, 0
    %v946 = vsel %vm174, %v106, 0
    %v949 = vsel %vm367, %v107, 0
    %951 = vmatprep.subr.mxu0 0.0
    %952 = vmatpush1.msra.mxu0 %v949
    %953 = vmatprep.subr.mxu0 0.0
    %954 = vmatpush1.msra.mxu0 0.0
    %955 = vmatprep.subr.mxu0 0.0
    %956 = vmatpush1.msra.mxu0 0.0
    %957 = vmatprep.subr.mxu0 0.0
    %958 = vmatpush1.msra.mxu0 0.0
    %959 = vmatprep.subr.mxu0 0.0
    %960 = vmatpush1.msra.mxu0 0.0
    %961 = vmatprep.subr.mxu0 0.0
    %962 = vmatpush1.msra.mxu0 0.0
    %963 = vmatprep.subr.mxu0 0.0
    %964 = vmatpush1.msra.mxu0 0.0
    %965 = vmatprep.subr.mxu0 0.0
    %966 = vmatpush1.msra.mxu0 0.0
    %967 = vmatprep.subr.mxu0 0.0
    %968 = vmatpush1.msra.mxu0 0.0
    %969 = vmatprep.subr.mxu0 0.0
    %970 = vmatpush1.msra.mxu0 0.0
    %971 = vmatprep.subr.mxu0 0.0
    %972 = vmatpush1.msra.mxu0 0.0
    %973 = vmatprep.subr.mxu0 0.0
    %974 = vmatpush1.msra.mxu0 0.0
    %975 = vmatprep.subr.mxu0 0.0
    %976 = vmatpush1.msra.mxu0 0.0
    %977 = vmatprep.subr.mxu0 0.0
    %978 = vmatpush1.msra.mxu0 0.0
    %979 = vmatprep.subr.mxu0 0.0
    %980 = vmatpush1.msra.mxu0 0.0
    %981 = vmatprep.subr.mxu0 0.0
    %982 = vmatpush1.msra.mxu0 0.0
    %983 = vmatprep.subr.mxu0 0.0
    %984 = vmatpush1.msra.mxu0 0.0
    %985 = vmatprep.subr.mxu0 0.0
    %986 = vmatpush1.msra.mxu0 0.0
    %987 = vmatprep.subr.mxu0 0.0
    %988 = vmatpush1.msra.mxu0 0.0
    %989 = vmatprep.subr.mxu0 0.0
    %990 = vmatpush1.msra.mxu0 0.0
    %991 = vmatprep.subr.mxu0 0.0
    %992 = vmatpush1.msra.mxu0 0.0
    %993 = vmatprep.subr.mxu0 0.0
    %994 = vmatpush1.msra.mxu0 0.0
    %995 = vmatprep.subr.mxu0 0.0
    %996 = vmatpush1.msra.mxu0 0.0
    %997 = vmatprep.subr.mxu0 0.0
    %998 = vmatpush1.msra.mxu0 0.0
    %999 = vmatprep.subr.mxu0 0.0
    %1000 = vmatpush1.msra.mxu0 0.0
    %1001 = vmatprep.subr.mxu0 0.0
    %1002 = vmatpush1.msra.mxu0 0.0
    %1003 = vmatprep.subr.mxu0 0.0
    %1004 = vmatpush1.msra.mxu0 0.0
    %1005 = vmatprep.subr.mxu0 0.0
    %1006 = vmatpush1.msra.mxu0 0.0
    %1007 = vmatprep.subr.mxu0 0.0
    %1008 = vmatpush1.msra.mxu0 0.0
    %1009 = vmatprep.subr.mxu0 0.0
    %1010 = vmatpush1.msra.mxu0 0.0
    %1011 = vmatprep.subr.mxu0 0.0
    %1012 = vmatpush1.msra.mxu0 0.0
    %1013 = vmatprep.subr.mxu0 0.0
    %1014 = vmatpush1.msra.mxu0 0.0
    %1015 = vmatprep.mubr.f32.mxu0 0.0
    %1016 = vmatmul.mubr.f32.gmra.mrb[0].mxu0 %v757
    %v1017 = vpop.f32.mrb[0].mxu0
    %v1018 = vadd.f32 %v438, %v1017
    %v1019 = vpop.f32.mrb[0].mxu0
    %1020 = vmatprep.mubr.f32.mxu0 0.0
    %1021 = vmatmul.mubr.f32.gmra.mrb[0].mxu0 %v760
    %v1022 = vpop.f32.mrb[0].mxu0
    %v1023 = vadd.f32 %v443, %v1022
    %v1024 = vpop.f32.mrb[0].mxu0
    %1025 = vmatprep.mubr.f32.mxu0 0.0
    %1026 = vmatmul.mubr.f32.gmra.mrb[0].mxu0 %v763
    %v1027 = vpop.f32.mrb[0].mxu0
    %v1028 = vadd.f32 %v448, %v1027
    %v1029 = vpop.f32.mrb[0].mxu0
    %1030 = vmatprep.mubr.f32.mxu0 0.0
    %1031 = vmatmul.mubr.f32.gmra.mrb[0].mxu0 %v766
    %v1032 = vpop.f32.mrb[0].mxu0
    %v1033 = vadd.f32 %v453, %v1032
    %v1034 = vpop.f32.mrb[0].mxu0
    %1035 = vmatprep.mubr.f32.mxu0 0.0
    %1036 = vmatmul.mubr.f32.gmra.mrb[0].mxu0 %v769
    %v1037 = vpop.f32.mrb[0].mxu0
    %v1038 = vadd.f32 %v458, %v1037
    %v1039 = vpop.f32.mrb[0].mxu0
    %1040 = vmatprep.mubr.f32.mxu0 0.0
    %1041 = vmatmul.mubr.f32.gmra.mrb[0].mxu0 %v772
    %v1042 = vpop.f32.mrb[0].mxu0
    %v1043 = vadd.f32 %v463, %v1042
    %v1044 = vpop.f32.mrb[0].mxu0
    %1045 = vmatprep.mubr.f32.mxu0 0.0
    %1046 = vmatmul.mubr.f32.gmra.mrb[0].mxu0 %v775
    %v1047 = vpop.f32.mrb[0].mxu0
    %v1048 = vadd.f32 %v468, %v1047
    %v1049 = vpop.f32.mrb[0].mxu0
    %1050 = vmatprep.mubr.f32.mxu0 0.0
    %1051 = vmatmul.mubr.f32.gmra.mrb[0].mxu0 %v778
    %v1052 = vpop.f32.mrb[0].mxu0
    %v1053 = vadd.f32 %v473, %v1052
    %v1054 = vpop.f32.mrb[0].mxu0
    %1055 = vmatprep.mubr.f32.mxu0 0.0
    %1056 = vmatmul.mubr.f32.gmra.mrb[0].mxu0 %v781
    %v1057 = vpop.f32.mrb[0].mxu0
    %v1058 = vadd.f32 %v478, %v1057
    %v1059 = vpop.f32.mrb[0].mxu0
    %1060 = vmatprep.mubr.f32.mxu0 0.0
    %1061 = vmatmul.mubr.f32.gmra.mrb[0].mxu0 %v784
    %v1062 = vpop.f32.mrb[0].mxu0
    %v1063 = vadd.f32 %v483, %v1062
    %v1064 = vpop.f32.mrb[0].mxu0
    %1065 = vmatprep.mubr.f32.mxu0 0.0
    %1066 = vmatmul.mubr.f32.gmra.mrb[0].mxu0 %v787
    %v1067 = vpop.f32.mrb[0].mxu0
    %v1068 = vadd.f32 %v488, %v1067
    %v1069 = vpop.f32.mrb[0].mxu0
    %1070 = vmatprep.mubr.f32.mxu0 0.0
    %1071 = vmatmul.mubr.f32.gmra.mrb[0].mxu0 %v790
    %v1072 = vpop.f32.mrb[0].mxu0
    %v1073 = vadd.f32 %v493, %v1072
    %v1074 = vpop.f32.mrb[0].mxu0
    %1075 = vmatprep.mubr.f32.mxu0 0.0
    %1076 = vmatmul.mubr.f32.gmra.mrb[0].mxu0 %v793
    %v1077 = vpop.f32.mrb[0].mxu0
    %v1078 = vadd.f32 %v498, %v1077
    %v1079 = vpop.f32.mrb[0].mxu0
    %1080 = vmatprep.mubr.f32.mxu0 0.0
    %1081 = vmatmul.mubr.f32.gmra.mrb[0].mxu0 %v796
    %v1082 = vpop.f32.mrb[0].mxu0
    %v1083 = vadd.f32 %v503, %v1082
    %v1084 = vpop.f32.mrb[0].mxu0
    %1085 = vmatprep.mubr.f32.mxu0 0.0
    %1086 = vmatmul.mubr.f32.gmra.mrb[0].mxu0 %v799
    %v1087 = vpop.f32.mrb[0].mxu0
    %v1088 = vadd.f32 %v508, %v1087
    %v1089 = vpop.f32.mrb[0].mxu0
    %1090 = vmatprep.mubr.f32.mxu0 0.0
    %1091 = vmatmul.mubr.f32.gmra.mrb[0].mxu0 %v802
    %v1092 = vpop.f32.mrb[0].mxu0
    %v1093 = vadd.f32 %v513, %v1092
    %v1094 = vpop.f32.mrb[0].mxu0
    %1095 = vmatprep.mubr.f32.mxu0 0.0
    %1096 = vmatmul.mubr.f32.gmra.mrb[0].mxu0 %v805
    %v1097 = vpop.f32.mrb[0].mxu0
    %v1098 = vadd.f32 %v518, %v1097
    %v1099 = vpop.f32.mrb[0].mxu0
    %1100 = vmatprep.mubr.f32.mxu0 0.0
    %1101 = vmatmul.mubr.f32.gmra.mrb[0].mxu0 %v808
    %v1102 = vpop.f32.mrb[0].mxu0
    %v1103 = vadd.f32 %v523, %v1102
    %v1104 = vpop.f32.mrb[0].mxu0
    %1105 = vmatprep.mubr.f32.mxu0 0.0
    %1106 = vmatmul.mubr.f32.gmra.mrb[0].mxu0 %v811
    %v1107 = vpop.f32.mrb[0].mxu0
    %v1108 = vadd.f32 %v528, %v1107
    %v1109 = vpop.f32.mrb[0].mxu0
    %1110 = vmatprep.mubr.f32.mxu0 0.0
    %1111 = vmatmul.mubr.f32.gmra.mrb[0].mxu0 %v814
    %v1112 = vpop.f32.mrb[0].mxu0
    %v1113 = vadd.f32 %v533, %v1112
    %v1114 = vpop.f32.mrb[0].mxu0
    %1115 = vmatprep.mubr.f32.mxu0 0.0
    %1116 = vmatmul.mubr.f32.gmra.mrb[0].mxu0 %v817
    %v1117 = vpop.f32.mrb[0].mxu0
    %v1118 = vadd.f32 %v538, %v1117
    %v1119 = vpop.f32.mrb[0].mxu0
    %1120 = vmatprep.mubr.f32.mxu0 0.0
    %1121 = vmatmul.mubr.f32.gmra.mrb[0].mxu0 %v820
    %v1122 = vpop.f32.mrb[0].mxu0
    %v1123 = vadd.f32 %v543, %v1122
    %v1124 = vpop.f32.mrb[0].mxu0
    %1125 = vmatprep.mubr.f32.mxu0 0.0
    %1126 = vmatmul.mubr.f32.gmra.mrb[0].mxu0 %v823
    %v1127 = vpop.f32.mrb[0].mxu0
    %v1128 = vadd.f32 %v548, %v1127
    %v1129 = vpop.f32.mrb[0].mxu0
    %1130 = vmatprep.mubr.f32.mxu0 0.0
    %1131 = vmatmul.mubr.f32.gmra.mrb[0].mxu0 %v826
    %v1132 = vpop.f32.mrb[0].mxu0
    %v1133 = vadd.f32 %v553, %v1132
    %v1134 = vpop.f32.mrb[0].mxu0
    %1135 = vmatprep.mubr.f32.mxu0 0.0
    %1136 = vmatmul.mubr.f32.gmra.mrb[0].mxu0 %v829
    %v1137 = vpop.f32.mrb[0].mxu0
    %v1138 = vadd.f32 %v558, %v1137
    %v1139 = vpop.f32.mrb[0].mxu0
    %1140 = vmatprep.mubr.f32.mxu0 0.0
    %1141 = vmatmul.mubr.f32.gmra.mrb[0].mxu0 %v832
    %v1142 = vpop.f32.mrb[0].mxu0
    %v1143 = vadd.f32 %v563, %v1142
    %v1144 = vpop.f32.mrb[0].mxu0
    %1145 = vmatprep.mubr.f32.mxu0 0.0
    %1146 = vmatmul.mubr.f32.gmra.mrb[0].mxu0 %v835
    %v1147 = vpop.f32.mrb[0].mxu0
    %v1148 = vadd.f32 %v568, %v1147
    %v1149 = vpop.f32.mrb[0].mxu0
    %1150 = vmatprep.mubr.f32.mxu0 0.0
    %1151 = vmatmul.mubr.f32.gmra.mrb[0].mxu0 %v838
    %v1152 = vpop.f32.mrb[0].mxu0
    %v1153 = vadd.f32 %v573, %v1152
    %v1154 = vpop.f32.mrb[0].mxu0
    %1155 = vmatprep.mubr.f32.mxu0 0.0
    %1156 = vmatmul.mubr.f32.gmra.mrb[0].mxu0 %v841
    %v1157 = vpop.f32.mrb[0].mxu0
    %v1158 = vadd.f32 %v578, %v1157
    %v1159 = vpop.f32.mrb[0].mxu0
    %1160 = vmatprep.mubr.f32.mxu0 0.0
    %1161 = vmatmul.mubr.f32.gmra.mrb[0].mxu0 %v844
    %v1162 = vpop.f32.mrb[0].mxu0
    %v1163 = vadd.f32 %v583, %v1162
    %v1164 = vpop.f32.mrb[0].mxu0
    %1165 = vmatprep.mubr.f32.mxu0 0.0
    %1166 = vmatmul.mubr.f32.gmra.mrb[0].mxu0 %v847
    %v1167 = vpop.f32.mrb[0].mxu0
    %v1168 = vadd.f32 %v588, %v1167
    %v1169 = vpop.f32.mrb[0].mxu0
    %1170 = vmatprep.mubr.f32.mxu0 0.0
    %1171 = vmatmul.mubr.f32.gmra.mrb[0].mxu0 %v850
    %v1172 = vpop.f32.mrb[0].mxu0
    %v1173 = vadd.f32 %v593, %v1172
    %v1174 = vpop.f32.mrb[0].mxu0
    %1175 = vmatprep.mubr.f32.mxu0 0.0
    %1176 = vmatmul.mubr.f32.gmra.mrb[0].mxu0 %v853
    %v1177 = vpop.f32.mrb[0].mxu0
    %v1178 = vadd.f32 %v598, %v1177
    %v1179 = vpop.f32.mrb[0].mxu0
    %1180 = vmatprep.mubr.f32.mxu0 0.0
    %1181 = vmatmul.mubr.f32.gmra.mrb[0].mxu0 %v856
    %v1182 = vpop.f32.mrb[0].mxu0
    %v1183 = vadd.f32 %v603, %v1182
    %v1184 = vpop.f32.mrb[0].mxu0
    %1185 = vmatprep.mubr.f32.mxu0 0.0
    %1186 = vmatmul.mubr.f32.gmra.mrb[0].mxu0 %v859
    %v1187 = vpop.f32.mrb[0].mxu0
    %v1188 = vadd.f32 %v608, %v1187
    %v1189 = vpop.f32.mrb[0].mxu0
    %1190 = vmatprep.mubr.f32.mxu0 0.0
    %1191 = vmatmul.mubr.f32.gmra.mrb[0].mxu0 %v862
    %v1192 = vpop.f32.mrb[0].mxu0
    %v1193 = vadd.f32 %v613, %v1192
    %v1194 = vpop.f32.mrb[0].mxu0
    %1195 = vmatprep.mubr.f32.mxu0 0.0
    %1196 = vmatmul.mubr.f32.gmra.mrb[0].mxu0 %v865
    %v1197 = vpop.f32.mrb[0].mxu0
    %v1198 = vadd.f32 %v618, %v1197
    %v1199 = vpop.f32.mrb[0].mxu0
    %1200 = vmatprep.mubr.f32.mxu0 0.0
    %1201 = vmatmul.mubr.f32.gmra.mrb[0].mxu0 %v868
    %v1202 = vpop.f32.mrb[0].mxu0
    %v1203 = vadd.f32 %v623, %v1202
    %v1204 = vpop.f32.mrb[0].mxu0
    %1205 = vmatprep.mubr.f32.mxu0 0.0
    %1206 = vmatmul.mubr.f32.gmra.mrb[0].mxu0 %v871
    %v1207 = vpop.f32.mrb[0].mxu0
    %v1208 = vadd.f32 %v628, %v1207
    %v1209 = vpop.f32.mrb[0].mxu0
    %1210 = vmatprep.mubr.f32.mxu0 0.0
    %1211 = vmatmul.mubr.f32.gmra.mrb[0].mxu0 %v874
    %v1212 = vpop.f32.mrb[0].mxu0
    %v1213 = vadd.f32 %v633, %v1212
    %v1214 = vpop.f32.mrb[0].mxu0
    %1215 = vmatprep.mubr.f32.mxu0 0.0
    %1216 = vmatmul.mubr.f32.gmra.mrb[0].mxu0 %v877
    %v1217 = vpop.f32.mrb[0].mxu0
    %v1218 = vadd.f32 %v638, %v1217
    %v1219 = vpop.f32.mrb[0].mxu0
    %1220 = vmatprep.mubr.f32.mxu0 0.0
    %1221 = vmatmul.mubr.f32.gmra.mrb[0].mxu0 %v880
    %v1222 = vpop.f32.mrb[0].mxu0
    %v1223 = vadd.f32 %v643, %v1222
    %v1224 = vpop.f32.mrb[0].mxu0
    %1225 = vmatprep.mubr.f32.mxu0 0.0
    %1226 = vmatmul.mubr.f32.gmra.mrb[0].mxu0 %v883
    %v1227 = vpop.f32.mrb[0].mxu0
    %v1228 = vadd.f32 %v648, %v1227
    %v1229 = vpop.f32.mrb[0].mxu0
    %1230 = vmatprep.mubr.f32.mxu0 0.0
    %1231 = vmatmul.mubr.f32.gmra.mrb[0].mxu0 %v886
    %v1232 = vpop.f32.mrb[0].mxu0
    %v1233 = vadd.f32 %v653, %v1232
    %v1234 = vpop.f32.mrb[0].mxu0
    %1235 = vmatprep.mubr.f32.mxu0 0.0
    %1236 = vmatmul.mubr.f32.gmra.mrb[0].mxu0 %v889
    %v1237 = vpop.f32.mrb[0].mxu0
    %v1238 = vadd.f32 %v658, %v1237
    %v1239 = vpop.f32.mrb[0].mxu0
    %1240 = vmatprep.mubr.f32.mxu0 0.0
    %1241 = vmatmul.mubr.f32.gmra.mrb[0].mxu0 %v892
    %v1242 = vpop.f32.mrb[0].mxu0
    %v1243 = vadd.f32 %v663, %v1242
    %v1244 = vpop.f32.mrb[0].mxu0
    %1245 = vmatprep.mubr.f32.mxu0 0.0
    %1246 = vmatmul.mubr.f32.gmra.mrb[0].mxu0 %v895
    %v1247 = vpop.f32.mrb[0].mxu0
    %v1248 = vadd.f32 %v668, %v1247
    %v1249 = vpop.f32.mrb[0].mxu0
    %1250 = vmatprep.mubr.f32.mxu0 0.0
    %1251 = vmatmul.mubr.f32.gmra.mrb[0].mxu0 %v898
    %v1252 = vpop.f32.mrb[0].mxu0
    %v1253 = vadd.f32 %v673, %v1252
    %v1254 = vpop.f32.mrb[0].mxu0
    %1255 = vmatprep.mubr.f32.mxu0 0.0
    %1256 = vmatmul.mubr.f32.gmra.mrb[0].mxu0 %v901
    %v1257 = vpop.f32.mrb[0].mxu0
    %v1258 = vadd.f32 %v678, %v1257
    %v1259 = vpop.f32.mrb[0].mxu0
    %1260 = vmatprep.mubr.f32.mxu0 0.0
    %1261 = vmatmul.mubr.f32.gmra.mrb[0].mxu0 %v904
    %v1262 = vpop.f32.mrb[0].mxu0
    %v1263 = vadd.f32 %v683, %v1262
    %v1264 = vpop.f32.mrb[0].mxu0
    %1265 = vmatprep.mubr.f32.mxu0 0.0
    %1266 = vmatmul.mubr.f32.gmra.mrb[0].mxu0 %v907
    %v1267 = vpop.f32.mrb[0].mxu0
    %v1268 = vadd.f32 %v688, %v1267
    %v1269 = vpop.f32.mrb[0].mxu0
    %1270 = vmatprep.mubr.f32.mxu0 0.0
    %1271 = vmatmul.mubr.f32.gmra.mrb[0].mxu0 %v910
    %v1272 = vpop.f32.mrb[0].mxu0
    %v1273 = vadd.f32 %v693, %v1272
    %v1274 = vpop.f32.mrb[0].mxu0
    %1275 = vmatprep.mubr.f32.mxu0 0.0
    %1276 = vmatmul.mubr.f32.gmra.mrb[0].mxu0 %v913
    %v1277 = vpop.f32.mrb[0].mxu0
    %v1278 = vadd.f32 %v698, %v1277
    %v1279 = vpop.f32.mrb[0].mxu0
    %1280 = vmatprep.mubr.f32.mxu0 0.0
    %1281 = vmatmul.mubr.f32.gmra.mrb[0].mxu0 %v916
    %v1282 = vpop.f32.mrb[0].mxu0
    %v1283 = vadd.f32 %v703, %v1282
    %v1284 = vpop.f32.mrb[0].mxu0
    %1285 = vmatprep.mubr.f32.mxu0 0.0
    %1286 = vmatmul.mubr.f32.gmra.mrb[0].mxu0 %v919
    %v1287 = vpop.f32.mrb[0].mxu0
    %v1288 = vadd.f32 %v708, %v1287
    %v1289 = vpop.f32.mrb[0].mxu0
    %1290 = vmatprep.mubr.f32.mxu0 0.0
    %1291 = vmatmul.mubr.f32.gmra.mrb[0].mxu0 %v922
    %v1292 = vpop.f32.mrb[0].mxu0
    %v1293 = vadd.f32 %v713, %v1292
    %v1294 = vpop.f32.mrb[0].mxu0
    %1295 = vmatprep.mubr.f32.mxu0 0.0
    %1296 = vmatmul.mubr.f32.gmra.mrb[0].mxu0 %v925
    %v1297 = vpop.f32.mrb[0].mxu0
    %v1298 = vadd.f32 %v718, %v1297
    %v1299 = vpop.f32.mrb[0].mxu0
    %1300 = vmatprep.mubr.f32.mxu0 0.0
    %1301 = vmatmul.mubr.f32.gmra.mrb[0].mxu0 %v928
    %v1302 = vpop.f32.mrb[0].mxu0
    %v1303 = vadd.f32 %v723, %v1302
    %v1304 = vpop.f32.mrb[0].mxu0
    %1305 = vmatprep.mubr.f32.mxu0 0.0
    %1306 = vmatmul.mubr.f32.gmra.mrb[0].mxu0 %v931
    %v1307 = vpop.f32.mrb[0].mxu0
    %v1308 = vadd.f32 %v728, %v1307
    %v1309 = vpop.f32.mrb[0].mxu0
    %1310 = vmatprep.mubr.f32.mxu0 0.0
    %1311 = vmatmul.mubr.f32.gmra.mrb[0].mxu0 %v934
    %v1312 = vpop.f32.mrb[0].mxu0
    %v1313 = vadd.f32 %v733, %v1312
    %v1314 = vpop.f32.mrb[0].mxu0
    %1315 = vmatprep.mubr.f32.mxu0 0.0
    %1316 = vmatmul.mubr.f32.gmra.mrb[0].mxu0 %v937
    %v1317 = vpop.f32.mrb[0].mxu0
    %v1318 = vadd.f32 %v738, %v1317
    %v1319 = vpop.f32.mrb[0].mxu0
    %1320 = vmatprep.mubr.f32.mxu0 0.0
    %1321 = vmatmul.mubr.f32.gmra.mrb[0].mxu0 %v940
    %v1322 = vpop.f32.mrb[0].mxu0
    %v1323 = vadd.f32 %v743, %v1322
    %v1324 = vpop.f32.mrb[0].mxu0
    %1325 = vmatprep.mubr.f32.mxu0 0.0
    %1326 = vmatmul.mubr.f32.gmra.mrb[0].mxu0 %v943
    %v1327 = vpop.f32.mrb[0].mxu0
    %v1328 = vadd.f32 %v748, %v1327
    %v1329 = vpop.f32.mrb[0].mxu0
    %1330 = vmatprep.mubr.f32.mxu0 0.0
    %1331 = vmatmul.mubr.f32.gmra.mrb[0].mxu0 %v946
    %v1332 = vpop.f32.mrb[0].mxu0
    %v1333 = vadd.f32 %v753, %v1332
    %v1334 = vpop.f32.mrb[0].mxu0
    %1335 = vdwg.mxu0
    %v1336 = vld [vmem:[%s1 + $0x2] sm:$0xff]
    %v1337 = vld [vmem:[%s1 + $0xa] sm:$0xff]
    %v1338 = vld [vmem:[%s1 + $0x1a] sm:$0xff]
    %v1339 = vld [vmem:[%s1 + $0x22] sm:$0xff]
    %v1340 = vld [vmem:[%s1 + $0x32] sm:$0xff]
    %v1341 = vld [vmem:[%s1 + $0x3a] sm:$0xff]
    %v1342 = vld [vmem:[%s1 + $0x4a] sm:$0xff]
    %v1343 = vld [vmem:[%s1 + $0x52] sm:$0xff]
    %v1344 = vld [vmem:[%s1 + $0x62] sm:$0xff]
    %v1345 = vld [vmem:[%s1 + $0x6a] sm:$0xff]
    %v1346 = vld [vmem:[%s1 + $0x7a] sm:$0xff]
    %v1347 = vld [vmem:[%s1 + $0x82] sm:$0xff]
    %v1348 = vld [vmem:[%s1 + $0x92] sm:$0xff]
    %v1349 = vld [vmem:[%s1 + $0x9a] sm:$0xff]
    %v1350 = vld [vmem:[%s1 + $0xaa] sm:$0xff]
    %v1351 = vld [vmem:[%s1 + $0xb2] sm:$0xff]
    %v1352 = vld [vmem:[%s1 + $0xc2] sm:$0xff]
    %v1353 = vld [vmem:[%s1 + $0xca] sm:$0xff]
    %v1354 = vld [vmem:[%s1 + $0xda] sm:$0xff]
    %v1355 = vld [vmem:[%s1 + $0xe2] sm:$0xff]
    %v1356 = vld [vmem:[%s1 + $0xf2] sm:$0xff]
    %v1357 = vld [vmem:[%s1 + $0xfa] sm:$0xff]
    %v1358 = vld [vmem:[%s1 + $0x10a] sm:$0xff]
    %v1359 = vld [vmem:[%s1 + $0x112] sm:$0xff]
    %v1360 = vld [vmem:[%s1 + $0x122] sm:$0xff]
    %v1361 = vld [vmem:[%s1 + $0x12a] sm:$0xff]
    %v1362 = vld [vmem:[%s1 + $0x13a] sm:$0xff]
    %v1363 = vld [vmem:[%s1 + $0x142] sm:$0xff]
    %v1364 = vld [vmem:[%s1 + $0x152] sm:$0xff]
    %v1365 = vld [vmem:[%s1 + $0x15a] sm:$0xff]
    %v1366 = vld [vmem:[%s1 + $0x16a] sm:$0xff]
    %v1367 = vld [vmem:[%s1 + $0x172] sm:$0xff]
    %v1368 = vld [vmem:[%s1 + $0x1b2] sm:$0xff]
    %v1369 = vld [vmem:[%s1 + $0x1ba] sm:$0xff]
    %v1370 = vld [vmem:[%s1 + $0x1ca] sm:$0xff]
    %v1371 = vld [vmem:[%s1 + $0x1d2] sm:$0xff]
    %v1372 = vld [vmem:[%s1 + $0x1e2] sm:$0xff]
    %v1373 = vld [vmem:[%s1 + $0x1ea] sm:$0xff]
    %v1374 = vld [vmem:[%s1 + $0x1fa] sm:$0xff]
    %v1375 = vld [vmem:[%s1 + $0x202] sm:$0xff]
    %v1376 = vld [vmem:[%s1 + $0x212] sm:$0xff]
    %v1377 = vld [vmem:[%s1 + $0x21a] sm:$0xff]
    %v1378 = vld [vmem:[%s1 + $0x22a] sm:$0xff]
    %v1379 = vld [vmem:[%s1 + $0x232] sm:$0xff]
    %v1380 = vld [vmem:[%s1 + $0x242] sm:$0xff]
    %v1381 = vld [vmem:[%s1 + $0x24a] sm:$0xff]
    %v1382 = vld [vmem:[%s1 + $0x25a] sm:$0xff]
    %v1383 = vld [vmem:[%s1 + $0x262] sm:$0xff]
    %v1384 = vld [vmem:[%s1 + $0x272] sm:$0xff]
    %v1385 = vld [vmem:[%s1 + $0x27a] sm:$0xff]
    %v1386 = vld [vmem:[%s1 + $0x28a] sm:$0xff]
    %v1387 = vld [vmem:[%s1 + $0x292] sm:$0xff]
    %v1388 = vld [vmem:[%s1 + $0x2a2] sm:$0xff]
    %v1389 = vld [vmem:[%s1 + $0x2aa] sm:$0xff]
    %v1390 = vld [vmem:[%s1 + $0x2ba] sm:$0xff]
    %v1391 = vld [vmem:[%s1 + $0x2c2] sm:$0xff]
    %v1392 = vld [vmem:[%s1 + $0x2d2] sm:$0xff]
    %v1393 = vld [vmem:[%s1 + $0x2da] sm:$0xff]
    %v1394 = vld [vmem:[%s1 + $0x2ea] sm:$0xff]
    %v1395 = vld [vmem:[%s1 + $0x2f2] sm:$0xff]
    %v1396 = vld [vmem:[%s1 + $0x302] sm:$0xff]
    %v1397 = vld [vmem:[%s1 + $0x30a] sm:$0xff]
    %v1398 = vld [vmem:[%s1 + $0x31a] sm:$0xff]
    %v1399 = vld [vmem:[%s1 + $0x322] sm:$0xff]
    %s1400 = scalar_lea.vmem %s2, 8
    %v1401 = vld [vmem:[%s1400] sm:$0xf]
    %v1403 = vsel %vm174, %v1336, 0
    %v1406 = vsel %vm174, %v1337, 0
    %v1409 = vsel %vm174, %v1338, 0
    %v1412 = vsel %vm174, %v1339, 0
    %v1415 = vsel %vm174, %v1340, 0
    %v1418 = vsel %vm174, %v1341, 0
    %v1421 = vsel %vm174, %v1342, 0
    %v1424 = vsel %vm174, %v1343, 0
    %v1427 = vsel %vm174, %v1344, 0
    %v1430 = vsel %vm174, %v1345, 0
    %v1433 = vsel %vm174, %v1346, 0
    %v1436 = vsel %vm174, %v1347, 0
    %v1439 = vsel %vm174, %v1348, 0
    %v1442 = vsel %vm174, %v1349, 0
    %v1445 = vsel %vm174, %v1350, 0
    %v1448 = vsel %vm174, %v1351, 0
    %v1451 = vsel %vm174, %v1352, 0
    %v1454 = vsel %vm174, %v1353, 0
    %v1457 = vsel %vm174, %v1354, 0
    %v1460 = vsel %vm174, %v1355, 0
    %v1463 = vsel %vm174, %v1356, 0
    %v1466 = vsel %vm174, %v1357, 0
    %v1469 = vsel %vm174, %v1358, 0
    %v1472 = vsel %vm174, %v1359, 0
    %v1475 = vsel %vm174, %v1360, 0
    %v1478 = vsel %vm174, %v1361, 0
    %v1481 = vsel %vm174, %v1362, 0
    %v1484 = vsel %vm174, %v1363, 0
    %v1487 = vsel %vm174, %v1364, 0
    %v1490 = vsel %vm174, %v1365, 0
    %v1493 = vsel %vm174, %v1366, 0
    %v1496 = vsel %vm174, %v1367, 0
    %v1499 = vsel %vm174, %v1368, 0
    %v1502 = vsel %vm174, %v1369, 0
    %v1505 = vsel %vm174, %v1370, 0
    %v1508 = vsel %vm174, %v1371, 0
    %v1511 = vsel %vm174, %v1372, 0
    %v1514 = vsel %vm174, %v1373, 0
    %v1517 = vsel %vm174, %v1374, 0
    %v1520 = vsel %vm174, %v1375, 0
    %v1523 = vsel %vm174, %v1376, 0
    %v1526 = vsel %vm174, %v1377, 0
    %v1529 = vsel %vm174, %v1378, 0
    %v1532 = vsel %vm174, %v1379, 0
    %v1535 = vsel %vm174, %v1380, 0
    %v1538 = vsel %vm174, %v1381, 0
    %v1541 = vsel %vm174, %v1382, 0
    %v1544 = vsel %vm174, %v1383, 0
    %v1547 = vsel %vm174, %v1384, 0
    %v1550 = vsel %vm174, %v1385, 0
    %v1553 = vsel %vm174, %v1386, 0
    %v1556 = vsel %vm174, %v1387, 0
    %v1559 = vsel %vm174, %v1388, 0
    %v1562 = vsel %vm174, %v1389, 0
    %v1565 = vsel %vm174, %v1390, 0
    %v1568 = vsel %vm174, %v1391, 0
    %v1571 = vsel %vm174, %v1392, 0
    %v1574 = vsel %vm174, %v1393, 0
    %v1577 = vsel %vm174, %v1394, 0
    %v1580 = vsel %vm174, %v1395, 0
    %v1583 = vsel %vm174, %v1396, 0
    %v1586 = vsel %vm174, %v1397, 0
    %v1589 = vsel %vm174, %v1398, 0
    %v1592 = vsel %vm174, %v1399, 0
    %v1595 = vsel %vm367, %v1401, 0
    %1597 = vmatprep.subr.mxu0 0.0
    %1598 = vmatpush1.msra.mxu0 %v1595
    %1599 = vmatprep.subr.mxu0 0.0
    %1600 = vmatpush1.msra.mxu0 0.0
    %1601 = vmatprep.subr.mxu0 0.0
    %1602 = vmatpush1.msra.mxu0 0.0
    %1603 = vmatprep.subr.mxu0 0.0
    %1604 = vmatpush1.msra.mxu0 0.0
    %1605 = vmatprep.subr.mxu0 0.0
    %1606 = vmatpush1.msra.mxu0 0.0
    %1607 = vmatprep.subr.mxu0 0.0
    %1608 = vmatpush1.msra.mxu0 0.0
    %1609 = vmatprep.subr.mxu0 0.0
    %1610 = vmatpush1.msra.mxu0 0.0
    %1611 = vmatprep.subr.mxu0 0.0
    %1612 = vmatpush1.msra.mxu0 0.0
    %1613 = vmatprep.subr.mxu0 0.0
    %1614 = vmatpush1.msra.mxu0 0.0
    %1615 = vmatprep.subr.mxu0 0.0
    %1616 = vmatpush1.msra.mxu0 0.0
    %1617 = vmatprep.subr.mxu0 0.0
    %1618 = vmatpush1.msra.mxu0 0.0
    %1619 = vmatprep.subr.mxu0 0.0
    %1620 = vmatpush1.msra.mxu0 0.0
    %1621 = vmatprep.subr.mxu0 0.0
    %1622 = vmatpush1.msra.mxu0 0.0
    %1623 = vmatprep.subr.mxu0 0.0
    %1624 = vmatpush1.msra.mxu0 0.0
    %1625 = vmatprep.subr.mxu0 0.0
    %1626 = vmatpush1.msra.mxu0 0.0
    %1627 = vmatprep.subr.mxu0 0.0
    %1628 = vmatpush1.msra.mxu0 0.0
    %1629 = vmatprep.subr.mxu0 0.0
    %1630 = vmatpush1.msra.mxu0 0.0
    %1631 = vmatprep.subr.mxu0 0.0
    %1632 = vmatpush1.msra.mxu0 0.0
    %1633 = vmatprep.subr.mxu0 0.0
    %1634 = vmatpush1.msra.mxu0 0.0
    %1635 = vmatprep.subr.mxu0 0.0
    %1636 = vmatpush1.msra.mxu0 0.0
    %1637 = vmatprep.subr.mxu0 0.0
    %1638 = vmatpush1.msra.mxu0 0.0
    %1639 = vmatprep.subr.mxu0 0.0
    %1640 = vmatpush1.msra.mxu0 0.0
    %1641 = vmatprep.subr.mxu0 0.0
    %1642 = vmatpush1.msra.mxu0 0.0
    %1643 = vmatprep.subr.mxu0 0.0
    %1644 = vmatpush1.msra.mxu0 0.0
    %1645 = vmatprep.subr.mxu0 0.0
    %1646 = vmatpush1.msra.mxu0 0.0
    %1647 = vmatprep.subr.mxu0 0.0
    %1648 = vmatpush1.msra.mxu0 0.0
    %1649 = vmatprep.subr.mxu0 0.0
    %1650 = vmatpush1.msra.mxu0 0.0
    %1651 = vmatprep.subr.mxu0 0.0
    %1652 = vmatpush1.msra.mxu0 0.0
    %1653 = vmatprep.subr.mxu0 0.0
    %1654 = vmatpush1.msra.mxu0 0.0
    %1655 = vmatprep.subr.mxu0 0.0
    %1656 = vmatpush1.msra.mxu0 0.0
    %1657 = vmatprep.subr.mxu0 0.0
    %1658 = vmatpush1.msra.mxu0 0.0
    %1659 = vmatprep.subr.mxu0 0.0
    %1660 = vmatpush1.msra.mxu0 0.0
    %1661 = vmatprep.mubr.f32.mxu0 0.0
    %1662 = vmatmul.mubr.f32.gmra.mrb[0].mxu0 %v1403
    %v1663 = vpop.f32.mrb[0].mxu0
    %v1664 = vadd.f32 0.0, %v1663
    %v1665 = vpop.f32.mrb[0].mxu0
    %1666 = vmatprep.mubr.f32.mxu0 0.0
    %1667 = vmatmul.mubr.f32.gmra.mrb[0].mxu0 %v1406
    %v1668 = vpop.f32.mrb[0].mxu0
    %v1669 = vadd.f32 0.0, %v1668
    %v1670 = vpop.f32.mrb[0].mxu0
    %1671 = vmatprep.mubr.f32.mxu0 0.0
    %1672 = vmatmul.mubr.f32.gmra.mrb[0].mxu0 %v1409
    %v1673 = vpop.f32.mrb[0].mxu0
    %v1674 = vadd.f32 0.0, %v1673
    %v1675 = vpop.f32.mrb[0].mxu0
    %1676 = vmatprep.mubr.f32.mxu0 0.0
    %1677 = vmatmul.mubr.f32.gmra.mrb[0].mxu0 %v1412
    %v1678 = vpop.f32.mrb[0].mxu0
    %v1679 = vadd.f32 0.0, %v1678
    %v1680 = vpop.f32.mrb[0].mxu0
    %1681 = vmatprep.mubr.f32.mxu0 0.0
    %1682 = vmatmul.mubr.f32.gmra.mrb[0].mxu0 %v1415
    %v1683 = vpop.f32.mrb[0].mxu0
    %v1684 = vadd.f32 0.0, %v1683
    %v1685 = vpop.f32.mrb[0].mxu0
    %1686 = vmatprep.mubr.f32.mxu0 0.0
    %1687 = vmatmul.mubr.f32.gmra.mrb[0].mxu0 %v1418
    %v1688 = vpop.f32.mrb[0].mxu0
    %v1689 = vadd.f32 0.0, %v1688
    %v1690 = vpop.f32.mrb[0].mxu0
    %1691 = vmatprep.mubr.f32.mxu0 0.0
    %1692 = vmatmul.mubr.f32.gmra.mrb[0].mxu0 %v1421
    %v1693 = vpop.f32.mrb[0].mxu0
    %v1694 = vadd.f32 0.0, %v1693
    %v1695 = vpop.f32.mrb[0].mxu0
    %1696 = vmatprep.mubr.f32.mxu0 0.0
    %1697 = vmatmul.mubr.f32.gmra.mrb[0].mxu0 %v1424
    %v1698 = vpop.f32.mrb[0].mxu0
    %v1699 = vadd.f32 0.0, %v1698
    %v1700 = vpop.f32.mrb[0].mxu0
    %1701 = vmatprep.mubr.f32.mxu0 0.0
    %1702 = vmatmul.mubr.f32.gmra.mrb[0].mxu0 %v1427
    %v1703 = vpop.f32.mrb[0].mxu0
    %v1704 = vadd.f32 0.0, %v1703
    %v1705 = vpop.f32.mrb[0].mxu0
    %1706 = vmatprep.mubr.f32.mxu0 0.0
    %1707 = vmatmul.mubr.f32.gmra.mrb[0].mxu0 %v1430
    %v1708 = vpop.f32.mrb[0].mxu0
    %v1709 = vadd.f32 0.0, %v1708
    %v1710 = vpop.f32.mrb[0].mxu0
    %1711 = vmatprep.mubr.f32.mxu0 0.0
    %1712 = vmatmul.mubr.f32.gmra.mrb[0].mxu0 %v1433
    %v1713 = vpop.f32.mrb[0].mxu0
    %v1714 = vadd.f32 0.0, %v1713
    %v1715 = vpop.f32.mrb[0].mxu0
    %1716 = vmatprep.mubr.f32.mxu0 0.0
    %1717 = vmatmul.mubr.f32.gmra.mrb[0].mxu0 %v1436
    %v1718 = vpop.f32.mrb[0].mxu0
    %v1719 = vadd.f32 0.0, %v1718
    %v1720 = vpop.f32.mrb[0].mxu0
    %1721 = vmatprep.mubr.f32.mxu0 0.0
    %1722 = vmatmul.mubr.f32.gmra.mrb[0].mxu0 %v1439
    %v1723 = vpop.f32.mrb[0].mxu0
    %v1724 = vadd.f32 0.0, %v1723
    %v1725 = vpop.f32.mrb[0].mxu0
    %1726 = vmatprep.mubr.f32.mxu0 0.0
    %1727 = vmatmul.mubr.f32.gmra.mrb[0].mxu0 %v1442
    %v1728 = vpop.f32.mrb[0].mxu0
    %v1729 = vadd.f32 0.0, %v1728
    %v1730 = vpop.f32.mrb[0].mxu0
    %1731 = vmatprep.mubr.f32.mxu0 0.0
    %1732 = vmatmul.mubr.f32.gmra.mrb[0].mxu0 %v1445
    %v1733 = vpop.f32.mrb[0].mxu0
    %v1734 = vadd.f32 0.0, %v1733
    %v1735 = vpop.f32.mrb[0].mxu0
    %1736 = vmatprep.mubr.f32.mxu0 0.0
    %1737 = vmatmul.mubr.f32.gmra.mrb[0].mxu0 %v1448
    %v1738 = vpop.f32.mrb[0].mxu0
    %v1739 = vadd.f32 0.0, %v1738
    %v1740 = vpop.f32.mrb[0].mxu0
    %1741 = vmatprep.mubr.f32.mxu0 0.0
    %1742 = vmatmul.mubr.f32.gmra.mrb[0].mxu0 %v1451
    %v1743 = vpop.f32.mrb[0].mxu0
    %v1744 = vadd.f32 0.0, %v1743
    %v1745 = vpop.f32.mrb[0].mxu0
    %1746 = vmatprep.mubr.f32.mxu0 0.0
    %1747 = vmatmul.mubr.f32.gmra.mrb[0].mxu0 %v1454
    %v1748 = vpop.f32.mrb[0].mxu0
    %v1749 = vadd.f32 0.0, %v1748
    %v1750 = vpop.f32.mrb[0].mxu0
    %1751 = vmatprep.mubr.f32.mxu0 0.0
    %1752 = vmatmul.mubr.f32.gmra.mrb[0].mxu0 %v1457
    %v1753 = vpop.f32.mrb[0].mxu0
    %v1754 = vadd.f32 0.0, %v1753
    %v1755 = vpop.f32.mrb[0].mxu0
    %1756 = vmatprep.mubr.f32.mxu0 0.0
    %1757 = vmatmul.mubr.f32.gmra.mrb[0].mxu0 %v1460
    %v1758 = vpop.f32.mrb[0].mxu0
    %v1759 = vadd.f32 0.0, %v1758
    %v1760 = vpop.f32.mrb[0].mxu0
    %1761 = vmatprep.mubr.f32.mxu0 0.0
    %1762 = vmatmul.mubr.f32.gmra.mrb[0].mxu0 %v1463
    %v1763 = vpop.f32.mrb[0].mxu0
    %v1764 = vadd.f32 0.0, %v1763
    %v1765 = vpop.f32.mrb[0].mxu0
    %1766 = vmatprep.mubr.f32.mxu0 0.0
    %1767 = vmatmul.mubr.f32.gmra.mrb[0].mxu0 %v1466
    %v1768 = vpop.f32.mrb[0].mxu0
    %v1769 = vadd.f32 0.0, %v1768
    %v1770 = vpop.f32.mrb[0].mxu0
    %1771 = vmatprep.mubr.f32.mxu0 0.0
    %1772 = vmatmul.mubr.f32.gmra.mrb[0].mxu0 %v1469
    %v1773 = vpop.f32.mrb[0].mxu0
    %v1774 = vadd.f32 0.0, %v1773
    %v1775 = vpop.f32.mrb[0].mxu0
    %1776 = vmatprep.mubr.f32.mxu0 0.0
    %1777 = vmatmul.mubr.f32.gmra.mrb[0].mxu0 %v1472
    %v1778 = vpop.f32.mrb[0].mxu0
    %v1779 = vadd.f32 0.0, %v1778
    %v1780 = vpop.f32.mrb[0].mxu0
    %1781 = vmatprep.mubr.f32.mxu0 0.0
    %1782 = vmatmul.mubr.f32.gmra.mrb[0].mxu0 %v1475
    %v1783 = vpop.f32.mrb[0].mxu0
    %v1784 = vadd.f32 0.0, %v1783
    %v1785 = vpop.f32.mrb[0].mxu0
    %1786 = vmatprep.mubr.f32.mxu0 0.0
    %1787 = vmatmul.mubr.f32.gmra.mrb[0].mxu0 %v1478
    %v1788 = vpop.f32.mrb[0].mxu0
    %v1789 = vadd.f32 0.0, %v1788
    %v1790 = vpop.f32.mrb[0].mxu0
    %1791 = vmatprep.mubr.f32.mxu0 0.0
    %1792 = vmatmul.mubr.f32.gmra.mrb[0].mxu0 %v1481
    %v1793 = vpop.f32.mrb[0].mxu0
    %v1794 = vadd.f32 0.0, %v1793
    %v1795 = vpop.f32.mrb[0].mxu0
    %1796 = vmatprep.mubr.f32.mxu0 0.0
    %1797 = vmatmul.mubr.f32.gmra.mrb[0].mxu0 %v1484
    %v1798 = vpop.f32.mrb[0].mxu0
    %v1799 = vadd.f32 0.0, %v1798
    %v1800 = vpop.f32.mrb[0].mxu0
    %1801 = vmatprep.mubr.f32.mxu0 0.0
    %1802 = vmatmul.mubr.f32.gmra.mrb[0].mxu0 %v1487
    %v1803 = vpop.f32.mrb[0].mxu0
    %v1804 = vadd.f32 0.0, %v1803
    %v1805 = vpop.f32.mrb[0].mxu0
    %1806 = vmatprep.mubr.f32.mxu0 0.0
    %1807 = vmatmul.mubr.f32.gmra.mrb[0].mxu0 %v1490
    %v1808 = vpop.f32.mrb[0].mxu0
    %v1809 = vadd.f32 0.0, %v1808
    %v1810 = vpop.f32.mrb[0].mxu0
    %1811 = vmatprep.mubr.f32.mxu0 0.0
    %1812 = vmatmul.mubr.f32.gmra.mrb[0].mxu0 %v1493
    %v1813 = vpop.f32.mrb[0].mxu0
    %v1814 = vadd.f32 0.0, %v1813
    %v1815 = vpop.f32.mrb[0].mxu0
    %1816 = vmatprep.mubr.f32.mxu0 0.0
    %1817 = vmatmul.mubr.f32.gmra.mrb[0].mxu0 %v1496
    %v1818 = vpop.f32.mrb[0].mxu0
    %v1819 = vadd.f32 0.0, %v1818
    %v1820 = vpop.f32.mrb[0].mxu0
    %1821 = vmatprep.mubr.f32.mxu0 0.0
    %1822 = vmatmul.mubr.f32.gmra.mrb[0].mxu0 %v1499
    %v1823 = vpop.f32.mrb[0].mxu0
    %v1824 = vadd.f32 0.0, %v1823
    %v1825 = vpop.f32.mrb[0].mxu0
    %1826 = vmatprep.mubr.f32.mxu0 0.0
    %1827 = vmatmul.mubr.f32.gmra.mrb[0].mxu0 %v1502
    %v1828 = vpop.f32.mrb[0].mxu0
    %v1829 = vadd.f32 0.0, %v1828
    %v1830 = vpop.f32.mrb[0].mxu0
    %1831 = vmatprep.mubr.f32.mxu0 0.0
    %1832 = vmatmul.mubr.f32.gmra.mrb[0].mxu0 %v1505
    %v1833 = vpop.f32.mrb[0].mxu0
    %v1834 = vadd.f32 0.0, %v1833
    %v1835 = vpop.f32.mrb[0].mxu0
    %1836 = vmatprep.mubr.f32.mxu0 0.0
    %1837 = vmatmul.mubr.f32.gmra.mrb[0].mxu0 %v1508
    %v1838 = vpop.f32.mrb[0].mxu0
    %v1839 = vadd.f32 0.0, %v1838
    %v1840 = vpop.f32.mrb[0].mxu0
    %1841 = vmatprep.mubr.f32.mxu0 0.0
    %1842 = vmatmul.mubr.f32.gmra.mrb[0].mxu0 %v1511
    %v1843 = vpop.f32.mrb[0].mxu0
    %v1844 = vadd.f32 0.0, %v1843
    %v1845 = vpop.f32.mrb[0].mxu0
    %1846 = vmatprep.mubr.f32.mxu0 0.0
    %1847 = vmatmul.mubr.f32.gmra.mrb[0].mxu0 %v1514
    %v1848 = vpop.f32.mrb[0].mxu0
    %v1849 = vadd.f32 0.0, %v1848
    %v1850 = vpop.f32.mrb[0].mxu0
    %1851 = vmatprep.mubr.f32.mxu0 0.0
    %1852 = vmatmul.mubr.f32.gmra.mrb[0].mxu0 %v1517
    %v1853 = vpop.f32.mrb[0].mxu0
    %v1854 = vadd.f32 0.0, %v1853
    %v1855 = vpop.f32.mrb[0].mxu0
    %1856 = vmatprep.mubr.f32.mxu0 0.0
    %1857 = vmatmul.mubr.f32.gmra.mrb[0].mxu0 %v1520
    %v1858 = vpop.f32.mrb[0].mxu0
    %v1859 = vadd.f32 0.0, %v1858
    %v1860 = vpop.f32.mrb[0].mxu0
    %1861 = vmatprep.mubr.f32.mxu0 0.0
    %1862 = vmatmul.mubr.f32.gmra.mrb[0].mxu0 %v1523
    %v1863 = vpop.f32.mrb[0].mxu0
    %v1864 = vadd.f32 0.0, %v1863
    %v1865 = vpop.f32.mrb[0].mxu0
    %1866 = vmatprep.mubr.f32.mxu0 0.0
    %1867 = vmatmul.mubr.f32.gmra.mrb[0].mxu0 %v1526
    %v1868 = vpop.f32.mrb[0].mxu0
    %v1869 = vadd.f32 0.0, %v1868
    %v1870 = vpop.f32.mrb[0].mxu0
    %1871 = vmatprep.mubr.f32.mxu0 0.0
    %1872 = vmatmul.mubr.f32.gmra.mrb[0].mxu0 %v1529
    %v1873 = vpop.f32.mrb[0].mxu0
    %v1874 = vadd.f32 0.0, %v1873
    %v1875 = vpop.f32.mrb[0].mxu0
    %1876 = vmatprep.mubr.f32.mxu0 0.0
    %1877 = vmatmul.mubr.f32.gmra.mrb[0].mxu0 %v1532
    %v1878 = vpop.f32.mrb[0].mxu0
    %v1879 = vadd.f32 0.0, %v1878
    %v1880 = vpop.f32.mrb[0].mxu0
    %1881 = vmatprep.mubr.f32.mxu0 0.0
    %1882 = vmatmul.mubr.f32.gmra.mrb[0].mxu0 %v1535
    %v1883 = vpop.f32.mrb[0].mxu0
    %v1884 = vadd.f32 0.0, %v1883
    %v1885 = vpop.f32.mrb[0].mxu0
    %1886 = vmatprep.mubr.f32.mxu0 0.0
    %1887 = vmatmul.mubr.f32.gmra.mrb[0].mxu0 %v1538
    %v1888 = vpop.f32.mrb[0].mxu0
    %v1889 = vadd.f32 0.0, %v1888
    %v1890 = vpop.f32.mrb[0].mxu0
    %1891 = vmatprep.mubr.f32.mxu0 0.0
    %1892 = vmatmul.mubr.f32.gmra.mrb[0].mxu0 %v1541
    %v1893 = vpop.f32.mrb[0].mxu0
    %v1894 = vadd.f32 0.0, %v1893
    %v1895 = vpop.f32.mrb[0].mxu0
    %1896 = vmatprep.mubr.f32.mxu0 0.0
    %1897 = vmatmul.mubr.f32.gmra.mrb[0].mxu0 %v1544
    %v1898 = vpop.f32.mrb[0].mxu0
    %v1899 = vadd.f32 0.0, %v1898
    %v1900 = vpop.f32.mrb[0].mxu0
    %1901 = vmatprep.mubr.f32.mxu0 0.0
    %1902 = vmatmul.mubr.f32.gmra.mrb[0].mxu0 %v1547
    %v1903 = vpop.f32.mrb[0].mxu0
    %v1904 = vadd.f32 0.0, %v1903
    %v1905 = vpop.f32.mrb[0].mxu0
    %1906 = vmatprep.mubr.f32.mxu0 0.0
    %1907 = vmatmul.mubr.f32.gmra.mrb[0].mxu0 %v1550
    %v1908 = vpop.f32.mrb[0].mxu0
    %v1909 = vadd.f32 0.0, %v1908
    %v1910 = vpop.f32.mrb[0].mxu0
    %1911 = vmatprep.mubr.f32.mxu0 0.0
    %1912 = vmatmul.mubr.f32.gmra.mrb[0].mxu0 %v1553
    %v1913 = vpop.f32.mrb[0].mxu0
    %v1914 = vadd.f32 0.0, %v1913
    %v1915 = vpop.f32.mrb[0].mxu0
    %1916 = vmatprep.mubr.f32.mxu0 0.0
    %1917 = vmatmul.mubr.f32.gmra.mrb[0].mxu0 %v1556
    %v1918 = vpop.f32.mrb[0].mxu0
    %v1919 = vadd.f32 0.0, %v1918
    %v1920 = vpop.f32.mrb[0].mxu0
    %1921 = vmatprep.mubr.f32.mxu0 0.0
    %1922 = vmatmul.mubr.f32.gmra.mrb[0].mxu0 %v1559
    %v1923 = vpop.f32.mrb[0].mxu0
    %v1924 = vadd.f32 0.0, %v1923
    %v1925 = vpop.f32.mrb[0].mxu0
    %1926 = vmatprep.mubr.f32.mxu0 0.0
    %1927 = vmatmul.mubr.f32.gmra.mrb[0].mxu0 %v1562
    %v1928 = vpop.f32.mrb[0].mxu0
    %v1929 = vadd.f32 0.0, %v1928
    %v1930 = vpop.f32.mrb[0].mxu0
    %1931 = vmatprep.mubr.f32.mxu0 0.0
    %1932 = vmatmul.mubr.f32.gmra.mrb[0].mxu0 %v1565
    %v1933 = vpop.f32.mrb[0].mxu0
    %v1934 = vadd.f32 0.0, %v1933
    %v1935 = vpop.f32.mrb[0].mxu0
    %1936 = vmatprep.mubr.f32.mxu0 0.0
    %1937 = vmatmul.mubr.f32.gmra.mrb[0].mxu0 %v1568
    %v1938 = vpop.f32.mrb[0].mxu0
    %v1939 = vadd.f32 0.0, %v1938
    %v1940 = vpop.f32.mrb[0].mxu0
    %1941 = vmatprep.mubr.f32.mxu0 0.0
    %1942 = vmatmul.mubr.f32.gmra.mrb[0].mxu0 %v1571
    %v1943 = vpop.f32.mrb[0].mxu0
    %v1944 = vadd.f32 0.0, %v1943
    %v1945 = vpop.f32.mrb[0].mxu0
    %1946 = vmatprep.mubr.f32.mxu0 0.0
    %1947 = vmatmul.mubr.f32.gmra.mrb[0].mxu0 %v1574
    %v1948 = vpop.f32.mrb[0].mxu0
    %v1949 = vadd.f32 0.0, %v1948
    %v1950 = vpop.f32.mrb[0].mxu0
    %1951 = vmatprep.mubr.f32.mxu0 0.0
    %1952 = vmatmul.mubr.f32.gmra.mrb[0].mxu0 %v1577
    %v1953 = vpop.f32.mrb[0].mxu0
    %v1954 = vadd.f32 0.0, %v1953
    %v1955 = vpop.f32.mrb[0].mxu0
    %1956 = vmatprep.mubr.f32.mxu0 0.0
    %1957 = vmatmul.mubr.f32.gmra.mrb[0].mxu0 %v1580
    %v1958 = vpop.f32.mrb[0].mxu0
    %v1959 = vadd.f32 0.0, %v1958
    %v1960 = vpop.f32.mrb[0].mxu0
    %1961 = vmatprep.mubr.f32.mxu0 0.0
    %1962 = vmatmul.mubr.f32.gmra.mrb[0].mxu0 %v1583
    %v1963 = vpop.f32.mrb[0].mxu0
    %v1964 = vadd.f32 0.0, %v1963
    %v1965 = vpop.f32.mrb[0].mxu0
    %1966 = vmatprep.mubr.f32.mxu0 0.0
    %1967 = vmatmul.mubr.f32.gmra.mrb[0].mxu0 %v1586
    %v1968 = vpop.f32.mrb[0].mxu0
    %v1969 = vadd.f32 0.0, %v1968
    %v1970 = vpop.f32.mrb[0].mxu0
    %1971 = vmatprep.mubr.f32.mxu0 0.0
    %1972 = vmatmul.mubr.f32.gmra.mrb[0].mxu0 %v1589
    %v1973 = vpop.f32.mrb[0].mxu0
    %v1974 = vadd.f32 0.0, %v1973
    %v1975 = vpop.f32.mrb[0].mxu0
    %1976 = vmatprep.mubr.f32.mxu0 0.0
    %1977 = vmatmul.mubr.f32.gmra.mrb[0].mxu0 %v1592
    %v1978 = vpop.f32.mrb[0].mxu0
    %v1979 = vadd.f32 0.0, %v1978
    %v1980 = vpop.f32.mrb[0].mxu0
    %1981 = vdwg.mxu0
    %v1982 = vadd.f32 %v1018, %v1664
    %v1983 = vadd.f32 %v1023, %v1669
    %v1984 = vadd.f32 %v1028, %v1674
    %v1985 = vadd.f32 %v1033, %v1679
    %v1986 = vadd.f32 %v1038, %v1684
    %v1987 = vadd.f32 %v1043, %v1689
    %v1988 = vadd.f32 %v1048, %v1694
    %v1989 = vadd.f32 %v1053, %v1699
    %v1990 = vadd.f32 %v1058, %v1704
    %v1991 = vadd.f32 %v1063, %v1709
    %v1992 = vadd.f32 %v1068, %v1714
    %v1993 = vadd.f32 %v1073, %v1719
    %v1994 = vadd.f32 %v1078, %v1724
    %v1995 = vadd.f32 %v1083, %v1729
    %v1996 = vadd.f32 %v1088, %v1734
    %v1997 = vadd.f32 %v1093, %v1739
    %v1998 = vadd.f32 %v1098, %v1744
    %v1999 = vadd.f32 %v1103, %v1749
    %v2000 = vadd.f32 %v1108, %v1754
    %v2001 = vadd.f32 %v1113, %v1759
    %v2002 = vadd.f32 %v1118, %v1764
    %v2003 = vadd.f32 %v1123, %v1769
    %v2004 = vadd.f32 %v1128, %v1774
    %v2005 = vadd.f32 %v1133, %v1779
    %v2006 = vadd.f32 %v1138, %v1784
    %v2007 = vadd.f32 %v1143, %v1789
    %v2008 = vadd.f32 %v1148, %v1794
    %v2009 = vadd.f32 %v1153, %v1799
    %v2010 = vadd.f32 %v1158, %v1804
    %v2011 = vadd.f32 %v1163, %v1809
    %v2012 = vadd.f32 %v1168, %v1814
    %v2013 = vadd.f32 %v1173, %v1819
    %v2014 = vadd.f32 %v1178, %v1824
    %v2015 = vadd.f32 %v1183, %v1829
    %v2016 = vadd.f32 %v1188, %v1834
    %v2017 = vadd.f32 %v1193, %v1839
    %v2018 = vadd.f32 %v1198, %v1844
    %v2019 = vadd.f32 %v1203, %v1849
    %v2020 = vadd.f32 %v1208, %v1854
    %v2021 = vadd.f32 %v1213, %v1859
    %v2022 = vadd.f32 %v1218, %v1864
    %v2023 = vadd.f32 %v1223, %v1869
    %v2024 = vadd.f32 %v1228, %v1874
    %v2025 = vadd.f32 %v1233, %v1879
    %v2026 = vadd.f32 %v1238, %v1884
    %v2027 = vadd.f32 %v1243, %v1889
    %v2028 = vadd.f32 %v1248, %v1894
    %v2029 = vadd.f32 %v1253, %v1899
    %v2030 = vadd.f32 %v1258, %v1904
    %v2031 = vadd.f32 %v1263, %v1909
    %v2032 = vadd.f32 %v1268, %v1914
    %v2033 = vadd.f32 %v1273, %v1919
    %v2034 = vadd.f32 %v1278, %v1924
    %v2035 = vadd.f32 %v1283, %v1929
    %v2036 = vadd.f32 %v1288, %v1934
    %v2037 = vadd.f32 %v1293, %v1939
    %v2038 = vadd.f32 %v1298, %v1944
    %v2039 = vadd.f32 %v1303, %v1949
    %v2040 = vadd.f32 %v1308, %v1954
    %v2041 = vadd.f32 %v1313, %v1959
    %v2042 = vadd.f32 %v1318, %v1964
    %v2043 = vadd.f32 %v1323, %v1969
    %v2044 = vadd.f32 %v1328, %v1974
    %v2045 = vadd.f32 %v1333, %v1979
    %s2046 = scalar_lea.vmem %s1, 24
    %v2047 = vld [vmem:[%s2046] sm:$0xff]
    %v2048 = vld [vmem:[%s2046 + $0x8] sm:$0xff]
    %v2049 = vld [vmem:[%s2046 + $0x18] sm:$0xff]
    %v2050 = vld [vmem:[%s2046 + $0x20] sm:$0xff]
    %v2051 = vld [vmem:[%s2046 + $0x30] sm:$0xff]
    %v2052 = vld [vmem:[%s2046 + $0x38] sm:$0xff]
    %v2053 = vld [vmem:[%s2046 + $0x48] sm:$0xff]
    %v2054 = vld [vmem:[%s2046 + $0x50] sm:$0xff]
    %v2055 = vld [vmem:[%s2046 + $0x60] sm:$0xff]
    %v2056 = vld [vmem:[%s2046 + $0x68] sm:$0xff]
    %v2057 = vld [vmem:[%s2046 + $0x78] sm:$0xff]
    %v2058 = vld [vmem:[%s2046 + $0x80] sm:$0xff]
    %v2059 = vld [vmem:[%s2046 + $0x90] sm:$0xff]
    %v2060 = vld [vmem:[%s2046 + $0x98] sm:$0xff]
    %v2061 = vld [vmem:[%s2046 + $0xa8] sm:$0xff]
    %v2062 = vld [vmem:[%s2046 + $0xb0] sm:$0xff]
    %v2063 = vld [vmem:[%s2046 + $0xc0] sm:$0xff]
    %v2064 = vld [vmem:[%s2046 + $0xc8] sm:$0xff]
    %v2065 = vld [vmem:[%s2046 + $0xd8] sm:$0xff]
    %v2066 = vld [vmem:[%s2046 + $0xe0] sm:$0xff]
    %v2067 = vld [vmem:[%s2046 + $0xf0] sm:$0xff]
    %v2068 = vld [vmem:[%s2046 + $0xf8] sm:$0xff]
    %v2069 = vld [vmem:[%s2046 + $0x108] sm:$0xff]
    %v2070 = vld [vmem:[%s2046 + $0x110] sm:$0xff]
    %v2071 = vld [vmem:[%s2046 + $0x120] sm:$0xff]
    %v2072 = vld [vmem:[%s2046 + $0x128] sm:$0xff]
    %v2073 = vld [vmem:[%s2046 + $0x138] sm:$0xff]
    %v2074 = vld [vmem:[%s2046 + $0x140] sm:$0xff]
    %v2075 = vld [vmem:[%s2046 + $0x150] sm:$0xff]
    %v2076 = vld [vmem:[%s2046 + $0x158] sm:$0xff]
    %v2077 = vld [vmem:[%s2046 + $0x168] sm:$0xff]
    %v2078 = vld [vmem:[%s2046 + $0x170] sm:$0xff]
    %v2079 = vld [vmem:[%s2046 + $0x1b0] sm:$0xff]
    %v2080 = vld [vmem:[%s2046 + $0x1b8] sm:$0xff]
    %v2081 = vld [vmem:[%s2046 + $0x1c8] sm:$0xff]
    %v2082 = vld [vmem:[%s2046 + $0x1d0] sm:$0xff]
    %v2083 = vld [vmem:[%s2046 + $0x1e0] sm:$0xff]
    %v2084 = vld [vmem:[%s2046 + $0x1e8] sm:$0xff]
    %v2085 = vld [vmem:[%s2046 + $0x1f8] sm:$0xff]
    %v2086 = vld [vmem:[%s2046 + $0x200] sm:$0xff]
    %v2087 = vld [vmem:[%s2046 + $0x210] sm:$0xff]
    %v2088 = vld [vmem:[%s2046 + $0x218] sm:$0xff]
    %v2089 = vld [vmem:[%s2046 + $0x228] sm:$0xff]
    %v2090 = vld [vmem:[%s2046 + $0x230] sm:$0xff]
    %v2091 = vld [vmem:[%s2046 + $0x240] sm:$0xff]
    %v2092 = vld [vmem:[%s2046 + $0x248] sm:$0xff]
    %v2093 = vld [vmem:[%s2046 + $0x258] sm:$0xff]
    %v2094 = vld [vmem:[%s2046 + $0x260] sm:$0xff]
    %v2095 = vld [vmem:[%s2046 + $0x270] sm:$0xff]
    %v2096 = vld [vmem:[%s2046 + $0x278] sm:$0xff]
    %v2097 = vld [vmem:[%s2046 + $0x288] sm:$0xff]
    %v2098 = vld [vmem:[%s2046 + $0x290] sm:$0xff]
    %v2099 = vld [vmem:[%s2046 + $0x2a0] sm:$0xff]
    %v2100 = vld [vmem:[%s2046 + $0x2a8] sm:$0xff]
    %v2101 = vld [vmem:[%s2046 + $0x2b8] sm:$0xff]
    %v2102 = vld [vmem:[%s2046 + $0x2c0] sm:$0xff]
    %v2103 = vld [vmem:[%s2046 + $0x2d0] sm:$0xff]
    %v2104 = vld [vmem:[%s2046 + $0x2d8] sm:$0xff]
    %v2105 = vld [vmem:[%s2046 + $0x2e8] sm:$0xff]
    %v2106 = vld [vmem:[%s2046 + $0x2f0] sm:$0xff]
    %v2107 = vld [vmem:[%s2046 + $0x300] sm:$0xff]
    %v2108 = vld [vmem:[%s2046 + $0x308] sm:$0xff]
    %v2109 = vld [vmem:[%s2046 + $0x318] sm:$0xff]
    %v2110 = vld [vmem:[%s2046 + $0x320] sm:$0xff]
    %s2111 = scalar_lea.vmem %s2, 12
    %v2112 = vld [vmem:[%s2111] sm:$0xf]
    %v2114 = vsel %vm174, %v2047, 0
    %v2117 = vsel %vm174, %v2048, 0
    %v2120 = vsel %vm174, %v2049, 0
    %v2123 = vsel %vm174, %v2050, 0
    %v2126 = vsel %vm174, %v2051, 0
    %v2129 = vsel %vm174, %v2052, 0
    %v2132 = vsel %vm174, %v2053, 0
    %v2135 = vsel %vm174, %v2054, 0
    %v2138 = vsel %vm174, %v2055, 0
    %v2141 = vsel %vm174, %v2056, 0
    %v2144 = vsel %vm174, %v2057, 0
    %v2147 = vsel %vm174, %v2058, 0
    %v2150 = vsel %vm174, %v2059, 0
    %v2153 = vsel %vm174, %v2060, 0
    %v2156 = vsel %vm174, %v2061, 0
    %v2159 = vsel %vm174, %v2062, 0
    %v2162 = vsel %vm174, %v2063, 0
    %v2165 = vsel %vm174, %v2064, 0
    %v2168 = vsel %vm174, %v2065, 0
    %v2171 = vsel %vm174, %v2066, 0
    %v2174 = vsel %vm174, %v2067, 0
    %v2177 = vsel %vm174, %v2068, 0
    %v2180 = vsel %vm174, %v2069, 0
    %v2183 = vsel %vm174, %v2070, 0
    %v2186 = vsel %vm174, %v2071, 0
    %v2189 = vsel %vm174, %v2072, 0
    %v2192 = vsel %vm174, %v2073, 0
    %v2195 = vsel %vm174, %v2074, 0
    %v2198 = vsel %vm174, %v2075, 0
    %v2201 = vsel %vm174, %v2076, 0
    %v2204 = vsel %vm174, %v2077, 0
    %v2207 = vsel %vm174, %v2078, 0
    %v2210 = vsel %vm174, %v2079, 0
    %v2213 = vsel %vm174, %v2080, 0
    %v2216 = vsel %vm174, %v2081, 0
    %v2219 = vsel %vm174, %v2082, 0
    %v2222 = vsel %vm174, %v2083, 0
    %v2225 = vsel %vm174, %v2084, 0
    %v2228 = vsel %vm174, %v2085, 0
    %v2231 = vsel %vm174, %v2086, 0
    %v2234 = vsel %vm174, %v2087, 0
    %v2237 = vsel %vm174, %v2088, 0
    %v2240 = vsel %vm174, %v2089, 0
    %v2243 = vsel %vm174, %v2090, 0
    %v2246 = vsel %vm174, %v2091, 0
    %v2249 = vsel %vm174, %v2092, 0
    %v2252 = vsel %vm174, %v2093, 0
    %v2255 = vsel %vm174, %v2094, 0
    %v2258 = vsel %vm174, %v2095, 0
    %v2261 = vsel %vm174, %v2096, 0
    %v2264 = vsel %vm174, %v2097, 0
    %v2267 = vsel %vm174, %v2098, 0
    %v2270 = vsel %vm174, %v2099, 0
    %v2273 = vsel %vm174, %v2100, 0
    %v2276 = vsel %vm174, %v2101, 0
    %v2279 = vsel %vm174, %v2102, 0
    %v2282 = vsel %vm174, %v2103, 0
    %v2285 = vsel %vm174, %v2104, 0
    %v2288 = vsel %vm174, %v2105, 0
    %v2291 = vsel %vm174, %v2106, 0
    %v2294 = vsel %vm174, %v2107, 0
    %v2297 = vsel %vm174, %v2108, 0
    %v2300 = vsel %vm174, %v2109, 0
    %v2303 = vsel %vm174, %v2110, 0
    %v2306 = vsel %vm367, %v2112, 0
    %2308 = vmatprep.subr.mxu0 0.0
    %2309 = vmatpush1.msra.mxu0 %v2306
    %2310 = vmatprep.subr.mxu0 0.0
    %2311 = vmatpush1.msra.mxu0 0.0
    %2312 = vmatprep.subr.mxu0 0.0
    %2313 = vmatpush1.msra.mxu0 0.0
    %2314 = vmatprep.subr.mxu0 0.0
    %2315 = vmatpush1.msra.mxu0 0.0
    %2316 = vmatprep.subr.mxu0 0.0
    %2317 = vmatpush1.msra.mxu0 0.0
    %2318 = vmatprep.subr.mxu0 0.0
    %2319 = vmatpush1.msra.mxu0 0.0
    %2320 = vmatprep.subr.mxu0 0.0
    %2321 = vmatpush1.msra.mxu0 0.0
    %2322 = vmatprep.subr.mxu0 0.0
    %2323 = vmatpush1.msra.mxu0 0.0
    %2324 = vmatprep.subr.mxu0 0.0
    %2325 = vmatpush1.msra.mxu0 0.0
    %2326 = vmatprep.subr.mxu0 0.0
    %2327 = vmatpush1.msra.mxu0 0.0
    %2328 = vmatprep.subr.mxu0 0.0
    %2329 = vmatpush1.msra.mxu0 0.0
    %2330 = vmatprep.subr.mxu0 0.0
    %2331 = vmatpush1.msra.mxu0 0.0
    %2332 = vmatprep.subr.mxu0 0.0
    %2333 = vmatpush1.msra.mxu0 0.0
    %2334 = vmatprep.subr.mxu0 0.0
    %2335 = vmatpush1.msra.mxu0 0.0
    %2336 = vmatprep.subr.mxu0 0.0
    %2337 = vmatpush1.msra.mxu0 0.0
    %2338 = vmatprep.subr.mxu0 0.0
    %2339 = vmatpush1.msra.mxu0 0.0
    %2340 = vmatprep.subr.mxu0 0.0
    %2341 = vmatpush1.msra.mxu0 0.0
    %2342 = vmatprep.subr.mxu0 0.0
    %2343 = vmatpush1.msra.mxu0 0.0
    %2344 = vmatprep.subr.mxu0 0.0
    %2345 = vmatpush1.msra.mxu0 0.0
    %2346 = vmatprep.subr.mxu0 0.0
    %2347 = vmatpush1.msra.mxu0 0.0
    %2348 = vmatprep.subr.mxu0 0.0
    %2349 = vmatpush1.msra.mxu0 0.0
    %2350 = vmatprep.subr.mxu0 0.0
    %2351 = vmatpush1.msra.mxu0 0.0
    %2352 = vmatprep.subr.mxu0 0.0
    %2353 = vmatpush1.msra.mxu0 0.0
    %2354 = vmatprep.subr.mxu0 0.0
    %2355 = vmatpush1.msra.mxu0 0.0
    %2356 = vmatprep.subr.mxu0 0.0
    %2357 = vmatpush1.msra.mxu0 0.0
    %2358 = vmatprep.subr.mxu0 0.0
    %2359 = vmatpush1.msra.mxu0 0.0
    %2360 = vmatprep.subr.mxu0 0.0
    %2361 = vmatpush1.msra.mxu0 0.0
    %2362 = vmatprep.subr.mxu0 0.0
    %2363 = vmatpush1.msra.mxu0 0.0
    %2364 = vmatprep.subr.mxu0 0.0
    %2365 = vmatpush1.msra.mxu0 0.0
    %2366 = vmatprep.subr.mxu0 0.0
    %2367 = vmatpush1.msra.mxu0 0.0
    %2368 = vmatprep.subr.mxu0 0.0
    %2369 = vmatpush1.msra.mxu0 0.0
    %2370 = vmatprep.subr.mxu0 0.0
    %2371 = vmatpush1.msra.mxu0 0.0
    %2372 = vmatprep.mubr.f32.mxu0 0.0
    %2373 = vmatmul.mubr.f32.gmra.mrb[0].mxu0 %v2114
    %v2374 = vpop.f32.mrb[0].mxu0
    %v2375 = vadd.f32 0.0, %v2374
    %v2376 = vpop.f32.mrb[0].mxu0
    %2377 = vmatprep.mubr.f32.mxu0 0.0
    %2378 = vmatmul.mubr.f32.gmra.mrb[0].mxu0 %v2117
    %v2379 = vpop.f32.mrb[0].mxu0
    %v2380 = vadd.f32 0.0, %v2379
    %v2381 = vpop.f32.mrb[0].mxu0
    %2382 = vmatprep.mubr.f32.mxu0 0.0
    %2383 = vmatmul.mubr.f32.gmra.mrb[0].mxu0 %v2120
    %v2384 = vpop.f32.mrb[0].mxu0
    %v2385 = vadd.f32 0.0, %v2384
    %v2386 = vpop.f32.mrb[0].mxu0
    %2387 = vmatprep.mubr.f32.mxu0 0.0
    %2388 = vmatmul.mubr.f32.gmra.mrb[0].mxu0 %v2123
    %v2389 = vpop.f32.mrb[0].mxu0
    %v2390 = vadd.f32 0.0, %v2389
    %v2391 = vpop.f32.mrb[0].mxu0
    %2392 = vmatprep.mubr.f32.mxu0 0.0
    %2393 = vmatmul.mubr.f32.gmra.mrb[0].mxu0 %v2126
    %v2394 = vpop.f32.mrb[0].mxu0
    %v2395 = vadd.f32 0.0, %v2394
    %v2396 = vpop.f32.mrb[0].mxu0
    %2397 = vmatprep.mubr.f32.mxu0 0.0
    %2398 = vmatmul.mubr.f32.gmra.mrb[0].mxu0 %v2129
    %v2399 = vpop.f32.mrb[0].mxu0
    %v2400 = vadd.f32 0.0, %v2399
    %v2401 = vpop.f32.mrb[0].mxu0
    %2402 = vmatprep.mubr.f32.mxu0 0.0
    %2403 = vmatmul.mubr.f32.gmra.mrb[0].mxu0 %v2132
    %v2404 = vpop.f32.mrb[0].mxu0
    %v2405 = vadd.f32 0.0, %v2404
    %v2406 = vpop.f32.mrb[0].mxu0
    %2407 = vmatprep.mubr.f32.mxu0 0.0
    %2408 = vmatmul.mubr.f32.gmra.mrb[0].mxu0 %v2135
    %v2409 = vpop.f32.mrb[0].mxu0
    %v2410 = vadd.f32 0.0, %v2409
    %v2411 = vpop.f32.mrb[0].mxu0
    %2412 = vmatprep.mubr.f32.mxu0 0.0
    %2413 = vmatmul.mubr.f32.gmra.mrb[0].mxu0 %v2138
    %v2414 = vpop.f32.mrb[0].mxu0
    %v2415 = vadd.f32 0.0, %v2414
    %v2416 = vpop.f32.mrb[0].mxu0
    %2417 = vmatprep.mubr.f32.mxu0 0.0
    %2418 = vmatmul.mubr.f32.gmra.mrb[0].mxu0 %v2141
    %v2419 = vpop.f32.mrb[0].mxu0
    %v2420 = vadd.f32 0.0, %v2419
    %v2421 = vpop.f32.mrb[0].mxu0
    %2422 = vmatprep.mubr.f32.mxu0 0.0
    %2423 = vmatmul.mubr.f32.gmra.mrb[0].mxu0 %v2144
    %v2424 = vpop.f32.mrb[0].mxu0
    %v2425 = vadd.f32 0.0, %v2424
    %v2426 = vpop.f32.mrb[0].mxu0
    %2427 = vmatprep.mubr.f32.mxu0 0.0
    %2428 = vmatmul.mubr.f32.gmra.mrb[0].mxu0 %v2147
    %v2429 = vpop.f32.mrb[0].mxu0
    %v2430 = vadd.f32 0.0, %v2429
    %v2431 = vpop.f32.mrb[0].mxu0
    %2432 = vmatprep.mubr.f32.mxu0 0.0
    %2433 = vmatmul.mubr.f32.gmra.mrb[0].mxu0 %v2150
    %v2434 = vpop.f32.mrb[0].mxu0
    %v2435 = vadd.f32 0.0, %v2434
    %v2436 = vpop.f32.mrb[0].mxu0
    %2437 = vmatprep.mubr.f32.mxu0 0.0
    %2438 = vmatmul.mubr.f32.gmra.mrb[0].mxu0 %v2153
    %v2439 = vpop.f32.mrb[0].mxu0
    %v2440 = vadd.f32 0.0, %v2439
    %v2441 = vpop.f32.mrb[0].mxu0
    %2442 = vmatprep.mubr.f32.mxu0 0.0
    %2443 = vmatmul.mubr.f32.gmra.mrb[0].mxu0 %v2156
    %v2444 = vpop.f32.mrb[0].mxu0
    %v2445 = vadd.f32 0.0, %v2444
    %v2446 = vpop.f32.mrb[0].mxu0
    %2447 = vmatprep.mubr.f32.mxu0 0.0
    %2448 = vmatmul.mubr.f32.gmra.mrb[0].mxu0 %v2159
    %v2449 = vpop.f32.mrb[0].mxu0
    %v2450 = vadd.f32 0.0, %v2449
    %v2451 = vpop.f32.mrb[0].mxu0
    %2452 = vmatprep.mubr.f32.mxu0 0.0
    %2453 = vmatmul.mubr.f32.gmra.mrb[0].mxu0 %v2162
    %v2454 = vpop.f32.mrb[0].mxu0
    %v2455 = vadd.f32 0.0, %v2454
    %v2456 = vpop.f32.mrb[0].mxu0
    %2457 = vmatprep.mubr.f32.mxu0 0.0
    %2458 = vmatmul.mubr.f32.gmra.mrb[0].mxu0 %v2165
    %v2459 = vpop.f32.mrb[0].mxu0
    %v2460 = vadd.f32 0.0, %v2459
    %v2461 = vpop.f32.mrb[0].mxu0
    %2462 = vmatprep.mubr.f32.mxu0 0.0
    %2463 = vmatmul.mubr.f32.gmra.mrb[0].mxu0 %v2168
    %v2464 = vpop.f32.mrb[0].mxu0
    %v2465 = vadd.f32 0.0, %v2464
    %v2466 = vpop.f32.mrb[0].mxu0
    %2467 = vmatprep.mubr.f32.mxu0 0.0
    %2468 = vmatmul.mubr.f32.gmra.mrb[0].mxu0 %v2171
    %v2469 = vpop.f32.mrb[0].mxu0
    %v2470 = vadd.f32 0.0, %v2469
    %v2471 = vpop.f32.mrb[0].mxu0
    %2472 = vmatprep.mubr.f32.mxu0 0.0
    %2473 = vmatmul.mubr.f32.gmra.mrb[0].mxu0 %v2174
    %v2474 = vpop.f32.mrb[0].mxu0
    %v2475 = vadd.f32 0.0, %v2474
    %v2476 = vpop.f32.mrb[0].mxu0
    %2477 = vmatprep.mubr.f32.mxu0 0.0
    %2478 = vmatmul.mubr.f32.gmra.mrb[0].mxu0 %v2177
    %v2479 = vpop.f32.mrb[0].mxu0
    %v2480 = vadd.f32 0.0, %v2479
    %v2481 = vpop.f32.mrb[0].mxu0
    %2482 = vmatprep.mubr.f32.mxu0 0.0
    %2483 = vmatmul.mubr.f32.gmra.mrb[0].mxu0 %v2180
    %v2484 = vpop.f32.mrb[0].mxu0
    %v2485 = vadd.f32 0.0, %v2484
    %v2486 = vpop.f32.mrb[0].mxu0
    %2487 = vmatprep.mubr.f32.mxu0 0.0
    %2488 = vmatmul.mubr.f32.gmra.mrb[0].mxu0 %v2183
    %v2489 = vpop.f32.mrb[0].mxu0
    %v2490 = vadd.f32 0.0, %v2489
    %v2491 = vpop.f32.mrb[0].mxu0
    %2492 = vmatprep.mubr.f32.mxu0 0.0
    %2493 = vmatmul.mubr.f32.gmra.mrb[0].mxu0 %v2186
    %v2494 = vpop.f32.mrb[0].mxu0
    %v2495 = vadd.f32 0.0, %v2494
    %v2496 = vpop.f32.mrb[0].mxu0
    %2497 = vmatprep.mubr.f32.mxu0 0.0
    %2498 = vmatmul.mubr.f32.gmra.mrb[0].mxu0 %v2189
    %v2499 = vpop.f32.mrb[0].mxu0
    %v2500 = vadd.f32 0.0, %v2499
    %v2501 = vpop.f32.mrb[0].mxu0
    %2502 = vmatprep.mubr.f32.mxu0 0.0
    %2503 = vmatmul.mubr.f32.gmra.mrb[0].mxu0 %v2192
    %v2504 = vpop.f32.mrb[0].mxu0
    %v2505 = vadd.f32 0.0, %v2504
    %v2506 = vpop.f32.mrb[0].mxu0
    %2507 = vmatprep.mubr.f32.mxu0 0.0
    %2508 = vmatmul.mubr.f32.gmra.mrb[0].mxu0 %v2195
    %v2509 = vpop.f32.mrb[0].mxu0
    %v2510 = vadd.f32 0.0, %v2509
    %v2511 = vpop.f32.mrb[0].mxu0
    %2512 = vmatprep.mubr.f32.mxu0 0.0
    %2513 = vmatmul.mubr.f32.gmra.mrb[0].mxu0 %v2198
    %v2514 = vpop.f32.mrb[0].mxu0
    %v2515 = vadd.f32 0.0, %v2514
    %v2516 = vpop.f32.mrb[0].mxu0
    %2517 = vmatprep.mubr.f32.mxu0 0.0
    %2518 = vmatmul.mubr.f32.gmra.mrb[0].mxu0 %v2201
    %v2519 = vpop.f32.mrb[0].mxu0
    %v2520 = vadd.f32 0.0, %v2519
    %v2521 = vpop.f32.mrb[0].mxu0
    %2522 = vmatprep.mubr.f32.mxu0 0.0
    %2523 = vmatmul.mubr.f32.gmra.mrb[0].mxu0 %v2204
    %v2524 = vpop.f32.mrb[0].mxu0
    %v2525 = vadd.f32 0.0, %v2524
    %v2526 = vpop.f32.mrb[0].mxu0
    %2527 = vmatprep.mubr.f32.mxu0 0.0
    %2528 = vmatmul.mubr.f32.gmra.mrb[0].mxu0 %v2207
    %v2529 = vpop.f32.mrb[0].mxu0
    %v2530 = vadd.f32 0.0, %v2529
    %v2531 = vpop.f32.mrb[0].mxu0
    %2532 = vmatprep.mubr.f32.mxu0 0.0
    %2533 = vmatmul.mubr.f32.gmra.mrb[0].mxu0 %v2210
    %v2534 = vpop.f32.mrb[0].mxu0
    %v2535 = vadd.f32 0.0, %v2534
    %v2536 = vpop.f32.mrb[0].mxu0
    %2537 = vmatprep.mubr.f32.mxu0 0.0
    %2538 = vmatmul.mubr.f32.gmra.mrb[0].mxu0 %v2213
    %v2539 = vpop.f32.mrb[0].mxu0
    %v2540 = vadd.f32 0.0, %v2539
    %v2541 = vpop.f32.mrb[0].mxu0
    %2542 = vmatprep.mubr.f32.mxu0 0.0
    %2543 = vmatmul.mubr.f32.gmra.mrb[0].mxu0 %v2216
    %v2544 = vpop.f32.mrb[0].mxu0
    %v2545 = vadd.f32 0.0, %v2544
    %v2546 = vpop.f32.mrb[0].mxu0
    %2547 = vmatprep.mubr.f32.mxu0 0.0
    %2548 = vmatmul.mubr.f32.gmra.mrb[0].mxu0 %v2219
    %v2549 = vpop.f32.mrb[0].mxu0
    %v2550 = vadd.f32 0.0, %v2549
    %v2551 = vpop.f32.mrb[0].mxu0
    %2552 = vmatprep.mubr.f32.mxu0 0.0
    %2553 = vmatmul.mubr.f32.gmra.mrb[0].mxu0 %v2222
    %v2554 = vpop.f32.mrb[0].mxu0
    %v2555 = vadd.f32 0.0, %v2554
    %v2556 = vpop.f32.mrb[0].mxu0
    %2557 = vmatprep.mubr.f32.mxu0 0.0
    %2558 = vmatmul.mubr.f32.gmra.mrb[0].mxu0 %v2225
    %v2559 = vpop.f32.mrb[0].mxu0
    %v2560 = vadd.f32 0.0, %v2559
    %v2561 = vpop.f32.mrb[0].mxu0
    %2562 = vmatprep.mubr.f32.mxu0 0.0
    %2563 = vmatmul.mubr.f32.gmra.mrb[0].mxu0 %v2228
    %v2564 = vpop.f32.mrb[0].mxu0
    %v2565 = vadd.f32 0.0, %v2564
    %v2566 = vpop.f32.mrb[0].mxu0
    %2567 = vmatprep.mubr.f32.mxu0 0.0
    %2568 = vmatmul.mubr.f32.gmra.mrb[0].mxu0 %v2231
    %v2569 = vpop.f32.mrb[0].mxu0
    %v2570 = vadd.f32 0.0, %v2569
    %v2571 = vpop.f32.mrb[0].mxu0
    %2572 = vmatprep.mubr.f32.mxu0 0.0
    %2573 = vmatmul.mubr.f32.gmra.mrb[0].mxu0 %v2234
    %v2574 = vpop.f32.mrb[0].mxu0
    %v2575 = vadd.f32 0.0, %v2574
    %v2576 = vpop.f32.mrb[0].mxu0
    %2577 = vmatprep.mubr.f32.mxu0 0.0
    %2578 = vmatmul.mubr.f32.gmra.mrb[0].mxu0 %v2237
    %v2579 = vpop.f32.mrb[0].mxu0
    %v2580 = vadd.f32 0.0, %v2579
    %v2581 = vpop.f32.mrb[0].mxu0
    %2582 = vmatprep.mubr.f32.mxu0 0.0
    %2583 = vmatmul.mubr.f32.gmra.mrb[0].mxu0 %v2240
    %v2584 = vpop.f32.mrb[0].mxu0
    %v2585 = vadd.f32 0.0, %v2584
    %v2586 = vpop.f32.mrb[0].mxu0
    %2587 = vmatprep.mubr.f32.mxu0 0.0
    %2588 = vmatmul.mubr.f32.gmra.mrb[0].mxu0 %v2243
    %v2589 = vpop.f32.mrb[0].mxu0
    %v2590 = vadd.f32 0.0, %v2589
    %v2591 = vpop.f32.mrb[0].mxu0
    %2592 = vmatprep.mubr.f32.mxu0 0.0
    %2593 = vmatmul.mubr.f32.gmra.mrb[0].mxu0 %v2246
    %v2594 = vpop.f32.mrb[0].mxu0
    %v2595 = vadd.f32 0.0, %v2594
    %v2596 = vpop.f32.mrb[0].mxu0
    %2597 = vmatprep.mubr.f32.mxu0 0.0
    %2598 = vmatmul.mubr.f32.gmra.mrb[0].mxu0 %v2249
    %v2599 = vpop.f32.mrb[0].mxu0
    %v2600 = vadd.f32 0.0, %v2599
    %v2601 = vpop.f32.mrb[0].mxu0
    %2602 = vmatprep.mubr.f32.mxu0 0.0
    %2603 = vmatmul.mubr.f32.gmra.mrb[0].mxu0 %v2252
    %v2604 = vpop.f32.mrb[0].mxu0
    %v2605 = vadd.f32 0.0, %v2604
    %v2606 = vpop.f32.mrb[0].mxu0
    %2607 = vmatprep.mubr.f32.mxu0 0.0
    %2608 = vmatmul.mubr.f32.gmra.mrb[0].mxu0 %v2255
    %v2609 = vpop.f32.mrb[0].mxu0
    %v2610 = vadd.f32 0.0, %v2609
    %v2611 = vpop.f32.mrb[0].mxu0
    %2612 = vmatprep.mubr.f32.mxu0 0.0
    %2613 = vmatmul.mubr.f32.gmra.mrb[0].mxu0 %v2258
    %v2614 = vpop.f32.mrb[0].mxu0
    %v2615 = vadd.f32 0.0, %v2614
    %v2616 = vpop.f32.mrb[0].mxu0
    %2617 = vmatprep.mubr.f32.mxu0 0.0
    %2618 = vmatmul.mubr.f32.gmra.mrb[0].mxu0 %v2261
    %v2619 = vpop.f32.mrb[0].mxu0
    %v2620 = vadd.f32 0.0, %v2619
    %v2621 = vpop.f32.mrb[0].mxu0
    %2622 = vmatprep.mubr.f32.mxu0 0.0
    %2623 = vmatmul.mubr.f32.gmra.mrb[0].mxu0 %v2264
    %v2624 = vpop.f32.mrb[0].mxu0
    %v2625 = vadd.f32 0.0, %v2624
    %v2626 = vpop.f32.mrb[0].mxu0
    %2627 = vmatprep.mubr.f32.mxu0 0.0
    %2628 = vmatmul.mubr.f32.gmra.mrb[0].mxu0 %v2267
    %v2629 = vpop.f32.mrb[0].mxu0
    %v2630 = vadd.f32 0.0, %v2629
    %v2631 = vpop.f32.mrb[0].mxu0
    %2632 = vmatprep.mubr.f32.mxu0 0.0
    %2633 = vmatmul.mubr.f32.gmra.mrb[0].mxu0 %v2270
    %v2634 = vpop.f32.mrb[0].mxu0
    %v2635 = vadd.f32 0.0, %v2634
    %v2636 = vpop.f32.mrb[0].mxu0
    %2637 = vmatprep.mubr.f32.mxu0 0.0
    %2638 = vmatmul.mubr.f32.gmra.mrb[0].mxu0 %v2273
    %v2639 = vpop.f32.mrb[0].mxu0
    %v2640 = vadd.f32 0.0, %v2639
    %v2641 = vpop.f32.mrb[0].mxu0
    %2642 = vmatprep.mubr.f32.mxu0 0.0
    %2643 = vmatmul.mubr.f32.gmra.mrb[0].mxu0 %v2276
    %v2644 = vpop.f32.mrb[0].mxu0
    %v2645 = vadd.f32 0.0, %v2644
    %v2646 = vpop.f32.mrb[0].mxu0
    %2647 = vmatprep.mubr.f32.mxu0 0.0
    %2648 = vmatmul.mubr.f32.gmra.mrb[0].mxu0 %v2279
    %v2649 = vpop.f32.mrb[0].mxu0
    %v2650 = vadd.f32 0.0, %v2649
    %v2651 = vpop.f32.mrb[0].mxu0
    %2652 = vmatprep.mubr.f32.mxu0 0.0
    %2653 = vmatmul.mubr.f32.gmra.mrb[0].mxu0 %v2282
    %v2654 = vpop.f32.mrb[0].mxu0
    %v2655 = vadd.f32 0.0, %v2654
    %v2656 = vpop.f32.mrb[0].mxu0
    %2657 = vmatprep.mubr.f32.mxu0 0.0
    %2658 = vmatmul.mubr.f32.gmra.mrb[0].mxu0 %v2285
    %v2659 = vpop.f32.mrb[0].mxu0
    %v2660 = vadd.f32 0.0, %v2659
    %v2661 = vpop.f32.mrb[0].mxu0
    %2662 = vmatprep.mubr.f32.mxu0 0.0
    %2663 = vmatmul.mubr.f32.gmra.mrb[0].mxu0 %v2288
    %v2664 = vpop.f32.mrb[0].mxu0
    %v2665 = vadd.f32 0.0, %v2664
    %v2666 = vpop.f32.mrb[0].mxu0
    %2667 = vmatprep.mubr.f32.mxu0 0.0
    %2668 = vmatmul.mubr.f32.gmra.mrb[0].mxu0 %v2291
    %v2669 = vpop.f32.mrb[0].mxu0
    %v2670 = vadd.f32 0.0, %v2669
    %v2671 = vpop.f32.mrb[0].mxu0
    %2672 = vmatprep.mubr.f32.mxu0 0.0
    %2673 = vmatmul.mubr.f32.gmra.mrb[0].mxu0 %v2294
    %v2674 = vpop.f32.mrb[0].mxu0
    %v2675 = vadd.f32 0.0, %v2674
    %v2676 = vpop.f32.mrb[0].mxu0
    %2677 = vmatprep.mubr.f32.mxu0 0.0
    %2678 = vmatmul.mubr.f32.gmra.mrb[0].mxu0 %v2297
    %v2679 = vpop.f32.mrb[0].mxu0
    %v2680 = vadd.f32 0.0, %v2679
    %v2681 = vpop.f32.mrb[0].mxu0
    %2682 = vmatprep.mubr.f32.mxu0 0.0
    %2683 = vmatmul.mubr.f32.gmra.mrb[0].mxu0 %v2300
    %v2684 = vpop.f32.mrb[0].mxu0
    %v2685 = vadd.f32 0.0, %v2684
    %v2686 = vpop.f32.mrb[0].mxu0
    %2687 = vmatprep.mubr.f32.mxu0 0.0
    %2688 = vmatmul.mubr.f32.gmra.mrb[0].mxu0 %v2303
    %v2689 = vpop.f32.mrb[0].mxu0
    %v2690 = vadd.f32 0.0, %v2689
    %v2691 = vpop.f32.mrb[0].mxu0
    %2692 = vdwg.mxu0
    %v2693 = vadd.f32 %v1982, %v2375
    %v2694 = vadd.f32 %v1983, %v2380
    %v2695 = vadd.f32 %v1984, %v2385
    %v2696 = vadd.f32 %v1985, %v2390
    %v2697 = vadd.f32 %v1986, %v2395
    %v2698 = vadd.f32 %v1987, %v2400
    %v2699 = vadd.f32 %v1988, %v2405
    %v2700 = vadd.f32 %v1989, %v2410
    %v2701 = vadd.f32 %v1990, %v2415
    %v2702 = vadd.f32 %v1991, %v2420
    %v2703 = vadd.f32 %v1992, %v2425
    %v2704 = vadd.f32 %v1993, %v2430
    %v2705 = vadd.f32 %v1994, %v2435
    %v2706 = vadd.f32 %v1995, %v2440
    %v2707 = vadd.f32 %v1996, %v2445
    %v2708 = vadd.f32 %v1997, %v2450
    %v2709 = vadd.f32 %v1998, %v2455
    %v2710 = vadd.f32 %v1999, %v2460
    %v2711 = vadd.f32 %v2000, %v2465
    %v2712 = vadd.f32 %v2001, %v2470
    %v2713 = vadd.f32 %v2002, %v2475
    %v2714 = vadd.f32 %v2003, %v2480
    %v2715 = vadd.f32 %v2004, %v2485
    %v2716 = vadd.f32 %v2005, %v2490
    %v2717 = vadd.f32 %v2006, %v2495
    %v2718 = vadd.f32 %v2007, %v2500
    %v2719 = vadd.f32 %v2008, %v2505
    %v2720 = vadd.f32 %v2009, %v2510
    %v2721 = vadd.f32 %v2010, %v2515
    %v2722 = vadd.f32 %v2011, %v2520
    %v2723 = vadd.f32 %v2012, %v2525
    %v2724 = vadd.f32 %v2013, %v2530
    %v2725 = vadd.f32 %v2014, %v2535
    %v2726 = vadd.f32 %v2015, %v2540
    %v2727 = vadd.f32 %v2016, %v2545
    %v2728 = vadd.f32 %v2017, %v2550
    %v2729 = vadd.f32 %v2018, %v2555
    %v2730 = vadd.f32 %v2019, %v2560
    %v2731 = vadd.f32 %v2020, %v2565
    %v2732 = vadd.f32 %v2021, %v2570
    %v2733 = vadd.f32 %v2022, %v2575
    %v2734 = vadd.f32 %v2023, %v2580
    %v2735 = vadd.f32 %v2024, %v2585
    %v2736 = vadd.f32 %v2025, %v2590
    %v2737 = vadd.f32 %v2026, %v2595
    %v2738 = vadd.f32 %v2027, %v2600
    %v2739 = vadd.f32 %v2028, %v2605
    %v2740 = vadd.f32 %v2029, %v2610
    %v2741 = vadd.f32 %v2030, %v2615
    %v2742 = vadd.f32 %v2031, %v2620
    %v2743 = vadd.f32 %v2032, %v2625
    %v2744 = vadd.f32 %v2033, %v2630
    %v2745 = vadd.f32 %v2034, %v2635
    %v2746 = vadd.f32 %v2035, %v2640
    %v2747 = vadd.f32 %v2036, %v2645
    %v2748 = vadd.f32 %v2037, %v2650
    %v2749 = vadd.f32 %v2038, %v2655
    %v2750 = vadd.f32 %v2039, %v2660
    %v2751 = vadd.f32 %v2040, %v2665
    %v2752 = vadd.f32 %v2041, %v2670
    %v2753 = vadd.f32 %v2042, %v2675
    %v2754 = vadd.f32 %v2043, %v2680
    %v2755 = vadd.f32 %v2044, %v2685
    %v2756 = vadd.f32 %v2045, %v2690
    %v2757 = vld [vmem:[%s2046 + $0x1] sm:$0xff]
    %v2758 = vld [vmem:[%s2046 + $0x9] sm:$0xff]
    %v2759 = vld [vmem:[%s2046 + $0x19] sm:$0xff]
    %v2760 = vld [vmem:[%s2046 + $0x21] sm:$0xff]
    %v2761 = vld [vmem:[%s2046 + $0x31] sm:$0xff]
    %v2762 = vld [vmem:[%s2046 + $0x39] sm:$0xff]
    %v2763 = vld [vmem:[%s2046 + $0x49] sm:$0xff]
    %v2764 = vld [vmem:[%s2046 + $0x51] sm:$0xff]
    %v2765 = vld [vmem:[%s2046 + $0x61] sm:$0xff]
    %v2766 = vld [vmem:[%s2046 + $0x69] sm:$0xff]
    %v2767 = vld [vmem:[%s2046 + $0x79] sm:$0xff]
    %v2768 = vld [vmem:[%s2046 + $0x81] sm:$0xff]
    %v2769 = vld [vmem:[%s2046 + $0x91] sm:$0xff]
    %v2770 = vld [vmem:[%s2046 + $0x99] sm:$0xff]
    %v2771 = vld [vmem:[%s2046 + $0xa9] sm:$0xff]
    %v2772 = vld [vmem:[%s2046 + $0xb1] sm:$0xff]
    %v2773 = vld [vmem:[%s2046 + $0xc1] sm:$0xff]
    %v2774 = vld [vmem:[%s2046 + $0xc9] sm:$0xff]
    %v2775 = vld [vmem:[%s2046 + $0xd9] sm:$0xff]
    %v2776 = vld [vmem:[%s2046 + $0xe1] sm:$0xff]
    %v2777 = vld [vmem:[%s2046 + $0xf1] sm:$0xff]
    %v2778 = vld [vmem:[%s2046 + $0xf9] sm:$0xff]
    %v2779 = vld [vmem:[%s2046 + $0x109] sm:$0xff]
    %v2780 = vld [vmem:[%s2046 + $0x111] sm:$0xff]
    %v2781 = vld [vmem:[%s2046 + $0x121] sm:$0xff]
    %v2782 = vld [vmem:[%s2046 + $0x129] sm:$0xff]
    %v2783 = vld [vmem:[%s2046 + $0x139] sm:$0xff]
    %v2784 = vld [vmem:[%s2046 + $0x141] sm:$0xff]
    %v2785 = vld [vmem:[%s2046 + $0x151] sm:$0xff]
    %v2786 = vld [vmem:[%s2046 + $0x159] sm:$0xff]
    %v2787 = vld [vmem:[%s2046 + $0x169] sm:$0xff]
    %v2788 = vld [vmem:[%s2046 + $0x171] sm:$0xff]
    %v2789 = vld [vmem:[%s2046 + $0x1b1] sm:$0xff]
    %v2790 = vld [vmem:[%s2046 + $0x1b9] sm:$0xff]
    %v2791 = vld [vmem:[%s2046 + $0x1c9] sm:$0xff]
    %v2792 = vld [vmem:[%s2046 + $0x1d1] sm:$0xff]
    %v2793 = vld [vmem:[%s2046 + $0x1e1] sm:$0xff]
    %v2794 = vld [vmem:[%s2046 + $0x1e9] sm:$0xff]
    %v2795 = vld [vmem:[%s2046 + $0x1f9] sm:$0xff]
    %v2796 = vld [vmem:[%s2046 + $0x201] sm:$0xff]
    %v2797 = vld [vmem:[%s2046 + $0x211] sm:$0xff]
    %v2798 = vld [vmem:[%s2046 + $0x219] sm:$0xff]
    %v2799 = vld [vmem:[%s2046 + $0x229] sm:$0xff]
    %v2800 = vld [vmem:[%s2046 + $0x231] sm:$0xff]
    %v2801 = vld [vmem:[%s2046 + $0x241] sm:$0xff]
    %v2802 = vld [vmem:[%s2046 + $0x249] sm:$0xff]
    %v2803 = vld [vmem:[%s2046 + $0x259] sm:$0xff]
    %v2804 = vld [vmem:[%s2046 + $0x261] sm:$0xff]
    %v2805 = vld [vmem:[%s2046 + $0x271] sm:$0xff]
    %v2806 = vld [vmem:[%s2046 + $0x279] sm:$0xff]
    %v2807 = vld [vmem:[%s2046 + $0x289] sm:$0xff]
    %v2808 = vld [vmem:[%s2046 + $0x291] sm:$0xff]
    %v2809 = vld [vmem:[%s2046 + $0x2a1] sm:$0xff]
    %v2810 = vld [vmem:[%s2046 + $0x2a9] sm:$0xff]
    %v2811 = vld [vmem:[%s2046 + $0x2b9] sm:$0xff]
    %v2812 = vld [vmem:[%s2046 + $0x2c1] sm:$0xff]
    %v2813 = vld [vmem:[%s2046 + $0x2d1] sm:$0xff]
    %v2814 = vld [vmem:[%s2046 + $0x2d9] sm:$0xff]
    %v2815 = vld [vmem:[%s2046 + $0x2e9] sm:$0xff]
    %v2816 = vld [vmem:[%s2046 + $0x2f1] sm:$0xff]
    %v2817 = vld [vmem:[%s2046 + $0x301] sm:$0xff]
    %v2818 = vld [vmem:[%s2046 + $0x309] sm:$0xff]
    %v2819 = vld [vmem:[%s2046 + $0x319] sm:$0xff]
    %v2820 = vld [vmem:[%s2046 + $0x321] sm:$0xff]
    %s2821 = scalar_lea.vmem %s2, 16
    %v2822 = vld [vmem:[%s2821] sm:$0xf]
    %v2824 = vsel %vm174, %v2757, 0
    %v2827 = vsel %vm174, %v2758, 0
    %v2830 = vsel %vm174, %v2759, 0
    %v2833 = vsel %vm174, %v2760, 0
    %v2836 = vsel %vm174, %v2761, 0
    %v2839 = vsel %vm174, %v2762, 0
    %v2842 = vsel %vm174, %v2763, 0
    %v2845 = vsel %vm174, %v2764, 0
    %v2848 = vsel %vm174, %v2765, 0
    %v2851 = vsel %vm174, %v2766, 0
    %v2854 = vsel %vm174, %v2767, 0
    %v2857 = vsel %vm174, %v2768, 0
    %v2860 = vsel %vm174, %v2769, 0
    %v2863 = vsel %vm174, %v2770, 0
    %v2866 = vsel %vm174, %v2771, 0
    %v2869 = vsel %vm174, %v2772, 0
    %v2872 = vsel %vm174, %v2773, 0
    %v2875 = vsel %vm174, %v2774, 0
    %v2878 = vsel %vm174, %v2775, 0
    %v2881 = vsel %vm174, %v2776, 0
    %v2884 = vsel %vm174, %v2777, 0
    %v2887 = vsel %vm174, %v2778, 0
    %v2890 = vsel %vm174, %v2779, 0
    %v2893 = vsel %vm174, %v2780, 0
    %v2896 = vsel %vm174, %v2781, 0
    %v2899 = vsel %vm174, %v2782, 0
    %v2902 = vsel %vm174, %v2783, 0
    %v2905 = vsel %vm174, %v2784, 0
    %v2908 = vsel %vm174, %v2785, 0
    %v2911 = vsel %vm174, %v2786, 0
    %v2914 = vsel %vm174, %v2787, 0
    %v2917 = vsel %vm174, %v2788, 0
    %v2920 = vsel %vm174, %v2789, 0
    %v2923 = vsel %vm174, %v2790, 0
    %v2926 = vsel %vm174, %v2791, 0
    %v2929 = vsel %vm174, %v2792, 0
    %v2932 = vsel %vm174, %v2793, 0
    %v2935 = vsel %vm174, %v2794, 0
    %v2938 = vsel %vm174, %v2795, 0
    %v2941 = vsel %vm174, %v2796, 0
    %v2944 = vsel %vm174, %v2797, 0
    %v2947 = vsel %vm174, %v2798, 0
    %v2950 = vsel %vm174, %v2799, 0
    %v2953 = vsel %vm174, %v2800, 0
    %v2956 = vsel %vm174, %v2801, 0
    %v2959 = vsel %vm174, %v2802, 0
    %v2962 = vsel %vm174, %v2803, 0
    %v2965 = vsel %vm174, %v2804, 0
    %v2968 = vsel %vm174, %v2805, 0
    %v2971 = vsel %vm174, %v2806, 0
    %v2974 = vsel %vm174, %v2807, 0
    %v2977 = vsel %vm174, %v2808, 0
    %v2980 = vsel %vm174, %v2809, 0
    %v2983 = vsel %vm174, %v2810, 0
    %v2986 = vsel %vm174, %v2811, 0
    %v2989 = vsel %vm174, %v2812, 0
    %v2992 = vsel %vm174, %v2813, 0
    %v2995 = vsel %vm174, %v2814, 0
    %v2998 = vsel %vm174, %v2815, 0
    %v3001 = vsel %vm174, %v2816, 0
    %v3004 = vsel %vm174, %v2817, 0
    %v3007 = vsel %vm174, %v2818, 0
    %v3010 = vsel %vm174, %v2819, 0
    %v3013 = vsel %vm174, %v2820, 0
    %v3016 = vsel %vm367, %v2822, 0
    %3018 = vmatprep.subr.mxu0 0.0
    %3019 = vmatpush1.msra.mxu0 %v3016
    %3020 = vmatprep.subr.mxu0 0.0
    %3021 = vmatpush1.msra.mxu0 0.0
    %3022 = vmatprep.subr.mxu0 0.0
    %3023 = vmatpush1.msra.mxu0 0.0
    %3024 = vmatprep.subr.mxu0 0.0
    %3025 = vmatpush1.msra.mxu0 0.0
    %3026 = vmatprep.subr.mxu0 0.0
    %3027 = vmatpush1.msra.mxu0 0.0
    %3028 = vmatprep.subr.mxu0 0.0
    %3029 = vmatpush1.msra.mxu0 0.0
    %3030 = vmatprep.subr.mxu0 0.0
    %3031 = vmatpush1.msra.mxu0 0.0
    %3032 = vmatprep.subr.mxu0 0.0
    %3033 = vmatpush1.msra.mxu0 0.0
    %3034 = vmatprep.subr.mxu0 0.0
    %3035 = vmatpush1.msra.mxu0 0.0
    %3036 = vmatprep.subr.mxu0 0.0
    %3037 = vmatpush1.msra.mxu0 0.0
    %3038 = vmatprep.subr.mxu0 0.0
    %3039 = vmatpush1.msra.mxu0 0.0
    %3040 = vmatprep.subr.mxu0 0.0
    %3041 = vmatpush1.msra.mxu0 0.0
    %3042 = vmatprep.subr.mxu0 0.0
    %3043 = vmatpush1.msra.mxu0 0.0
    %3044 = vmatprep.subr.mxu0 0.0
    %3045 = vmatpush1.msra.mxu0 0.0
    %3046 = vmatprep.subr.mxu0 0.0
    %3047 = vmatpush1.msra.mxu0 0.0
    %3048 = vmatprep.subr.mxu0 0.0
    %3049 = vmatpush1.msra.mxu0 0.0
    %3050 = vmatprep.subr.mxu0 0.0
    %3051 = vmatpush1.msra.mxu0 0.0
    %3052 = vmatprep.subr.mxu0 0.0
    %3053 = vmatpush1.msra.mxu0 0.0
    %3054 = vmatprep.subr.mxu0 0.0
    %3055 = vmatpush1.msra.mxu0 0.0
    %3056 = vmatprep.subr.mxu0 0.0
    %3057 = vmatpush1.msra.mxu0 0.0
    %3058 = vmatprep.subr.mxu0 0.0
    %3059 = vmatpush1.msra.mxu0 0.0
    %3060 = vmatprep.subr.mxu0 0.0
    %3061 = vmatpush1.msra.mxu0 0.0
    %3062 = vmatprep.subr.mxu0 0.0
    %3063 = vmatpush1.msra.mxu0 0.0
    %3064 = vmatprep.subr.mxu0 0.0
    %3065 = vmatpush1.msra.mxu0 0.0
    %3066 = vmatprep.subr.mxu0 0.0
    %3067 = vmatpush1.msra.mxu0 0.0
    %3068 = vmatprep.subr.mxu0 0.0
    %3069 = vmatpush1.msra.mxu0 0.0
    %3070 = vmatprep.subr.mxu0 0.0
    %3071 = vmatpush1.msra.mxu0 0.0
    %3072 = vmatprep.subr.mxu0 0.0
    %3073 = vmatpush1.msra.mxu0 0.0
    %3074 = vmatprep.subr.mxu0 0.0
    %3075 = vmatpush1.msra.mxu0 0.0
    %3076 = vmatprep.subr.mxu0 0.0
    %3077 = vmatpush1.msra.mxu0 0.0
    %3078 = vmatprep.subr.mxu0 0.0
    %3079 = vmatpush1.msra.mxu0 0.0
    %3080 = vmatprep.subr.mxu0 0.0
    %3081 = vmatpush1.msra.mxu0 0.0
    %3082 = vmatprep.mubr.f32.mxu0 0.0
    %3083 = vmatmul.mubr.f32.gmra.mrb[0].mxu0 %v2824
    %v3084 = vpop.f32.mrb[0].mxu0
    %v3085 = vadd.f32 0.0, %v3084
    %v3086 = vpop.f32.mrb[0].mxu0
    %3087 = vmatprep.mubr.f32.mxu0 0.0
    %3088 = vmatmul.mubr.f32.gmra.mrb[0].mxu0 %v2827
    %v3089 = vpop.f32.mrb[0].mxu0
    %v3090 = vadd.f32 0.0, %v3089
    %v3091 = vpop.f32.mrb[0].mxu0
    %3092 = vmatprep.mubr.f32.mxu0 0.0
    %3093 = vmatmul.mubr.f32.gmra.mrb[0].mxu0 %v2830
    %v3094 = vpop.f32.mrb[0].mxu0
    %v3095 = vadd.f32 0.0, %v3094
    %v3096 = vpop.f32.mrb[0].mxu0
    %3097 = vmatprep.mubr.f32.mxu0 0.0
    %3098 = vmatmul.mubr.f32.gmra.mrb[0].mxu0 %v2833
    %v3099 = vpop.f32.mrb[0].mxu0
    %v3100 = vadd.f32 0.0, %v3099
    %v3101 = vpop.f32.mrb[0].mxu0
    %3102 = vmatprep.mubr.f32.mxu0 0.0
    %3103 = vmatmul.mubr.f32.gmra.mrb[0].mxu0 %v2836
    %v3104 = vpop.f32.mrb[0].mxu0
    %v3105 = vadd.f32 0.0, %v3104
    %v3106 = vpop.f32.mrb[0].mxu0
    %3107 = vmatprep.mubr.f32.mxu0 0.0
    %3108 = vmatmul.mubr.f32.gmra.mrb[0].mxu0 %v2839
    %v3109 = vpop.f32.mrb[0].mxu0
    %v3110 = vadd.f32 0.0, %v3109
    %v3111 = vpop.f32.mrb[0].mxu0
    %3112 = vmatprep.mubr.f32.mxu0 0.0
    %3113 = vmatmul.mubr.f32.gmra.mrb[0].mxu0 %v2842
    %v3114 = vpop.f32.mrb[0].mxu0
    %v3115 = vadd.f32 0.0, %v3114
    %v3116 = vpop.f32.mrb[0].mxu0
    %3117 = vmatprep.mubr.f32.mxu0 0.0
    %3118 = vmatmul.mubr.f32.gmra.mrb[0].mxu0 %v2845
    %v3119 = vpop.f32.mrb[0].mxu0
    %v3120 = vadd.f32 0.0, %v3119
    %v3121 = vpop.f32.mrb[0].mxu0
    %3122 = vmatprep.mubr.f32.mxu0 0.0
    %3123 = vmatmul.mubr.f32.gmra.mrb[0].mxu0 %v2848
    %v3124 = vpop.f32.mrb[0].mxu0
    %v3125 = vadd.f32 0.0, %v3124
    %v3126 = vpop.f32.mrb[0].mxu0
    %3127 = vmatprep.mubr.f32.mxu0 0.0
    %3128 = vmatmul.mubr.f32.gmra.mrb[0].mxu0 %v2851
    %v3129 = vpop.f32.mrb[0].mxu0
    %v3130 = vadd.f32 0.0, %v3129
    %v3131 = vpop.f32.mrb[0].mxu0
    %3132 = vmatprep.mubr.f32.mxu0 0.0
    %3133 = vmatmul.mubr.f32.gmra.mrb[0].mxu0 %v2854
    %v3134 = vpop.f32.mrb[0].mxu0
    %v3135 = vadd.f32 0.0, %v3134
    %v3136 = vpop.f32.mrb[0].mxu0
    %3137 = vmatprep.mubr.f32.mxu0 0.0
    %3138 = vmatmul.mubr.f32.gmra.mrb[0].mxu0 %v2857
    %v3139 = vpop.f32.mrb[0].mxu0
    %v3140 = vadd.f32 0.0, %v3139
    %v3141 = vpop.f32.mrb[0].mxu0
    %3142 = vmatprep.mubr.f32.mxu0 0.0
    %3143 = vmatmul.mubr.f32.gmra.mrb[0].mxu0 %v2860
    %v3144 = vpop.f32.mrb[0].mxu0
    %v3145 = vadd.f32 0.0, %v3144
    %v3146 = vpop.f32.mrb[0].mxu0
    %3147 = vmatprep.mubr.f32.mxu0 0.0
    %3148 = vmatmul.mubr.f32.gmra.mrb[0].mxu0 %v2863
    %v3149 = vpop.f32.mrb[0].mxu0
    %v3150 = vadd.f32 0.0, %v3149
    %v3151 = vpop.f32.mrb[0].mxu0
    %3152 = vmatprep.mubr.f32.mxu0 0.0
    %3153 = vmatmul.mubr.f32.gmra.mrb[0].mxu0 %v2866
    %v3154 = vpop.f32.mrb[0].mxu0
    %v3155 = vadd.f32 0.0, %v3154
    %v3156 = vpop.f32.mrb[0].mxu0
    %3157 = vmatprep.mubr.f32.mxu0 0.0
    %3158 = vmatmul.mubr.f32.gmra.mrb[0].mxu0 %v2869
    %v3159 = vpop.f32.mrb[0].mxu0
    %v3160 = vadd.f32 0.0, %v3159
    %v3161 = vpop.f32.mrb[0].mxu0
    %3162 = vmatprep.mubr.f32.mxu0 0.0
    %3163 = vmatmul.mubr.f32.gmra.mrb[0].mxu0 %v2872
    %v3164 = vpop.f32.mrb[0].mxu0
    %v3165 = vadd.f32 0.0, %v3164
    %v3166 = vpop.f32.mrb[0].mxu0
    %3167 = vmatprep.mubr.f32.mxu0 0.0
    %3168 = vmatmul.mubr.f32.gmra.mrb[0].mxu0 %v2875
    %v3169 = vpop.f32.mrb[0].mxu0
    %v3170 = vadd.f32 0.0, %v3169
    %v3171 = vpop.f32.mrb[0].mxu0
    %3172 = vmatprep.mubr.f32.mxu0 0.0
    %3173 = vmatmul.mubr.f32.gmra.mrb[0].mxu0 %v2878
    %v3174 = vpop.f32.mrb[0].mxu0
    %v3175 = vadd.f32 0.0, %v3174
    %v3176 = vpop.f32.mrb[0].mxu0
    %3177 = vmatprep.mubr.f32.mxu0 0.0
    %3178 = vmatmul.mubr.f32.gmra.mrb[0].mxu0 %v2881
    %v3179 = vpop.f32.mrb[0].mxu0
    %v3180 = vadd.f32 0.0, %v3179
    %v3181 = vpop.f32.mrb[0].mxu0
    %3182 = vmatprep.mubr.f32.mxu0 0.0
    %3183 = vmatmul.mubr.f32.gmra.mrb[0].mxu0 %v2884
    %v3184 = vpop.f32.mrb[0].mxu0
    %v3185 = vadd.f32 0.0, %v3184
    %v3186 = vpop.f32.mrb[0].mxu0
    %3187 = vmatprep.mubr.f32.mxu0 0.0
    %3188 = vmatmul.mubr.f32.gmra.mrb[0].mxu0 %v2887
    %v3189 = vpop.f32.mrb[0].mxu0
    %v3190 = vadd.f32 0.0, %v3189
    %v3191 = vpop.f32.mrb[0].mxu0
    %3192 = vmatprep.mubr.f32.mxu0 0.0
    %3193 = vmatmul.mubr.f32.gmra.mrb[0].mxu0 %v2890
    %v3194 = vpop.f32.mrb[0].mxu0
    %v3195 = vadd.f32 0.0, %v3194
    %v3196 = vpop.f32.mrb[0].mxu0
    %3197 = vmatprep.mubr.f32.mxu0 0.0
    %3198 = vmatmul.mubr.f32.gmra.mrb[0].mxu0 %v2893
    %v3199 = vpop.f32.mrb[0].mxu0
    %v3200 = vadd.f32 0.0, %v3199
    %v3201 = vpop.f32.mrb[0].mxu0
    %3202 = vmatprep.mubr.f32.mxu0 0.0
    %3203 = vmatmul.mubr.f32.gmra.mrb[0].mxu0 %v2896
    %v3204 = vpop.f32.mrb[0].mxu0
    %v3205 = vadd.f32 0.0, %v3204
    %v3206 = vpop.f32.mrb[0].mxu0
    %3207 = vmatprep.mubr.f32.mxu0 0.0
    %3208 = vmatmul.mubr.f32.gmra.mrb[0].mxu0 %v2899
    %v3209 = vpop.f32.mrb[0].mxu0
    %v3210 = vadd.f32 0.0, %v3209
    %v3211 = vpop.f32.mrb[0].mxu0
    %3212 = vmatprep.mubr.f32.mxu0 0.0
    %3213 = vmatmul.mubr.f32.gmra.mrb[0].mxu0 %v2902
    %v3214 = vpop.f32.mrb[0].mxu0
    %v3215 = vadd.f32 0.0, %v3214
    %v3216 = vpop.f32.mrb[0].mxu0
    %3217 = vmatprep.mubr.f32.mxu0 0.0
    %3218 = vmatmul.mubr.f32.gmra.mrb[0].mxu0 %v2905
    %v3219 = vpop.f32.mrb[0].mxu0
    %v3220 = vadd.f32 0.0, %v3219
    %v3221 = vpop.f32.mrb[0].mxu0
    %3222 = vmatprep.mubr.f32.mxu0 0.0
    %3223 = vmatmul.mubr.f32.gmra.mrb[0].mxu0 %v2908
    %v3224 = vpop.f32.mrb[0].mxu0
    %v3225 = vadd.f32 0.0, %v3224
    %v3226 = vpop.f32.mrb[0].mxu0
    %3227 = vmatprep.mubr.f32.mxu0 0.0
    %3228 = vmatmul.mubr.f32.gmra.mrb[0].mxu0 %v2911
    %v3229 = vpop.f32.mrb[0].mxu0
    %v3230 = vadd.f32 0.0, %v3229
    %v3231 = vpop.f32.mrb[0].mxu0
    %3232 = vmatprep.mubr.f32.mxu0 0.0
    %3233 = vmatmul.mubr.f32.gmra.mrb[0].mxu0 %v2914
    %v3234 = vpop.f32.mrb[0].mxu0
    %v3235 = vadd.f32 0.0, %v3234
    %v3236 = vpop.f32.mrb[0].mxu0
    %3237 = vmatprep.mubr.f32.mxu0 0.0
    %3238 = vmatmul.mubr.f32.gmra.mrb[0].mxu0 %v2917
    %v3239 = vpop.f32.mrb[0].mxu0
    %v3240 = vadd.f32 0.0, %v3239
    %v3241 = vpop.f32.mrb[0].mxu0
    %3242 = vmatprep.mubr.f32.mxu0 0.0
    %3243 = vmatmul.mubr.f32.gmra.mrb[0].mxu0 %v2920
    %v3244 = vpop.f32.mrb[0].mxu0
    %v3245 = vadd.f32 0.0, %v3244
    %v3246 = vpop.f32.mrb[0].mxu0
    %3247 = vmatprep.mubr.f32.mxu0 0.0
    %3248 = vmatmul.mubr.f32.gmra.mrb[0].mxu0 %v2923
    %v3249 = vpop.f32.mrb[0].mxu0
    %v3250 = vadd.f32 0.0, %v3249
    %v3251 = vpop.f32.mrb[0].mxu0
    %3252 = vmatprep.mubr.f32.mxu0 0.0
    %3253 = vmatmul.mubr.f32.gmra.mrb[0].mxu0 %v2926
    %v3254 = vpop.f32.mrb[0].mxu0
    %v3255 = vadd.f32 0.0, %v3254
    %v3256 = vpop.f32.mrb[0].mxu0
    %3257 = vmatprep.mubr.f32.mxu0 0.0
    %3258 = vmatmul.mubr.f32.gmra.mrb[0].mxu0 %v2929
    %v3259 = vpop.f32.mrb[0].mxu0
    %v3260 = vadd.f32 0.0, %v3259
    %v3261 = vpop.f32.mrb[0].mxu0
    %3262 = vmatprep.mubr.f32.mxu0 0.0
    %3263 = vmatmul.mubr.f32.gmra.mrb[0].mxu0 %v2932
    %v3264 = vpop.f32.mrb[0].mxu0
    %v3265 = vadd.f32 0.0, %v3264
    %v3266 = vpop.f32.mrb[0].mxu0
    %3267 = vmatprep.mubr.f32.mxu0 0.0
    %3268 = vmatmul.mubr.f32.gmra.mrb[0].mxu0 %v2935
    %v3269 = vpop.f32.mrb[0].mxu0
    %v3270 = vadd.f32 0.0, %v3269
    %v3271 = vpop.f32.mrb[0].mxu0
    %3272 = vmatprep.mubr.f32.mxu0 0.0
    %3273 = vmatmul.mubr.f32.gmra.mrb[0].mxu0 %v2938
    %v3274 = vpop.f32.mrb[0].mxu0
    %v3275 = vadd.f32 0.0, %v3274
    %v3276 = vpop.f32.mrb[0].mxu0
    %3277 = vmatprep.mubr.f32.mxu0 0.0
    %3278 = vmatmul.mubr.f32.gmra.mrb[0].mxu0 %v2941
    %v3279 = vpop.f32.mrb[0].mxu0
    %v3280 = vadd.f32 0.0, %v3279
    %v3281 = vpop.f32.mrb[0].mxu0
    %3282 = vmatprep.mubr.f32.mxu0 0.0
    %3283 = vmatmul.mubr.f32.gmra.mrb[0].mxu0 %v2944
    %v3284 = vpop.f32.mrb[0].mxu0
    %v3285 = vadd.f32 0.0, %v3284
    %v3286 = vpop.f32.mrb[0].mxu0
    %3287 = vmatprep.mubr.f32.mxu0 0.0
    %3288 = vmatmul.mubr.f32.gmra.mrb[0].mxu0 %v2947
    %v3289 = vpop.f32.mrb[0].mxu0
    %v3290 = vadd.f32 0.0, %v3289
    %v3291 = vpop.f32.mrb[0].mxu0
    %3292 = vmatprep.mubr.f32.mxu0 0.0
    %3293 = vmatmul.mubr.f32.gmra.mrb[0].mxu0 %v2950
    %v3294 = vpop.f32.mrb[0].mxu0
    %v3295 = vadd.f32 0.0, %v3294
    %v3296 = vpop.f32.mrb[0].mxu0
    %3297 = vmatprep.mubr.f32.mxu0 0.0
    %3298 = vmatmul.mubr.f32.gmra.mrb[0].mxu0 %v2953
    %v3299 = vpop.f32.mrb[0].mxu0
    %v3300 = vadd.f32 0.0, %v3299
    %v3301 = vpop.f32.mrb[0].mxu0
    %3302 = vmatprep.mubr.f32.mxu0 0.0
    %3303 = vmatmul.mubr.f32.gmra.mrb[0].mxu0 %v2956
    %v3304 = vpop.f32.mrb[0].mxu0
    %v3305 = vadd.f32 0.0, %v3304
    %v3306 = vpop.f32.mrb[0].mxu0
    %3307 = vmatprep.mubr.f32.mxu0 0.0
    %3308 = vmatmul.mubr.f32.gmra.mrb[0].mxu0 %v2959
    %v3309 = vpop.f32.mrb[0].mxu0
    %v3310 = vadd.f32 0.0, %v3309
    %v3311 = vpop.f32.mrb[0].mxu0
    %3312 = vmatprep.mubr.f32.mxu0 0.0
    %3313 = vmatmul.mubr.f32.gmra.mrb[0].mxu0 %v2962
    %v3314 = vpop.f32.mrb[0].mxu0
    %v3315 = vadd.f32 0.0, %v3314
    %v3316 = vpop.f32.mrb[0].mxu0
    %3317 = vmatprep.mubr.f32.mxu0 0.0
    %3318 = vmatmul.mubr.f32.gmra.mrb[0].mxu0 %v2965
    %v3319 = vpop.f32.mrb[0].mxu0
    %v3320 = vadd.f32 0.0, %v3319
    %v3321 = vpop.f32.mrb[0].mxu0
    %3322 = vmatprep.mubr.f32.mxu0 0.0
    %3323 = vmatmul.mubr.f32.gmra.mrb[0].mxu0 %v2968
    %v3324 = vpop.f32.mrb[0].mxu0
    %v3325 = vadd.f32 0.0, %v3324
    %v3326 = vpop.f32.mrb[0].mxu0
    %3327 = vmatprep.mubr.f32.mxu0 0.0
    %3328 = vmatmul.mubr.f32.gmra.mrb[0].mxu0 %v2971
    %v3329 = vpop.f32.mrb[0].mxu0
    %v3330 = vadd.f32 0.0, %v3329
    %v3331 = vpop.f32.mrb[0].mxu0
    %3332 = vmatprep.mubr.f32.mxu0 0.0
    %3333 = vmatmul.mubr.f32.gmra.mrb[0].mxu0 %v2974
    %v3334 = vpop.f32.mrb[0].mxu0
    %v3335 = vadd.f32 0.0, %v3334
    %v3336 = vpop.f32.mrb[0].mxu0
    %3337 = vmatprep.mubr.f32.mxu0 0.0
    %3338 = vmatmul.mubr.f32.gmra.mrb[0].mxu0 %v2977
    %v3339 = vpop.f32.mrb[0].mxu0
    %v3340 = vadd.f32 0.0, %v3339
    %v3341 = vpop.f32.mrb[0].mxu0
    %3342 = vmatprep.mubr.f32.mxu0 0.0
    %3343 = vmatmul.mubr.f32.gmra.mrb[0].mxu0 %v2980
    %v3344 = vpop.f32.mrb[0].mxu0
    %v3345 = vadd.f32 0.0, %v3344
    %v3346 = vpop.f32.mrb[0].mxu0
    %3347 = vmatprep.mubr.f32.mxu0 0.0
    %3348 = vmatmul.mubr.f32.gmra.mrb[0].mxu0 %v2983
    %v3349 = vpop.f32.mrb[0].mxu0
    %v3350 = vadd.f32 0.0, %v3349
    %v3351 = vpop.f32.mrb[0].mxu0
    %3352 = vmatprep.mubr.f32.mxu0 0.0
    %3353 = vmatmul.mubr.f32.gmra.mrb[0].mxu0 %v2986
    %v3354 = vpop.f32.mrb[0].mxu0
    %v3355 = vadd.f32 0.0, %v3354
    %v3356 = vpop.f32.mrb[0].mxu0
    %3357 = vmatprep.mubr.f32.mxu0 0.0
    %3358 = vmatmul.mubr.f32.gmra.mrb[0].mxu0 %v2989
    %v3359 = vpop.f32.mrb[0].mxu0
    %v3360 = vadd.f32 0.0, %v3359
    %v3361 = vpop.f32.mrb[0].mxu0
    %3362 = vmatprep.mubr.f32.mxu0 0.0
    %3363 = vmatmul.mubr.f32.gmra.mrb[0].mxu0 %v2992
    %v3364 = vpop.f32.mrb[0].mxu0
    %v3365 = vadd.f32 0.0, %v3364
    %v3366 = vpop.f32.mrb[0].mxu0
    %3367 = vmatprep.mubr.f32.mxu0 0.0
    %3368 = vmatmul.mubr.f32.gmra.mrb[0].mxu0 %v2995
    %v3369 = vpop.f32.mrb[0].mxu0
    %v3370 = vadd.f32 0.0, %v3369
    %v3371 = vpop.f32.mrb[0].mxu0
    %3372 = vmatprep.mubr.f32.mxu0 0.0
    %3373 = vmatmul.mubr.f32.gmra.mrb[0].mxu0 %v2998
    %v3374 = vpop.f32.mrb[0].mxu0
    %v3375 = vadd.f32 0.0, %v3374
    %v3376 = vpop.f32.mrb[0].mxu0
    %3377 = vmatprep.mubr.f32.mxu0 0.0
    %3378 = vmatmul.mubr.f32.gmra.mrb[0].mxu0 %v3001
    %v3379 = vpop.f32.mrb[0].mxu0
    %v3380 = vadd.f32 0.0, %v3379
    %v3381 = vpop.f32.mrb[0].mxu0
    %3382 = vmatprep.mubr.f32.mxu0 0.0
    %3383 = vmatmul.mubr.f32.gmra.mrb[0].mxu0 %v3004
    %v3384 = vpop.f32.mrb[0].mxu0
    %v3385 = vadd.f32 0.0, %v3384
    %v3386 = vpop.f32.mrb[0].mxu0
    %3387 = vmatprep.mubr.f32.mxu0 0.0
    %3388 = vmatmul.mubr.f32.gmra.mrb[0].mxu0 %v3007
    %v3389 = vpop.f32.mrb[0].mxu0
    %v3390 = vadd.f32 0.0, %v3389
    %v3391 = vpop.f32.mrb[0].mxu0
    %3392 = vmatprep.mubr.f32.mxu0 0.0
    %3393 = vmatmul.mubr.f32.gmra.mrb[0].mxu0 %v3010
    %v3394 = vpop.f32.mrb[0].mxu0
    %v3395 = vadd.f32 0.0, %v3394
    %v3396 = vpop.f32.mrb[0].mxu0
    %3397 = vmatprep.mubr.f32.mxu0 0.0
    %3398 = vmatmul.mubr.f32.gmra.mrb[0].mxu0 %v3013
    %v3399 = vpop.f32.mrb[0].mxu0
    %v3400 = vadd.f32 0.0, %v3399
    %v3401 = vpop.f32.mrb[0].mxu0
    %3402 = vdwg.mxu0
    %v3403 = vadd.f32 %v2693, %v3085
    %v3404 = vadd.f32 %v2694, %v3090
    %v3405 = vadd.f32 %v2695, %v3095
    %v3406 = vadd.f32 %v2696, %v3100
    %v3407 = vadd.f32 %v2697, %v3105
    %v3408 = vadd.f32 %v2698, %v3110
    %v3409 = vadd.f32 %v2699, %v3115
    %v3410 = vadd.f32 %v2700, %v3120
    %v3411 = vadd.f32 %v2701, %v3125
    %v3412 = vadd.f32 %v2702, %v3130
    %v3413 = vadd.f32 %v2703, %v3135
    %v3414 = vadd.f32 %v2704, %v3140
    %v3415 = vadd.f32 %v2705, %v3145
    %v3416 = vadd.f32 %v2706, %v3150
    %v3417 = vadd.f32 %v2707, %v3155
    %v3418 = vadd.f32 %v2708, %v3160
    %v3419 = vadd.f32 %v2709, %v3165
    %v3420 = vadd.f32 %v2710, %v3170
    %v3421 = vadd.f32 %v2711, %v3175
    %v3422 = vadd.f32 %v2712, %v3180
    %v3423 = vadd.f32 %v2713, %v3185
    %v3424 = vadd.f32 %v2714, %v3190
    %v3425 = vadd.f32 %v2715, %v3195
    %v3426 = vadd.f32 %v2716, %v3200
    %v3427 = vadd.f32 %v2717, %v3205
    %v3428 = vadd.f32 %v2718, %v3210
    %v3429 = vadd.f32 %v2719, %v3215
    %v3430 = vadd.f32 %v2720, %v3220
    %v3431 = vadd.f32 %v2721, %v3225
    %v3432 = vadd.f32 %v2722, %v3230
    %v3433 = vadd.f32 %v2723, %v3235
    %v3434 = vadd.f32 %v2724, %v3240
    %v3435 = vadd.f32 %v2725, %v3245
    %v3436 = vadd.f32 %v2726, %v3250
    %v3437 = vadd.f32 %v2727, %v3255
    %v3438 = vadd.f32 %v2728, %v3260
    %v3439 = vadd.f32 %v2729, %v3265
    %v3440 = vadd.f32 %v2730, %v3270
    %v3441 = vadd.f32 %v2731, %v3275
    %v3442 = vadd.f32 %v2732, %v3280
    %v3443 = vadd.f32 %v2733, %v3285
    %v3444 = vadd.f32 %v2734, %v3290
    %v3445 = vadd.f32 %v2735, %v3295
    %v3446 = vadd.f32 %v2736, %v3300
    %v3447 = vadd.f32 %v2737, %v3305
    %v3448 = vadd.f32 %v2738, %v3310
    %v3449 = vadd.f32 %v2739, %v3315
    %v3450 = vadd.f32 %v2740, %v3320
    %v3451 = vadd.f32 %v2741, %v3325
    %v3452 = vadd.f32 %v2742, %v3330
    %v3453 = vadd.f32 %v2743, %v3335
    %v3454 = vadd.f32 %v2744, %v3340
    %v3455 = vadd.f32 %v2745, %v3345
    %v3456 = vadd.f32 %v2746, %v3350
    %v3457 = vadd.f32 %v2747, %v3355
    %v3458 = vadd.f32 %v2748, %v3360
    %v3459 = vadd.f32 %v2749, %v3365
    %v3460 = vadd.f32 %v2750, %v3370
    %v3461 = vadd.f32 %v2751, %v3375
    %v3462 = vadd.f32 %v2752, %v3380
    %v3463 = vadd.f32 %v2753, %v3385
    %v3464 = vadd.f32 %v2754, %v3390
    %v3465 = vadd.f32 %v2755, %v3395
    %v3466 = vadd.f32 %v2756, %v3400
    %v3467 = vld [vmem:[%s2046 + $0x2] sm:$0xff]
    %v3468 = vld [vmem:[%s2046 + $0xa] sm:$0xff]
    %v3469 = vld [vmem:[%s2046 + $0x1a] sm:$0xff]
    %v3470 = vld [vmem:[%s2046 + $0x22] sm:$0xff]
    %v3471 = vld [vmem:[%s2046 + $0x32] sm:$0xff]
    %v3472 = vld [vmem:[%s2046 + $0x3a] sm:$0xff]
    %v3473 = vld [vmem:[%s2046 + $0x4a] sm:$0xff]
    %v3474 = vld [vmem:[%s2046 + $0x52] sm:$0xff]
    %v3475 = vld [vmem:[%s2046 + $0x62] sm:$0xff]
    %v3476 = vld [vmem:[%s2046 + $0x6a] sm:$0xff]
    %v3477 = vld [vmem:[%s2046 + $0x7a] sm:$0xff]
    %v3478 = vld [vmem:[%s2046 + $0x82] sm:$0xff]
    %v3479 = vld [vmem:[%s2046 + $0x92] sm:$0xff]
    %v3480 = vld [vmem:[%s2046 + $0x9a] sm:$0xff]
    %v3481 = vld [vmem:[%s2046 + $0xaa] sm:$0xff]
    %v3482 = vld [vmem:[%s2046 + $0xb2] sm:$0xff]
    %v3483 = vld [vmem:[%s2046 + $0xc2] sm:$0xff]
    %v3484 = vld [vmem:[%s2046 + $0xca] sm:$0xff]
    %v3485 = vld [vmem:[%s2046 + $0xda] sm:$0xff]
    %v3486 = vld [vmem:[%s2046 + $0xe2] sm:$0xff]
    %v3487 = vld [vmem:[%s2046 + $0xf2] sm:$0xff]
    %v3488 = vld [vmem:[%s2046 + $0xfa] sm:$0xff]
    %v3489 = vld [vmem:[%s2046 + $0x10a] sm:$0xff]
    %v3490 = vld [vmem:[%s2046 + $0x112] sm:$0xff]
    %v3491 = vld [vmem:[%s2046 + $0x122] sm:$0xff]
    %v3492 = vld [vmem:[%s2046 + $0x12a] sm:$0xff]
    %v3493 = vld [vmem:[%s2046 + $0x13a] sm:$0xff]
    %v3494 = vld [vmem:[%s2046 + $0x142] sm:$0xff]
    %v3495 = vld [vmem:[%s2046 + $0x152] sm:$0xff]
    %v3496 = vld [vmem:[%s2046 + $0x15a] sm:$0xff]
    %v3497 = vld [vmem:[%s2046 + $0x16a] sm:$0xff]
    %v3498 = vld [vmem:[%s2046 + $0x172] sm:$0xff]
    %v3499 = vld [vmem:[%s2046 + $0x1b2] sm:$0xff]
    %v3500 = vld [vmem:[%s2046 + $0x1ba] sm:$0xff]
    %v3501 = vld [vmem:[%s2046 + $0x1ca] sm:$0xff]
    %v3502 = vld [vmem:[%s2046 + $0x1d2] sm:$0xff]
    %v3503 = vld [vmem:[%s2046 + $0x1e2] sm:$0xff]
    %v3504 = vld [vmem:[%s2046 + $0x1ea] sm:$0xff]
    %v3505 = vld [vmem:[%s2046 + $0x1fa] sm:$0xff]
    %v3506 = vld [vmem:[%s2046 + $0x202] sm:$0xff]
    %v3507 = vld [vmem:[%s2046 + $0x212] sm:$0xff]
    %v3508 = vld [vmem:[%s2046 + $0x21a] sm:$0xff]
    %v3509 = vld [vmem:[%s2046 + $0x22a] sm:$0xff]
    %v3510 = vld [vmem:[%s2046 + $0x232] sm:$0xff]
    %v3511 = vld [vmem:[%s2046 + $0x242] sm:$0xff]
    %v3512 = vld [vmem:[%s2046 + $0x24a] sm:$0xff]
    %v3513 = vld [vmem:[%s2046 + $0x25a] sm:$0xff]
    %v3514 = vld [vmem:[%s2046 + $0x262] sm:$0xff]
    %v3515 = vld [vmem:[%s2046 + $0x272] sm:$0xff]
    %v3516 = vld [vmem:[%s2046 + $0x27a] sm:$0xff]
    %v3517 = vld [vmem:[%s2046 + $0x28a] sm:$0xff]
    %v3518 = vld [vmem:[%s2046 + $0x292] sm:$0xff]
    %v3519 = vld [vmem:[%s2046 + $0x2a2] sm:$0xff]
    %v3520 = vld [vmem:[%s2046 + $0x2aa] sm:$0xff]
    %v3521 = vld [vmem:[%s2046 + $0x2ba] sm:$0xff]
    %v3522 = vld [vmem:[%s2046 + $0x2c2] sm:$0xff]
    %v3523 = vld [vmem:[%s2046 + $0x2d2] sm:$0xff]
    %v3524 = vld [vmem:[%s2046 + $0x2da] sm:$0xff]
    %v3525 = vld [vmem:[%s2046 + $0x2ea] sm:$0xff]
    %v3526 = vld [vmem:[%s2046 + $0x2f2] sm:$0xff]
    %v3527 = vld [vmem:[%s2046 + $0x302] sm:$0xff]
    %v3528 = vld [vmem:[%s2046 + $0x30a] sm:$0xff]
    %v3529 = vld [vmem:[%s2046 + $0x31a] sm:$0xff]
    %v3530 = vld [vmem:[%s2046 + $0x322] sm:$0xff]
    %s3531 = scalar_lea.vmem %s2, 20
    %v3532 = vld [vmem:[%s3531] sm:$0xf]
    %v3534 = vsel %vm174, %v3467, 0
    %v3537 = vsel %vm174, %v3468, 0
    %v3540 = vsel %vm174, %v3469, 0
    %v3543 = vsel %vm174, %v3470, 0
    %v3546 = vsel %vm174, %v3471, 0
    %v3549 = vsel %vm174, %v3472, 0
    %v3552 = vsel %vm174, %v3473, 0
    %v3555 = vsel %vm174, %v3474, 0
    %v3558 = vsel %vm174, %v3475, 0
    %v3561 = vsel %vm174, %v3476, 0
    %v3564 = vsel %vm174, %v3477, 0
    %v3567 = vsel %vm174, %v3478, 0
    %v3570 = vsel %vm174, %v3479, 0
    %v3573 = vsel %vm174, %v3480, 0
    %v3576 = vsel %vm174, %v3481, 0
    %v3579 = vsel %vm174, %v3482, 0
    %v3582 = vsel %vm174, %v3483, 0
    %v3585 = vsel %vm174, %v3484, 0
    %v3588 = vsel %vm174, %v3485, 0
    %v3591 = vsel %vm174, %v3486, 0
    %v3594 = vsel %vm174, %v3487, 0
    %v3597 = vsel %vm174, %v3488, 0
    %v3600 = vsel %vm174, %v3489, 0
    %v3603 = vsel %vm174, %v3490, 0
    %v3606 = vsel %vm174, %v3491, 0
    %v3609 = vsel %vm174, %v3492, 0
    %v3612 = vsel %vm174, %v3493, 0
    %v3615 = vsel %vm174, %v3494, 0
    %v3618 = vsel %vm174, %v3495, 0
    %v3621 = vsel %vm174, %v3496, 0
    %v3624 = vsel %vm174, %v3497, 0
    %v3627 = vsel %vm174, %v3498, 0
    %v3630 = vsel %vm174, %v3499, 0
    %v3633 = vsel %vm174, %v3500, 0
    %v3636 = vsel %vm174, %v3501, 0
    %v3639 = vsel %vm174, %v3502, 0
    %v3642 = vsel %vm174, %v3503, 0
    %v3645 = vsel %vm174, %v3504, 0
    %v3648 = vsel %vm174, %v3505, 0
    %v3651 = vsel %vm174, %v3506, 0
    %v3654 = vsel %vm174, %v3507, 0
    %v3657 = vsel %vm174, %v3508, 0
    %v3660 = vsel %vm174, %v3509, 0
    %v3663 = vsel %vm174, %v3510, 0
    %v3666 = vsel %vm174, %v3511, 0
    %v3669 = vsel %vm174, %v3512, 0
    %v3672 = vsel %vm174, %v3513, 0
    %v3675 = vsel %vm174, %v3514, 0
    %v3678 = vsel %vm174, %v3515, 0
    %v3681 = vsel %vm174, %v3516, 0
    %v3684 = vsel %vm174, %v3517, 0
    %v3687 = vsel %vm174, %v3518, 0
    %v3690 = vsel %vm174, %v3519, 0
    %v3693 = vsel %vm174, %v3520, 0
    %v3696 = vsel %vm174, %v3521, 0
    %v3699 = vsel %vm174, %v3522, 0
    %v3702 = vsel %vm174, %v3523, 0
    %v3705 = vsel %vm174, %v3524, 0
    %v3708 = vsel %vm174, %v3525, 0
    %v3711 = vsel %vm174, %v3526, 0
    %v3714 = vsel %vm174, %v3527, 0
    %v3717 = vsel %vm174, %v3528, 0
    %v3720 = vsel %vm174, %v3529, 0
    %v3723 = vsel %vm174, %v3530, 0
    %v3726 = vsel %vm367, %v3532, 0
    %3728 = vmatprep.subr.mxu0 0.0
    %3729 = vmatpush1.msra.mxu0 %v3726
    %3730 = vmatprep.subr.mxu0 0.0
    %3731 = vmatpush1.msra.mxu0 0.0
    %3732 = vmatprep.subr.mxu0 0.0
    %3733 = vmatpush1.msra.mxu0 0.0
    %3734 = vmatprep.subr.mxu0 0.0
    %3735 = vmatpush1.msra.mxu0 0.0
    %3736 = vmatprep.subr.mxu0 0.0
    %3737 = vmatpush1.msra.mxu0 0.0
    %3738 = vmatprep.subr.mxu0 0.0
    %3739 = vmatpush1.msra.mxu0 0.0
    %3740 = vmatprep.subr.mxu0 0.0
    %3741 = vmatpush1.msra.mxu0 0.0
    %3742 = vmatprep.subr.mxu0 0.0
    %3743 = vmatpush1.msra.mxu0 0.0
    %3744 = vmatprep.subr.mxu0 0.0
    %3745 = vmatpush1.msra.mxu0 0.0
    %3746 = vmatprep.subr.mxu0 0.0
    %3747 = vmatpush1.msra.mxu0 0.0
    %3748 = vmatprep.subr.mxu0 0.0
    %3749 = vmatpush1.msra.mxu0 0.0
    %3750 = vmatprep.subr.mxu0 0.0
    %3751 = vmatpush1.msra.mxu0 0.0
    %3752 = vmatprep.subr.mxu0 0.0
    %3753 = vmatpush1.msra.mxu0 0.0
    %3754 = vmatprep.subr.mxu0 0.0
    %3755 = vmatpush1.msra.mxu0 0.0
    %3756 = vmatprep.subr.mxu0 0.0
    %3757 = vmatpush1.msra.mxu0 0.0
    %3758 = vmatprep.subr.mxu0 0.0
    %3759 = vmatpush1.msra.mxu0 0.0
    %3760 = vmatprep.subr.mxu0 0.0
    %3761 = vmatpush1.msra.mxu0 0.0
    %3762 = vmatprep.subr.mxu0 0.0
    %3763 = vmatpush1.msra.mxu0 0.0
    %3764 = vmatprep.subr.mxu0 0.0
    %3765 = vmatpush1.msra.mxu0 0.0
    %3766 = vmatprep.subr.mxu0 0.0
    %3767 = vmatpush1.msra.mxu0 0.0
    %3768 = vmatprep.subr.mxu0 0.0
    %3769 = vmatpush1.msra.mxu0 0.0
    %3770 = vmatprep.subr.mxu0 0.0
    %3771 = vmatpush1.msra.mxu0 0.0
    %3772 = vmatprep.subr.mxu0 0.0
    %3773 = vmatpush1.msra.mxu0 0.0
    %3774 = vmatprep.subr.mxu0 0.0
    %3775 = vmatpush1.msra.mxu0 0.0
    %3776 = vmatprep.subr.mxu0 0.0
    %3777 = vmatpush1.msra.mxu0 0.0
    %3778 = vmatprep.subr.mxu0 0.0
    %3779 = vmatpush1.msra.mxu0 0.0
    %3780 = vmatprep.subr.mxu0 0.0
    %3781 = vmatpush1.msra.mxu0 0.0
    %3782 = vmatprep.subr.mxu0 0.0
    %3783 = vmatpush1.msra.mxu0 0.0
    %3784 = vmatprep.subr.mxu0 0.0
    %3785 = vmatpush1.msra.mxu0 0.0
    %3786 = vmatprep.subr.mxu0 0.0
    %3787 = vmatpush1.msra.mxu0 0.0
    %3788 = vmatprep.subr.mxu0 0.0
    %3789 = vmatpush1.msra.mxu0 0.0
    %3790 = vmatprep.subr.mxu0 0.0
    %3791 = vmatpush1.msra.mxu0 0.0
    %3792 = vmatprep.mubr.f32.mxu0 0.0
    %3793 = vmatmul.mubr.f32.gmra.mrb[0].mxu0 %v3534
    %v3794 = vpop.f32.mrb[0].mxu0
    %v3795 = vadd.f32 0.0, %v3794
    %v3796 = vpop.f32.mrb[0].mxu0
    %3797 = vmatprep.mubr.f32.mxu0 0.0
    %3798 = vmatmul.mubr.f32.gmra.mrb[0].mxu0 %v3537
    %v3799 = vpop.f32.mrb[0].mxu0
    %v3800 = vadd.f32 0.0, %v3799
    %v3801 = vpop.f32.mrb[0].mxu0
    %3802 = vmatprep.mubr.f32.mxu0 0.0
    %3803 = vmatmul.mubr.f32.gmra.mrb[0].mxu0 %v3540
    %v3804 = vpop.f32.mrb[0].mxu0
    %v3805 = vadd.f32 0.0, %v3804
    %v3806 = vpop.f32.mrb[0].mxu0
    %3807 = vmatprep.mubr.f32.mxu0 0.0
    %3808 = vmatmul.mubr.f32.gmra.mrb[0].mxu0 %v3543
    %v3809 = vpop.f32.mrb[0].mxu0
    %v3810 = vadd.f32 0.0, %v3809
    %v3811 = vpop.f32.mrb[0].mxu0
    %3812 = vmatprep.mubr.f32.mxu0 0.0
    %3813 = vmatmul.mubr.f32.gmra.mrb[0].mxu0 %v3546
    %v3814 = vpop.f32.mrb[0].mxu0
    %v3815 = vadd.f32 0.0, %v3814
    %v3816 = vpop.f32.mrb[0].mxu0
    %3817 = vmatprep.mubr.f32.mxu0 0.0
    %3818 = vmatmul.mubr.f32.gmra.mrb[0].mxu0 %v3549
    %v3819 = vpop.f32.mrb[0].mxu0
    %v3820 = vadd.f32 0.0, %v3819
    %v3821 = vpop.f32.mrb[0].mxu0
    %3822 = vmatprep.mubr.f32.mxu0 0.0
    %3823 = vmatmul.mubr.f32.gmra.mrb[0].mxu0 %v3552
    %v3824 = vpop.f32.mrb[0].mxu0
    %v3825 = vadd.f32 0.0, %v3824
    %v3826 = vpop.f32.mrb[0].mxu0
    %3827 = vmatprep.mubr.f32.mxu0 0.0
    %3828 = vmatmul.mubr.f32.gmra.mrb[0].mxu0 %v3555
    %v3829 = vpop.f32.mrb[0].mxu0
    %v3830 = vadd.f32 0.0, %v3829
    %v3831 = vpop.f32.mrb[0].mxu0
    %3832 = vmatprep.mubr.f32.mxu0 0.0
    %3833 = vmatmul.mubr.f32.gmra.mrb[0].mxu0 %v3558
    %v3834 = vpop.f32.mrb[0].mxu0
    %v3835 = vadd.f32 0.0, %v3834
    %v3836 = vpop.f32.mrb[0].mxu0
    %3837 = vmatprep.mubr.f32.mxu0 0.0
    %3838 = vmatmul.mubr.f32.gmra.mrb[0].mxu0 %v3561
    %v3839 = vpop.f32.mrb[0].mxu0
    %v3840 = vadd.f32 0.0, %v3839
    %v3841 = vpop.f32.mrb[0].mxu0
    %3842 = vmatprep.mubr.f32.mxu0 0.0
    %3843 = vmatmul.mubr.f32.gmra.mrb[0].mxu0 %v3564
    %v3844 = vpop.f32.mrb[0].mxu0
    %v3845 = vadd.f32 0.0, %v3844
    %v3846 = vpop.f32.mrb[0].mxu0
    %3847 = vmatprep.mubr.f32.mxu0 0.0
    %3848 = vmatmul.mubr.f32.gmra.mrb[0].mxu0 %v3567
    %v3849 = vpop.f32.mrb[0].mxu0
    %v3850 = vadd.f32 0.0, %v3849
    %v3851 = vpop.f32.mrb[0].mxu0
    %3852 = vmatprep.mubr.f32.mxu0 0.0
    %3853 = vmatmul.mubr.f32.gmra.mrb[0].mxu0 %v3570
    %v3854 = vpop.f32.mrb[0].mxu0
    %v3855 = vadd.f32 0.0, %v3854
    %v3856 = vpop.f32.mrb[0].mxu0
    %3857 = vmatprep.mubr.f32.mxu0 0.0
    %3858 = vmatmul.mubr.f32.gmra.mrb[0].mxu0 %v3573
    %v3859 = vpop.f32.mrb[0].mxu0
    %v3860 = vadd.f32 0.0, %v3859
    %v3861 = vpop.f32.mrb[0].mxu0
    %3862 = vmatprep.mubr.f32.mxu0 0.0
    %3863 = vmatmul.mubr.f32.gmra.mrb[0].mxu0 %v3576
    %v3864 = vpop.f32.mrb[0].mxu0
    %v3865 = vadd.f32 0.0, %v3864
    %v3866 = vpop.f32.mrb[0].mxu0
    %3867 = vmatprep.mubr.f32.mxu0 0.0
    %3868 = vmatmul.mubr.f32.gmra.mrb[0].mxu0 %v3579
    %v3869 = vpop.f32.mrb[0].mxu0
    %v3870 = vadd.f32 0.0, %v3869
    %v3871 = vpop.f32.mrb[0].mxu0
    %3872 = vmatprep.mubr.f32.mxu0 0.0
    %3873 = vmatmul.mubr.f32.gmra.mrb[0].mxu0 %v3582
    %v3874 = vpop.f32.mrb[0].mxu0
    %v3875 = vadd.f32 0.0, %v3874
    %v3876 = vpop.f32.mrb[0].mxu0
    %3877 = vmatprep.mubr.f32.mxu0 0.0
    %3878 = vmatmul.mubr.f32.gmra.mrb[0].mxu0 %v3585
    %v3879 = vpop.f32.mrb[0].mxu0
    %v3880 = vadd.f32 0.0, %v3879
    %v3881 = vpop.f32.mrb[0].mxu0
    %3882 = vmatprep.mubr.f32.mxu0 0.0
    %3883 = vmatmul.mubr.f32.gmra.mrb[0].mxu0 %v3588
    %v3884 = vpop.f32.mrb[0].mxu0
    %v3885 = vadd.f32 0.0, %v3884
    %v3886 = vpop.f32.mrb[0].mxu0
    %3887 = vmatprep.mubr.f32.mxu0 0.0
    %3888 = vmatmul.mubr.f32.gmra.mrb[0].mxu0 %v3591
    %v3889 = vpop.f32.mrb[0].mxu0
    %v3890 = vadd.f32 0.0, %v3889
    %v3891 = vpop.f32.mrb[0].mxu0
    %3892 = vmatprep.mubr.f32.mxu0 0.0
    %3893 = vmatmul.mubr.f32.gmra.mrb[0].mxu0 %v3594
    %v3894 = vpop.f32.mrb[0].mxu0
    %v3895 = vadd.f32 0.0, %v3894
    %v3896 = vpop.f32.mrb[0].mxu0
    %3897 = vmatprep.mubr.f32.mxu0 0.0
    %3898 = vmatmul.mubr.f32.gmra.mrb[0].mxu0 %v3597
    %v3899 = vpop.f32.mrb[0].mxu0
    %v3900 = vadd.f32 0.0, %v3899
    %v3901 = vpop.f32.mrb[0].mxu0
    %3902 = vmatprep.mubr.f32.mxu0 0.0
    %3903 = vmatmul.mubr.f32.gmra.mrb[0].mxu0 %v3600
    %v3904 = vpop.f32.mrb[0].mxu0
    %v3905 = vadd.f32 0.0, %v3904
    %v3906 = vpop.f32.mrb[0].mxu0
    %3907 = vmatprep.mubr.f32.mxu0 0.0
    %3908 = vmatmul.mubr.f32.gmra.mrb[0].mxu0 %v3603
    %v3909 = vpop.f32.mrb[0].mxu0
    %v3910 = vadd.f32 0.0, %v3909
    %v3911 = vpop.f32.mrb[0].mxu0
    %3912 = vmatprep.mubr.f32.mxu0 0.0
    %3913 = vmatmul.mubr.f32.gmra.mrb[0].mxu0 %v3606
    %v3914 = vpop.f32.mrb[0].mxu0
    %v3915 = vadd.f32 0.0, %v3914
    %v3916 = vpop.f32.mrb[0].mxu0
    %3917 = vmatprep.mubr.f32.mxu0 0.0
    %3918 = vmatmul.mubr.f32.gmra.mrb[0].mxu0 %v3609
    %v3919 = vpop.f32.mrb[0].mxu0
    %v3920 = vadd.f32 0.0, %v3919
    %v3921 = vpop.f32.mrb[0].mxu0
    %3922 = vmatprep.mubr.f32.mxu0 0.0
    %3923 = vmatmul.mubr.f32.gmra.mrb[0].mxu0 %v3612
    %v3924 = vpop.f32.mrb[0].mxu0
    %v3925 = vadd.f32 0.0, %v3924
    %v3926 = vpop.f32.mrb[0].mxu0
    %3927 = vmatprep.mubr.f32.mxu0 0.0
    %3928 = vmatmul.mubr.f32.gmra.mrb[0].mxu0 %v3615
    %v3929 = vpop.f32.mrb[0].mxu0
    %v3930 = vadd.f32 0.0, %v3929
    %v3931 = vpop.f32.mrb[0].mxu0
    %3932 = vmatprep.mubr.f32.mxu0 0.0
    %3933 = vmatmul.mubr.f32.gmra.mrb[0].mxu0 %v3618
    %v3934 = vpop.f32.mrb[0].mxu0
    %v3935 = vadd.f32 0.0, %v3934
    %v3936 = vpop.f32.mrb[0].mxu0
    %3937 = vmatprep.mubr.f32.mxu0 0.0
    %3938 = vmatmul.mubr.f32.gmra.mrb[0].mxu0 %v3621
    %v3939 = vpop.f32.mrb[0].mxu0
    %v3940 = vadd.f32 0.0, %v3939
    %v3941 = vpop.f32.mrb[0].mxu0
    %3942 = vmatprep.mubr.f32.mxu0 0.0
    %3943 = vmatmul.mubr.f32.gmra.mrb[0].mxu0 %v3624
    %v3944 = vpop.f32.mrb[0].mxu0
    %v3945 = vadd.f32 0.0, %v3944
    %v3946 = vpop.f32.mrb[0].mxu0
    %3947 = vmatprep.mubr.f32.mxu0 0.0
    %3948 = vmatmul.mubr.f32.gmra.mrb[0].mxu0 %v3627
    %v3949 = vpop.f32.mrb[0].mxu0
    %v3950 = vadd.f32 0.0, %v3949
    %v3951 = vpop.f32.mrb[0].mxu0
    %3952 = vmatprep.mubr.f32.mxu0 0.0
    %3953 = vmatmul.mubr.f32.gmra.mrb[0].mxu0 %v3630
    %v3954 = vpop.f32.mrb[0].mxu0
    %v3955 = vadd.f32 0.0, %v3954
    %v3956 = vpop.f32.mrb[0].mxu0
    %3957 = vmatprep.mubr.f32.mxu0 0.0
    %3958 = vmatmul.mubr.f32.gmra.mrb[0].mxu0 %v3633
    %v3959 = vpop.f32.mrb[0].mxu0
    %v3960 = vadd.f32 0.0, %v3959
    %v3961 = vpop.f32.mrb[0].mxu0
    %3962 = vmatprep.mubr.f32.mxu0 0.0
    %3963 = vmatmul.mubr.f32.gmra.mrb[0].mxu0 %v3636
    %v3964 = vpop.f32.mrb[0].mxu0
    %v3965 = vadd.f32 0.0, %v3964
    %v3966 = vpop.f32.mrb[0].mxu0
    %3967 = vmatprep.mubr.f32.mxu0 0.0
    %3968 = vmatmul.mubr.f32.gmra.mrb[0].mxu0 %v3639
    %v3969 = vpop.f32.mrb[0].mxu0
    %v3970 = vadd.f32 0.0, %v3969
    %v3971 = vpop.f32.mrb[0].mxu0
    %3972 = vmatprep.mubr.f32.mxu0 0.0
    %3973 = vmatmul.mubr.f32.gmra.mrb[0].mxu0 %v3642
    %v3974 = vpop.f32.mrb[0].mxu0
    %v3975 = vadd.f32 0.0, %v3974
    %v3976 = vpop.f32.mrb[0].mxu0
    %3977 = vmatprep.mubr.f32.mxu0 0.0
    %3978 = vmatmul.mubr.f32.gmra.mrb[0].mxu0 %v3645
    %v3979 = vpop.f32.mrb[0].mxu0
    %v3980 = vadd.f32 0.0, %v3979
    %v3981 = vpop.f32.mrb[0].mxu0
    %3982 = vmatprep.mubr.f32.mxu0 0.0
    %3983 = vmatmul.mubr.f32.gmra.mrb[0].mxu0 %v3648
    %v3984 = vpop.f32.mrb[0].mxu0
    %v3985 = vadd.f32 0.0, %v3984
    %v3986 = vpop.f32.mrb[0].mxu0
    %3987 = vmatprep.mubr.f32.mxu0 0.0
    %3988 = vmatmul.mubr.f32.gmra.mrb[0].mxu0 %v3651
    %v3989 = vpop.f32.mrb[0].mxu0
    %v3990 = vadd.f32 0.0, %v3989
    %v3991 = vpop.f32.mrb[0].mxu0
    %3992 = vmatprep.mubr.f32.mxu0 0.0
    %3993 = vmatmul.mubr.f32.gmra.mrb[0].mxu0 %v3654
    %v3994 = vpop.f32.mrb[0].mxu0
    %v3995 = vadd.f32 0.0, %v3994
    %v3996 = vpop.f32.mrb[0].mxu0
    %3997 = vmatprep.mubr.f32.mxu0 0.0
    %3998 = vmatmul.mubr.f32.gmra.mrb[0].mxu0 %v3657
    %v3999 = vpop.f32.mrb[0].mxu0
    %v4000 = vadd.f32 0.0, %v3999
    %v4001 = vpop.f32.mrb[0].mxu0
    %4002 = vmatprep.mubr.f32.mxu0 0.0
    %4003 = vmatmul.mubr.f32.gmra.mrb[0].mxu0 %v3660
    %v4004 = vpop.f32.mrb[0].mxu0
    %v4005 = vadd.f32 0.0, %v4004
    %v4006 = vpop.f32.mrb[0].mxu0
    %4007 = vmatprep.mubr.f32.mxu0 0.0
    %4008 = vmatmul.mubr.f32.gmra.mrb[0].mxu0 %v3663
    %v4009 = vpop.f32.mrb[0].mxu0
    %v4010 = vadd.f32 0.0, %v4009
    %v4011 = vpop.f32.mrb[0].mxu0
    %4012 = vmatprep.mubr.f32.mxu0 0.0
    %4013 = vmatmul.mubr.f32.gmra.mrb[0].mxu0 %v3666
    %v4014 = vpop.f32.mrb[0].mxu0
    %v4015 = vadd.f32 0.0, %v4014
    %v4016 = vpop.f32.mrb[0].mxu0
    %4017 = vmatprep.mubr.f32.mxu0 0.0
    %4018 = vmatmul.mubr.f32.gmra.mrb[0].mxu0 %v3669
    %v4019 = vpop.f32.mrb[0].mxu0
    %v4020 = vadd.f32 0.0, %v4019
    %v4021 = vpop.f32.mrb[0].mxu0
    %4022 = vmatprep.mubr.f32.mxu0 0.0
    %4023 = vmatmul.mubr.f32.gmra.mrb[0].mxu0 %v3672
    %v4024 = vpop.f32.mrb[0].mxu0
    %v4025 = vadd.f32 0.0, %v4024
    %v4026 = vpop.f32.mrb[0].mxu0
    %4027 = vmatprep.mubr.f32.mxu0 0.0
    %4028 = vmatmul.mubr.f32.gmra.mrb[0].mxu0 %v3675
    %v4029 = vpop.f32.mrb[0].mxu0
    %v4030 = vadd.f32 0.0, %v4029
    %v4031 = vpop.f32.mrb[0].mxu0
    %4032 = vmatprep.mubr.f32.mxu0 0.0
    %4033 = vmatmul.mubr.f32.gmra.mrb[0].mxu0 %v3678
    %v4034 = vpop.f32.mrb[0].mxu0
    %v4035 = vadd.f32 0.0, %v4034
    %v4036 = vpop.f32.mrb[0].mxu0
    %4037 = vmatprep.mubr.f32.mxu0 0.0
    %4038 = vmatmul.mubr.f32.gmra.mrb[0].mxu0 %v3681
    %v4039 = vpop.f32.mrb[0].mxu0
    %v4040 = vadd.f32 0.0, %v4039
    %v4041 = vpop.f32.mrb[0].mxu0
    %4042 = vmatprep.mubr.f32.mxu0 0.0
    %4043 = vmatmul.mubr.f32.gmra.mrb[0].mxu0 %v3684
    %v4044 = vpop.f32.mrb[0].mxu0
    %v4045 = vadd.f32 0.0, %v4044
    %v4046 = vpop.f32.mrb[0].mxu0
    %4047 = vmatprep.mubr.f32.mxu0 0.0
    %4048 = vmatmul.mubr.f32.gmra.mrb[0].mxu0 %v3687
    %v4049 = vpop.f32.mrb[0].mxu0
    %v4050 = vadd.f32 0.0, %v4049
    %v4051 = vpop.f32.mrb[0].mxu0
    %4052 = vmatprep.mubr.f32.mxu0 0.0
    %4053 = vmatmul.mubr.f32.gmra.mrb[0].mxu0 %v3690
    %v4054 = vpop.f32.mrb[0].mxu0
    %v4055 = vadd.f32 0.0, %v4054
    %v4056 = vpop.f32.mrb[0].mxu0
    %4057 = vmatprep.mubr.f32.mxu0 0.0
    %4058 = vmatmul.mubr.f32.gmra.mrb[0].mxu0 %v3693
    %v4059 = vpop.f32.mrb[0].mxu0
    %v4060 = vadd.f32 0.0, %v4059
    %v4061 = vpop.f32.mrb[0].mxu0
    %4062 = vmatprep.mubr.f32.mxu0 0.0
    %4063 = vmatmul.mubr.f32.gmra.mrb[0].mxu0 %v3696
    %v4064 = vpop.f32.mrb[0].mxu0
    %v4065 = vadd.f32 0.0, %v4064
    %v4066 = vpop.f32.mrb[0].mxu0
    %4067 = vmatprep.mubr.f32.mxu0 0.0
    %4068 = vmatmul.mubr.f32.gmra.mrb[0].mxu0 %v3699
    %v4069 = vpop.f32.mrb[0].mxu0
    %v4070 = vadd.f32 0.0, %v4069
    %v4071 = vpop.f32.mrb[0].mxu0
    %4072 = vmatprep.mubr.f32.mxu0 0.0
    %4073 = vmatmul.mubr.f32.gmra.mrb[0].mxu0 %v3702
    %v4074 = vpop.f32.mrb[0].mxu0
    %v4075 = vadd.f32 0.0, %v4074
    %v4076 = vpop.f32.mrb[0].mxu0
    %4077 = vmatprep.mubr.f32.mxu0 0.0
    %4078 = vmatmul.mubr.f32.gmra.mrb[0].mxu0 %v3705
    %v4079 = vpop.f32.mrb[0].mxu0
    %v4080 = vadd.f32 0.0, %v4079
    %v4081 = vpop.f32.mrb[0].mxu0
    %4082 = vmatprep.mubr.f32.mxu0 0.0
    %4083 = vmatmul.mubr.f32.gmra.mrb[0].mxu0 %v3708
    %v4084 = vpop.f32.mrb[0].mxu0
    %v4085 = vadd.f32 0.0, %v4084
    %v4086 = vpop.f32.mrb[0].mxu0
    %4087 = vmatprep.mubr.f32.mxu0 0.0
    %4088 = vmatmul.mubr.f32.gmra.mrb[0].mxu0 %v3711
    %v4089 = vpop.f32.mrb[0].mxu0
    %v4090 = vadd.f32 0.0, %v4089
    %v4091 = vpop.f32.mrb[0].mxu0
    %4092 = vmatprep.mubr.f32.mxu0 0.0
    %4093 = vmatmul.mubr.f32.gmra.mrb[0].mxu0 %v3714
    %v4094 = vpop.f32.mrb[0].mxu0
    %v4095 = vadd.f32 0.0, %v4094
    %v4096 = vpop.f32.mrb[0].mxu0
    %4097 = vmatprep.mubr.f32.mxu0 0.0
    %4098 = vmatmul.mubr.f32.gmra.mrb[0].mxu0 %v3717
    %v4099 = vpop.f32.mrb[0].mxu0
    %v4100 = vadd.f32 0.0, %v4099
    %v4101 = vpop.f32.mrb[0].mxu0
    %4102 = vmatprep.mubr.f32.mxu0 0.0
    %4103 = vmatmul.mubr.f32.gmra.mrb[0].mxu0 %v3720
    %v4104 = vpop.f32.mrb[0].mxu0
    %v4105 = vadd.f32 0.0, %v4104
    %v4106 = vpop.f32.mrb[0].mxu0
    %4107 = vmatprep.mubr.f32.mxu0 0.0
    %4108 = vmatmul.mubr.f32.gmra.mrb[0].mxu0 %v3723
    %v4109 = vpop.f32.mrb[0].mxu0
    %v4110 = vadd.f32 0.0, %v4109
    %v4111 = vpop.f32.mrb[0].mxu0
    %4112 = vdwg.mxu0
    %v4113 = vadd.f32 %v3403, %v3795
    %v4114 = vadd.f32 %v3404, %v3800
    %v4115 = vadd.f32 %v3405, %v3805
    %v4116 = vadd.f32 %v3406, %v3810
    %v4117 = vadd.f32 %v3407, %v3815
    %v4118 = vadd.f32 %v3408, %v3820
    %v4119 = vadd.f32 %v3409, %v3825
    %v4120 = vadd.f32 %v3410, %v3830
    %v4121 = vadd.f32 %v3411, %v3835
    %v4122 = vadd.f32 %v3412, %v3840
    %v4123 = vadd.f32 %v3413, %v3845
    %v4124 = vadd.f32 %v3414, %v3850
    %v4125 = vadd.f32 %v3415, %v3855
    %v4126 = vadd.f32 %v3416, %v3860
    %v4127 = vadd.f32 %v3417, %v3865
    %v4128 = vadd.f32 %v3418, %v3870
    %v4129 = vadd.f32 %v3419, %v3875
    %v4130 = vadd.f32 %v3420, %v3880
    %v4131 = vadd.f32 %v3421, %v3885
    %v4132 = vadd.f32 %v3422, %v3890
    %v4133 = vadd.f32 %v3423, %v3895
    %v4134 = vadd.f32 %v3424, %v3900
    %v4135 = vadd.f32 %v3425, %v3905
    %v4136 = vadd.f32 %v3426, %v3910
    %v4137 = vadd.f32 %v3427, %v3915
    %v4138 = vadd.f32 %v3428, %v3920
    %v4139 = vadd.f32 %v3429, %v3925
    %v4140 = vadd.f32 %v3430, %v3930
    %v4141 = vadd.f32 %v3431, %v3935
    %v4142 = vadd.f32 %v3432, %v3940
    %v4143 = vadd.f32 %v3433, %v3945
    %v4144 = vadd.f32 %v3434, %v3950
    %v4145 = vadd.f32 %v3435, %v3955
    %v4146 = vadd.f32 %v3436, %v3960
    %v4147 = vadd.f32 %v3437, %v3965
    %v4148 = vadd.f32 %v3438, %v3970
    %v4149 = vadd.f32 %v3439, %v3975
    %v4150 = vadd.f32 %v3440, %v3980
    %v4151 = vadd.f32 %v3441, %v3985
    %v4152 = vadd.f32 %v3442, %v3990
    %v4153 = vadd.f32 %v3443, %v3995
    %v4154 = vadd.f32 %v3444, %v4000
    %v4155 = vadd.f32 %v3445, %v4005
    %v4156 = vadd.f32 %v3446, %v4010
    %v4157 = vadd.f32 %v3447, %v4015
    %v4158 = vadd.f32 %v3448, %v4020
    %v4159 = vadd.f32 %v3449, %v4025
    %v4160 = vadd.f32 %v3450, %v4030
    %v4161 = vadd.f32 %v3451, %v4035
    %v4162 = vadd.f32 %v3452, %v4040
    %v4163 = vadd.f32 %v3453, %v4045
    %v4164 = vadd.f32 %v3454, %v4050
    %v4165 = vadd.f32 %v3455, %v4055
    %v4166 = vadd.f32 %v3456, %v4060
    %v4167 = vadd.f32 %v3457, %v4065
    %v4168 = vadd.f32 %v3458, %v4070
    %v4169 = vadd.f32 %v3459, %v4075
    %v4170 = vadd.f32 %v3460, %v4080
    %v4171 = vadd.f32 %v3461, %v4085
    %v4172 = vadd.f32 %v3462, %v4090
    %v4173 = vadd.f32 %v3463, %v4095
    %v4174 = vadd.f32 %v3464, %v4100
    %v4175 = vadd.f32 %v3465, %v4105
    %v4176 = vadd.f32 %v3466, %v4110
    %s4177 = scalar_lea.vmem %s1, 48
    %v4178 = vld [vmem:[%s4177] sm:$0xff]
    %v4179 = vld [vmem:[%s4177 + $0x8] sm:$0xff]
    %v4180 = vld [vmem:[%s4177 + $0x18] sm:$0xff]
    %v4181 = vld [vmem:[%s4177 + $0x20] sm:$0xff]
    %v4182 = vld [vmem:[%s4177 + $0x30] sm:$0xff]
    %v4183 = vld [vmem:[%s4177 + $0x38] sm:$0xff]
    %v4184 = vld [vmem:[%s4177 + $0x48] sm:$0xff]
    %v4185 = vld [vmem:[%s4177 + $0x50] sm:$0xff]
    %v4186 = vld [vmem:[%s4177 + $0x60] sm:$0xff]
    %v4187 = vld [vmem:[%s4177 + $0x68] sm:$0xff]
    %v4188 = vld [vmem:[%s4177 + $0x78] sm:$0xff]
    %v4189 = vld [vmem:[%s4177 + $0x80] sm:$0xff]
    %v4190 = vld [vmem:[%s4177 + $0x90] sm:$0xff]
    %v4191 = vld [vmem:[%s4177 + $0x98] sm:$0xff]
    %v4192 = vld [vmem:[%s4177 + $0xa8] sm:$0xff]
    %v4193 = vld [vmem:[%s4177 + $0xb0] sm:$0xff]
    %v4194 = vld [vmem:[%s4177 + $0xc0] sm:$0xff]
    %v4195 = vld [vmem:[%s4177 + $0xc8] sm:$0xff]
    %v4196 = vld [vmem:[%s4177 + $0xd8] sm:$0xff]
    %v4197 = vld [vmem:[%s4177 + $0xe0] sm:$0xff]
    %v4198 = vld [vmem:[%s4177 + $0xf0] sm:$0xff]
    %v4199 = vld [vmem:[%s4177 + $0xf8] sm:$0xff]
    %v4200 = vld [vmem:[%s4177 + $0x108] sm:$0xff]
    %v4201 = vld [vmem:[%s4177 + $0x110] sm:$0xff]
    %v4202 = vld [vmem:[%s4177 + $0x120] sm:$0xff]
    %v4203 = vld [vmem:[%s4177 + $0x128] sm:$0xff]
    %v4204 = vld [vmem:[%s4177 + $0x138] sm:$0xff]
    %v4205 = vld [vmem:[%s4177 + $0x140] sm:$0xff]
    %v4206 = vld [vmem:[%s4177 + $0x150] sm:$0xff]
    %v4207 = vld [vmem:[%s4177 + $0x158] sm:$0xff]
    %v4208 = vld [vmem:[%s4177 + $0x168] sm:$0xff]
    %v4209 = vld [vmem:[%s4177 + $0x170] sm:$0xff]
    %v4210 = vld [vmem:[%s4177 + $0x1b0] sm:$0xff]
    %v4211 = vld [vmem:[%s4177 + $0x1b8] sm:$0xff]
    %v4212 = vld [vmem:[%s4177 + $0x1c8] sm:$0xff]
    %v4213 = vld [vmem:[%s4177 + $0x1d0] sm:$0xff]
    %v4214 = vld [vmem:[%s4177 + $0x1e0] sm:$0xff]
    %v4215 = vld [vmem:[%s4177 + $0x1e8] sm:$0xff]
    %v4216 = vld [vmem:[%s4177 + $0x1f8] sm:$0xff]
    %v4217 = vld [vmem:[%s4177 + $0x200] sm:$0xff]
    %v4218 = vld [vmem:[%s4177 + $0x210] sm:$0xff]
    %v4219 = vld [vmem:[%s4177 + $0x218] sm:$0xff]
    %v4220 = vld [vmem:[%s4177 + $0x228] sm:$0xff]
    %v4221 = vld [vmem:[%s4177 + $0x230] sm:$0xff]
    %v4222 = vld [vmem:[%s4177 + $0x240] sm:$0xff]
    %v4223 = vld [vmem:[%s4177 + $0x248] sm:$0xff]
    %v4224 = vld [vmem:[%s4177 + $0x258] sm:$0xff]
    %v4225 = vld [vmem:[%s4177 + $0x260] sm:$0xff]
    %v4226 = vld [vmem:[%s4177 + $0x270] sm:$0xff]
    %v4227 = vld [vmem:[%s4177 + $0x278] sm:$0xff]
    %v4228 = vld [vmem:[%s4177 + $0x288] sm:$0xff]
    %v4229 = vld [vmem:[%s4177 + $0x290] sm:$0xff]
    %v4230 = vld [vmem:[%s4177 + $0x2a0] sm:$0xff]
    %v4231 = vld [vmem:[%s4177 + $0x2a8] sm:$0xff]
    %v4232 = vld [vmem:[%s4177 + $0x2b8] sm:$0xff]
    %v4233 = vld [vmem:[%s4177 + $0x2c0] sm:$0xff]
    %v4234 = vld [vmem:[%s4177 + $0x2d0] sm:$0xff]
    %v4235 = vld [vmem:[%s4177 + $0x2d8] sm:$0xff]
    %v4236 = vld [vmem:[%s4177 + $0x2e8] sm:$0xff]
    %v4237 = vld [vmem:[%s4177 + $0x2f0] sm:$0xff]
    %v4238 = vld [vmem:[%s4177 + $0x300] sm:$0xff]
    %v4239 = vld [vmem:[%s4177 + $0x308] sm:$0xff]
    %v4240 = vld [vmem:[%s4177 + $0x318] sm:$0xff]
    %v4241 = vld [vmem:[%s4177 + $0x320] sm:$0xff]
    %s4242 = scalar_lea.vmem %s2, 24
    %v4243 = vld [vmem:[%s4242] sm:$0xf]
    %v4245 = vsel %vm174, %v4178, 0
    %v4248 = vsel %vm174, %v4179, 0
    %v4251 = vsel %vm174, %v4180, 0
    %v4254 = vsel %vm174, %v4181, 0
    %v4257 = vsel %vm174, %v4182, 0
    %v4260 = vsel %vm174, %v4183, 0
    %v4263 = vsel %vm174, %v4184, 0
    %v4266 = vsel %vm174, %v4185, 0
    %v4269 = vsel %vm174, %v4186, 0
    %v4272 = vsel %vm174, %v4187, 0
    %v4275 = vsel %vm174, %v4188, 0
    %v4278 = vsel %vm174, %v4189, 0
    %v4281 = vsel %vm174, %v4190, 0
    %v4284 = vsel %vm174, %v4191, 0
    %v4287 = vsel %vm174, %v4192, 0
    %v4290 = vsel %vm174, %v4193, 0
    %v4293 = vsel %vm174, %v4194, 0
    %v4296 = vsel %vm174, %v4195, 0
    %v4299 = vsel %vm174, %v4196, 0
    %v4302 = vsel %vm174, %v4197, 0
    %v4305 = vsel %vm174, %v4198, 0
    %v4308 = vsel %vm174, %v4199, 0
    %v4311 = vsel %vm174, %v4200, 0
    %v4314 = vsel %vm174, %v4201, 0
    %v4317 = vsel %vm174, %v4202, 0
    %v4320 = vsel %vm174, %v4203, 0
    %v4323 = vsel %vm174, %v4204, 0
    %v4326 = vsel %vm174, %v4205, 0
    %v4329 = vsel %vm174, %v4206, 0
    %v4332 = vsel %vm174, %v4207, 0
    %v4335 = vsel %vm174, %v4208, 0
    %v4338 = vsel %vm174, %v4209, 0
    %v4341 = vsel %vm174, %v4210, 0
    %v4344 = vsel %vm174, %v4211, 0
    %v4347 = vsel %vm174, %v4212, 0
    %v4350 = vsel %vm174, %v4213, 0
    %v4353 = vsel %vm174, %v4214, 0
    %v4356 = vsel %vm174, %v4215, 0
    %v4359 = vsel %vm174, %v4216, 0
    %v4362 = vsel %vm174, %v4217, 0
    %v4365 = vsel %vm174, %v4218, 0
    %v4368 = vsel %vm174, %v4219, 0
    %v4371 = vsel %vm174, %v4220, 0
    %v4374 = vsel %vm174, %v4221, 0
    %v4377 = vsel %vm174, %v4222, 0
    %v4380 = vsel %vm174, %v4223, 0
    %v4383 = vsel %vm174, %v4224, 0
    %v4386 = vsel %vm174, %v4225, 0
    %v4389 = vsel %vm174, %v4226, 0
    %v4392 = vsel %vm174, %v4227, 0
    %v4395 = vsel %vm174, %v4228, 0
    %v4398 = vsel %vm174, %v4229, 0
    %v4401 = vsel %vm174, %v4230, 0
    %v4404 = vsel %vm174, %v4231, 0
    %v4407 = vsel %vm174, %v4232, 0
    %v4410 = vsel %vm174, %v4233, 0
    %v4413 = vsel %vm174, %v4234, 0
    %v4416 = vsel %vm174, %v4235, 0
    %v4419 = vsel %vm174, %v4236, 0
    %v4422 = vsel %vm174, %v4237, 0
    %v4425 = vsel %vm174, %v4238, 0
    %v4428 = vsel %vm174, %v4239, 0
    %v4431 = vsel %vm174, %v4240, 0
    %v4434 = vsel %vm174, %v4241, 0
    %v4437 = vsel %vm367, %v4243, 0
    %4439 = vmatprep.subr.mxu0 0.0
    %4440 = vmatpush1.msra.mxu0 %v4437
    %4441 = vmatprep.subr.mxu0 0.0
    %4442 = vmatpush1.msra.mxu0 0.0
    %4443 = vmatprep.subr.mxu0 0.0
    %4444 = vmatpush1.msra.mxu0 0.0
    %4445 = vmatprep.subr.mxu0 0.0
    %4446 = vmatpush1.msra.mxu0 0.0
    %4447 = vmatprep.subr.mxu0 0.0
    %4448 = vmatpush1.msra.mxu0 0.0
    %4449 = vmatprep.subr.mxu0 0.0
    %4450 = vmatpush1.msra.mxu0 0.0
    %4451 = vmatprep.subr.mxu0 0.0
    %4452 = vmatpush1.msra.mxu0 0.0
    %4453 = vmatprep.subr.mxu0 0.0
    %4454 = vmatpush1.msra.mxu0 0.0
    %4455 = vmatprep.subr.mxu0 0.0
    %4456 = vmatpush1.msra.mxu0 0.0
    %4457 = vmatprep.subr.mxu0 0.0
    %4458 = vmatpush1.msra.mxu0 0.0
    %4459 = vmatprep.subr.mxu0 0.0
    %4460 = vmatpush1.msra.mxu0 0.0
    %4461 = vmatprep.subr.mxu0 0.0
    %4462 = vmatpush1.msra.mxu0 0.0
    %4463 = vmatprep.subr.mxu0 0.0
    %4464 = vmatpush1.msra.mxu0 0.0
    %4465 = vmatprep.subr.mxu0 0.0
    %4466 = vmatpush1.msra.mxu0 0.0
    %4467 = vmatprep.subr.mxu0 0.0
    %4468 = vmatpush1.msra.mxu0 0.0
    %4469 = vmatprep.subr.mxu0 0.0
    %4470 = vmatpush1.msra.mxu0 0.0
    %4471 = vmatprep.subr.mxu0 0.0
    %4472 = vmatpush1.msra.mxu0 0.0
    %4473 = vmatprep.subr.mxu0 0.0
    %4474 = vmatpush1.msra.mxu0 0.0
    %4475 = vmatprep.subr.mxu0 0.0
    %4476 = vmatpush1.msra.mxu0 0.0
    %4477 = vmatprep.subr.mxu0 0.0
    %4478 = vmatpush1.msra.mxu0 0.0
    %4479 = vmatprep.subr.mxu0 0.0
    %4480 = vmatpush1.msra.mxu0 0.0
    %4481 = vmatprep.subr.mxu0 0.0
    %4482 = vmatpush1.msra.mxu0 0.0
    %4483 = vmatprep.subr.mxu0 0.0
    %4484 = vmatpush1.msra.mxu0 0.0
    %4485 = vmatprep.subr.mxu0 0.0
    %4486 = vmatpush1.msra.mxu0 0.0
    %4487 = vmatprep.subr.mxu0 0.0
    %4488 = vmatpush1.msra.mxu0 0.0
    %4489 = vmatprep.subr.mxu0 0.0
    %4490 = vmatpush1.msra.mxu0 0.0
    %4491 = vmatprep.subr.mxu0 0.0
    %4492 = vmatpush1.msra.mxu0 0.0
    %4493 = vmatprep.subr.mxu0 0.0
    %4494 = vmatpush1.msra.mxu0 0.0
    %4495 = vmatprep.subr.mxu0 0.0
    %4496 = vmatpush1.msra.mxu0 0.0
    %4497 = vmatprep.subr.mxu0 0.0
    %4498 = vmatpush1.msra.mxu0 0.0
    %4499 = vmatprep.subr.mxu0 0.0
    %4500 = vmatpush1.msra.mxu0 0.0
    %4501 = vmatprep.subr.mxu0 0.0
    %4502 = vmatpush1.msra.mxu0 0.0
    %4503 = vmatprep.mubr.f32.mxu0 0.0
    %4504 = vmatmul.mubr.f32.gmra.mrb[0].mxu0 %v4245
    %v4505 = vpop.f32.mrb[0].mxu0
    %v4506 = vadd.f32 0.0, %v4505
    %v4507 = vpop.f32.mrb[0].mxu0
    %4508 = vmatprep.mubr.f32.mxu0 0.0
    %4509 = vmatmul.mubr.f32.gmra.mrb[0].mxu0 %v4248
    %v4510 = vpop.f32.mrb[0].mxu0
    %v4511 = vadd.f32 0.0, %v4510
    %v4512 = vpop.f32.mrb[0].mxu0
    %4513 = vmatprep.mubr.f32.mxu0 0.0
    %4514 = vmatmul.mubr.f32.gmra.mrb[0].mxu0 %v4251
    %v4515 = vpop.f32.mrb[0].mxu0
    %v4516 = vadd.f32 0.0, %v4515
    %v4517 = vpop.f32.mrb[0].mxu0
    %4518 = vmatprep.mubr.f32.mxu0 0.0
    %4519 = vmatmul.mubr.f32.gmra.mrb[0].mxu0 %v4254
    %v4520 = vpop.f32.mrb[0].mxu0
    %v4521 = vadd.f32 0.0, %v4520
    %v4522 = vpop.f32.mrb[0].mxu0
    %4523 = vmatprep.mubr.f32.mxu0 0.0
    %4524 = vmatmul.mubr.f32.gmra.mrb[0].mxu0 %v4257
    %v4525 = vpop.f32.mrb[0].mxu0
    %v4526 = vadd.f32 0.0, %v4525
    %v4527 = vpop.f32.mrb[0].mxu0
    %4528 = vmatprep.mubr.f32.mxu0 0.0
    %4529 = vmatmul.mubr.f32.gmra.mrb[0].mxu0 %v4260
    %v4530 = vpop.f32.mrb[0].mxu0
    %v4531 = vadd.f32 0.0, %v4530
    %v4532 = vpop.f32.mrb[0].mxu0
    %4533 = vmatprep.mubr.f32.mxu0 0.0
    %4534 = vmatmul.mubr.f32.gmra.mrb[0].mxu0 %v4263
    %v4535 = vpop.f32.mrb[0].mxu0
    %v4536 = vadd.f32 0.0, %v4535
    %v4537 = vpop.f32.mrb[0].mxu0
    %4538 = vmatprep.mubr.f32.mxu0 0.0
    %4539 = vmatmul.mubr.f32.gmra.mrb[0].mxu0 %v4266
    %v4540 = vpop.f32.mrb[0].mxu0
    %v4541 = vadd.f32 0.0, %v4540
    %v4542 = vpop.f32.mrb[0].mxu0
    %4543 = vmatprep.mubr.f32.mxu0 0.0
    %4544 = vmatmul.mubr.f32.gmra.mrb[0].mxu0 %v4269
    %v4545 = vpop.f32.mrb[0].mxu0
    %v4546 = vadd.f32 0.0, %v4545
    %v4547 = vpop.f32.mrb[0].mxu0
    %4548 = vmatprep.mubr.f32.mxu0 0.0
    %4549 = vmatmul.mubr.f32.gmra.mrb[0].mxu0 %v4272
    %v4550 = vpop.f32.mrb[0].mxu0
    %v4551 = vadd.f32 0.0, %v4550
    %v4552 = vpop.f32.mrb[0].mxu0
    %4553 = vmatprep.mubr.f32.mxu0 0.0
    %4554 = vmatmul.mubr.f32.gmra.mrb[0].mxu0 %v4275
    %v4555 = vpop.f32.mrb[0].mxu0
    %v4556 = vadd.f32 0.0, %v4555
    %v4557 = vpop.f32.mrb[0].mxu0
    %4558 = vmatprep.mubr.f32.mxu0 0.0
    %4559 = vmatmul.mubr.f32.gmra.mrb[0].mxu0 %v4278
    %v4560 = vpop.f32.mrb[0].mxu0
    %v4561 = vadd.f32 0.0, %v4560
    %v4562 = vpop.f32.mrb[0].mxu0
    %4563 = vmatprep.mubr.f32.mxu0 0.0
    %4564 = vmatmul.mubr.f32.gmra.mrb[0].mxu0 %v4281
    %v4565 = vpop.f32.mrb[0].mxu0
    %v4566 = vadd.f32 0.0, %v4565
    %v4567 = vpop.f32.mrb[0].mxu0
    %4568 = vmatprep.mubr.f32.mxu0 0.0
    %4569 = vmatmul.mubr.f32.gmra.mrb[0].mxu0 %v4284
    %v4570 = vpop.f32.mrb[0].mxu0
    %v4571 = vadd.f32 0.0, %v4570
    %v4572 = vpop.f32.mrb[0].mxu0
    %4573 = vmatprep.mubr.f32.mxu0 0.0
    %4574 = vmatmul.mubr.f32.gmra.mrb[0].mxu0 %v4287
    %v4575 = vpop.f32.mrb[0].mxu0
    %v4576 = vadd.f32 0.0, %v4575
    %v4577 = vpop.f32.mrb[0].mxu0
    %4578 = vmatprep.mubr.f32.mxu0 0.0
    %4579 = vmatmul.mubr.f32.gmra.mrb[0].mxu0 %v4290
    %v4580 = vpop.f32.mrb[0].mxu0
    %v4581 = vadd.f32 0.0, %v4580
    %v4582 = vpop.f32.mrb[0].mxu0
    %4583 = vmatprep.mubr.f32.mxu0 0.0
    %4584 = vmatmul.mubr.f32.gmra.mrb[0].mxu0 %v4293
    %v4585 = vpop.f32.mrb[0].mxu0
    %v4586 = vadd.f32 0.0, %v4585
    %v4587 = vpop.f32.mrb[0].mxu0
    %4588 = vmatprep.mubr.f32.mxu0 0.0
    %4589 = vmatmul.mubr.f32.gmra.mrb[0].mxu0 %v4296
    %v4590 = vpop.f32.mrb[0].mxu0
    %v4591 = vadd.f32 0.0, %v4590
    %v4592 = vpop.f32.mrb[0].mxu0
    %4593 = vmatprep.mubr.f32.mxu0 0.0
    %4594 = vmatmul.mubr.f32.gmra.mrb[0].mxu0 %v4299
    %v4595 = vpop.f32.mrb[0].mxu0
    %v4596 = vadd.f32 0.0, %v4595
    %v4597 = vpop.f32.mrb[0].mxu0
    %4598 = vmatprep.mubr.f32.mxu0 0.0
    %4599 = vmatmul.mubr.f32.gmra.mrb[0].mxu0 %v4302
    %v4600 = vpop.f32.mrb[0].mxu0
    %v4601 = vadd.f32 0.0, %v4600
    %v4602 = vpop.f32.mrb[0].mxu0
    %4603 = vmatprep.mubr.f32.mxu0 0.0
    %4604 = vmatmul.mubr.f32.gmra.mrb[0].mxu0 %v4305
    %v4605 = vpop.f32.mrb[0].mxu0
    %v4606 = vadd.f32 0.0, %v4605
    %v4607 = vpop.f32.mrb[0].mxu0
    %4608 = vmatprep.mubr.f32.mxu0 0.0
    %4609 = vmatmul.mubr.f32.gmra.mrb[0].mxu0 %v4308
    %v4610 = vpop.f32.mrb[0].mxu0
    %v4611 = vadd.f32 0.0, %v4610
    %v4612 = vpop.f32.mrb[0].mxu0
    %4613 = vmatprep.mubr.f32.mxu0 0.0
    %4614 = vmatmul.mubr.f32.gmra.mrb[0].mxu0 %v4311
    %v4615 = vpop.f32.mrb[0].mxu0
    %v4616 = vadd.f32 0.0, %v4615
    %v4617 = vpop.f32.mrb[0].mxu0
    %4618 = vmatprep.mubr.f32.mxu0 0.0
    %4619 = vmatmul.mubr.f32.gmra.mrb[0].mxu0 %v4314
    %v4620 = vpop.f32.mrb[0].mxu0
    %v4621 = vadd.f32 0.0, %v4620
    %v4622 = vpop.f32.mrb[0].mxu0
    %4623 = vmatprep.mubr.f32.mxu0 0.0
    %4624 = vmatmul.mubr.f32.gmra.mrb[0].mxu0 %v4317
    %v4625 = vpop.f32.mrb[0].mxu0
    %v4626 = vadd.f32 0.0, %v4625
    %v4627 = vpop.f32.mrb[0].mxu0
    %4628 = vmatprep.mubr.f32.mxu0 0.0
    %4629 = vmatmul.mubr.f32.gmra.mrb[0].mxu0 %v4320
    %v4630 = vpop.f32.mrb[0].mxu0
    %v4631 = vadd.f32 0.0, %v4630
    %v4632 = vpop.f32.mrb[0].mxu0
    %4633 = vmatprep.mubr.f32.mxu0 0.0
    %4634 = vmatmul.mubr.f32.gmra.mrb[0].mxu0 %v4323
    %v4635 = vpop.f32.mrb[0].mxu0
    %v4636 = vadd.f32 0.0, %v4635
    %v4637 = vpop.f32.mrb[0].mxu0
    %4638 = vmatprep.mubr.f32.mxu0 0.0
    %4639 = vmatmul.mubr.f32.gmra.mrb[0].mxu0 %v4326
    %v4640 = vpop.f32.mrb[0].mxu0
    %v4641 = vadd.f32 0.0, %v4640
    %v4642 = vpop.f32.mrb[0].mxu0
    %4643 = vmatprep.mubr.f32.mxu0 0.0
    %4644 = vmatmul.mubr.f32.gmra.mrb[0].mxu0 %v4329
    %v4645 = vpop.f32.mrb[0].mxu0
    %v4646 = vadd.f32 0.0, %v4645
    %v4647 = vpop.f32.mrb[0].mxu0
    %4648 = vmatprep.mubr.f32.mxu0 0.0
    %4649 = vmatmul.mubr.f32.gmra.mrb[0].mxu0 %v4332
    %v4650 = vpop.f32.mrb[0].mxu0
    %v4651 = vadd.f32 0.0, %v4650
    %v4652 = vpop.f32.mrb[0].mxu0
    %4653 = vmatprep.mubr.f32.mxu0 0.0
    %4654 = vmatmul.mubr.f32.gmra.mrb[0].mxu0 %v4335
    %v4655 = vpop.f32.mrb[0].mxu0
    %v4656 = vadd.f32 0.0, %v4655
    %v4657 = vpop.f32.mrb[0].mxu0
    %4658 = vmatprep.mubr.f32.mxu0 0.0
    %4659 = vmatmul.mubr.f32.gmra.mrb[0].mxu0 %v4338
    %v4660 = vpop.f32.mrb[0].mxu0
    %v4661 = vadd.f32 0.0, %v4660
    %v4662 = vpop.f32.mrb[0].mxu0
    %4663 = vmatprep.mubr.f32.mxu0 0.0
    %4664 = vmatmul.mubr.f32.gmra.mrb[0].mxu0 %v4341
    %v4665 = vpop.f32.mrb[0].mxu0
    %v4666 = vadd.f32 0.0, %v4665
    %v4667 = vpop.f32.mrb[0].mxu0
    %4668 = vmatprep.mubr.f32.mxu0 0.0
    %4669 = vmatmul.mubr.f32.gmra.mrb[0].mxu0 %v4344
    %v4670 = vpop.f32.mrb[0].mxu0
    %v4671 = vadd.f32 0.0, %v4670
    %v4672 = vpop.f32.mrb[0].mxu0
    %4673 = vmatprep.mubr.f32.mxu0 0.0
    %4674 = vmatmul.mubr.f32.gmra.mrb[0].mxu0 %v4347
    %v4675 = vpop.f32.mrb[0].mxu0
    %v4676 = vadd.f32 0.0, %v4675
    %v4677 = vpop.f32.mrb[0].mxu0
    %4678 = vmatprep.mubr.f32.mxu0 0.0
    %4679 = vmatmul.mubr.f32.gmra.mrb[0].mxu0 %v4350
    %v4680 = vpop.f32.mrb[0].mxu0
    %v4681 = vadd.f32 0.0, %v4680
    %v4682 = vpop.f32.mrb[0].mxu0
    %4683 = vmatprep.mubr.f32.mxu0 0.0
    %4684 = vmatmul.mubr.f32.gmra.mrb[0].mxu0 %v4353
    %v4685 = vpop.f32.mrb[0].mxu0
    %v4686 = vadd.f32 0.0, %v4685
    %v4687 = vpop.f32.mrb[0].mxu0
    %4688 = vmatprep.mubr.f32.mxu0 0.0
    %4689 = vmatmul.mubr.f32.gmra.mrb[0].mxu0 %v4356
    %v4690 = vpop.f32.mrb[0].mxu0
    %v4691 = vadd.f32 0.0, %v4690
    %v4692 = vpop.f32.mrb[0].mxu0
    %4693 = vmatprep.mubr.f32.mxu0 0.0
    %4694 = vmatmul.mubr.f32.gmra.mrb[0].mxu0 %v4359
    %v4695 = vpop.f32.mrb[0].mxu0
    %v4696 = vadd.f32 0.0, %v4695
    %v4697 = vpop.f32.mrb[0].mxu0
    %4698 = vmatprep.mubr.f32.mxu0 0.0
    %4699 = vmatmul.mubr.f32.gmra.mrb[0].mxu0 %v4362
    %v4700 = vpop.f32.mrb[0].mxu0
    %v4701 = vadd.f32 0.0, %v4700
    %v4702 = vpop.f32.mrb[0].mxu0
    %4703 = vmatprep.mubr.f32.mxu0 0.0
    %4704 = vmatmul.mubr.f32.gmra.mrb[0].mxu0 %v4365
    %v4705 = vpop.f32.mrb[0].mxu0
    %v4706 = vadd.f32 0.0, %v4705
    %v4707 = vpop.f32.mrb[0].mxu0
    %4708 = vmatprep.mubr.f32.mxu0 0.0
    %4709 = vmatmul.mubr.f32.gmra.mrb[0].mxu0 %v4368
    %v4710 = vpop.f32.mrb[0].mxu0
    %v4711 = vadd.f32 0.0, %v4710
    %v4712 = vpop.f32.mrb[0].mxu0
    %4713 = vmatprep.mubr.f32.mxu0 0.0
    %4714 = vmatmul.mubr.f32.gmra.mrb[0].mxu0 %v4371
    %v4715 = vpop.f32.mrb[0].mxu0
    %v4716 = vadd.f32 0.0, %v4715
    %v4717 = vpop.f32.mrb[0].mxu0
    %4718 = vmatprep.mubr.f32.mxu0 0.0
    %4719 = vmatmul.mubr.f32.gmra.mrb[0].mxu0 %v4374
    %v4720 = vpop.f32.mrb[0].mxu0
    %v4721 = vadd.f32 0.0, %v4720
    %v4722 = vpop.f32.mrb[0].mxu0
    %4723 = vmatprep.mubr.f32.mxu0 0.0
    %4724 = vmatmul.mubr.f32.gmra.mrb[0].mxu0 %v4377
    %v4725 = vpop.f32.mrb[0].mxu0
    %v4726 = vadd.f32 0.0, %v4725
    %v4727 = vpop.f32.mrb[0].mxu0
    %4728 = vmatprep.mubr.f32.mxu0 0.0
    %4729 = vmatmul.mubr.f32.gmra.mrb[0].mxu0 %v4380
    %v4730 = vpop.f32.mrb[0].mxu0
    %v4731 = vadd.f32 0.0, %v4730
    %v4732 = vpop.f32.mrb[0].mxu0
    %4733 = vmatprep.mubr.f32.mxu0 0.0
    %4734 = vmatmul.mubr.f32.gmra.mrb[0].mxu0 %v4383
    %v4735 = vpop.f32.mrb[0].mxu0
    %v4736 = vadd.f32 0.0, %v4735
    %v4737 = vpop.f32.mrb[0].mxu0
    %4738 = vmatprep.mubr.f32.mxu0 0.0
    %4739 = vmatmul.mubr.f32.gmra.mrb[0].mxu0 %v4386
    %v4740 = vpop.f32.mrb[0].mxu0
    %v4741 = vadd.f32 0.0, %v4740
    %v4742 = vpop.f32.mrb[0].mxu0
    %4743 = vmatprep.mubr.f32.mxu0 0.0
    %4744 = vmatmul.mubr.f32.gmra.mrb[0].mxu0 %v4389
    %v4745 = vpop.f32.mrb[0].mxu0
    %v4746 = vadd.f32 0.0, %v4745
    %v4747 = vpop.f32.mrb[0].mxu0
    %4748 = vmatprep.mubr.f32.mxu0 0.0
    %4749 = vmatmul.mubr.f32.gmra.mrb[0].mxu0 %v4392
    %v4750 = vpop.f32.mrb[0].mxu0
    %v4751 = vadd.f32 0.0, %v4750
    %v4752 = vpop.f32.mrb[0].mxu0
    %4753 = vmatprep.mubr.f32.mxu0 0.0
    %4754 = vmatmul.mubr.f32.gmra.mrb[0].mxu0 %v4395
    %v4755 = vpop.f32.mrb[0].mxu0
    %v4756 = vadd.f32 0.0, %v4755
    %v4757 = vpop.f32.mrb[0].mxu0
    %4758 = vmatprep.mubr.f32.mxu0 0.0
    %4759 = vmatmul.mubr.f32.gmra.mrb[0].mxu0 %v4398
    %v4760 = vpop.f32.mrb[0].mxu0
    %v4761 = vadd.f32 0.0, %v4760
    %v4762 = vpop.f32.mrb[0].mxu0
    %4763 = vmatprep.mubr.f32.mxu0 0.0
    %4764 = vmatmul.mubr.f32.gmra.mrb[0].mxu0 %v4401
    %v4765 = vpop.f32.mrb[0].mxu0
    %v4766 = vadd.f32 0.0, %v4765
    %v4767 = vpop.f32.mrb[0].mxu0
    %4768 = vmatprep.mubr.f32.mxu0 0.0
    %4769 = vmatmul.mubr.f32.gmra.mrb[0].mxu0 %v4404
    %v4770 = vpop.f32.mrb[0].mxu0
    %v4771 = vadd.f32 0.0, %v4770
    %v4772 = vpop.f32.mrb[0].mxu0
    %4773 = vmatprep.mubr.f32.mxu0 0.0
    %4774 = vmatmul.mubr.f32.gmra.mrb[0].mxu0 %v4407
    %v4775 = vpop.f32.mrb[0].mxu0
    %v4776 = vadd.f32 0.0, %v4775
    %v4777 = vpop.f32.mrb[0].mxu0
    %4778 = vmatprep.mubr.f32.mxu0 0.0
    %4779 = vmatmul.mubr.f32.gmra.mrb[0].mxu0 %v4410
    %v4780 = vpop.f32.mrb[0].mxu0
    %v4781 = vadd.f32 0.0, %v4780
    %v4782 = vpop.f32.mrb[0].mxu0
    %4783 = vmatprep.mubr.f32.mxu0 0.0
    %4784 = vmatmul.mubr.f32.gmra.mrb[0].mxu0 %v4413
    %v4785 = vpop.f32.mrb[0].mxu0
    %v4786 = vadd.f32 0.0, %v4785
    %v4787 = vpop.f32.mrb[0].mxu0
    %4788 = vmatprep.mubr.f32.mxu0 0.0
    %4789 = vmatmul.mubr.f32.gmra.mrb[0].mxu0 %v4416
    %v4790 = vpop.f32.mrb[0].mxu0
    %v4791 = vadd.f32 0.0, %v4790
    %v4792 = vpop.f32.mrb[0].mxu0
    %4793 = vmatprep.mubr.f32.mxu0 0.0
    %4794 = vmatmul.mubr.f32.gmra.mrb[0].mxu0 %v4419
    %v4795 = vpop.f32.mrb[0].mxu0
    %v4796 = vadd.f32 0.0, %v4795
    %v4797 = vpop.f32.mrb[0].mxu0
    %4798 = vmatprep.mubr.f32.mxu0 0.0
    %4799 = vmatmul.mubr.f32.gmra.mrb[0].mxu0 %v4422
    %v4800 = vpop.f32.mrb[0].mxu0
    %v4801 = vadd.f32 0.0, %v4800
    %v4802 = vpop.f32.mrb[0].mxu0
    %4803 = vmatprep.mubr.f32.mxu0 0.0
    %4804 = vmatmul.mubr.f32.gmra.mrb[0].mxu0 %v4425
    %v4805 = vpop.f32.mrb[0].mxu0
    %v4806 = vadd.f32 0.0, %v4805
    %v4807 = vpop.f32.mrb[0].mxu0
    %4808 = vmatprep.mubr.f32.mxu0 0.0
    %4809 = vmatmul.mubr.f32.gmra.mrb[0].mxu0 %v4428
    %v4810 = vpop.f32.mrb[0].mxu0
    %v4811 = vadd.f32 0.0, %v4810
    %v4812 = vpop.f32.mrb[0].mxu0
    %4813 = vmatprep.mubr.f32.mxu0 0.0
    %4814 = vmatmul.mubr.f32.gmra.mrb[0].mxu0 %v4431
    %v4815 = vpop.f32.mrb[0].mxu0
    %v4816 = vadd.f32 0.0, %v4815
    %v4817 = vpop.f32.mrb[0].mxu0
    %4818 = vmatprep.mubr.f32.mxu0 0.0
    %4819 = vmatmul.mubr.f32.gmra.mrb[0].mxu0 %v4434
    %v4820 = vpop.f32.mrb[0].mxu0
    %v4821 = vadd.f32 0.0, %v4820
    %v4822 = vpop.f32.mrb[0].mxu0
    %4823 = vdwg.mxu0
    %v4824 = vadd.f32 %v4113, %v4506
    %v4825 = vadd.f32 %v4114, %v4511
    %v4826 = vadd.f32 %v4115, %v4516
    %v4827 = vadd.f32 %v4116, %v4521
    %v4828 = vadd.f32 %v4117, %v4526
    %v4829 = vadd.f32 %v4118, %v4531
    %v4830 = vadd.f32 %v4119, %v4536
    %v4831 = vadd.f32 %v4120, %v4541
    %v4832 = vadd.f32 %v4121, %v4546
    %v4833 = vadd.f32 %v4122, %v4551
    %v4834 = vadd.f32 %v4123, %v4556
    %v4835 = vadd.f32 %v4124, %v4561
    %v4836 = vadd.f32 %v4125, %v4566
    %v4837 = vadd.f32 %v4126, %v4571
    %v4838 = vadd.f32 %v4127, %v4576
    %v4839 = vadd.f32 %v4128, %v4581
    %v4840 = vadd.f32 %v4129, %v4586
    %v4841 = vadd.f32 %v4130, %v4591
    %v4842 = vadd.f32 %v4131, %v4596
    %v4843 = vadd.f32 %v4132, %v4601
    %v4844 = vadd.f32 %v4133, %v4606
    %v4845 = vadd.f32 %v4134, %v4611
    %v4846 = vadd.f32 %v4135, %v4616
    %v4847 = vadd.f32 %v4136, %v4621
    %v4848 = vadd.f32 %v4137, %v4626
    %v4849 = vadd.f32 %v4138, %v4631
    %v4850 = vadd.f32 %v4139, %v4636
    %v4851 = vadd.f32 %v4140, %v4641
    %v4852 = vadd.f32 %v4141, %v4646
    %v4853 = vadd.f32 %v4142, %v4651
    %v4854 = vadd.f32 %v4143, %v4656
    %v4855 = vadd.f32 %v4144, %v4661
    %v4856 = vadd.f32 %v4145, %v4666
    %v4857 = vadd.f32 %v4146, %v4671
    %v4858 = vadd.f32 %v4147, %v4676
    %v4859 = vadd.f32 %v4148, %v4681
    %v4860 = vadd.f32 %v4149, %v4686
    %v4861 = vadd.f32 %v4150, %v4691
    %v4862 = vadd.f32 %v4151, %v4696
    %v4863 = vadd.f32 %v4152, %v4701
    %v4864 = vadd.f32 %v4153, %v4706
    %v4865 = vadd.f32 %v4154, %v4711
    %v4866 = vadd.f32 %v4155, %v4716
    %v4867 = vadd.f32 %v4156, %v4721
    %v4868 = vadd.f32 %v4157, %v4726
    %v4869 = vadd.f32 %v4158, %v4731
    %v4870 = vadd.f32 %v4159, %v4736
    %v4871 = vadd.f32 %v4160, %v4741
    %v4872 = vadd.f32 %v4161, %v4746
    %v4873 = vadd.f32 %v4162, %v4751
    %v4874 = vadd.f32 %v4163, %v4756
    %v4875 = vadd.f32 %v4164, %v4761
    %v4876 = vadd.f32 %v4165, %v4766
    %v4877 = vadd.f32 %v4166, %v4771
    %v4878 = vadd.f32 %v4167, %v4776
    %v4879 = vadd.f32 %v4168, %v4781
    %v4880 = vadd.f32 %v4169, %v4786
    %v4881 = vadd.f32 %v4170, %v4791
    %v4882 = vadd.f32 %v4171, %v4796
    %v4883 = vadd.f32 %v4172, %v4801
    %v4884 = vadd.f32 %v4173, %v4806
    %v4885 = vadd.f32 %v4174, %v4811
    %v4886 = vadd.f32 %v4175, %v4816
    %v4887 = vadd.f32 %v4176, %v4821
    %v4888 = vld [vmem:[%s4177 + $0x1] sm:$0xff]
    %v4889 = vld [vmem:[%s4177 + $0x9] sm:$0xff]
    %v4890 = vld [vmem:[%s4177 + $0x19] sm:$0xff]
    %v4891 = vld [vmem:[%s4177 + $0x21] sm:$0xff]
    %v4892 = vld [vmem:[%s4177 + $0x31] sm:$0xff]
    %v4893 = vld [vmem:[%s4177 + $0x39] sm:$0xff]
    %v4894 = vld [vmem:[%s4177 + $0x49] sm:$0xff]
    %v4895 = vld [vmem:[%s4177 + $0x51] sm:$0xff]
    %v4896 = vld [vmem:[%s4177 + $0x61] sm:$0xff]
    %v4897 = vld [vmem:[%s4177 + $0x69] sm:$0xff]
    %v4898 = vld [vmem:[%s4177 + $0x79] sm:$0xff]
    %v4899 = vld [vmem:[%s4177 + $0x81] sm:$0xff]
    %v4900 = vld [vmem:[%s4177 + $0x91] sm:$0xff]
    %v4901 = vld [vmem:[%s4177 + $0x99] sm:$0xff]
    %v4902 = vld [vmem:[%s4177 + $0xa9] sm:$0xff]
    %v4903 = vld [vmem:[%s4177 + $0xb1] sm:$0xff]
    %v4904 = vld [vmem:[%s4177 + $0xc1] sm:$0xff]
    %v4905 = vld [vmem:[%s4177 + $0xc9] sm:$0xff]
    %v4906 = vld [vmem:[%s4177 + $0xd9] sm:$0xff]
    %v4907 = vld [vmem:[%s4177 + $0xe1] sm:$0xff]
    %v4908 = vld [vmem:[%s4177 + $0xf1] sm:$0xff]
    %v4909 = vld [vmem:[%s4177 + $0xf9] sm:$0xff]
    %v4910 = vld [vmem:[%s4177 + $0x109] sm:$0xff]
    %v4911 = vld [vmem:[%s4177 + $0x111] sm:$0xff]
    %v4912 = vld [vmem:[%s4177 + $0x121] sm:$0xff]
    %v4913 = vld [vmem:[%s4177 + $0x129] sm:$0xff]
    %v4914 = vld [vmem:[%s4177 + $0x139] sm:$0xff]
    %v4915 = vld [vmem:[%s4177 + $0x141] sm:$0xff]
    %v4916 = vld [vmem:[%s4177 + $0x151] sm:$0xff]
    %v4917 = vld [vmem:[%s4177 + $0x159] sm:$0xff]
    %v4918 = vld [vmem:[%s4177 + $0x169] sm:$0xff]
    %v4919 = vld [vmem:[%s4177 + $0x171] sm:$0xff]
    %v4920 = vld [vmem:[%s4177 + $0x1b1] sm:$0xff]
    %v4921 = vld [vmem:[%s4177 + $0x1b9] sm:$0xff]
    %v4922 = vld [vmem:[%s4177 + $0x1c9] sm:$0xff]
    %v4923 = vld [vmem:[%s4177 + $0x1d1] sm:$0xff]
    %v4924 = vld [vmem:[%s4177 + $0x1e1] sm:$0xff]
    %v4925 = vld [vmem:[%s4177 + $0x1e9] sm:$0xff]
    %v4926 = vld [vmem:[%s4177 + $0x1f9] sm:$0xff]
    %v4927 = vld [vmem:[%s4177 + $0x201] sm:$0xff]
    %v4928 = vld [vmem:[%s4177 + $0x211] sm:$0xff]
    %v4929 = vld [vmem:[%s4177 + $0x219] sm:$0xff]
    %v4930 = vld [vmem:[%s4177 + $0x229] sm:$0xff]
    %v4931 = vld [vmem:[%s4177 + $0x231] sm:$0xff]
    %v4932 = vld [vmem:[%s4177 + $0x241] sm:$0xff]
    %v4933 = vld [vmem:[%s4177 + $0x249] sm:$0xff]
    %v4934 = vld [vmem:[%s4177 + $0x259] sm:$0xff]
    %v4935 = vld [vmem:[%s4177 + $0x261] sm:$0xff]
    %v4936 = vld [vmem:[%s4177 + $0x271] sm:$0xff]
    %v4937 = vld [vmem:[%s4177 + $0x279] sm:$0xff]
    %v4938 = vld [vmem:[%s4177 + $0x289] sm:$0xff]
    %v4939 = vld [vmem:[%s4177 + $0x291] sm:$0xff]
    %v4940 = vld [vmem:[%s4177 + $0x2a1] sm:$0xff]
    %v4941 = vld [vmem:[%s4177 + $0x2a9] sm:$0xff]
    %v4942 = vld [vmem:[%s4177 + $0x2b9] sm:$0xff]
    %v4943 = vld [vmem:[%s4177 + $0x2c1] sm:$0xff]
    %v4944 = vld [vmem:[%s4177 + $0x2d1] sm:$0xff]
    %v4945 = vld [vmem:[%s4177 + $0x2d9] sm:$0xff]
    %v4946 = vld [vmem:[%s4177 + $0x2e9] sm:$0xff]
    %v4947 = vld [vmem:[%s4177 + $0x2f1] sm:$0xff]
    %v4948 = vld [vmem:[%s4177 + $0x301] sm:$0xff]
    %v4949 = vld [vmem:[%s4177 + $0x309] sm:$0xff]
    %v4950 = vld [vmem:[%s4177 + $0x319] sm:$0xff]
    %v4951 = vld [vmem:[%s4177 + $0x321] sm:$0xff]
    %s4952 = scalar_lea.vmem %s2, 28
    %v4953 = vld [vmem:[%s4952] sm:$0xf]
    %v4955 = vsel %vm174, %v4888, 0
    %v4958 = vsel %vm174, %v4889, 0
    %v4961 = vsel %vm174, %v4890, 0
    %v4964 = vsel %vm174, %v4891, 0
    %v4967 = vsel %vm174, %v4892, 0
    %v4970 = vsel %vm174, %v4893, 0
    %v4973 = vsel %vm174, %v4894, 0
    %v4976 = vsel %vm174, %v4895, 0
    %v4979 = vsel %vm174, %v4896, 0
    %v4982 = vsel %vm174, %v4897, 0
    %v4985 = vsel %vm174, %v4898, 0
    %v4988 = vsel %vm174, %v4899, 0
    %v4991 = vsel %vm174, %v4900, 0
    %v4994 = vsel %vm174, %v4901, 0
    %v4997 = vsel %vm174, %v4902, 0
    %v5000 = vsel %vm174, %v4903, 0
    %v5003 = vsel %vm174, %v4904, 0
    %v5006 = vsel %vm174, %v4905, 0
    %v5009 = vsel %vm174, %v4906, 0
    %v5012 = vsel %vm174, %v4907, 0
    %v5015 = vsel %vm174, %v4908, 0
    %v5018 = vsel %vm174, %v4909, 0
    %v5021 = vsel %vm174, %v4910, 0
    %v5024 = vsel %vm174, %v4911, 0
    %v5027 = vsel %vm174, %v4912, 0
    %v5030 = vsel %vm174, %v4913, 0
    %v5033 = vsel %vm174, %v4914, 0
    %v5036 = vsel %vm174, %v4915, 0
    %v5039 = vsel %vm174, %v4916, 0
    %v5042 = vsel %vm174, %v4917, 0
    %v5045 = vsel %vm174, %v4918, 0
    %v5048 = vsel %vm174, %v4919, 0
    %v5051 = vsel %vm174, %v4920, 0
    %v5054 = vsel %vm174, %v4921, 0
    %v5057 = vsel %vm174, %v4922, 0
    %v5060 = vsel %vm174, %v4923, 0
    %v5063 = vsel %vm174, %v4924, 0
    %v5066 = vsel %vm174, %v4925, 0
    %v5069 = vsel %vm174, %v4926, 0
    %v5072 = vsel %vm174, %v4927, 0
    %v5075 = vsel %vm174, %v4928, 0
    %v5078 = vsel %vm174, %v4929, 0
    %v5081 = vsel %vm174, %v4930, 0
    %v5084 = vsel %vm174, %v4931, 0
    %v5087 = vsel %vm174, %v4932, 0
    %v5090 = vsel %vm174, %v4933, 0
    %v5093 = vsel %vm174, %v4934, 0
    %v5096 = vsel %vm174, %v4935, 0
    %v5099 = vsel %vm174, %v4936, 0
    %v5102 = vsel %vm174, %v4937, 0
    %v5105 = vsel %vm174, %v4938, 0
    %v5108 = vsel %vm174, %v4939, 0
    %v5111 = vsel %vm174, %v4940, 0
    %v5114 = vsel %vm174, %v4941, 0
    %v5117 = vsel %vm174, %v4942, 0
    %v5120 = vsel %vm174, %v4943, 0
    %v5123 = vsel %vm174, %v4944, 0
    %v5126 = vsel %vm174, %v4945, 0
    %v5129 = vsel %vm174, %v4946, 0
    %v5132 = vsel %vm174, %v4947, 0
    %v5135 = vsel %vm174, %v4948, 0
    %v5138 = vsel %vm174, %v4949, 0
    %v5141 = vsel %vm174, %v4950, 0
    %v5144 = vsel %vm174, %v4951, 0
    %v5147 = vsel %vm367, %v4953, 0
    %5149 = vmatprep.subr.mxu0 0.0
    %5150 = vmatpush1.msra.mxu0 %v5147
    %5151 = vmatprep.subr.mxu0 0.0
    %5152 = vmatpush1.msra.mxu0 0.0
    %5153 = vmatprep.subr.mxu0 0.0
    %5154 = vmatpush1.msra.mxu0 0.0
    %5155 = vmatprep.subr.mxu0 0.0
    %5156 = vmatpush1.msra.mxu0 0.0
    %5157 = vmatprep.subr.mxu0 0.0
    %5158 = vmatpush1.msra.mxu0 0.0
    %5159 = vmatprep.subr.mxu0 0.0
    %5160 = vmatpush1.msra.mxu0 0.0
    %5161 = vmatprep.subr.mxu0 0.0
    %5162 = vmatpush1.msra.mxu0 0.0
    %5163 = vmatprep.subr.mxu0 0.0
    %5164 = vmatpush1.msra.mxu0 0.0
    %5165 = vmatprep.subr.mxu0 0.0
    %5166 = vmatpush1.msra.mxu0 0.0
    %5167 = vmatprep.subr.mxu0 0.0
    %5168 = vmatpush1.msra.mxu0 0.0
    %5169 = vmatprep.subr.mxu0 0.0
    %5170 = vmatpush1.msra.mxu0 0.0
    %5171 = vmatprep.subr.mxu0 0.0
    %5172 = vmatpush1.msra.mxu0 0.0
    %5173 = vmatprep.subr.mxu0 0.0
    %5174 = vmatpush1.msra.mxu0 0.0
    %5175 = vmatprep.subr.mxu0 0.0
    %5176 = vmatpush1.msra.mxu0 0.0
    %5177 = vmatprep.subr.mxu0 0.0
    %5178 = vmatpush1.msra.mxu0 0.0
    %5179 = vmatprep.subr.mxu0 0.0
    %5180 = vmatpush1.msra.mxu0 0.0
    %5181 = vmatprep.subr.mxu0 0.0
    %5182 = vmatpush1.msra.mxu0 0.0
    %5183 = vmatprep.subr.mxu0 0.0
    %5184 = vmatpush1.msra.mxu0 0.0
    %5185 = vmatprep.subr.mxu0 0.0
    %5186 = vmatpush1.msra.mxu0 0.0
    %5187 = vmatprep.subr.mxu0 0.0
    %5188 = vmatpush1.msra.mxu0 0.0
    %5189 = vmatprep.subr.mxu0 0.0
    %5190 = vmatpush1.msra.mxu0 0.0
    %5191 = vmatprep.subr.mxu0 0.0
    %5192 = vmatpush1.msra.mxu0 0.0
    %5193 = vmatprep.subr.mxu0 0.0
    %5194 = vmatpush1.msra.mxu0 0.0
    %5195 = vmatprep.subr.mxu0 0.0
    %5196 = vmatpush1.msra.mxu0 0.0
    %5197 = vmatprep.subr.mxu0 0.0
    %5198 = vmatpush1.msra.mxu0 0.0
    %5199 = vmatprep.subr.mxu0 0.0
    %5200 = vmatpush1.msra.mxu0 0.0
    %5201 = vmatprep.subr.mxu0 0.0
    %5202 = vmatpush1.msra.mxu0 0.0
    %5203 = vmatprep.subr.mxu0 0.0
    %5204 = vmatpush1.msra.mxu0 0.0
    %5205 = vmatprep.subr.mxu0 0.0
    %5206 = vmatpush1.msra.mxu0 0.0
    %5207 = vmatprep.subr.mxu0 0.0
    %5208 = vmatpush1.msra.mxu0 0.0
    %5209 = vmatprep.subr.mxu0 0.0
    %5210 = vmatpush1.msra.mxu0 0.0
    %5211 = vmatprep.subr.mxu0 0.0
    %5212 = vmatpush1.msra.mxu0 0.0
    %5213 = vmatprep.mubr.f32.mxu0 0.0
    %5214 = vmatmul.mubr.f32.gmra.mrb[0].mxu0 %v4955
    %v5215 = vpop.f32.mrb[0].mxu0
    %v5216 = vadd.f32 0.0, %v5215
    %v5217 = vpop.f32.mrb[0].mxu0
    %5218 = vmatprep.mubr.f32.mxu0 0.0
    %5219 = vmatmul.mubr.f32.gmra.mrb[0].mxu0 %v4958
    %v5220 = vpop.f32.mrb[0].mxu0
    %v5221 = vadd.f32 0.0, %v5220
    %v5222 = vpop.f32.mrb[0].mxu0
    %5223 = vmatprep.mubr.f32.mxu0 0.0
    %5224 = vmatmul.mubr.f32.gmra.mrb[0].mxu0 %v4961
    %v5225 = vpop.f32.mrb[0].mxu0
    %v5226 = vadd.f32 0.0, %v5225
    %v5227 = vpop.f32.mrb[0].mxu0
    %5228 = vmatprep.mubr.f32.mxu0 0.0
    %5229 = vmatmul.mubr.f32.gmra.mrb[0].mxu0 %v4964
    %v5230 = vpop.f32.mrb[0].mxu0
    %v5231 = vadd.f32 0.0, %v5230
    %v5232 = vpop.f32.mrb[0].mxu0
    %5233 = vmatprep.mubr.f32.mxu0 0.0
    %5234 = vmatmul.mubr.f32.gmra.mrb[0].mxu0 %v4967
    %v5235 = vpop.f32.mrb[0].mxu0
    %v5236 = vadd.f32 0.0, %v5235
    %v5237 = vpop.f32.mrb[0].mxu0
    %5238 = vmatprep.mubr.f32.mxu0 0.0
    %5239 = vmatmul.mubr.f32.gmra.mrb[0].mxu0 %v4970
    %v5240 = vpop.f32.mrb[0].mxu0
    %v5241 = vadd.f32 0.0, %v5240
    %v5242 = vpop.f32.mrb[0].mxu0
    %5243 = vmatprep.mubr.f32.mxu0 0.0
    %5244 = vmatmul.mubr.f32.gmra.mrb[0].mxu0 %v4973
    %v5245 = vpop.f32.mrb[0].mxu0
    %v5246 = vadd.f32 0.0, %v5245
    %v5247 = vpop.f32.mrb[0].mxu0
    %5248 = vmatprep.mubr.f32.mxu0 0.0
    %5249 = vmatmul.mubr.f32.gmra.mrb[0].mxu0 %v4976
    %v5250 = vpop.f32.mrb[0].mxu0
    %v5251 = vadd.f32 0.0, %v5250
    %v5252 = vpop.f32.mrb[0].mxu0
    %5253 = vmatprep.mubr.f32.mxu0 0.0
    %5254 = vmatmul.mubr.f32.gmra.mrb[0].mxu0 %v4979
    %v5255 = vpop.f32.mrb[0].mxu0
    %v5256 = vadd.f32 0.0, %v5255
    %v5257 = vpop.f32.mrb[0].mxu0
    %5258 = vmatprep.mubr.f32.mxu0 0.0
    %5259 = vmatmul.mubr.f32.gmra.mrb[0].mxu0 %v4982
    %v5260 = vpop.f32.mrb[0].mxu0
    %v5261 = vadd.f32 0.0, %v5260
    %v5262 = vpop.f32.mrb[0].mxu0
    %5263 = vmatprep.mubr.f32.mxu0 0.0
    %5264 = vmatmul.mubr.f32.gmra.mrb[0].mxu0 %v4985
    %v5265 = vpop.f32.mrb[0].mxu0
    %v5266 = vadd.f32 0.0, %v5265
    %v5267 = vpop.f32.mrb[0].mxu0
    %5268 = vmatprep.mubr.f32.mxu0 0.0
    %5269 = vmatmul.mubr.f32.gmra.mrb[0].mxu0 %v4988
    %v5270 = vpop.f32.mrb[0].mxu0
    %v5271 = vadd.f32 0.0, %v5270
    %v5272 = vpop.f32.mrb[0].mxu0
    %5273 = vmatprep.mubr.f32.mxu0 0.0
    %5274 = vmatmul.mubr.f32.gmra.mrb[0].mxu0 %v4991
    %v5275 = vpop.f32.mrb[0].mxu0
    %v5276 = vadd.f32 0.0, %v5275
    %v5277 = vpop.f32.mrb[0].mxu0
    %5278 = vmatprep.mubr.f32.mxu0 0.0
    %5279 = vmatmul.mubr.f32.gmra.mrb[0].mxu0 %v4994
    %v5280 = vpop.f32.mrb[0].mxu0
    %v5281 = vadd.f32 0.0, %v5280
    %v5282 = vpop.f32.mrb[0].mxu0
    %5283 = vmatprep.mubr.f32.mxu0 0.0
    %5284 = vmatmul.mubr.f32.gmra.mrb[0].mxu0 %v4997
    %v5285 = vpop.f32.mrb[0].mxu0
    %v5286 = vadd.f32 0.0, %v5285
    %v5287 = vpop.f32.mrb[0].mxu0
    %5288 = vmatprep.mubr.f32.mxu0 0.0
    %5289 = vmatmul.mubr.f32.gmra.mrb[0].mxu0 %v5000
    %v5290 = vpop.f32.mrb[0].mxu0
    %v5291 = vadd.f32 0.0, %v5290
    %v5292 = vpop.f32.mrb[0].mxu0
    %5293 = vmatprep.mubr.f32.mxu0 0.0
    %5294 = vmatmul.mubr.f32.gmra.mrb[0].mxu0 %v5003
    %v5295 = vpop.f32.mrb[0].mxu0
    %v5296 = vadd.f32 0.0, %v5295
    %v5297 = vpop.f32.mrb[0].mxu0
    %5298 = vmatprep.mubr.f32.mxu0 0.0
    %5299 = vmatmul.mubr.f32.gmra.mrb[0].mxu0 %v5006
    %v5300 = vpop.f32.mrb[0].mxu0
    %v5301 = vadd.f32 0.0, %v5300
    %v5302 = vpop.f32.mrb[0].mxu0
    %5303 = vmatprep.mubr.f32.mxu0 0.0
    %5304 = vmatmul.mubr.f32.gmra.mrb[0].mxu0 %v5009
    %v5305 = vpop.f32.mrb[0].mxu0
    %v5306 = vadd.f32 0.0, %v5305
    %v5307 = vpop.f32.mrb[0].mxu0
    %5308 = vmatprep.mubr.f32.mxu0 0.0
    %5309 = vmatmul.mubr.f32.gmra.mrb[0].mxu0 %v5012
    %v5310 = vpop.f32.mrb[0].mxu0
    %v5311 = vadd.f32 0.0, %v5310
    %v5312 = vpop.f32.mrb[0].mxu0
    %5313 = vmatprep.mubr.f32.mxu0 0.0
    %5314 = vmatmul.mubr.f32.gmra.mrb[0].mxu0 %v5015
    %v5315 = vpop.f32.mrb[0].mxu0
    %v5316 = vadd.f32 0.0, %v5315
    %v5317 = vpop.f32.mrb[0].mxu0
    %5318 = vmatprep.mubr.f32.mxu0 0.0
    %5319 = vmatmul.mubr.f32.gmra.mrb[0].mxu0 %v5018
    %v5320 = vpop.f32.mrb[0].mxu0
    %v5321 = vadd.f32 0.0, %v5320
    %v5322 = vpop.f32.mrb[0].mxu0
    %5323 = vmatprep.mubr.f32.mxu0 0.0
    %5324 = vmatmul.mubr.f32.gmra.mrb[0].mxu0 %v5021
    %v5325 = vpop.f32.mrb[0].mxu0
    %v5326 = vadd.f32 0.0, %v5325
    %v5327 = vpop.f32.mrb[0].mxu0
    %5328 = vmatprep.mubr.f32.mxu0 0.0
    %5329 = vmatmul.mubr.f32.gmra.mrb[0].mxu0 %v5024
    %v5330 = vpop.f32.mrb[0].mxu0
    %v5331 = vadd.f32 0.0, %v5330
    %v5332 = vpop.f32.mrb[0].mxu0
    %5333 = vmatprep.mubr.f32.mxu0 0.0
    %5334 = vmatmul.mubr.f32.gmra.mrb[0].mxu0 %v5027
    %v5335 = vpop.f32.mrb[0].mxu0
    %v5336 = vadd.f32 0.0, %v5335
    %v5337 = vpop.f32.mrb[0].mxu0
    %5338 = vmatprep.mubr.f32.mxu0 0.0
    %5339 = vmatmul.mubr.f32.gmra.mrb[0].mxu0 %v5030
    %v5340 = vpop.f32.mrb[0].mxu0
    %v5341 = vadd.f32 0.0, %v5340
    %v5342 = vpop.f32.mrb[0].mxu0
    %5343 = vmatprep.mubr.f32.mxu0 0.0
    %5344 = vmatmul.mubr.f32.gmra.mrb[0].mxu0 %v5033
    %v5345 = vpop.f32.mrb[0].mxu0
    %v5346 = vadd.f32 0.0, %v5345
    %v5347 = vpop.f32.mrb[0].mxu0
    %5348 = vmatprep.mubr.f32.mxu0 0.0
    %5349 = vmatmul.mubr.f32.gmra.mrb[0].mxu0 %v5036
    %v5350 = vpop.f32.mrb[0].mxu0
    %v5351 = vadd.f32 0.0, %v5350
    %v5352 = vpop.f32.mrb[0].mxu0
    %5353 = vmatprep.mubr.f32.mxu0 0.0
    %5354 = vmatmul.mubr.f32.gmra.mrb[0].mxu0 %v5039
    %v5355 = vpop.f32.mrb[0].mxu0
    %v5356 = vadd.f32 0.0, %v5355
    %v5357 = vpop.f32.mrb[0].mxu0
    %5358 = vmatprep.mubr.f32.mxu0 0.0
    %5359 = vmatmul.mubr.f32.gmra.mrb[0].mxu0 %v5042
    %v5360 = vpop.f32.mrb[0].mxu0
    %v5361 = vadd.f32 0.0, %v5360
    %v5362 = vpop.f32.mrb[0].mxu0
    %5363 = vmatprep.mubr.f32.mxu0 0.0
    %5364 = vmatmul.mubr.f32.gmra.mrb[0].mxu0 %v5045
    %v5365 = vpop.f32.mrb[0].mxu0
    %v5366 = vadd.f32 0.0, %v5365
    %v5367 = vpop.f32.mrb[0].mxu0
    %5368 = vmatprep.mubr.f32.mxu0 0.0
    %5369 = vmatmul.mubr.f32.gmra.mrb[0].mxu0 %v5048
    %v5370 = vpop.f32.mrb[0].mxu0
    %v5371 = vadd.f32 0.0, %v5370
    %v5372 = vpop.f32.mrb[0].mxu0
    %5373 = vmatprep.mubr.f32.mxu0 0.0
    %5374 = vmatmul.mubr.f32.gmra.mrb[0].mxu0 %v5051
    %v5375 = vpop.f32.mrb[0].mxu0
    %v5376 = vadd.f32 0.0, %v5375
    %v5377 = vpop.f32.mrb[0].mxu0
    %5378 = vmatprep.mubr.f32.mxu0 0.0
    %5379 = vmatmul.mubr.f32.gmra.mrb[0].mxu0 %v5054
    %v5380 = vpop.f32.mrb[0].mxu0
    %v5381 = vadd.f32 0.0, %v5380
    %v5382 = vpop.f32.mrb[0].mxu0
    %5383 = vmatprep.mubr.f32.mxu0 0.0
    %5384 = vmatmul.mubr.f32.gmra.mrb[0].mxu0 %v5057
    %v5385 = vpop.f32.mrb[0].mxu0
    %v5386 = vadd.f32 0.0, %v5385
    %v5387 = vpop.f32.mrb[0].mxu0
    %5388 = vmatprep.mubr.f32.mxu0 0.0
    %5389 = vmatmul.mubr.f32.gmra.mrb[0].mxu0 %v5060
    %v5390 = vpop.f32.mrb[0].mxu0
    %v5391 = vadd.f32 0.0, %v5390
    %v5392 = vpop.f32.mrb[0].mxu0
    %5393 = vmatprep.mubr.f32.mxu0 0.0
    %5394 = vmatmul.mubr.f32.gmra.mrb[0].mxu0 %v5063
    %v5395 = vpop.f32.mrb[0].mxu0
    %v5396 = vadd.f32 0.0, %v5395
    %v5397 = vpop.f32.mrb[0].mxu0
    %5398 = vmatprep.mubr.f32.mxu0 0.0
    %5399 = vmatmul.mubr.f32.gmra.mrb[0].mxu0 %v5066
    %v5400 = vpop.f32.mrb[0].mxu0
    %v5401 = vadd.f32 0.0, %v5400
    %v5402 = vpop.f32.mrb[0].mxu0
    %5403 = vmatprep.mubr.f32.mxu0 0.0
    %5404 = vmatmul.mubr.f32.gmra.mrb[0].mxu0 %v5069
    %v5405 = vpop.f32.mrb[0].mxu0
    %v5406 = vadd.f32 0.0, %v5405
    %v5407 = vpop.f32.mrb[0].mxu0
    %5408 = vmatprep.mubr.f32.mxu0 0.0
    %5409 = vmatmul.mubr.f32.gmra.mrb[0].mxu0 %v5072
    %v5410 = vpop.f32.mrb[0].mxu0
    %v5411 = vadd.f32 0.0, %v5410
    %v5412 = vpop.f32.mrb[0].mxu0
    %5413 = vmatprep.mubr.f32.mxu0 0.0
    %5414 = vmatmul.mubr.f32.gmra.mrb[0].mxu0 %v5075
    %v5415 = vpop.f32.mrb[0].mxu0
    %v5416 = vadd.f32 0.0, %v5415
    %v5417 = vpop.f32.mrb[0].mxu0
    %5418 = vmatprep.mubr.f32.mxu0 0.0
    %5419 = vmatmul.mubr.f32.gmra.mrb[0].mxu0 %v5078
    %v5420 = vpop.f32.mrb[0].mxu0
    %v5421 = vadd.f32 0.0, %v5420
    %v5422 = vpop.f32.mrb[0].mxu0
    %5423 = vmatprep.mubr.f32.mxu0 0.0
    %5424 = vmatmul.mubr.f32.gmra.mrb[0].mxu0 %v5081
    %v5425 = vpop.f32.mrb[0].mxu0
    %v5426 = vadd.f32 0.0, %v5425
    %v5427 = vpop.f32.mrb[0].mxu0
    %5428 = vmatprep.mubr.f32.mxu0 0.0
    %5429 = vmatmul.mubr.f32.gmra.mrb[0].mxu0 %v5084
    %v5430 = vpop.f32.mrb[0].mxu0
    %v5431 = vadd.f32 0.0, %v5430
    %v5432 = vpop.f32.mrb[0].mxu0
    %5433 = vmatprep.mubr.f32.mxu0 0.0
    %5434 = vmatmul.mubr.f32.gmra.mrb[0].mxu0 %v5087
    %v5435 = vpop.f32.mrb[0].mxu0
    %v5436 = vadd.f32 0.0, %v5435
    %v5437 = vpop.f32.mrb[0].mxu0
    %5438 = vmatprep.mubr.f32.mxu0 0.0
    %5439 = vmatmul.mubr.f32.gmra.mrb[0].mxu0 %v5090
    %v5440 = vpop.f32.mrb[0].mxu0
    %v5441 = vadd.f32 0.0, %v5440
    %v5442 = vpop.f32.mrb[0].mxu0
    %5443 = vmatprep.mubr.f32.mxu0 0.0
    %5444 = vmatmul.mubr.f32.gmra.mrb[0].mxu0 %v5093
    %v5445 = vpop.f32.mrb[0].mxu0
    %v5446 = vadd.f32 0.0, %v5445
    %v5447 = vpop.f32.mrb[0].mxu0
    %5448 = vmatprep.mubr.f32.mxu0 0.0
    %5449 = vmatmul.mubr.f32.gmra.mrb[0].mxu0 %v5096
    %v5450 = vpop.f32.mrb[0].mxu0
    %v5451 = vadd.f32 0.0, %v5450
    %v5452 = vpop.f32.mrb[0].mxu0
    %5453 = vmatprep.mubr.f32.mxu0 0.0
    %5454 = vmatmul.mubr.f32.gmra.mrb[0].mxu0 %v5099
    %v5455 = vpop.f32.mrb[0].mxu0
    %v5456 = vadd.f32 0.0, %v5455
    %v5457 = vpop.f32.mrb[0].mxu0
    %5458 = vmatprep.mubr.f32.mxu0 0.0
    %5459 = vmatmul.mubr.f32.gmra.mrb[0].mxu0 %v5102
    %v5460 = vpop.f32.mrb[0].mxu0
    %v5461 = vadd.f32 0.0, %v5460
    %v5462 = vpop.f32.mrb[0].mxu0
    %5463 = vmatprep.mubr.f32.mxu0 0.0
    %5464 = vmatmul.mubr.f32.gmra.mrb[0].mxu0 %v5105
    %v5465 = vpop.f32.mrb[0].mxu0
    %v5466 = vadd.f32 0.0, %v5465
    %v5467 = vpop.f32.mrb[0].mxu0
    %5468 = vmatprep.mubr.f32.mxu0 0.0
    %5469 = vmatmul.mubr.f32.gmra.mrb[0].mxu0 %v5108
    %v5470 = vpop.f32.mrb[0].mxu0
    %v5471 = vadd.f32 0.0, %v5470
    %v5472 = vpop.f32.mrb[0].mxu0
    %5473 = vmatprep.mubr.f32.mxu0 0.0
    %5474 = vmatmul.mubr.f32.gmra.mrb[0].mxu0 %v5111
    %v5475 = vpop.f32.mrb[0].mxu0
    %v5476 = vadd.f32 0.0, %v5475
    %v5477 = vpop.f32.mrb[0].mxu0
    %5478 = vmatprep.mubr.f32.mxu0 0.0
    %5479 = vmatmul.mubr.f32.gmra.mrb[0].mxu0 %v5114
    %v5480 = vpop.f32.mrb[0].mxu0
    %v5481 = vadd.f32 0.0, %v5480
    %v5482 = vpop.f32.mrb[0].mxu0
    %5483 = vmatprep.mubr.f32.mxu0 0.0
    %5484 = vmatmul.mubr.f32.gmra.mrb[0].mxu0 %v5117
    %v5485 = vpop.f32.mrb[0].mxu0
    %v5486 = vadd.f32 0.0, %v5485
    %v5487 = vpop.f32.mrb[0].mxu0
    %5488 = vmatprep.mubr.f32.mxu0 0.0
    %5489 = vmatmul.mubr.f32.gmra.mrb[0].mxu0 %v5120
    %v5490 = vpop.f32.mrb[0].mxu0
    %v5491 = vadd.f32 0.0, %v5490
    %v5492 = vpop.f32.mrb[0].mxu0
    %5493 = vmatprep.mubr.f32.mxu0 0.0
    %5494 = vmatmul.mubr.f32.gmra.mrb[0].mxu0 %v5123
    %v5495 = vpop.f32.mrb[0].mxu0
    %v5496 = vadd.f32 0.0, %v5495
    %v5497 = vpop.f32.mrb[0].mxu0
    %5498 = vmatprep.mubr.f32.mxu0 0.0
    %5499 = vmatmul.mubr.f32.gmra.mrb[0].mxu0 %v5126
    %v5500 = vpop.f32.mrb[0].mxu0
    %v5501 = vadd.f32 0.0, %v5500
    %v5502 = vpop.f32.mrb[0].mxu0
    %5503 = vmatprep.mubr.f32.mxu0 0.0
    %5504 = vmatmul.mubr.f32.gmra.mrb[0].mxu0 %v5129
    %v5505 = vpop.f32.mrb[0].mxu0
    %v5506 = vadd.f32 0.0, %v5505
    %v5507 = vpop.f32.mrb[0].mxu0
    %5508 = vmatprep.mubr.f32.mxu0 0.0
    %5509 = vmatmul.mubr.f32.gmra.mrb[0].mxu0 %v5132
    %v5510 = vpop.f32.mrb[0].mxu0
    %v5511 = vadd.f32 0.0, %v5510
    %v5512 = vpop.f32.mrb[0].mxu0
    %5513 = vmatprep.mubr.f32.mxu0 0.0
    %5514 = vmatmul.mubr.f32.gmra.mrb[0].mxu0 %v5135
    %v5515 = vpop.f32.mrb[0].mxu0
    %v5516 = vadd.f32 0.0, %v5515
    %v5517 = vpop.f32.mrb[0].mxu0
    %5518 = vmatprep.mubr.f32.mxu0 0.0
    %5519 = vmatmul.mubr.f32.gmra.mrb[0].mxu0 %v5138
    %v5520 = vpop.f32.mrb[0].mxu0
    %v5521 = vadd.f32 0.0, %v5520
    %v5522 = vpop.f32.mrb[0].mxu0
    %5523 = vmatprep.mubr.f32.mxu0 0.0
    %5524 = vmatmul.mubr.f32.gmra.mrb[0].mxu0 %v5141
    %v5525 = vpop.f32.mrb[0].mxu0
    %v5526 = vadd.f32 0.0, %v5525
    %v5527 = vpop.f32.mrb[0].mxu0
    %5528 = vmatprep.mubr.f32.mxu0 0.0
    %5529 = vmatmul.mubr.f32.gmra.mrb[0].mxu0 %v5144
    %v5530 = vpop.f32.mrb[0].mxu0
    %v5531 = vadd.f32 0.0, %v5530
    %v5532 = vpop.f32.mrb[0].mxu0
    %5533 = vdwg.mxu0
    %v5534 = vadd.f32 %v4824, %v5216
    %v5535 = vadd.f32 %v4825, %v5221
    %v5536 = vadd.f32 %v4826, %v5226
    %v5537 = vadd.f32 %v4827, %v5231
    %v5538 = vadd.f32 %v4828, %v5236
    %v5539 = vadd.f32 %v4829, %v5241
    %v5540 = vadd.f32 %v4830, %v5246
    %v5541 = vadd.f32 %v4831, %v5251
    %v5542 = vadd.f32 %v4832, %v5256
    %v5543 = vadd.f32 %v4833, %v5261
    %v5544 = vadd.f32 %v4834, %v5266
    %v5545 = vadd.f32 %v4835, %v5271
    %v5546 = vadd.f32 %v4836, %v5276
    %v5547 = vadd.f32 %v4837, %v5281
    %v5548 = vadd.f32 %v4838, %v5286
    %v5549 = vadd.f32 %v4839, %v5291
    %v5550 = vadd.f32 %v4840, %v5296
    %v5551 = vadd.f32 %v4841, %v5301
    %v5552 = vadd.f32 %v4842, %v5306
    %v5553 = vadd.f32 %v4843, %v5311
    %v5554 = vadd.f32 %v4844, %v5316
    %v5555 = vadd.f32 %v4845, %v5321
    %v5556 = vadd.f32 %v4846, %v5326
    %v5557 = vadd.f32 %v4847, %v5331
    %v5558 = vadd.f32 %v4848, %v5336
    %v5559 = vadd.f32 %v4849, %v5341
    %v5560 = vadd.f32 %v4850, %v5346
    %v5561 = vadd.f32 %v4851, %v5351
    %v5562 = vadd.f32 %v4852, %v5356
    %v5563 = vadd.f32 %v4853, %v5361
    %v5564 = vadd.f32 %v4854, %v5366
    %v5565 = vadd.f32 %v4855, %v5371
    %v5566 = vadd.f32 %v4856, %v5376
    %v5567 = vadd.f32 %v4857, %v5381
    %v5568 = vadd.f32 %v4858, %v5386
    %v5569 = vadd.f32 %v4859, %v5391
    %v5570 = vadd.f32 %v4860, %v5396
    %v5571 = vadd.f32 %v4861, %v5401
    %v5572 = vadd.f32 %v4862, %v5406
    %v5573 = vadd.f32 %v4863, %v5411
    %v5574 = vadd.f32 %v4864, %v5416
    %v5575 = vadd.f32 %v4865, %v5421
    %v5576 = vadd.f32 %v4866, %v5426
    %v5577 = vadd.f32 %v4867, %v5431
    %v5578 = vadd.f32 %v4868, %v5436
    %v5579 = vadd.f32 %v4869, %v5441
    %v5580 = vadd.f32 %v4870, %v5446
    %v5581 = vadd.f32 %v4871, %v5451
    %v5582 = vadd.f32 %v4872, %v5456
    %v5583 = vadd.f32 %v4873, %v5461
    %v5584 = vadd.f32 %v4874, %v5466
    %v5585 = vadd.f32 %v4875, %v5471
    %v5586 = vadd.f32 %v4876, %v5476
    %v5587 = vadd.f32 %v4877, %v5481
    %v5588 = vadd.f32 %v4878, %v5486
    %v5589 = vadd.f32 %v4879, %v5491
    %v5590 = vadd.f32 %v4880, %v5496
    %v5591 = vadd.f32 %v4881, %v5501
    %v5592 = vadd.f32 %v4882, %v5506
    %v5593 = vadd.f32 %v4883, %v5511
    %v5594 = vadd.f32 %v4884, %v5516
    %v5595 = vadd.f32 %v4885, %v5521
    %v5596 = vadd.f32 %v4886, %v5526
    %v5597 = vadd.f32 %v4887, %v5531
    %v5598 = vld [vmem:[%s4177 + $0x2] sm:$0xff]
    %v5599 = vld [vmem:[%s4177 + $0xa] sm:$0xff]
    %v5600 = vld [vmem:[%s4177 + $0x1a] sm:$0xff]
    %v5601 = vld [vmem:[%s4177 + $0x22] sm:$0xff]
    %v5602 = vld [vmem:[%s4177 + $0x32] sm:$0xff]
    %v5603 = vld [vmem:[%s4177 + $0x3a] sm:$0xff]
    %v5604 = vld [vmem:[%s4177 + $0x4a] sm:$0xff]
    %v5605 = vld [vmem:[%s4177 + $0x52] sm:$0xff]
    %v5606 = vld [vmem:[%s4177 + $0x62] sm:$0xff]
    %v5607 = vld [vmem:[%s4177 + $0x6a] sm:$0xff]
    %v5608 = vld [vmem:[%s4177 + $0x7a] sm:$0xff]
    %v5609 = vld [vmem:[%s4177 + $0x82] sm:$0xff]
    %v5610 = vld [vmem:[%s4177 + $0x92] sm:$0xff]
    %v5611 = vld [vmem:[%s4177 + $0x9a] sm:$0xff]
    %v5612 = vld [vmem:[%s4177 + $0xaa] sm:$0xff]
    %v5613 = vld [vmem:[%s4177 + $0xb2] sm:$0xff]
    %v5614 = vld [vmem:[%s4177 + $0xc2] sm:$0xff]
    %v5615 = vld [vmem:[%s4177 + $0xca] sm:$0xff]
    %v5616 = vld [vmem:[%s4177 + $0xda] sm:$0xff]
    %v5617 = vld [vmem:[%s4177 + $0xe2] sm:$0xff]
    %v5618 = vld [vmem:[%s4177 + $0xf2] sm:$0xff]
    %v5619 = vld [vmem:[%s4177 + $0xfa] sm:$0xff]
    %v5620 = vld [vmem:[%s4177 + $0x10a] sm:$0xff]
    %v5621 = vld [vmem:[%s4177 + $0x112] sm:$0xff]
    %v5622 = vld [vmem:[%s4177 + $0x122] sm:$0xff]
    %v5623 = vld [vmem:[%s4177 + $0x12a] sm:$0xff]
    %v5624 = vld [vmem:[%s4177 + $0x13a] sm:$0xff]
    %v5625 = vld [vmem:[%s4177 + $0x142] sm:$0xff]
    %v5626 = vld [vmem:[%s4177 + $0x152] sm:$0xff]
    %v5627 = vld [vmem:[%s4177 + $0x15a] sm:$0xff]
    %v5628 = vld [vmem:[%s4177 + $0x16a] sm:$0xff]
    %v5629 = vld [vmem:[%s4177 + $0x172] sm:$0xff]
    %v5630 = vld [vmem:[%s4177 + $0x1b2] sm:$0xff]
    %v5631 = vld [vmem:[%s4177 + $0x1ba] sm:$0xff]
    %v5632 = vld [vmem:[%s4177 + $0x1ca] sm:$0xff]
    %v5633 = vld [vmem:[%s4177 + $0x1d2] sm:$0xff]
    %v5634 = vld [vmem:[%s4177 + $0x1e2] sm:$0xff]
    %v5635 = vld [vmem:[%s4177 + $0x1ea] sm:$0xff]
    %v5636 = vld [vmem:[%s4177 + $0x1fa] sm:$0xff]
    %v5637 = vld [vmem:[%s4177 + $0x202] sm:$0xff]
    %v5638 = vld [vmem:[%s4177 + $0x212] sm:$0xff]
    %v5639 = vld [vmem:[%s4177 + $0x21a] sm:$0xff]
    %v5640 = vld [vmem:[%s4177 + $0x22a] sm:$0xff]
    %v5641 = vld [vmem:[%s4177 + $0x232] sm:$0xff]
    %v5642 = vld [vmem:[%s4177 + $0x242] sm:$0xff]
    %v5643 = vld [vmem:[%s4177 + $0x24a] sm:$0xff]
    %v5644 = vld [vmem:[%s4177 + $0x25a] sm:$0xff]
    %v5645 = vld [vmem:[%s4177 + $0x262] sm:$0xff]
    %v5646 = vld [vmem:[%s4177 + $0x272] sm:$0xff]
    %v5647 = vld [vmem:[%s4177 + $0x27a] sm:$0xff]
    %v5648 = vld [vmem:[%s4177 + $0x28a] sm:$0xff]
    %v5649 = vld [vmem:[%s4177 + $0x292] sm:$0xff]
    %v5650 = vld [vmem:[%s4177 + $0x2a2] sm:$0xff]
    %v5651 = vld [vmem:[%s4177 + $0x2aa] sm:$0xff]
    %v5652 = vld [vmem:[%s4177 + $0x2ba] sm:$0xff]
    %v5653 = vld [vmem:[%s4177 + $0x2c2] sm:$0xff]
    %v5654 = vld [vmem:[%s4177 + $0x2d2] sm:$0xff]
    %v5655 = vld [vmem:[%s4177 + $0x2da] sm:$0xff]
    %v5656 = vld [vmem:[%s4177 + $0x2ea] sm:$0xff]
    %v5657 = vld [vmem:[%s4177 + $0x2f2] sm:$0xff]
    %v5658 = vld [vmem:[%s4177 + $0x302] sm:$0xff]
    %v5659 = vld [vmem:[%s4177 + $0x30a] sm:$0xff]
    %v5660 = vld [vmem:[%s4177 + $0x31a] sm:$0xff]
    %v5661 = vld [vmem:[%s4177 + $0x322] sm:$0xff]
    %s5662 = scalar_lea.vmem %s2, 32
    %v5663 = vld [vmem:[%s5662] sm:$0xf]
    %v5665 = vsel %vm174, %v5598, 0
    %v5668 = vsel %vm174, %v5599, 0
    %v5671 = vsel %vm174, %v5600, 0
    %v5674 = vsel %vm174, %v5601, 0
    %v5677 = vsel %vm174, %v5602, 0
    %v5680 = vsel %vm174, %v5603, 0
    %v5683 = vsel %vm174, %v5604, 0
    %v5686 = vsel %vm174, %v5605, 0
    %v5689 = vsel %vm174, %v5606, 0
    %v5692 = vsel %vm174, %v5607, 0
    %v5695 = vsel %vm174, %v5608, 0
    %v5698 = vsel %vm174, %v5609, 0
    %v5701 = vsel %vm174, %v5610, 0
    %v5704 = vsel %vm174, %v5611, 0
    %v5707 = vsel %vm174, %v5612, 0
    %v5710 = vsel %vm174, %v5613, 0
    %v5713 = vsel %vm174, %v5614, 0
    %v5716 = vsel %vm174, %v5615, 0
    %v5719 = vsel %vm174, %v5616, 0
    %v5722 = vsel %vm174, %v5617, 0
    %v5725 = vsel %vm174, %v5618, 0
    %v5728 = vsel %vm174, %v5619, 0
    %v5731 = vsel %vm174, %v5620, 0
    %v5734 = vsel %vm174, %v5621, 0
    %v5737 = vsel %vm174, %v5622, 0
    %v5740 = vsel %vm174, %v5623, 0
    %v5743 = vsel %vm174, %v5624, 0
    %v5746 = vsel %vm174, %v5625, 0
    %v5749 = vsel %vm174, %v5626, 0
    %v5752 = vsel %vm174, %v5627, 0
    %v5755 = vsel %vm174, %v5628, 0
    %v5758 = vsel %vm174, %v5629, 0
    %v5761 = vsel %vm174, %v5630, 0
    %v5764 = vsel %vm174, %v5631, 0
    %v5767 = vsel %vm174, %v5632, 0
    %v5770 = vsel %vm174, %v5633, 0
    %v5773 = vsel %vm174, %v5634, 0
    %v5776 = vsel %vm174, %v5635, 0
    %v5779 = vsel %vm174, %v5636, 0
    %v5782 = vsel %vm174, %v5637, 0
    %v5785 = vsel %vm174, %v5638, 0
    %v5788 = vsel %vm174, %v5639, 0
    %v5791 = vsel %vm174, %v5640, 0
    %v5794 = vsel %vm174, %v5641, 0
    %v5797 = vsel %vm174, %v5642, 0
    %v5800 = vsel %vm174, %v5643, 0
    %v5803 = vsel %vm174, %v5644, 0
    %v5806 = vsel %vm174, %v5645, 0
    %v5809 = vsel %vm174, %v5646, 0
    %v5812 = vsel %vm174, %v5647, 0
    %v5815 = vsel %vm174, %v5648, 0
    %v5818 = vsel %vm174, %v5649, 0
    %v5821 = vsel %vm174, %v5650, 0
    %v5824 = vsel %vm174, %v5651, 0
    %v5827 = vsel %vm174, %v5652, 0
    %v5830 = vsel %vm174, %v5653, 0
    %v5833 = vsel %vm174, %v5654, 0
    %v5836 = vsel %vm174, %v5655, 0
    %v5839 = vsel %vm174, %v5656, 0
    %v5842 = vsel %vm174, %v5657, 0
    %v5845 = vsel %vm174, %v5658, 0
    %v5848 = vsel %vm174, %v5659, 0
    %v5851 = vsel %vm174, %v5660, 0
    %v5854 = vsel %vm174, %v5661, 0
    %v5857 = vsel %vm367, %v5663, 0
    %5859 = vmatprep.subr.mxu0 0.0
    %5860 = vmatpush1.msra.mxu0 %v5857
    %5861 = vmatprep.subr.mxu0 0.0
    %5862 = vmatpush1.msra.mxu0 0.0
    %5863 = vmatprep.subr.mxu0 0.0
    %5864 = vmatpush1.msra.mxu0 0.0
    %5865 = vmatprep.subr.mxu0 0.0
    %5866 = vmatpush1.msra.mxu0 0.0
    %5867 = vmatprep.subr.mxu0 0.0
    %5868 = vmatpush1.msra.mxu0 0.0
    %5869 = vmatprep.subr.mxu0 0.0
    %5870 = vmatpush1.msra.mxu0 0.0
    %5871 = vmatprep.subr.mxu0 0.0
    %5872 = vmatpush1.msra.mxu0 0.0
    %5873 = vmatprep.subr.mxu0 0.0
    %5874 = vmatpush1.msra.mxu0 0.0
    %5875 = vmatprep.subr.mxu0 0.0
    %5876 = vmatpush1.msra.mxu0 0.0
    %5877 = vmatprep.subr.mxu0 0.0
    %5878 = vmatpush1.msra.mxu0 0.0
    %5879 = vmatprep.subr.mxu0 0.0
    %5880 = vmatpush1.msra.mxu0 0.0
    %5881 = vmatprep.subr.mxu0 0.0
    %5882 = vmatpush1.msra.mxu0 0.0
    %5883 = vmatprep.subr.mxu0 0.0
    %5884 = vmatpush1.msra.mxu0 0.0
    %5885 = vmatprep.subr.mxu0 0.0
    %5886 = vmatpush1.msra.mxu0 0.0
    %5887 = vmatprep.subr.mxu0 0.0
    %5888 = vmatpush1.msra.mxu0 0.0
    %5889 = vmatprep.subr.mxu0 0.0
    %5890 = vmatpush1.msra.mxu0 0.0
    %5891 = vmatprep.subr.mxu0 0.0
    %5892 = vmatpush1.msra.mxu0 0.0
    %5893 = vmatprep.subr.mxu0 0.0
    %5894 = vmatpush1.msra.mxu0 0.0
    %5895 = vmatprep.subr.mxu0 0.0
    %5896 = vmatpush1.msra.mxu0 0.0
    %5897 = vmatprep.subr.mxu0 0.0
    %5898 = vmatpush1.msra.mxu0 0.0
    %5899 = vmatprep.subr.mxu0 0.0
    %5900 = vmatpush1.msra.mxu0 0.0
    %5901 = vmatprep.subr.mxu0 0.0
    %5902 = vmatpush1.msra.mxu0 0.0
    %5903 = vmatprep.subr.mxu0 0.0
    %5904 = vmatpush1.msra.mxu0 0.0
    %5905 = vmatprep.subr.mxu0 0.0
    %5906 = vmatpush1.msra.mxu0 0.0
    %5907 = vmatprep.subr.mxu0 0.0
    %5908 = vmatpush1.msra.mxu0 0.0
    %5909 = vmatprep.subr.mxu0 0.0
    %5910 = vmatpush1.msra.mxu0 0.0
    %5911 = vmatprep.subr.mxu0 0.0
    %5912 = vmatpush1.msra.mxu0 0.0
    %5913 = vmatprep.subr.mxu0 0.0
    %5914 = vmatpush1.msra.mxu0 0.0
    %5915 = vmatprep.subr.mxu0 0.0
    %5916 = vmatpush1.msra.mxu0 0.0
    %5917 = vmatprep.subr.mxu0 0.0
    %5918 = vmatpush1.msra.mxu0 0.0
    %5919 = vmatprep.subr.mxu0 0.0
    %5920 = vmatpush1.msra.mxu0 0.0
    %5921 = vmatprep.subr.mxu0 0.0
    %5922 = vmatpush1.msra.mxu0 0.0
    %5923 = vmatprep.mubr.f32.mxu0 0.0
    %5924 = vmatmul.mubr.f32.gmra.mrb[0].mxu0 %v5665
    %v5925 = vpop.f32.mrb[0].mxu0
    %v5926 = vadd.f32 0.0, %v5925
    %v5927 = vpop.f32.mrb[0].mxu0
    %5928 = vmatprep.mubr.f32.mxu0 0.0
    %5929 = vmatmul.mubr.f32.gmra.mrb[0].mxu0 %v5668
    %v5930 = vpop.f32.mrb[0].mxu0
    %v5931 = vadd.f32 0.0, %v5930
    %v5932 = vpop.f32.mrb[0].mxu0
    %5933 = vmatprep.mubr.f32.mxu0 0.0
    %5934 = vmatmul.mubr.f32.gmra.mrb[0].mxu0 %v5671
    %v5935 = vpop.f32.mrb[0].mxu0
    %v5936 = vadd.f32 0.0, %v5935
    %v5937 = vpop.f32.mrb[0].mxu0
    %5938 = vmatprep.mubr.f32.mxu0 0.0
    %5939 = vmatmul.mubr.f32.gmra.mrb[0].mxu0 %v5674
    %v5940 = vpop.f32.mrb[0].mxu0
    %v5941 = vadd.f32 0.0, %v5940
    %v5942 = vpop.f32.mrb[0].mxu0
    %5943 = vmatprep.mubr.f32.mxu0 0.0
    %5944 = vmatmul.mubr.f32.gmra.mrb[0].mxu0 %v5677
    %v5945 = vpop.f32.mrb[0].mxu0
    %v5946 = vadd.f32 0.0, %v5945
    %v5947 = vpop.f32.mrb[0].mxu0
    %5948 = vmatprep.mubr.f32.mxu0 0.0
    %5949 = vmatmul.mubr.f32.gmra.mrb[0].mxu0 %v5680
    %v5950 = vpop.f32.mrb[0].mxu0
    %v5951 = vadd.f32 0.0, %v5950
    %v5952 = vpop.f32.mrb[0].mxu0
    %5953 = vmatprep.mubr.f32.mxu0 0.0
    %5954 = vmatmul.mubr.f32.gmra.mrb[0].mxu0 %v5683
    %v5955 = vpop.f32.mrb[0].mxu0
    %v5956 = vadd.f32 0.0, %v5955
    %v5957 = vpop.f32.mrb[0].mxu0
    %5958 = vmatprep.mubr.f32.mxu0 0.0
    %5959 = vmatmul.mubr.f32.gmra.mrb[0].mxu0 %v5686
    %v5960 = vpop.f32.mrb[0].mxu0
    %v5961 = vadd.f32 0.0, %v5960
    %v5962 = vpop.f32.mrb[0].mxu0
    %5963 = vmatprep.mubr.f32.mxu0 0.0
    %5964 = vmatmul.mubr.f32.gmra.mrb[0].mxu0 %v5689
    %v5965 = vpop.f32.mrb[0].mxu0
    %v5966 = vadd.f32 0.0, %v5965
    %v5967 = vpop.f32.mrb[0].mxu0
    %5968 = vmatprep.mubr.f32.mxu0 0.0
    %5969 = vmatmul.mubr.f32.gmra.mrb[0].mxu0 %v5692
    %v5970 = vpop.f32.mrb[0].mxu0
    %v5971 = vadd.f32 0.0, %v5970
    %v5972 = vpop.f32.mrb[0].mxu0
    %5973 = vmatprep.mubr.f32.mxu0 0.0
    %5974 = vmatmul.mubr.f32.gmra.mrb[0].mxu0 %v5695
    %v5975 = vpop.f32.mrb[0].mxu0
    %v5976 = vadd.f32 0.0, %v5975
    %v5977 = vpop.f32.mrb[0].mxu0
    %5978 = vmatprep.mubr.f32.mxu0 0.0
    %5979 = vmatmul.mubr.f32.gmra.mrb[0].mxu0 %v5698
    %v5980 = vpop.f32.mrb[0].mxu0
    %v5981 = vadd.f32 0.0, %v5980
    %v5982 = vpop.f32.mrb[0].mxu0
    %5983 = vmatprep.mubr.f32.mxu0 0.0
    %5984 = vmatmul.mubr.f32.gmra.mrb[0].mxu0 %v5701
    %v5985 = vpop.f32.mrb[0].mxu0
    %v5986 = vadd.f32 0.0, %v5985
    %v5987 = vpop.f32.mrb[0].mxu0
    %5988 = vmatprep.mubr.f32.mxu0 0.0
    %5989 = vmatmul.mubr.f32.gmra.mrb[0].mxu0 %v5704
    %v5990 = vpop.f32.mrb[0].mxu0
    %v5991 = vadd.f32 0.0, %v5990
    %v5992 = vpop.f32.mrb[0].mxu0
    %5993 = vmatprep.mubr.f32.mxu0 0.0
    %5994 = vmatmul.mubr.f32.gmra.mrb[0].mxu0 %v5707
    %v5995 = vpop.f32.mrb[0].mxu0
    %v5996 = vadd.f32 0.0, %v5995
    %v5997 = vpop.f32.mrb[0].mxu0
    %5998 = vmatprep.mubr.f32.mxu0 0.0
    %5999 = vmatmul.mubr.f32.gmra.mrb[0].mxu0 %v5710
    %v6000 = vpop.f32.mrb[0].mxu0
    %v6001 = vadd.f32 0.0, %v6000
    %v6002 = vpop.f32.mrb[0].mxu0
    %6003 = vmatprep.mubr.f32.mxu0 0.0
    %6004 = vmatmul.mubr.f32.gmra.mrb[0].mxu0 %v5713
    %v6005 = vpop.f32.mrb[0].mxu0
    %v6006 = vadd.f32 0.0, %v6005
    %v6007 = vpop.f32.mrb[0].mxu0
    %6008 = vmatprep.mubr.f32.mxu0 0.0
    %6009 = vmatmul.mubr.f32.gmra.mrb[0].mxu0 %v5716
    %v6010 = vpop.f32.mrb[0].mxu0
    %v6011 = vadd.f32 0.0, %v6010
    %v6012 = vpop.f32.mrb[0].mxu0
    %6013 = vmatprep.mubr.f32.mxu0 0.0
    %6014 = vmatmul.mubr.f32.gmra.mrb[0].mxu0 %v5719
    %v6015 = vpop.f32.mrb[0].mxu0
    %v6016 = vadd.f32 0.0, %v6015
    %v6017 = vpop.f32.mrb[0].mxu0
    %6018 = vmatprep.mubr.f32.mxu0 0.0
    %6019 = vmatmul.mubr.f32.gmra.mrb[0].mxu0 %v5722
    %v6020 = vpop.f32.mrb[0].mxu0
    %v6021 = vadd.f32 0.0, %v6020
    %v6022 = vpop.f32.mrb[0].mxu0
    %6023 = vmatprep.mubr.f32.mxu0 0.0
    %6024 = vmatmul.mubr.f32.gmra.mrb[0].mxu0 %v5725
    %v6025 = vpop.f32.mrb[0].mxu0
    %v6026 = vadd.f32 0.0, %v6025
    %v6027 = vpop.f32.mrb[0].mxu0
    %6028 = vmatprep.mubr.f32.mxu0 0.0
    %6029 = vmatmul.mubr.f32.gmra.mrb[0].mxu0 %v5728
    %v6030 = vpop.f32.mrb[0].mxu0
    %v6031 = vadd.f32 0.0, %v6030
    %v6032 = vpop.f32.mrb[0].mxu0
    %6033 = vmatprep.mubr.f32.mxu0 0.0
    %6034 = vmatmul.mubr.f32.gmra.mrb[0].mxu0 %v5731
    %v6035 = vpop.f32.mrb[0].mxu0
    %v6036 = vadd.f32 0.0, %v6035
    %v6037 = vpop.f32.mrb[0].mxu0
    %6038 = vmatprep.mubr.f32.mxu0 0.0
    %6039 = vmatmul.mubr.f32.gmra.mrb[0].mxu0 %v5734
    %v6040 = vpop.f32.mrb[0].mxu0
    %v6041 = vadd.f32 0.0, %v6040
    %v6042 = vpop.f32.mrb[0].mxu0
    %6043 = vmatprep.mubr.f32.mxu0 0.0
    %6044 = vmatmul.mubr.f32.gmra.mrb[0].mxu0 %v5737
    %v6045 = vpop.f32.mrb[0].mxu0
    %v6046 = vadd.f32 0.0, %v6045
    %v6047 = vpop.f32.mrb[0].mxu0
    %6048 = vmatprep.mubr.f32.mxu0 0.0
    %6049 = vmatmul.mubr.f32.gmra.mrb[0].mxu0 %v5740
    %v6050 = vpop.f32.mrb[0].mxu0
    %v6051 = vadd.f32 0.0, %v6050
    %v6052 = vpop.f32.mrb[0].mxu0
    %6053 = vmatprep.mubr.f32.mxu0 0.0
    %6054 = vmatmul.mubr.f32.gmra.mrb[0].mxu0 %v5743
    %v6055 = vpop.f32.mrb[0].mxu0
    %v6056 = vadd.f32 0.0, %v6055
    %v6057 = vpop.f32.mrb[0].mxu0
    %6058 = vmatprep.mubr.f32.mxu0 0.0
    %6059 = vmatmul.mubr.f32.gmra.mrb[0].mxu0 %v5746
    %v6060 = vpop.f32.mrb[0].mxu0
    %v6061 = vadd.f32 0.0, %v6060
    %v6062 = vpop.f32.mrb[0].mxu0
    %6063 = vmatprep.mubr.f32.mxu0 0.0
    %6064 = vmatmul.mubr.f32.gmra.mrb[0].mxu0 %v5749
    %v6065 = vpop.f32.mrb[0].mxu0
    %v6066 = vadd.f32 0.0, %v6065
    %v6067 = vpop.f32.mrb[0].mxu0
    %6068 = vmatprep.mubr.f32.mxu0 0.0
    %6069 = vmatmul.mubr.f32.gmra.mrb[0].mxu0 %v5752
    %v6070 = vpop.f32.mrb[0].mxu0
    %v6071 = vadd.f32 0.0, %v6070
    %v6072 = vpop.f32.mrb[0].mxu0
    %6073 = vmatprep.mubr.f32.mxu0 0.0
    %6074 = vmatmul.mubr.f32.gmra.mrb[0].mxu0 %v5755
    %v6075 = vpop.f32.mrb[0].mxu0
    %v6076 = vadd.f32 0.0, %v6075
    %v6077 = vpop.f32.mrb[0].mxu0
    %6078 = vmatprep.mubr.f32.mxu0 0.0
    %6079 = vmatmul.mubr.f32.gmra.mrb[0].mxu0 %v5758
    %v6080 = vpop.f32.mrb[0].mxu0
    %v6081 = vadd.f32 0.0, %v6080
    %v6082 = vpop.f32.mrb[0].mxu0
    %6083 = vmatprep.mubr.f32.mxu0 0.0
    %6084 = vmatmul.mubr.f32.gmra.mrb[0].mxu0 %v5761
    %v6085 = vpop.f32.mrb[0].mxu0
    %v6086 = vadd.f32 0.0, %v6085
    %v6087 = vpop.f32.mrb[0].mxu0
    %6088 = vmatprep.mubr.f32.mxu0 0.0
    %6089 = vmatmul.mubr.f32.gmra.mrb[0].mxu0 %v5764
    %v6090 = vpop.f32.mrb[0].mxu0
    %v6091 = vadd.f32 0.0, %v6090
    %v6092 = vpop.f32.mrb[0].mxu0
    %6093 = vmatprep.mubr.f32.mxu0 0.0
    %6094 = vmatmul.mubr.f32.gmra.mrb[0].mxu0 %v5767
    %v6095 = vpop.f32.mrb[0].mxu0
    %v6096 = vadd.f32 0.0, %v6095
    %v6097 = vpop.f32.mrb[0].mxu0
    %6098 = vmatprep.mubr.f32.mxu0 0.0
    %6099 = vmatmul.mubr.f32.gmra.mrb[0].mxu0 %v5770
    %v6100 = vpop.f32.mrb[0].mxu0
    %v6101 = vadd.f32 0.0, %v6100
    %v6102 = vpop.f32.mrb[0].mxu0
    %6103 = vmatprep.mubr.f32.mxu0 0.0
    %6104 = vmatmul.mubr.f32.gmra.mrb[0].mxu0 %v5773
    %v6105 = vpop.f32.mrb[0].mxu0
    %v6106 = vadd.f32 0.0, %v6105
    %v6107 = vpop.f32.mrb[0].mxu0
    %6108 = vmatprep.mubr.f32.mxu0 0.0
    %6109 = vmatmul.mubr.f32.gmra.mrb[0].mxu0 %v5776
    %v6110 = vpop.f32.mrb[0].mxu0
    %v6111 = vadd.f32 0.0, %v6110
    %v6112 = vpop.f32.mrb[0].mxu0
    %6113 = vmatprep.mubr.f32.mxu0 0.0
    %6114 = vmatmul.mubr.f32.gmra.mrb[0].mxu0 %v5779
    %v6115 = vpop.f32.mrb[0].mxu0
    %v6116 = vadd.f32 0.0, %v6115
    %v6117 = vpop.f32.mrb[0].mxu0
    %6118 = vmatprep.mubr.f32.mxu0 0.0
    %6119 = vmatmul.mubr.f32.gmra.mrb[0].mxu0 %v5782
    %v6120 = vpop.f32.mrb[0].mxu0
    %v6121 = vadd.f32 0.0, %v6120
    %v6122 = vpop.f32.mrb[0].mxu0
    %6123 = vmatprep.mubr.f32.mxu0 0.0
    %6124 = vmatmul.mubr.f32.gmra.mrb[0].mxu0 %v5785
    %v6125 = vpop.f32.mrb[0].mxu0
    %v6126 = vadd.f32 0.0, %v6125
    %v6127 = vpop.f32.mrb[0].mxu0
    %6128 = vmatprep.mubr.f32.mxu0 0.0
    %6129 = vmatmul.mubr.f32.gmra.mrb[0].mxu0 %v5788
    %v6130 = vpop.f32.mrb[0].mxu0
    %v6131 = vadd.f32 0.0, %v6130
    %v6132 = vpop.f32.mrb[0].mxu0
    %6133 = vmatprep.mubr.f32.mxu0 0.0
    %6134 = vmatmul.mubr.f32.gmra.mrb[0].mxu0 %v5791
    %v6135 = vpop.f32.mrb[0].mxu0
    %v6136 = vadd.f32 0.0, %v6135
    %v6137 = vpop.f32.mrb[0].mxu0
    %6138 = vmatprep.mubr.f32.mxu0 0.0
    %6139 = vmatmul.mubr.f32.gmra.mrb[0].mxu0 %v5794
    %v6140 = vpop.f32.mrb[0].mxu0
    %v6141 = vadd.f32 0.0, %v6140
    %v6142 = vpop.f32.mrb[0].mxu0
    %6143 = vmatprep.mubr.f32.mxu0 0.0
    %6144 = vmatmul.mubr.f32.gmra.mrb[0].mxu0 %v5797
    %v6145 = vpop.f32.mrb[0].mxu0
    %v6146 = vadd.f32 0.0, %v6145
    %v6147 = vpop.f32.mrb[0].mxu0
    %6148 = vmatprep.mubr.f32.mxu0 0.0
    %6149 = vmatmul.mubr.f32.gmra.mrb[0].mxu0 %v5800
    %v6150 = vpop.f32.mrb[0].mxu0
    %v6151 = vadd.f32 0.0, %v6150
    %v6152 = vpop.f32.mrb[0].mxu0
    %6153 = vmatprep.mubr.f32.mxu0 0.0
    %6154 = vmatmul.mubr.f32.gmra.mrb[0].mxu0 %v5803
    %v6155 = vpop.f32.mrb[0].mxu0
    %v6156 = vadd.f32 0.0, %v6155
    %v6157 = vpop.f32.mrb[0].mxu0
    %6158 = vmatprep.mubr.f32.mxu0 0.0
    %6159 = vmatmul.mubr.f32.gmra.mrb[0].mxu0 %v5806
    %v6160 = vpop.f32.mrb[0].mxu0
    %v6161 = vadd.f32 0.0, %v6160
    %v6162 = vpop.f32.mrb[0].mxu0
    %6163 = vmatprep.mubr.f32.mxu0 0.0
    %6164 = vmatmul.mubr.f32.gmra.mrb[0].mxu0 %v5809
    %v6165 = vpop.f32.mrb[0].mxu0
    %v6166 = vadd.f32 0.0, %v6165
    %v6167 = vpop.f32.mrb[0].mxu0
    %6168 = vmatprep.mubr.f32.mxu0 0.0
    %6169 = vmatmul.mubr.f32.gmra.mrb[0].mxu0 %v5812
    %v6170 = vpop.f32.mrb[0].mxu0
    %v6171 = vadd.f32 0.0, %v6170
    %v6172 = vpop.f32.mrb[0].mxu0
    %6173 = vmatprep.mubr.f32.mxu0 0.0
    %6174 = vmatmul.mubr.f32.gmra.mrb[0].mxu0 %v5815
    %v6175 = vpop.f32.mrb[0].mxu0
    %v6176 = vadd.f32 0.0, %v6175
    %v6177 = vpop.f32.mrb[0].mxu0
    %6178 = vmatprep.mubr.f32.mxu0 0.0
    %6179 = vmatmul.mubr.f32.gmra.mrb[0].mxu0 %v5818
    %v6180 = vpop.f32.mrb[0].mxu0
    %v6181 = vadd.f32 0.0, %v6180
    %v6182 = vpop.f32.mrb[0].mxu0
    %6183 = vmatprep.mubr.f32.mxu0 0.0
    %6184 = vmatmul.mubr.f32.gmra.mrb[0].mxu0 %v5821
    %v6185 = vpop.f32.mrb[0].mxu0
    %v6186 = vadd.f32 0.0, %v6185
    %v6187 = vpop.f32.mrb[0].mxu0
    %6188 = vmatprep.mubr.f32.mxu0 0.0
    %6189 = vmatmul.mubr.f32.gmra.mrb[0].mxu0 %v5824
    %v6190 = vpop.f32.mrb[0].mxu0
    %v6191 = vadd.f32 0.0, %v6190
    %v6192 = vpop.f32.mrb[0].mxu0
    %6193 = vmatprep.mubr.f32.mxu0 0.0
    %6194 = vmatmul.mubr.f32.gmra.mrb[0].mxu0 %v5827
    %v6195 = vpop.f32.mrb[0].mxu0
    %v6196 = vadd.f32 0.0, %v6195
    %v6197 = vpop.f32.mrb[0].mxu0
    %6198 = vmatprep.mubr.f32.mxu0 0.0
    %6199 = vmatmul.mubr.f32.gmra.mrb[0].mxu0 %v5830
    %v6200 = vpop.f32.mrb[0].mxu0
    %v6201 = vadd.f32 0.0, %v6200
    %v6202 = vpop.f32.mrb[0].mxu0
    %6203 = vmatprep.mubr.f32.mxu0 0.0
    %6204 = vmatmul.mubr.f32.gmra.mrb[0].mxu0 %v5833
    %v6205 = vpop.f32.mrb[0].mxu0
    %v6206 = vadd.f32 0.0, %v6205
    %v6207 = vpop.f32.mrb[0].mxu0
    %6208 = vmatprep.mubr.f32.mxu0 0.0
    %6209 = vmatmul.mubr.f32.gmra.mrb[0].mxu0 %v5836
    %v6210 = vpop.f32.mrb[0].mxu0
    %v6211 = vadd.f32 0.0, %v6210
    %v6212 = vpop.f32.mrb[0].mxu0
    %6213 = vmatprep.mubr.f32.mxu0 0.0
    %6214 = vmatmul.mubr.f32.gmra.mrb[0].mxu0 %v5839
    %v6215 = vpop.f32.mrb[0].mxu0
    %v6216 = vadd.f32 0.0, %v6215
    %v6217 = vpop.f32.mrb[0].mxu0
    %6218 = vmatprep.mubr.f32.mxu0 0.0
    %6219 = vmatmul.mubr.f32.gmra.mrb[0].mxu0 %v5842
    %v6220 = vpop.f32.mrb[0].mxu0
    %v6221 = vadd.f32 0.0, %v6220
    %v6222 = vpop.f32.mrb[0].mxu0
    %6223 = vmatprep.mubr.f32.mxu0 0.0
    %6224 = vmatmul.mubr.f32.gmra.mrb[0].mxu0 %v5845
    %v6225 = vpop.f32.mrb[0].mxu0
    %v6226 = vadd.f32 0.0, %v6225
    %v6227 = vpop.f32.mrb[0].mxu0
    %6228 = vmatprep.mubr.f32.mxu0 0.0
    %6229 = vmatmul.mubr.f32.gmra.mrb[0].mxu0 %v5848
    %v6230 = vpop.f32.mrb[0].mxu0
    %v6231 = vadd.f32 0.0, %v6230
    %v6232 = vpop.f32.mrb[0].mxu0
    %6233 = vmatprep.mubr.f32.mxu0 0.0
    %6234 = vmatmul.mubr.f32.gmra.mrb[0].mxu0 %v5851
    %v6235 = vpop.f32.mrb[0].mxu0
    %v6236 = vadd.f32 0.0, %v6235
    %v6237 = vpop.f32.mrb[0].mxu0
    %6238 = vmatprep.mubr.f32.mxu0 0.0
    %6239 = vmatmul.mubr.f32.gmra.mrb[0].mxu0 %v5854
    %v6240 = vpop.f32.mrb[0].mxu0
    %v6241 = vadd.f32 0.0, %v6240
    %v6242 = vpop.f32.mrb[0].mxu0
    %6243 = vdwg.mxu0
    %v6244 = vadd.f32 %v5534, %v5926
    %v6245 = vadd.f32 %v5535, %v5931
    %v6246 = vadd.f32 %v5536, %v5936
    %v6247 = vadd.f32 %v5537, %v5941
    %v6248 = vadd.f32 %v5538, %v5946
    %v6249 = vadd.f32 %v5539, %v5951
    %v6250 = vadd.f32 %v5540, %v5956
    %v6251 = vadd.f32 %v5541, %v5961
    %v6252 = vadd.f32 %v5542, %v5966
    %v6253 = vadd.f32 %v5543, %v5971
    %v6254 = vadd.f32 %v5544, %v5976
    %v6255 = vadd.f32 %v5545, %v5981
    %v6256 = vadd.f32 %v5546, %v5986
    %v6257 = vadd.f32 %v5547, %v5991
    %v6258 = vadd.f32 %v5548, %v5996
    %v6259 = vadd.f32 %v5549, %v6001
    %v6260 = vadd.f32 %v5550, %v6006
    %v6261 = vadd.f32 %v5551, %v6011
    %v6262 = vadd.f32 %v5552, %v6016
    %v6263 = vadd.f32 %v5553, %v6021
    %v6264 = vadd.f32 %v5554, %v6026
    %v6265 = vadd.f32 %v5555, %v6031
    %v6266 = vadd.f32 %v5556, %v6036
    %v6267 = vadd.f32 %v5557, %v6041
    %v6268 = vadd.f32 %v5558, %v6046
    %v6269 = vadd.f32 %v5559, %v6051
    %v6270 = vadd.f32 %v5560, %v6056
    %v6271 = vadd.f32 %v5561, %v6061
    %v6272 = vadd.f32 %v5562, %v6066
    %v6273 = vadd.f32 %v5563, %v6071
    %v6274 = vadd.f32 %v5564, %v6076
    %v6275 = vadd.f32 %v5565, %v6081
    %v6276 = vadd.f32 %v5566, %v6086
    %v6277 = vadd.f32 %v5567, %v6091
    %v6278 = vadd.f32 %v5568, %v6096
    %v6279 = vadd.f32 %v5569, %v6101
    %v6280 = vadd.f32 %v5570, %v6106
    %v6281 = vadd.f32 %v5571, %v6111
    %v6282 = vadd.f32 %v5572, %v6116
    %v6283 = vadd.f32 %v5573, %v6121
    %v6284 = vadd.f32 %v5574, %v6126
    %v6285 = vadd.f32 %v5575, %v6131
    %v6286 = vadd.f32 %v5576, %v6136
    %v6287 = vadd.f32 %v5577, %v6141
    %v6288 = vadd.f32 %v5578, %v6146
    %v6289 = vadd.f32 %v5579, %v6151
    %v6290 = vadd.f32 %v5580, %v6156
    %v6291 = vadd.f32 %v5581, %v6161
    %v6292 = vadd.f32 %v5582, %v6166
    %v6293 = vadd.f32 %v5583, %v6171
    %v6294 = vadd.f32 %v5584, %v6176
    %v6295 = vadd.f32 %v5585, %v6181
    %v6296 = vadd.f32 %v5586, %v6186
    %v6297 = vadd.f32 %v5587, %v6191
    %v6298 = vadd.f32 %v5588, %v6196
    %v6299 = vadd.f32 %v5589, %v6201
    %v6300 = vadd.f32 %v5590, %v6206
    %v6301 = vadd.f32 %v5591, %v6211
    %v6302 = vadd.f32 %v5592, %v6216
    %v6303 = vadd.f32 %v5593, %v6221
    %v6304 = vadd.f32 %v5594, %v6226
    %v6305 = vadd.f32 %v5595, %v6231
    %v6306 = vadd.f32 %v5596, %v6236
    %v6307 = vadd.f32 %v5597, %v6241
    %v6308 = vld [vmem:[%s3] sm:$0x1]
    %v6310 = vlaneseq
    %v6311 = vshrl.u32 %v6310, 7
    %v6312 = vsub.s32 0, %v6311
    %v6313 = vrot.slane %v6308, %v6312
    %v6315 = vadd.f32 %v6244, %v6313
    %v6316 = vadd.f32 %v6245, %v6313
    %v6317 = vadd.f32 %v6246, %v6313
    %v6318 = vadd.f32 %v6247, %v6313
    %v6319 = vadd.f32 %v6248, %v6313
    %v6320 = vadd.f32 %v6249, %v6313
    %v6321 = vadd.f32 %v6250, %v6313
    %v6322 = vadd.f32 %v6251, %v6313
    %v6323 = vadd.f32 %v6252, %v6313
    %v6324 = vadd.f32 %v6253, %v6313
    %v6325 = vadd.f32 %v6254, %v6313
    %v6326 = vadd.f32 %v6255, %v6313
    %v6327 = vadd.f32 %v6256, %v6313
    %v6328 = vadd.f32 %v6257, %v6313
    %v6329 = vadd.f32 %v6258, %v6313
    %v6330 = vadd.f32 %v6259, %v6313
    %v6331 = vadd.f32 %v6260, %v6313
    %v6332 = vadd.f32 %v6261, %v6313
    %v6333 = vadd.f32 %v6262, %v6313
    %v6334 = vadd.f32 %v6263, %v6313
    %v6335 = vadd.f32 %v6264, %v6313
    %v6336 = vadd.f32 %v6265, %v6313
    %v6337 = vadd.f32 %v6266, %v6313
    %v6338 = vadd.f32 %v6267, %v6313
    %v6339 = vadd.f32 %v6268, %v6313
    %v6340 = vadd.f32 %v6269, %v6313
    %v6341 = vadd.f32 %v6270, %v6313
    %v6342 = vadd.f32 %v6271, %v6313
    %v6343 = vadd.f32 %v6272, %v6313
    %v6344 = vadd.f32 %v6273, %v6313
    %v6345 = vadd.f32 %v6274, %v6313
    %v6346 = vadd.f32 %v6275, %v6313
    %v6347 = vadd.f32 %v6276, %v6313
    %v6348 = vadd.f32 %v6277, %v6313
    %v6349 = vadd.f32 %v6278, %v6313
    %v6350 = vadd.f32 %v6279, %v6313
    %v6351 = vadd.f32 %v6280, %v6313
    %v6352 = vadd.f32 %v6281, %v6313
    %v6353 = vadd.f32 %v6282, %v6313
    %v6354 = vadd.f32 %v6283, %v6313
    %v6355 = vadd.f32 %v6284, %v6313
    %v6356 = vadd.f32 %v6285, %v6313
    %v6357 = vadd.f32 %v6286, %v6313
    %v6358 = vadd.f32 %v6287, %v6313
    %v6359 = vadd.f32 %v6288, %v6313
    %v6360 = vadd.f32 %v6289, %v6313
    %v6361 = vadd.f32 %v6290, %v6313
    %v6362 = vadd.f32 %v6291, %v6313
    %v6363 = vadd.f32 %v6292, %v6313
    %v6364 = vadd.f32 %v6293, %v6313
    %v6365 = vadd.f32 %v6294, %v6313
    %v6366 = vadd.f32 %v6295, %v6313
    %v6367 = vadd.f32 %v6296, %v6313
    %v6368 = vadd.f32 %v6297, %v6313
    %v6369 = vadd.f32 %v6298, %v6313
    %v6370 = vadd.f32 %v6299, %v6313
    %v6371 = vadd.f32 %v6300, %v6313
    %v6372 = vadd.f32 %v6301, %v6313
    %v6373 = vadd.f32 %v6302, %v6313
    %v6374 = vadd.f32 %v6303, %v6313
    %v6375 = vadd.f32 %v6304, %v6313
    %v6376 = vadd.f32 %v6305, %v6313
    %v6377 = vadd.f32 %v6306, %v6313
    %v6378 = vadd.f32 %v6307, %v6313
    %v6379 = vmax.f32 %v6315, 0.0
    %v6380 = vmax.f32 %v6316, 0.0
    %v6381 = vmax.f32 %v6317, 0.0
    %v6382 = vmax.f32 %v6318, 0.0
    %v6383 = vmax.f32 %v6319, 0.0
    %v6384 = vmax.f32 %v6320, 0.0
    %v6385 = vmax.f32 %v6321, 0.0
    %v6386 = vmax.f32 %v6322, 0.0
    %v6387 = vmax.f32 %v6323, 0.0
    %v6388 = vmax.f32 %v6324, 0.0
    %v6389 = vmax.f32 %v6325, 0.0
    %v6390 = vmax.f32 %v6326, 0.0
    %v6391 = vmax.f32 %v6327, 0.0
    %v6392 = vmax.f32 %v6328, 0.0
    %v6393 = vmax.f32 %v6329, 0.0
    %v6394 = vmax.f32 %v6330, 0.0
    %v6395 = vmax.f32 %v6331, 0.0
    %v6396 = vmax.f32 %v6332, 0.0
    %v6397 = vmax.f32 %v6333, 0.0
    %v6398 = vmax.f32 %v6334, 0.0
    %v6399 = vmax.f32 %v6335, 0.0
    %v6400 = vmax.f32 %v6336, 0.0
    %v6401 = vmax.f32 %v6337, 0.0
    %v6402 = vmax.f32 %v6338, 0.0
    %v6403 = vmax.f32 %v6339, 0.0
    %v6404 = vmax.f32 %v6340, 0.0
    %v6405 = vmax.f32 %v6341, 0.0
    %v6406 = vmax.f32 %v6342, 0.0
    %v6407 = vmax.f32 %v6343, 0.0
    %v6408 = vmax.f32 %v6344, 0.0
    %v6409 = vmax.f32 %v6345, 0.0
    %v6410 = vmax.f32 %v6346, 0.0
    %v6411 = vmax.f32 %v6347, 0.0
    %v6412 = vmax.f32 %v6348, 0.0
    %v6413 = vmax.f32 %v6349, 0.0
    %v6414 = vmax.f32 %v6350, 0.0
    %v6415 = vmax.f32 %v6351, 0.0
    %v6416 = vmax.f32 %v6352, 0.0
    %v6417 = vmax.f32 %v6353, 0.0
    %v6418 = vmax.f32 %v6354, 0.0
    %v6419 = vmax.f32 %v6355, 0.0
    %v6420 = vmax.f32 %v6356, 0.0
    %v6421 = vmax.f32 %v6357, 0.0
    %v6422 = vmax.f32 %v6358, 0.0
    %v6423 = vmax.f32 %v6359, 0.0
    %v6424 = vmax.f32 %v6360, 0.0
    %v6425 = vmax.f32 %v6361, 0.0
    %v6426 = vmax.f32 %v6362, 0.0
    %v6427 = vmax.f32 %v6363, 0.0
    %v6428 = vmax.f32 %v6364, 0.0
    %v6429 = vmax.f32 %v6365, 0.0
    %v6430 = vmax.f32 %v6366, 0.0
    %v6431 = vmax.f32 %v6367, 0.0
    %v6432 = vmax.f32 %v6368, 0.0
    %v6433 = vmax.f32 %v6369, 0.0
    %v6434 = vmax.f32 %v6370, 0.0
    %v6435 = vmax.f32 %v6371, 0.0
    %v6436 = vmax.f32 %v6372, 0.0
    %v6437 = vmax.f32 %v6373, 0.0
    %v6438 = vmax.f32 %v6374, 0.0
    %v6439 = vmax.f32 %v6375, 0.0
    %v6440 = vmax.f32 %v6376, 0.0
    %v6441 = vmax.f32 %v6377, 0.0
    %v6442 = vmax.f32 %v6378, 0.0
    %vm6443 = vcmask 261120
    %v6444 = vsel %vm6443, %v6379, 0.0
    %v6445 = vsel %vm6443, %v6380, 0.0
    %v6446 = vadd.f32 %v6444, %v6445
    %v6447 = vsel %vm6443, %v6381, 0.0
    %v6448 = vadd.f32 %v6446, %v6447
    %v6449 = vsel %vm6443, %v6382, 0.0
    %v6450 = vadd.f32 %v6448, %v6449
    %v6451 = vsel %vm6443, %v6383, 0.0
    %v6452 = vadd.f32 %v6450, %v6451
    %v6453 = vsel %vm6443, %v6384, 0.0
    %v6454 = vadd.f32 %v6452, %v6453
    %v6455 = vsel %vm6443, %v6385, 0.0
    %v6456 = vadd.f32 %v6454, %v6455
    %v6457 = vsel %vm6443, %v6386, 0.0
    %v6458 = vadd.f32 %v6456, %v6457
    %v6459 = vsel %vm6443, %v6387, 0.0
    %v6460 = vadd.f32 %v6458, %v6459
    %v6461 = vsel %vm6443, %v6388, 0.0
    %v6462 = vadd.f32 %v6460, %v6461
    %v6463 = vsel %vm6443, %v6389, 0.0
    %v6464 = vadd.f32 %v6462, %v6463
    %v6465 = vsel %vm6443, %v6390, 0.0
    %v6466 = vadd.f32 %v6464, %v6465
    %v6467 = vsel %vm6443, %v6391, 0.0
    %v6468 = vadd.f32 %v6466, %v6467
    %v6469 = vsel %vm6443, %v6392, 0.0
    %v6470 = vadd.f32 %v6468, %v6469
    %v6471 = vsel %vm6443, %v6393, 0.0
    %v6472 = vadd.f32 %v6470, %v6471
    %v6473 = vsel %vm6443, %v6394, 0.0
    %v6474 = vadd.f32 %v6472, %v6473
    %v6475 = vsel %vm6443, %v6395, 0.0
    %v6476 = vadd.f32 %v6474, %v6475
    %v6477 = vsel %vm6443, %v6396, 0.0
    %v6478 = vadd.f32 %v6476, %v6477
    %v6479 = vsel %vm6443, %v6397, 0.0
    %v6480 = vadd.f32 %v6478, %v6479
    %v6481 = vsel %vm6443, %v6398, 0.0
    %v6482 = vadd.f32 %v6480, %v6481
    %v6483 = vsel %vm6443, %v6399, 0.0
    %v6484 = vadd.f32 %v6482, %v6483
    %v6485 = vsel %vm6443, %v6400, 0.0
    %v6486 = vadd.f32 %v6484, %v6485
    %v6487 = vsel %vm6443, %v6401, 0.0
    %v6488 = vadd.f32 %v6486, %v6487
    %v6489 = vsel %vm6443, %v6402, 0.0
    %v6490 = vadd.f32 %v6488, %v6489
    %v6491 = vsel %vm6443, %v6403, 0.0
    %v6492 = vadd.f32 %v6490, %v6491
    %v6493 = vsel %vm6443, %v6404, 0.0
    %v6494 = vadd.f32 %v6492, %v6493
    %v6495 = vsel %vm6443, %v6405, 0.0
    %v6496 = vadd.f32 %v6494, %v6495
    %v6497 = vsel %vm6443, %v6406, 0.0
    %v6498 = vadd.f32 %v6496, %v6497
    %v6499 = vsel %vm6443, %v6407, 0.0
    %v6500 = vadd.f32 %v6498, %v6499
    %v6501 = vsel %vm6443, %v6408, 0.0
    %v6502 = vadd.f32 %v6500, %v6501
    %v6503 = vsel %vm6443, %v6409, 0.0
    %v6504 = vadd.f32 %v6502, %v6503
    %v6505 = vsel %vm6443, %v6410, 0.0
    %v6506 = vadd.f32 %v6504, %v6505
    %v6507 = vrot.slane %v6506, 4
    %v6508 = vadd.f32 %v6506, %v6507
    %v6509 = vrot.slane %v6508, 2
    %v6510 = vadd.f32 %v6508, %v6509
    %v6511 = vrot.slane %v6510, 1
    %v6512 = vadd.f32 %v6510, %v6511
    %v6513 = vsel %vm6443, %v6411, 0.0
    %v6514 = vsel %vm6443, %v6412, 0.0
    %v6515 = vadd.f32 %v6513, %v6514
    %v6516 = vsel %vm6443, %v6413, 0.0
    %v6517 = vadd.f32 %v6515, %v6516
    %v6518 = vsel %vm6443, %v6414, 0.0
    %v6519 = vadd.f32 %v6517, %v6518
    %v6520 = vsel %vm6443, %v6415, 0.0
    %v6521 = vadd.f32 %v6519, %v6520
    %v6522 = vsel %vm6443, %v6416, 0.0
    %v6523 = vadd.f32 %v6521, %v6522
    %v6524 = vsel %vm6443, %v6417, 0.0
    %v6525 = vadd.f32 %v6523, %v6524
    %v6526 = vsel %vm6443, %v6418, 0.0
    %v6527 = vadd.f32 %v6525, %v6526
    %v6528 = vsel %vm6443, %v6419, 0.0
    %v6529 = vadd.f32 %v6527, %v6528
    %v6530 = vsel %vm6443, %v6420, 0.0
    %v6531 = vadd.f32 %v6529, %v6530
    %v6532 = vsel %vm6443, %v6421, 0.0
    %v6533 = vadd.f32 %v6531, %v6532
    %v6534 = vsel %vm6443, %v6422, 0.0
    %v6535 = vadd.f32 %v6533, %v6534
    %v6536 = vsel %vm6443, %v6423, 0.0
    %v6537 = vadd.f32 %v6535, %v6536
    %v6538 = vsel %vm6443, %v6424, 0.0
    %v6539 = vadd.f32 %v6537, %v6538
    %v6540 = vsel %vm6443, %v6425, 0.0
    %v6541 = vadd.f32 %v6539, %v6540
    %v6542 = vsel %vm6443, %v6426, 0.0
    %v6543 = vadd.f32 %v6541, %v6542
    %v6544 = vsel %vm6443, %v6427, 0.0
    %v6545 = vadd.f32 %v6543, %v6544
    %v6546 = vsel %vm6443, %v6428, 0.0
    %v6547 = vadd.f32 %v6545, %v6546
    %v6548 = vsel %vm6443, %v6429, 0.0
    %v6549 = vadd.f32 %v6547, %v6548
    %v6550 = vsel %vm6443, %v6430, 0.0
    %v6551 = vadd.f32 %v6549, %v6550
    %v6552 = vsel %vm6443, %v6431, 0.0
    %v6553 = vadd.f32 %v6551, %v6552
    %v6554 = vsel %vm6443, %v6432, 0.0
    %v6555 = vadd.f32 %v6553, %v6554
    %v6556 = vsel %vm6443, %v6433, 0.0
    %v6557 = vadd.f32 %v6555, %v6556
    %v6558 = vsel %vm6443, %v6434, 0.0
    %v6559 = vadd.f32 %v6557, %v6558
    %v6560 = vsel %vm6443, %v6435, 0.0
    %v6561 = vadd.f32 %v6559, %v6560
    %v6562 = vsel %vm6443, %v6436, 0.0
    %v6563 = vadd.f32 %v6561, %v6562
    %v6564 = vsel %vm6443, %v6437, 0.0
    %v6565 = vadd.f32 %v6563, %v6564
    %v6566 = vsel %vm6443, %v6438, 0.0
    %v6567 = vadd.f32 %v6565, %v6566
    %v6568 = vsel %vm6443, %v6439, 0.0
    %v6569 = vadd.f32 %v6567, %v6568
    %v6570 = vsel %vm6443, %v6440, 0.0
    %v6571 = vadd.f32 %v6569, %v6570
    %v6572 = vsel %vm6443, %v6441, 0.0
    %v6573 = vadd.f32 %v6571, %v6572
    %v6574 = vsel %vm6443, %v6442, 0.0
    %v6575 = vadd.f32 %v6573, %v6574
    %v6576 = vrot.slane %v6575, 4
    %v6577 = vadd.f32 %v6575, %v6576
    %v6578 = vrot.slane %v6577, 2
    %v6579 = vadd.f32 %v6577, %v6578
    %v6580 = vrot.slane %v6579, 1
    %v6581 = vadd.f32 %v6579, %v6580
    %v6582 = vrcp.pop 256.0
    %v6583 = vmul.f32 %v6512, %v6582
    %v6584 = vmul.f32 %v6581, %v6582
    %s6585 = sld [smem:[#allocation3]]
    %p6586 = scmp.gt.s32.totalorder %s6585, 0
    %s6587 = scalar_select %p6586, %s6585, 0
    %p6588 = scmp.lt.s32.totalorder %s6587, 49
    %s6589 = scalar_select %p6588, %s6587, 49
    %s6590 = scalar_lea.vmem %s4, %s6589
    %v6591 = vld [vmem:[%s6590] sm:$0x1]
    %s6592 = sld [smem:[#allocation3 + $0x1]]
    %p6593 = scmp.gt.s32.totalorder %s6592, 0
    %s6594 = scalar_select %p6593, %s6592, 0
    %p6595 = scmp.lt.s32.totalorder %s6594, 49
    %s6596 = scalar_select %p6595, %s6594, 49
    %s6597 = scalar_lea.vmem %s4, %s6596
    %v6598 = vld [vmem:[%s6597] sm:$0x1]
    %s6599 = sld [smem:[#allocation3 + $0x2]]
    %p6600 = scmp.gt.s32.totalorder %s6599, 0
    %s6601 = scalar_select %p6600, %s6599, 0
    %p6602 = scmp.lt.s32.totalorder %s6601, 49
    %s6603 = scalar_select %p6602, %s6601, 49
    %s6604 = scalar_lea.vmem %s4, %s6603
    %v6605 = vld [vmem:[%s6604] sm:$0x1]
    %s6606 = sld [smem:[#allocation3 + $0x3]]
    %p6607 = scmp.gt.s32.totalorder %s6606, 0
    %s6608 = scalar_select %p6607, %s6606, 0
    %p6609 = scmp.lt.s32.totalorder %s6608, 49
    %s6610 = scalar_select %p6609, %s6608, 49
    %s6611 = scalar_lea.vmem %s4, %s6610
    %v6612 = vld [vmem:[%s6611] sm:$0x1]
    %s6613 = sld [smem:[#allocation3 + $0x4]]
    %p6614 = scmp.gt.s32.totalorder %s6613, 0
    %s6615 = scalar_select %p6614, %s6613, 0
    %p6616 = scmp.lt.s32.totalorder %s6615, 49
    %s6617 = scalar_select %p6616, %s6615, 49
    %s6618 = scalar_lea.vmem %s4, %s6617
    %v6619 = vld [vmem:[%s6618] sm:$0x1]
    %s6620 = sld [smem:[#allocation3 + $0x5]]
    %p6621 = scmp.gt.s32.totalorder %s6620, 0
    %s6622 = scalar_select %p6621, %s6620, 0
    %p6623 = scmp.lt.s32.totalorder %s6622, 49
    %s6624 = scalar_select %p6623, %s6622, 49
    %s6625 = scalar_lea.vmem %s4, %s6624
    %v6626 = vld [vmem:[%s6625] sm:$0x1]
    %s6627 = sld [smem:[#allocation3 + $0x6]]
    %p6628 = scmp.gt.s32.totalorder %s6627, 0
    %s6629 = scalar_select %p6628, %s6627, 0
    %p6630 = scmp.lt.s32.totalorder %s6629, 49
    %s6631 = scalar_select %p6630, %s6629, 49
    %s6632 = scalar_lea.vmem %s4, %s6631
    %v6633 = vld [vmem:[%s6632] sm:$0x1]
    %s6634 = sld [smem:[#allocation3 + $0x7]]
    %p6635 = scmp.gt.s32.totalorder %s6634, 0
    %s6636 = scalar_select %p6635, %s6634, 0
    %p6637 = scmp.lt.s32.totalorder %s6636, 49
    %s6638 = scalar_select %p6637, %s6636, 49
    %s6639 = scalar_lea.vmem %s4, %s6638
    %v6640 = vld [vmem:[%s6639] sm:$0x1]
    %s6641 = sld [smem:[#allocation3 + $0x80]]
    %p6642 = scmp.gt.s32.totalorder %s6641, 0
    %s6643 = scalar_select %p6642, %s6641, 0
    %p6644 = scmp.lt.s32.totalorder %s6643, 49
    %s6645 = scalar_select %p6644, %s6643, 49
    %s6646 = scalar_lea.vmem %s4, %s6645
    %v6647 = vld [vmem:[%s6646] sm:$0x1]
    %s6648 = sld [smem:[#allocation3 + $0x81]]
    %p6649 = scmp.gt.s32.totalorder %s6648, 0
    %s6650 = scalar_select %p6649, %s6648, 0
    %p6651 = scmp.lt.s32.totalorder %s6650, 49
    %s6652 = scalar_select %p6651, %s6650, 49
    %s6653 = scalar_lea.vmem %s4, %s6652
    %v6654 = vld [vmem:[%s6653] sm:$0x1]
    %s6655 = sld [smem:[#allocation3 + $0x82]]
    %p6656 = scmp.gt.s32.totalorder %s6655, 0
    %s6657 = scalar_select %p6656, %s6655, 0
    %p6658 = scmp.lt.s32.totalorder %s6657, 49
    %s6659 = scalar_select %p6658, %s6657, 49
    %s6660 = scalar_lea.vmem %s4, %s6659
    %v6661 = vld [vmem:[%s6660] sm:$0x1]
    %s6662 = sld [smem:[#allocation3 + $0x83]]
    %p6663 = scmp.gt.s32.totalorder %s6662, 0
    %s6664 = scalar_select %p6663, %s6662, 0
    %p6665 = scmp.lt.s32.totalorder %s6664, 49
    %s6666 = scalar_select %p6665, %s6664, 49
    %s6667 = scalar_lea.vmem %s4, %s6666
    %v6668 = vld [vmem:[%s6667] sm:$0x1]
    %s6669 = sld [smem:[#allocation3 + $0x84]]
    %p6670 = scmp.gt.s32.totalorder %s6669, 0
    %s6671 = scalar_select %p6670, %s6669, 0
    %p6672 = scmp.lt.s32.totalorder %s6671, 49
    %s6673 = scalar_select %p6672, %s6671, 49
    %s6674 = scalar_lea.vmem %s4, %s6673
    %v6675 = vld [vmem:[%s6674] sm:$0x1]
    %s6676 = sld [smem:[#allocation3 + $0x85]]
    %p6677 = scmp.gt.s32.totalorder %s6676, 0
    %s6678 = scalar_select %p6677, %s6676, 0
    %p6679 = scmp.lt.s32.totalorder %s6678, 49
    %s6680 = scalar_select %p6679, %s6678, 49
    %s6681 = scalar_lea.vmem %s4, %s6680
    %v6682 = vld [vmem:[%s6681] sm:$0x1]
    %s6683 = sld [smem:[#allocation3 + $0x86]]
    %p6684 = scmp.gt.s32.totalorder %s6683, 0
    %s6685 = scalar_select %p6684, %s6683, 0
    %p6686 = scmp.lt.s32.totalorder %s6685, 49
    %s6687 = scalar_select %p6686, %s6685, 49
    %s6688 = scalar_lea.vmem %s4, %s6687
    %v6689 = vld [vmem:[%s6688] sm:$0x1]
    %s6690 = sld [smem:[#allocation3 + $0x87]]
    %p6691 = scmp.gt.s32.totalorder %s6690, 0
    %s6692 = scalar_select %p6691, %s6690, 0
    %p6693 = scmp.lt.s32.totalorder %s6692, 49
    %s6694 = scalar_select %p6693, %s6692, 49
    %s6695 = scalar_lea.vmem %s4, %s6694
    %v6696 = vld [vmem:[%s6695] sm:$0x1]
    %v6698 = vrot.slane %v6598, 7
    %v6701 = vrot.slane %v6605, 6
    %v6704 = vrot.slane %v6612, 5
    %v6707 = vrot.slane %v6619, 4
    %v6710 = vrot.slane %v6626, 3
    %v6713 = vrot.slane %v6633, 2
    %v6716 = vrot.slane %v6640, 1
    %v6719 = vrot.slane %v6654, 7
    %v6722 = vrot.slane %v6661, 6
    %v6725 = vrot.slane %v6668, 5
    %v6728 = vrot.slane %v6675, 4
    %v6731 = vrot.slane %v6682, 3
    %v6734 = vrot.slane %v6689, 2
    %v6737 = vrot.slane %v6696, 1
    %vm6739 = vcmask 1040384
    %v6740 = vsel %vm6739, %v6591, %v6698
    %vm6741 = vcmask 1041408
    %v6742 = vsel %vm6741, %v6740, %v6701
    %vm6743 = vcmask 1042432
    %v6744 = vsel %vm6743, %v6742, %v6704
    %v6745 = vsel %vm367, %v6744, %v6707
    %vm6746 = vcmask 1044480
    %v6747 = vsel %vm6746, %v6745, %v6710
    %vm6748 = vcmask 1045504
    %v6749 = vsel %vm6748, %v6747, %v6713
    %vm6750 = vcmask 1046528
    %v6751 = vsel %vm6750, %v6749, %v6716
    %v6752 = vsel %vm6739, %v6647, %v6719
    %v6753 = vsel %vm6741, %v6752, %v6722
    %v6754 = vsel %vm6743, %v6753, %v6725
    %v6755 = vsel %vm367, %v6754, %v6728
    %v6756 = vsel %vm6746, %v6755, %v6731
    %v6757 = vsel %vm6748, %v6756, %v6734
    %v6758 = vsel %vm6750, %v6757, %v6737
    %vm6759 = vcmask 130048
    %v6760 = vsel %vm6759, %v6751, 0.0
    %v6761 = vrot.slane %v6760, 4
    %v6762 = vadd.f32 %v6760, %v6761
    %v6763 = vrot.slane %v6762, 2
    %v6764 = vadd.f32 %v6762, %v6763
    %v6765 = vrot.slane %v6764, 1
    %v6766 = vadd.f32 %v6764, %v6765
    %v6767 = vsel %vm6759, %v6758, 0.0
    %v6768 = vrot.slane %v6767, 4
    %v6769 = vadd.f32 %v6767, %v6768
    %v6770 = vrot.slane %v6769, 2
    %v6771 = vadd.f32 %v6769, %v6770
    %v6772 = vrot.slane %v6771, 1
    %v6773 = vadd.f32 %v6771, %v6772
    %v6774 = vrcp.pop 8.0
    %v6775 = vmul.f32 %v6766, %v6774
    %v6776 = vmul.f32 %v6773, %v6774
    %v6777 = vld [vmem:[%s5] sm:$0xff]
    %v6778 = vld [vmem:[%s5 + $0x8] sm:$0xff]
    %v6779 = vld [vmem:[%s6] sm:$0x1]
    %v6781 = vlaneseq
    %v6782 = vshrl.u32 %v6781, 7
    %v6783 = vsub.s32 0, %v6782
    %v6784 = vrot.slane %v6779, %v6783
    %vm6788 = vcmask 1041409
    %v6789 = vsel %vm6788, %v6776, %v6775
    %v6790 = vsel %vm6759, %v6789, 0
    %6792 = vmatprep.subr.mxu0 0.0
    %6793 = vmatpush1.msra.mxu0 %v6777
    %6794 = vmatprep.subr.mxu0 0.0
    %6795 = vmatpush1.msra.mxu0 %v6778
    %6796 = vmatprep.subr.mxu0 0.0
    %6797 = vmatpush1.msra.mxu0 0.0
    %6798 = vmatprep.subr.mxu0 0.0
    %6799 = vmatpush1.msra.mxu0 0.0
    %6800 = vmatprep.subr.mxu0 0.0
    %6801 = vmatpush1.msra.mxu0 0.0
    %6802 = vmatprep.subr.mxu0 0.0
    %6803 = vmatpush1.msra.mxu0 0.0
    %6804 = vmatprep.subr.mxu0 0.0
    %6805 = vmatpush1.msra.mxu0 0.0
    %6806 = vmatprep.subr.mxu0 0.0
    %6807 = vmatpush1.msra.mxu0 0.0
    %6808 = vmatprep.subr.mxu0 0.0
    %6809 = vmatpush1.msra.mxu0 0.0
    %6810 = vmatprep.subr.mxu0 0.0
    %6811 = vmatpush1.msra.mxu0 0.0
    %6812 = vmatprep.subr.mxu0 0.0
    %6813 = vmatpush1.msra.mxu0 0.0
    %6814 = vmatprep.subr.mxu0 0.0
    %6815 = vmatpush1.msra.mxu0 0.0
    %6816 = vmatprep.subr.mxu0 0.0
    %6817 = vmatpush1.msra.mxu0 0.0
    %6818 = vmatprep.subr.mxu0 0.0
    %6819 = vmatpush1.msra.mxu0 0.0
    %6820 = vmatprep.subr.mxu0 0.0
    %6821 = vmatpush1.msra.mxu0 0.0
    %6822 = vmatprep.subr.mxu0 0.0
    %6823 = vmatpush1.msra.mxu0 0.0
    %6824 = vmatprep.subr.mxu0 0.0
    %6825 = vmatpush1.msra.mxu0 0.0
    %6826 = vmatprep.subr.mxu0 0.0
    %6827 = vmatpush1.msra.mxu0 0.0
    %6828 = vmatprep.subr.mxu0 0.0
    %6829 = vmatpush1.msra.mxu0 0.0
    %6830 = vmatprep.subr.mxu0 0.0
    %6831 = vmatpush1.msra.mxu0 0.0
    %6832 = vmatprep.subr.mxu0 0.0
    %6833 = vmatpush1.msra.mxu0 0.0
    %6834 = vmatprep.subr.mxu0 0.0
    %6835 = vmatpush1.msra.mxu0 0.0
    %6836 = vmatprep.subr.mxu0 0.0
    %6837 = vmatpush1.msra.mxu0 0.0
    %6838 = vmatprep.subr.mxu0 0.0
    %6839 = vmatpush1.msra.mxu0 0.0
    %6840 = vmatprep.subr.mxu0 0.0
    %6841 = vmatpush1.msra.mxu0 0.0
    %6842 = vmatprep.subr.mxu0 0.0
    %6843 = vmatpush1.msra.mxu0 0.0
    %6844 = vmatprep.subr.mxu0 0.0
    %6845 = vmatpush1.msra.mxu0 0.0
    %6846 = vmatprep.subr.mxu0 0.0
    %6847 = vmatpush1.msra.mxu0 0.0
    %6848 = vmatprep.subr.mxu0 0.0
    %6849 = vmatpush1.msra.mxu0 0.0
    %6850 = vmatprep.subr.mxu0 0.0
    %6851 = vmatpush1.msra.mxu0 0.0
    %6852 = vmatprep.subr.mxu0 0.0
    %6853 = vmatpush1.msra.mxu0 0.0
    %6854 = vmatprep.subr.mxu0 0.0
    %6855 = vmatpush1.msra.mxu0 0.0
    %6856 = vmatprep.mubr.f32.mxu0 0.0
    %6857 = vmatmul.mubr.f32.gmra.mrb[0].mxu0 %v6790
    %v6858 = vpop.f32.mrb[0].mxu0
    %v6859 = vadd.f32 %v6784, %v6858
    %v6860 = vpop.f32.mrb[0].mxu0
    %6861 = vdwg.mxu0
    %v6862 = vtanh.pop %v6859
    %v6865 = vsel %vm6788, %v6584, %v6583
    %6868 = vrot.lane.b32.xlu0 %v6862, 32
    %v6869 = vpop.permute.xlu0 %6868
    %v6871 = vsel %vm6443, %v6865, %v6869
    %v6872 = vld [vmem:[%s7] sm:$0xff]
    %v6873 = vld [vmem:[%s7 + $0x8] sm:$0xff]
    %v6874 = vld [vmem:[%s7 + $0x10] sm:$0xff]
    %v6875 = vld [vmem:[%s7 + $0x18] sm:$0xff]
    %v6876 = vld [vmem:[%s7 + $0x20] sm:$0xff]
    %v6877 = vld [vmem:[%s7 + $0x28] sm:$0xff]
    %v6878 = vld [vmem:[%s7 + $0x30] sm:$0xff]
    %v6879 = vld [vmem:[%s7 + $0x38] sm:$0xff]
    %v6880 = vld [vmem:[%s8] sm:$0x1]
    %v6882 = vlaneseq
    %v6883 = vshrl.u32 %v6882, 7
    %v6884 = vsub.s32 0, %v6883
    %v6885 = vrot.slane %v6880, %v6884
    %vm6887 = vcmask 523264
    %v6889 = vsel %vm6887, %v6871, 0
    %6891 = vmatprep.subr.mxu0 0.0
    %6892 = vmatpush1.msra.mxu0 %v6872
    %6893 = vmatprep.subr.mxu0 0.0
    %6894 = vmatpush1.msra.mxu0 %v6873
    %6895 = vmatprep.subr.mxu0 0.0
    %6896 = vmatpush1.msra.mxu0 %v6874
    %6897 = vmatprep.subr.mxu0 0.0
    %6898 = vmatpush1.msra.mxu0 %v6875
    %6899 = vmatprep.subr.mxu0 0.0
    %6900 = vmatpush1.msra.mxu0 %v6876
    %6901 = vmatprep.subr.mxu0 0.0
    %6902 = vmatpush1.msra.mxu0 %v6877
    %6903 = vmatprep.subr.mxu0 0.0
    %6904 = vmatpush1.msra.mxu0 %v6878
    %6905 = vmatprep.subr.mxu0 0.0
    %6906 = vmatpush1.msra.mxu0 %v6879
    %6907 = vmatprep.subr.mxu0 0.0
    %6908 = vmatpush1.msra.mxu0 0.0
    %6909 = vmatprep.subr.mxu0 0.0
    %6910 = vmatpush1.msra.mxu0 0.0
    %6911 = vmatprep.subr.mxu0 0.0
    %6912 = vmatpush1.msra.mxu0 0.0
    %6913 = vmatprep.subr.mxu0 0.0
    %6914 = vmatpush1.msra.mxu0 0.0
    %6915 = vmatprep.subr.mxu0 0.0
    %6916 = vmatpush1.msra.mxu0 0.0
    %6917 = vmatprep.subr.mxu0 0.0
    %6918 = vmatpush1.msra.mxu0 0.0
    %6919 = vmatprep.subr.mxu0 0.0
    %6920 = vmatpush1.msra.mxu0 0.0
    %6921 = vmatprep.subr.mxu0 0.0
    %6922 = vmatpush1.msra.mxu0 0.0
    %6923 = vmatprep.subr.mxu0 0.0
    %6924 = vmatpush1.msra.mxu0 0.0
    %6925 = vmatprep.subr.mxu0 0.0
    %6926 = vmatpush1.msra.mxu0 0.0
    %6927 = vmatprep.subr.mxu0 0.0
    %6928 = vmatpush1.msra.mxu0 0.0
    %6929 = vmatprep.subr.mxu0 0.0
    %6930 = vmatpush1.msra.mxu0 0.0
    %6931 = vmatprep.subr.mxu0 0.0
    %6932 = vmatpush1.msra.mxu0 0.0
    %6933 = vmatprep.subr.mxu0 0.0
    %6934 = vmatpush1.msra.mxu0 0.0
    %6935 = vmatprep.subr.mxu0 0.0
    %6936 = vmatpush1.msra.mxu0 0.0
    %6937 = vmatprep.subr.mxu0 0.0
    %6938 = vmatpush1.msra.mxu0 0.0
    %6939 = vmatprep.subr.mxu0 0.0
    %6940 = vmatpush1.msra.mxu0 0.0
    %6941 = vmatprep.subr.mxu0 0.0
    %6942 = vmatpush1.msra.mxu0 0.0
    %6943 = vmatprep.subr.mxu0 0.0
    %6944 = vmatpush1.msra.mxu0 0.0
    %6945 = vmatprep.subr.mxu0 0.0
    %6946 = vmatpush1.msra.mxu0 0.0
    %6947 = vmatprep.subr.mxu0 0.0
    %6948 = vmatpush1.msra.mxu0 0.0
    %6949 = vmatprep.subr.mxu0 0.0
    %6950 = vmatpush1.msra.mxu0 0.0
    %6951 = vmatprep.subr.mxu0 0.0
    %6952 = vmatpush1.msra.mxu0 0.0
    %6953 = vmatprep.subr.mxu0 0.0
    %6954 = vmatpush1.msra.mxu0 0.0
    %6955 = vmatprep.mubr.f32.mxu0 0.0
    %6956 = vmatmul.mubr.f32.gmra.mrb[0].mxu0 %v6889
    %v6957 = vpop.f32.mrb[0].mxu0
    %v6958 = vadd.f32 %v6885, %v6957
    %v6959 = vpop.f32.mrb[0].mxu0
    %6960 = vdwg.mxu0
    %v6961 = vmax.f32 %v6958, 0.0
    %v6962 = vld [vmem:[%s9] sm:$0xff]
    %v6963 = vld [vmem:[%s9 + $0x8] sm:$0xff]
    %v6964 = vld [vmem:[%s9 + $0x10] sm:$0xff]
    %v6965 = vld [vmem:[%s9 + $0x18] sm:$0xff]
    %v6966 = vld [vmem:[%s9 + $0x20] sm:$0xff]
    %v6967 = vld [vmem:[%s9 + $0x28] sm:$0xff]
    %v6968 = vld [vmem:[%s9 + $0x30] sm:$0xff]
    %v6969 = vld [vmem:[%s9 + $0x38] sm:$0xff]
    %v6970 = vld [vmem:[%s10] sm:$0x1]
    %v6972 = vlaneseq
    %v6973 = vshrl.u32 %v6972, 7
    %v6974 = vsub.s32 0, %v6973
    %v6975 = vrot.slane %v6970, %v6974
    %v6978 = vsel %vm6887, %v6961, 0
    %6980 = vmatprep.subr.mxu0 0.0
    %6981 = vmatpush1.msra.mxu0 %v6962
    %6982 = vmatprep.subr.mxu0 0.0
    %6983 = vmatpush1.msra.mxu0 %v6963
    %6984 = vmatprep.subr.mxu0 0.0
    %6985 = vmatpush1.msra.mxu0 %v6964
    %6986 = vmatprep.subr.mxu0 0.0
    %6987 = vmatpush1.msra.mxu0 %v6965
    %6988 = vmatprep.subr.mxu0 0.0
    %6989 = vmatpush1.msra.mxu0 %v6966
    %6990 = vmatprep.subr.mxu0 0.0
    %6991 = vmatpush1.msra.mxu0 %v6967
    %6992 = vmatprep.subr.mxu0 0.0
    %6993 = vmatpush1.msra.mxu0 %v6968
    %6994 = vmatprep.subr.mxu0 0.0
    %6995 = vmatpush1.msra.mxu0 %v6969
    %6996 = vmatprep.subr.mxu0 0.0
    %6997 = vmatpush1.msra.mxu0 0.0
    %6998 = vmatprep.subr.mxu0 0.0
    %6999 = vmatpush1.msra.mxu0 0.0
    %7000 = vmatprep.subr.mxu0 0.0
    %7001 = vmatpush1.msra.mxu0 0.0
    %7002 = vmatprep.subr.mxu0 0.0
    %7003 = vmatpush1.msra.mxu0 0.0
    %7004 = vmatprep.subr.mxu0 0.0
    %7005 = vmatpush1.msra.mxu0 0.0
    %7006 = vmatprep.subr.mxu0 0.0
    %7007 = vmatpush1.msra.mxu0 0.0
    %7008 = vmatprep.subr.mxu0 0.0
    %7009 = vmatpush1.msra.mxu0 0.0
    %7010 = vmatprep.subr.mxu0 0.0
    %7011 = vmatpush1.msra.mxu0 0.0
    %7012 = vmatprep.subr.mxu0 0.0
    %7013 = vmatpush1.msra.mxu0 0.0
    %7014 = vmatprep.subr.mxu0 0.0
    %7015 = vmatpush1.msra.mxu0 0.0
    %7016 = vmatprep.subr.mxu0 0.0
    %7017 = vmatpush1.msra.mxu0 0.0
    %7018 = vmatprep.subr.mxu0 0.0
    %7019 = vmatpush1.msra.mxu0 0.0
    %7020 = vmatprep.subr.mxu0 0.0
    %7021 = vmatpush1.msra.mxu0 0.0
    %7022 = vmatprep.subr.mxu0 0.0
    %7023 = vmatpush1.msra.mxu0 0.0
    %7024 = vmatprep.subr.mxu0 0.0
    %7025 = vmatpush1.msra.mxu0 0.0
    %7026 = vmatprep.subr.mxu0 0.0
    %7027 = vmatpush1.msra.mxu0 0.0
    %7028 = vmatprep.subr.mxu0 0.0
    %7029 = vmatpush1.msra.mxu0 0.0
    %7030 = vmatprep.subr.mxu0 0.0
    %7031 = vmatpush1.msra.mxu0 0.0
    %7032 = vmatprep.subr.mxu0 0.0
    %7033 = vmatpush1.msra.mxu0 0.0
    %7034 = vmatprep.subr.mxu0 0.0
    %7035 = vmatpush1.msra.mxu0 0.0
    %7036 = vmatprep.subr.mxu0 0.0
    %7037 = vmatpush1.msra.mxu0 0.0
    %7038 = vmatprep.subr.mxu0 0.0
    %7039 = vmatpush1.msra.mxu0 0.0
    %7040 = vmatprep.subr.mxu0 0.0
    %7041 = vmatpush1.msra.mxu0 0.0
    %7042 = vmatprep.subr.mxu0 0.0
    %7043 = vmatpush1.msra.mxu0 0.0
    %7044 = vmatprep.mubr.f32.mxu0 0.0
    %7045 = vmatmul.mubr.f32.gmra.mrb[0].mxu0 %v6978
    %v7046 = vpop.f32.mrb[0].mxu0
    %v7047 = vadd.f32 %v6975, %v7046
    %v7048 = vpop.f32.mrb[0].mxu0
    %7049 = vdwg.mxu0
    %7050 = vst [vmem:[#allocation4] sm:$0x3] %v7047
    // Predicated region
    $region42: #{vqars1_forward.1} parent=1 // pred_check
      _
    $region43: #{vqars1_forward.1} parent=1 // pred_check_branch
      %7052 = sbr.rel (0) target = $region45
    $region44: #{vqars1_forward.1} parent=1 // pred_region
      %s7054 = ssub.s32 32, 32
      %7055 = vsyncadd [#allocation5], %s7054
      %s7057 = sshll.u32 [#allocation4], 4
      %s7058 = int_to_ptr.vmem [resolvable:$true] %s7057
      %7060 = dma.vmem_to_hbm [thread:$0]  %s7058, 32, %s11, [#allocation5]
    $region45: #{vqars1_forward.1} parent=1 // pred_fallthru
      _
    // Predicated region
    $region46: #{vqars1_forward.1} parent=1 // pred_check
      _
    $region47: #{vqars1_forward.1} parent=1 // pred_check_branch
      %7062 = sbr.rel (0) target = $region49
    $region48: #{vqars1_forward.1} parent=1 // pred_region
      %7063 = dma.done [#allocation5], 32
    $region49: #{vqars1_forward.1} parent=1 // pred_fallthru
      _
    %7064 = vsyncpa [#allocation5], 1

</llo_original>
